<compile_context>
chip_gen: v6e
topology: v6e:2x2x1
jax: 0.10.0
libtpu: 0.0.40
codegen_flags: <defaults>
</compile_context>

<pallas_src>
import jax
import jax.numpy as jnp
from jax.experimental import pallas as pl
from jax.experimental.pallas import tpu as pltpu


# Columns of the packed per-block, per-channel parameter matrix (C_out, 13).
_WF0, _WF1, _WF2, _BF, _FSC, _FSH, _WT0, _WT1, _WT2, _TSC, _TSH, _BID, _BT = range(13)


def _col(m, i):
    """(C, 1) column i of a packed (C, K) matrix."""
    return m[:, i:i + 1]


def _silu(y):
    return y * (1.0 / (1.0 + jnp.exp(-y)))


# --------------------------------------------------------------------------- #
# In-kernel building blocks.  Activations are per-sample, channel-major and
# spatially flattened: shape (C, H*W), h-major / w-minor flat index, so
#   * 1x1 convs are (Cout, Cin) @ (Cin, H*W) matmuls (MXU),
#   * depthwise frequency taps are whole-row (width-W) lane shifts,
#   * depthwise time taps are single-lane shifts (after the H average pool the
#     tensor is just (C, W)),
# and nothing leaves VMEM until the final (numClasses, 1) logits store.
# --------------------------------------------------------------------------- #
def _head_conv(x_row, w, b, h_in, w_in, kh=7, kw=7, sh=2, pad=2):
    """Conv2d(1, C0, 7, stride=(2,1), padding=2) + folded BN + ReLU.

    x_row: (1, (h_in+2p)*(w_in+2p)) zero-padded, flattened single-channel input.
    w: (C0, 49) folded weights;  b: (C0, 1) folded bias.
    """
    c0 = w.shape[0]
    hp, wp = h_in + 2 * pad, w_in + 2 * pad
    h_out = (hp - kh) // sh + 1
    w_out = wp - kw + 1
    # Stride-1 output length actually needed (rows 0, 2, ..., 2*(h_out-1)).
    length = sh * (h_out - 1) * wp + w_out
    acc = jnp.zeros((c0, length), jnp.float32) + b
    for i in range(kh):
        for j in range(kw):
            tap = x_row[:, i * wp + j: i * wp + j + length]         # (1, length)
            acc = acc + w[:, i * kw + j: i * kw + j + 1] * tap      # (C0, length)
    # Keep the stride-2 rows and drop the padded-width tail of each row.
    rows = [acc[:, sh * r * wp: sh * r * wp + w_out] for r in range(h_out)]
    out = jnp.maximum(jnp.concatenate(rows, axis=1), 0.0)
    return out, h_out, w_out


def _block_fwd(x, h, w, blk, prefs):
    """One BroadcastedResidualModule on a per-sample (C, h*w) activation."""
    cin, cout, sh = blk["cin"], blk["cout"], blk["sh"]
    pack = prefs[blk["pack"]][...]                                   # (cout, 13)
    wid = prefs[blk["wid"]][...]                                     # (cout, cout)
    original = x

    # Transition 1x1 conv (+ folded BN) + ReLU, only when channel count changes.
    if cin != cout:
        wt = prefs[blk["wt"]][...]                                   # (cout, cin)
        x = jnp.dot(wt, x, preferred_element_type=jnp.float32) + _col(pack, _BT)
        x = jnp.maximum(x, 0.0)

    # Depthwise frequency conv (3,1), padding (1,0), stride (sh,1), bias.
    zrow = jnp.zeros((cout, w), jnp.float32)
    t_prev = jnp.concatenate([zrow, x[:, : (h - 1) * w]], axis=1)    # row h-1
    t_next = jnp.concatenate([x[:, w:], zrow], axis=1)               # row h+1
    f = (_col(pack, _WF0) * t_prev + _col(pack, _WF1) * x
         + _col(pack, _WF2) * t_next + _col(pack, _BF))
    if sh > 1:
        h_out = (h - 1) // sh + 1
        f = jnp.concatenate(
            [f[:, sh * r * w: sh * r * w + w] for r in range(h_out)], axis=1)
    else:
        h_out = h
    f = _silu(f)                                                     # conv -> SiLU -> BN
    f = f * _col(pack, _FSC) + _col(pack, _FSH)
    freq_out = f                                                     # (cout, h_out*w)

    # Frequency average pool: mean over the h_out row-chunks -> (cout, w).
    p = f[:, :w]
    for r in range(1, h_out):
        p = p + f[:, r * w: (r + 1) * w]
    p = p * (1.0 / h_out)

    # Depthwise time conv (1,3), padding (0,1), no bias, then SiLU, then BN.
    zcol = jnp.zeros((cout, 1), jnp.float32)
    u_prev = jnp.concatenate([zcol, p[:, : w - 1]], axis=1)
    u_next = jnp.concatenate([p[:, 1:], zcol], axis=1)
    t = _col(pack, _WT0) * u_prev + _col(pack, _WT1) * p + _col(pack, _WT2) * u_next
    t = _silu(t)
    t = t * _col(pack, _TSC) + _col(pack, _TSH)

    # Identity 1x1 conv (bias, no BN / activation).
    z = jnp.dot(wid, t, preferred_element_type=jnp.float32) + _col(pack, _BID)

    # Broadcast the (cout, w) time path over H, add residual(s), ReLU.
    y = freq_out + jnp.concatenate([z] * h_out, axis=1)
    if cin == cout and sh == 1:
        y = y + original
    return jnp.maximum(y, 0.0), h_out


def _classifier_fwd(x, h, w, dw_w, pw_w, fin_w):
    """Depthwise 5x5 (pad (0,2)) -> 1x1 + ReLU -> global avg pool -> 1x1."""
    c4 = dw_w.shape[0]
    kh = kw = 5
    h_out = h - kh + 1
    zpad = jnp.zeros((c4, 2), jnp.float32)
    rows = []
    for r in range(h_out):
        acc = jnp.zeros((c4, w), jnp.float32)
        for i in range(kh):
            xi = x[:, (r + i) * w: (r + i + 1) * w]                  # (c4, w)
            xpi = jnp.concatenate([zpad, xi, zpad], axis=1)          # (c4, w+4)
            for j in range(kw):
                acc = acc + _col(dw_w, i * kw + j) * xpi[:, j: j + w]
        rows.append(acc)
    y = rows[0] if h_out == 1 else jnp.concatenate(rows, axis=1)     # (c4, h_out*w)
    y = jnp.maximum(jnp.dot(pw_w, y, preferred_element_type=jnp.float32), 0.0)
    g = jnp.mean(y, axis=1, keepdims=True)                           # (c5, 1)
    return jnp.dot(fin_w, g, preferred_element_type=jnp.float32)     # (ncls, 1)


def _make_kernel(plan):
    """Builds the fused whole-model kernel (one grid step == one sample)."""

    def kernel(*args):
        x_ref, out_ref = args[0], args[-1]
        prefs = args[1:-1]
        head = plan["head"]
        x_row = x_ref[0]                                             # (1, Hp*Wp)
        act, h, w = _head_conv(x_row, prefs[head["w"]][...],
                               prefs[head["b"]][...],
                               plan["h_in"], plan["w_in"])
        for blk in plan["blocks"]:
            act, h = _block_fwd(act, h, w, blk, prefs)
        cls = plan["cls"]
        logits = _classifier_fwd(act, h, w, prefs[cls["dw"]][...],
                                 prefs[cls["pw"]][...], prefs[cls["fin"]][...])
        out_ref[0] = logits                                          # (ncls, 1)

    return kernel


# --------------------------------------------------------------------------- #
# Host-side parameter folding / packing and the pallas_call wrapper.
# --------------------------------------------------------------------------- #
def _fold_bn(bn, w, b):
    """Fold inference-mode BN that directly follows a conv into (w, b)."""
    scale, shift = bn
    return w * scale[:, None], b * scale + shift


def _prepare(params, h_in, w_in):
    """Folds BN, packs per-channel vectors and builds the static kernel plan."""
    flat = []

    def add(a):
        flat.append(jnp.asarray(a, jnp.float32))
        return len(flat) - 1

    head = params["head"]
    wh, bh = _fold_bn(head["bn"], head["w"], head["b"])
    plan = {"h_in": h_in, "w_in": w_in,
            "head": {"w": add(wh), "b": add(bh[:, None])}}

    blocks = []
    for bp in params["blocks"]:
        cin, cout, stride = bp["in_dim"], bp["out_dim"], bp["stride"]
        assert stride[1] == 1, "time-axis stride != 1 not used by this model"
        fsc, fsh = bp["freq_bn"]
        tsc, tsh = bp["time_bn"]
        cols = [bp["freq_w"][:, 0], bp["freq_w"][:, 1], bp["freq_w"][:, 2],
                bp["freq_b"], fsc, fsh,
                bp["time_w"][:, 0], bp["time_w"][:, 1], bp["time_w"][:, 2],
                tsc, tsh, bp["id_b"]]
        entry = {"cin": cin, "cout": cout, "sh": stride[0]}
        if cin != cout:
            wt, bt = _fold_bn(bp["trans_bn"], bp["trans_w"], bp["trans_b"])
            cols.append(bt)
            entry["wt"] = add(wt)
        else:
            cols.append(jnp.zeros((cout,), jnp.float32))
        entry["pack"] = add(jnp.stack(cols, axis=1))                 # (cout, 13)
        entry["wid"] = add(bp["id_w"])
        blocks.append(entry)
    plan["blocks"] = blocks

    cls = params["classifier"]
    plan["cls"] = {"dw": add(cls["dw_w"]), "pw": add(cls["pw_w"]),
                   "fin": add(cls["final_w"])}
    return flat, plan


def keyword_detection_forward(params, x, num_classes=2):
    """x: (B, 1, F, T) NCHW like the PyTorch module; returns (B, num_classes)."""
    x = jnp.asarray(x, jnp.float32)
    b, cin, h_in, w_in = x.shape
    assert cin == 1
    flat, plan = _prepare(params, h_in, w_in)

    # Host side only re-lays-out the input: zero-pad by the head conv's padding
    # (2) and flatten each sample row-major.  All compute runs in the kernel.
    hp, wp = h_in + 4, w_in + 4
    xflat = jnp.pad(x[:, 0], ((0, 0), (2, 2), (2, 2))).reshape(b, 1, hp * wp)

    out = pl.pallas_call(
        _make_kernel(plan),
        out_shape=jax.ShapeDtypeStruct((b, num_classes, 1), jnp.float32),
        grid=(b,),
        in_specs=[pl.BlockSpec((1, 1, hp * wp), lambda i: (i, 0, 0))]
        + [pl.BlockSpec(a.shape, lambda i: (0, 0)) for a in flat],
        out_specs=pl.BlockSpec((1, num_classes, 1), lambda i: (i, 0, 0)),
        compiler_params=pltpu.CompilerParams(dimension_semantics=("parallel",)),
    )(xflat, *flat)
    return out.reshape(b, num_classes)


# --------------------------------------------------------------------------- #
# Deterministic parameter initialization (inference-mode BN running stats).
# --------------------------------------------------------------------------- #
def _bn_params(key, c, eps=1e-5):
    k1, k2 = jax.random.split(key)
    gamma = 1.0 + 0.1 * jax.random.normal(k1, (c,), jnp.float32)
    beta = 0.1 * jax.random.normal(k2, (c,), jnp.float32)
    running_mean = jnp.zeros((c,), jnp.float32)
    running_var = jnp.ones((c,), jnp.float32)
    scale = gamma / jnp.sqrt(running_var + eps)
    shift = beta - running_mean * scale
    return scale, shift


def init_block_params(key, in_dim, out_dim, stride):
    keys = jax.random.split(key, 10)
    p = {"in_dim": in_dim, "out_dim": out_dim, "stride": stride}
    if in_dim != out_dim:
        p["trans_w"] = 0.1 * jax.random.normal(keys[0], (out_dim, in_dim), jnp.float32)
        p["trans_b"] = 0.1 * jax.random.normal(keys[1], (out_dim,), jnp.float32)
        p["trans_bn"] = _bn_params(keys[2], out_dim)
    p["freq_w"] = 0.1 * jax.random.normal(keys[3], (out_dim, 3), jnp.float32)
    p["freq_b"] = 0.1 * jax.random.normal(keys[4], (out_dim,), jnp.float32)
    p["freq_bn"] = _bn_params(keys[5], out_dim)
    p["time_w"] = 0.1 * jax.random.normal(keys[6], (out_dim, 3), jnp.float32)
    p["time_bn"] = _bn_params(keys[7], out_dim)
    p["id_w"] = 0.1 * jax.random.normal(keys[8], (out_dim, out_dim), jnp.float32)
    p["id_b"] = 0.1 * jax.random.normal(keys[9], (out_dim,), jnp.float32)
    return p


def init_model_params(key, model_config, num_classes=2):
    num_layers = model_config["numLayers"]
    channels = model_config["channels"]
    use_stride = set(model_config["useStride"])
    channel_size = [channels * 2, channels, int(channels * 1.5),
                    channels * 2, int(channels * 2.5), channels * 4]
    assert len(channel_size) - 2 == len(num_layers)

    keys = jax.random.split(key, 64)
    ki = iter(range(64))
    params = {"channel_size": channel_size}
    params["head"] = {
        "w": 0.1 * jax.random.normal(keys[next(ki)], (channel_size[0], 49), jnp.float32),
        "b": 0.1 * jax.random.normal(keys[next(ki)], (channel_size[0],), jnp.float32),
        "bn": _bn_params(keys[next(ki)], channel_size[0]),
    }
    blocks = []
    for idx, layer_count in enumerate(num_layers):
        stride = (2, 1) if idx in use_stride else (1, 1)
        blocks.append(init_block_params(keys[next(ki)], channel_size[idx],
                                        channel_size[idx + 1], stride))
        for _ in range(layer_count - 1):
            blocks.append(init_block_params(keys[next(ki)], channel_size[idx + 1],
                                            channel_size[idx + 1], (1, 1)))
    params["blocks"] = blocks
    params["classifier"] = {
        "dw_w": 0.1 * jax.random.normal(keys[next(ki)], (channel_size[-2], 25), jnp.float32),
        "pw_w": 0.1 * jax.random.normal(keys[next(ki)],
                                        (channel_size[-1], channel_size[-2]), jnp.float32),
        "final_w": 0.1 * jax.random.normal(keys[next(ki)],
                                           (num_classes, channel_size[-1]), jnp.float32),
    }
    return params


# --------------------------------------------------------------------------- #
if __name__ == "__main__":
    key = jax.random.PRNGKey(0)
    kp, kx = jax.random.split(key)

    model_config = {"numLayers": [1, 2, 1, 1], "channels": 8, "useStride": [0, 2]}
    num_classes = 2
    params = init_model_params(kp, model_config, num_classes=num_classes)

    # Input: (B, 1, F=40 mel bins, T=8 frames), NCHW like the PyTorch module.
    x = jax.random.normal(kx, (2, 1, 40, 8), jnp.float32)

    fwd = jax.jit(lambda inp: keyword_detection_forward(params, inp,
                                                        num_classes=num_classes))
    out = jax.block_until_ready(fwd(x))
    assert out.shape == (2, num_classes), out.shape
    assert bool(jnp.all(jnp.isfinite(out)))
    print("KERNEL_OK")
</pallas_src>

<mosaic_0001>
module attributes {stable_mosaic.version = 11 : i64} {
  func.func @kernel(%arg0: i32, %arg1: memref<1x1x528xf32, #tpu.memory_space<vmem>>, %arg2: memref<16x49xf32, #tpu.memory_space<vmem>>, %arg3: memref<16x1xf32, #tpu.memory_space<vmem>>, %arg4: memref<8x16xf32, #tpu.memory_space<vmem>>, %arg5: memref<8x13xf32, #tpu.memory_space<vmem>>, %arg6: memref<8x8xf32, #tpu.memory_space<vmem>>, %arg7: memref<12x8xf32, #tpu.memory_space<vmem>>, %arg8: memref<12x13xf32, #tpu.memory_space<vmem>>, %arg9: memref<12x12xf32, #tpu.memory_space<vmem>>, %arg10: memref<12x13xf32, #tpu.memory_space<vmem>>, %arg11: memref<12x12xf32, #tpu.memory_space<vmem>>, %arg12: memref<16x12xf32, #tpu.memory_space<vmem>>, %arg13: memref<16x13xf32, #tpu.memory_space<vmem>>, %arg14: memref<16x16xf32, #tpu.memory_space<vmem>>, %arg15: memref<20x16xf32, #tpu.memory_space<vmem>>, %arg16: memref<20x13xf32, #tpu.memory_space<vmem>>, %arg17: memref<20x20xf32, #tpu.memory_space<vmem>>, %arg18: memref<20x25xf32, #tpu.memory_space<vmem>>, %arg19: memref<32x20xf32, #tpu.memory_space<vmem>>, %arg20: memref<2x32xf32, #tpu.memory_space<vmem>>, %arg21: memref<1x2x1xf32, #tpu.memory_space<vmem>>) attributes {dimension_semantics = [#tpu.dimension_semantics<parallel>], iteration_bounds = array<i64: 2>, scalar_prefetch = 0 : i64, scratch_operands = 0 : i64, tpu.core_type = #tpu.core_type<tc>, window_params = [{transform_indices = @transform_0, window_bounds = array<i64: 1, 1, 528>}, {pipeline_mode = #tpu.pipeline_mode<synchronous>, transform_indices = @transform_1, window_bounds = array<i64: 16, 49>}, {pipeline_mode = #tpu.pipeline_mode<synchronous>, transform_indices = @transform_2, window_bounds = array<i64: 16, 1>}, {pipeline_mode = #tpu.pipeline_mode<synchronous>, transform_indices = @transform_3, window_bounds = array<i64: 8, 16>}, {pipeline_mode = #tpu.pipeline_mode<synchronous>, transform_indices = @transform_4, window_bounds = array<i64: 8, 13>}, {pipeline_mode = #tpu.pipeline_mode<synchronous>, transform_indices = @transform_5, window_bounds = array<i64: 8, 8>}, {pipeline_mode = #tpu.pipeline_mode<synchronous>, transform_indices = @transform_6, window_bounds = array<i64: 12, 8>}, {pipeline_mode = #tpu.pipeline_mode<synchronous>, transform_indices = @transform_7, window_bounds = array<i64: 12, 13>}, {pipeline_mode = #tpu.pipeline_mode<synchronous>, transform_indices = @transform_8, window_bounds = array<i64: 12, 12>}, {pipeline_mode = #tpu.pipeline_mode<synchronous>, transform_indices = @transform_9, window_bounds = array<i64: 12, 13>}, {pipeline_mode = #tpu.pipeline_mode<synchronous>, transform_indices = @transform_10, window_bounds = array<i64: 12, 12>}, {pipeline_mode = #tpu.pipeline_mode<synchronous>, transform_indices = @transform_11, window_bounds = array<i64: 16, 12>}, {pipeline_mode = #tpu.pipeline_mode<synchronous>, transform_indices = @transform_12, window_bounds = array<i64: 16, 13>}, {pipeline_mode = #tpu.pipeline_mode<synchronous>, transform_indices = @transform_13, window_bounds = array<i64: 16, 16>}, {pipeline_mode = #tpu.pipeline_mode<synchronous>, transform_indices = @transform_14, window_bounds = array<i64: 20, 16>}, {pipeline_mode = #tpu.pipeline_mode<synchronous>, transform_indices = @transform_15, window_bounds = array<i64: 20, 13>}, {pipeline_mode = #tpu.pipeline_mode<synchronous>, transform_indices = @transform_16, window_bounds = array<i64: 20, 20>}, {pipeline_mode = #tpu.pipeline_mode<synchronous>, transform_indices = @transform_17, window_bounds = array<i64: 20, 25>}, {pipeline_mode = #tpu.pipeline_mode<synchronous>, transform_indices = @transform_18, window_bounds = array<i64: 32, 20>}, {pipeline_mode = #tpu.pipeline_mode<synchronous>, transform_indices = @transform_19, window_bounds = array<i64: 2, 32>}, {transform_indices = @transform_20, window_bounds = array<i64: 1, 2, 1>}]} {
    %c0 = arith.constant 0 : index
    %c0_0 = arith.constant 0 : index
    %c0_1 = arith.constant 0 : index
    %0 = vector.load %arg1[%c0, %c0_0, %c0_1] : memref<1x1x528xf32, #tpu.memory_space<vmem>>, vector<1x1x528xf32>
    %1 = vector.shape_cast %0 : vector<1x1x528xf32> to vector<1x528xf32>
    %c0_2 = arith.constant 0 : index
    %c0_3 = arith.constant 0 : index
    %2 = vector.load %arg2[%c0_2, %c0_3] : memref<16x49xf32, #tpu.memory_space<vmem>>, vector<16x49xf32>
    %c0_4 = arith.constant 0 : index
    %c0_5 = arith.constant 0 : index
    %3 = vector.load %arg3[%c0_4, %c0_5] : memref<16x1xf32, #tpu.memory_space<vmem>>, vector<16x1xf32>
    %cst = arith.constant 0.000000e+00 : f32
    %4 = vector.broadcast %cst : f32 to vector<16x438xf32>
    %5 = vector.broadcast %3 : vector<16x1xf32> to vector<16x438xf32>
    %6 = arith.addf %4, %5 : vector<16x438xf32>
    %7 = vector.extract_strided_slice %1 {offsets = [0, 0], sizes = [1, 438], strides = [1, 1]} : vector<1x528xf32> to vector<1x438xf32>
    %8 = vector.extract_strided_slice %2 {offsets = [0, 0], sizes = [16, 1], strides = [1, 1]} : vector<16x49xf32> to vector<16x1xf32>
    %9 = vector.broadcast %8 : vector<16x1xf32> to vector<16x438xf32>
    %10 = vector.broadcast %7 : vector<1x438xf32> to vector<16x438xf32>
    %11 = arith.mulf %9, %10 : vector<16x438xf32>
    %12 = arith.addf %6, %11 : vector<16x438xf32>
    %13 = vector.extract_strided_slice %1 {offsets = [0, 1], sizes = [1, 438], strides = [1, 1]} : vector<1x528xf32> to vector<1x438xf32>
    %14 = vector.extract_strided_slice %2 {offsets = [0, 1], sizes = [16, 1], strides = [1, 1]} : vector<16x49xf32> to vector<16x1xf32>
    %15 = vector.broadcast %14 : vector<16x1xf32> to vector<16x438xf32>
    %16 = vector.broadcast %13 : vector<1x438xf32> to vector<16x438xf32>
    %17 = arith.mulf %15, %16 : vector<16x438xf32>
    %18 = arith.addf %12, %17 : vector<16x438xf32>
    %19 = vector.extract_strided_slice %1 {offsets = [0, 2], sizes = [1, 438], strides = [1, 1]} : vector<1x528xf32> to vector<1x438xf32>
    %20 = vector.extract_strided_slice %2 {offsets = [0, 2], sizes = [16, 1], strides = [1, 1]} : vector<16x49xf32> to vector<16x1xf32>
    %21 = vector.broadcast %20 : vector<16x1xf32> to vector<16x438xf32>
    %22 = vector.broadcast %19 : vector<1x438xf32> to vector<16x438xf32>
    %23 = arith.mulf %21, %22 : vector<16x438xf32>
    %24 = arith.addf %18, %23 : vector<16x438xf32>
    %25 = vector.extract_strided_slice %1 {offsets = [0, 3], sizes = [1, 438], strides = [1, 1]} : vector<1x528xf32> to vector<1x438xf32>
    %26 = vector.extract_strided_slice %2 {offsets = [0, 3], sizes = [16, 1], strides = [1, 1]} : vector<16x49xf32> to vector<16x1xf32>
    %27 = vector.broadcast %26 : vector<16x1xf32> to vector<16x438xf32>
    %28 = vector.broadcast %25 : vector<1x438xf32> to vector<16x438xf32>
    %29 = arith.mulf %27, %28 : vector<16x438xf32>
    %30 = arith.addf %24, %29 : vector<16x438xf32>
    %31 = vector.extract_strided_slice %1 {offsets = [0, 4], sizes = [1, 438], strides = [1, 1]} : vector<1x528xf32> to vector<1x438xf32>
    %32 = vector.extract_strided_slice %2 {offsets = [0, 4], sizes = [16, 1], strides = [1, 1]} : vector<16x49xf32> to vector<16x1xf32>
    %33 = vector.broadcast %32 : vector<16x1xf32> to vector<16x438xf32>
    %34 = vector.broadcast %31 : vector<1x438xf32> to vector<16x438xf32>
    %35 = arith.mulf %33, %34 : vector<16x438xf32>
    %36 = arith.addf %30, %35 : vector<16x438xf32>
    %37 = vector.extract_strided_slice %1 {offsets = [0, 5], sizes = [1, 438], strides = [1, 1]} : vector<1x528xf32> to vector<1x438xf32>
    %38 = vector.extract_strided_slice %2 {offsets = [0, 5], sizes = [16, 1], strides = [1, 1]} : vector<16x49xf32> to vector<16x1xf32>
    %39 = vector.broadcast %38 : vector<16x1xf32> to vector<16x438xf32>
    %40 = vector.broadcast %37 : vector<1x438xf32> to vector<16x438xf32>
    %41 = arith.mulf %39, %40 : vector<16x438xf32>
    %42 = arith.addf %36, %41 : vector<16x438xf32>
    %43 = vector.extract_strided_slice %1 {offsets = [0, 6], sizes = [1, 438], strides = [1, 1]} : vector<1x528xf32> to vector<1x438xf32>
    %44 = vector.extract_strided_slice %2 {offsets = [0, 6], sizes = [16, 1], strides = [1, 1]} : vector<16x49xf32> to vector<16x1xf32>
    %45 = vector.broadcast %44 : vector<16x1xf32> to vector<16x438xf32>
    %46 = vector.broadcast %43 : vector<1x438xf32> to vector<16x438xf32>
    %47 = arith.mulf %45, %46 : vector<16x438xf32>
    %48 = arith.addf %42, %47 : vector<16x438xf32>
    %49 = vector.extract_strided_slice %1 {offsets = [0, 12], sizes = [1, 438], strides = [1, 1]} : vector<1x528xf32> to vector<1x438xf32>
    %50 = vector.extract_strided_slice %2 {offsets = [0, 7], sizes = [16, 1], strides = [1, 1]} : vector<16x49xf32> to vector<16x1xf32>
    %51 = vector.broadcast %50 : vector<16x1xf32> to vector<16x438xf32>
    %52 = vector.broadcast %49 : vector<1x438xf32> to vector<16x438xf32>
    %53 = arith.mulf %51, %52 : vector<16x438xf32>
    %54 = arith.addf %48, %53 : vector<16x438xf32>
    %55 = vector.extract_strided_slice %1 {offsets = [0, 13], sizes = [1, 438], strides = [1, 1]} : vector<1x528xf32> to vector<1x438xf32>
    %56 = vector.extract_strided_slice %2 {offsets = [0, 8], sizes = [16, 1], strides = [1, 1]} : vector<16x49xf32> to vector<16x1xf32>
    %57 = vector.broadcast %56 : vector<16x1xf32> to vector<16x438xf32>
    %58 = vector.broadcast %55 : vector<1x438xf32> to vector<16x438xf32>
    %59 = arith.mulf %57, %58 : vector<16x438xf32>
    %60 = arith.addf %54, %59 : vector<16x438xf32>
    %61 = vector.extract_strided_slice %1 {offsets = [0, 14], sizes = [1, 438], strides = [1, 1]} : vector<1x528xf32> to vector<1x438xf32>
    %62 = vector.extract_strided_slice %2 {offsets = [0, 9], sizes = [16, 1], strides = [1, 1]} : vector<16x49xf32> to vector<16x1xf32>
    %63 = vector.broadcast %62 : vector<16x1xf32> to vector<16x438xf32>
    %64 = vector.broadcast %61 : vector<1x438xf32> to vector<16x438xf32>
    %65 = arith.mulf %63, %64 : vector<16x438xf32>
    %66 = arith.addf %60, %65 : vector<16x438xf32>
    %67 = vector.extract_strided_slice %1 {offsets = [0, 15], sizes = [1, 438], strides = [1, 1]} : vector<1x528xf32> to vector<1x438xf32>
    %68 = vector.extract_strided_slice %2 {offsets = [0, 10], sizes = [16, 1], strides = [1, 1]} : vector<16x49xf32> to vector<16x1xf32>
    %69 = vector.broadcast %68 : vector<16x1xf32> to vector<16x438xf32>
    %70 = vector.broadcast %67 : vector<1x438xf32> to vector<16x438xf32>
    %71 = arith.mulf %69, %70 : vector<16x438xf32>
    %72 = arith.addf %66, %71 : vector<16x438xf32>
    %73 = vector.extract_strided_slice %1 {offsets = [0, 16], sizes = [1, 438], strides = [1, 1]} : vector<1x528xf32> to vector<1x438xf32>
    %74 = vector.extract_strided_slice %2 {offsets = [0, 11], sizes = [16, 1], strides = [1, 1]} : vector<16x49xf32> to vector<16x1xf32>
    %75 = vector.broadcast %74 : vector<16x1xf32> to vector<16x438xf32>
    %76 = vector.broadcast %73 : vector<1x438xf32> to vector<16x438xf32>
    %77 = arith.mulf %75, %76 : vector<16x438xf32>
    %78 = arith.addf %72, %77 : vector<16x438xf32>
    %79 = vector.extract_strided_slice %1 {offsets = [0, 17], sizes = [1, 438], strides = [1, 1]} : vector<1x528xf32> to vector<1x438xf32>
    %80 = vector.extract_strided_slice %2 {offsets = [0, 12], sizes = [16, 1], strides = [1, 1]} : vector<16x49xf32> to vector<16x1xf32>
    %81 = vector.broadcast %80 : vector<16x1xf32> to vector<16x438xf32>
    %82 = vector.broadcast %79 : vector<1x438xf32> to vector<16x438xf32>
    %83 = arith.mulf %81, %82 : vector<16x438xf32>
    %84 = arith.addf %78, %83 : vector<16x438xf32>
    %85 = vector.extract_strided_slice %1 {offsets = [0, 18], sizes = [1, 438], strides = [1, 1]} : vector<1x528xf32> to vector<1x438xf32>
    %86 = vector.extract_strided_slice %2 {offsets = [0, 13], sizes = [16, 1], strides = [1, 1]} : vector<16x49xf32> to vector<16x1xf32>
    %87 = vector.broadcast %86 : vector<16x1xf32> to vector<16x438xf32>
    %88 = vector.broadcast %85 : vector<1x438xf32> to vector<16x438xf32>
    %89 = arith.mulf %87, %88 : vector<16x438xf32>
    %90 = arith.addf %84, %89 : vector<16x438xf32>
    %91 = vector.extract_strided_slice %1 {offsets = [0, 24], sizes = [1, 438], strides = [1, 1]} : vector<1x528xf32> to vector<1x438xf32>
    %92 = vector.extract_strided_slice %2 {offsets = [0, 14], sizes = [16, 1], strides = [1, 1]} : vector<16x49xf32> to vector<16x1xf32>
    %93 = vector.broadcast %92 : vector<16x1xf32> to vector<16x438xf32>
    %94 = vector.broadcast %91 : vector<1x438xf32> to vector<16x438xf32>
    %95 = arith.mulf %93, %94 : vector<16x438xf32>
    %96 = arith.addf %90, %95 : vector<16x438xf32>
    %97 = vector.extract_strided_slice %1 {offsets = [0, 25], sizes = [1, 438], strides = [1, 1]} : vector<1x528xf32> to vector<1x438xf32>
    %98 = vector.extract_strided_slice %2 {offsets = [0, 15], sizes = [16, 1], strides = [1, 1]} : vector<16x49xf32> to vector<16x1xf32>
    %99 = vector.broadcast %98 : vector<16x1xf32> to vector<16x438xf32>
    %100 = vector.broadcast %97 : vector<1x438xf32> to vector<16x438xf32>
    %101 = arith.mulf %99, %100 : vector<16x438xf32>
    %102 = arith.addf %96, %101 : vector<16x438xf32>
    %103 = vector.extract_strided_slice %1 {offsets = [0, 26], sizes = [1, 438], strides = [1, 1]} : vector<1x528xf32> to vector<1x438xf32>
    %104 = vector.extract_strided_slice %2 {offsets = [0, 16], sizes = [16, 1], strides = [1, 1]} : vector<16x49xf32> to vector<16x1xf32>
    %105 = vector.broadcast %104 : vector<16x1xf32> to vector<16x438xf32>
    %106 = vector.broadcast %103 : vector<1x438xf32> to vector<16x438xf32>
    %107 = arith.mulf %105, %106 : vector<16x438xf32>
    %108 = arith.addf %102, %107 : vector<16x438xf32>
    %109 = vector.extract_strided_slice %1 {offsets = [0, 27], sizes = [1, 438], strides = [1, 1]} : vector<1x528xf32> to vector<1x438xf32>
    %110 = vector.extract_strided_slice %2 {offsets = [0, 17], sizes = [16, 1], strides = [1, 1]} : vector<16x49xf32> to vector<16x1xf32>
    %111 = vector.broadcast %110 : vector<16x1xf32> to vector<16x438xf32>
    %112 = vector.broadcast %109 : vector<1x438xf32> to vector<16x438xf32>
    %113 = arith.mulf %111, %112 : vector<16x438xf32>
    %114 = arith.addf %108, %113 : vector<16x438xf32>
    %115 = vector.extract_strided_slice %1 {offsets = [0, 28], sizes = [1, 438], strides = [1, 1]} : vector<1x528xf32> to vector<1x438xf32>
    %116 = vector.extract_strided_slice %2 {offsets = [0, 18], sizes = [16, 1], strides = [1, 1]} : vector<16x49xf32> to vector<16x1xf32>
    %117 = vector.broadcast %116 : vector<16x1xf32> to vector<16x438xf32>
    %118 = vector.broadcast %115 : vector<1x438xf32> to vector<16x438xf32>
    %119 = arith.mulf %117, %118 : vector<16x438xf32>
    %120 = arith.addf %114, %119 : vector<16x438xf32>
    %121 = vector.extract_strided_slice %1 {offsets = [0, 29], sizes = [1, 438], strides = [1, 1]} : vector<1x528xf32> to vector<1x438xf32>
    %122 = vector.extract_strided_slice %2 {offsets = [0, 19], sizes = [16, 1], strides = [1, 1]} : vector<16x49xf32> to vector<16x1xf32>
    %123 = vector.broadcast %122 : vector<16x1xf32> to vector<16x438xf32>
    %124 = vector.broadcast %121 : vector<1x438xf32> to vector<16x438xf32>
    %125 = arith.mulf %123, %124 : vector<16x438xf32>
    %126 = arith.addf %120, %125 : vector<16x438xf32>
    %127 = vector.extract_strided_slice %1 {offsets = [0, 30], sizes = [1, 438], strides = [1, 1]} : vector<1x528xf32> to vector<1x438xf32>
    %128 = vector.extract_strided_slice %2 {offsets = [0, 20], sizes = [16, 1], strides = [1, 1]} : vector<16x49xf32> to vector<16x1xf32>
    %129 = vector.broadcast %128 : vector<16x1xf32> to vector<16x438xf32>
    %130 = vector.broadcast %127 : vector<1x438xf32> to vector<16x438xf32>
    %131 = arith.mulf %129, %130 : vector<16x438xf32>
    %132 = arith.addf %126, %131 : vector<16x438xf32>
    %133 = vector.extract_strided_slice %1 {offsets = [0, 36], sizes = [1, 438], strides = [1, 1]} : vector<1x528xf32> to vector<1x438xf32>
    %134 = vector.extract_strided_slice %2 {offsets = [0, 21], sizes = [16, 1], strides = [1, 1]} : vector<16x49xf32> to vector<16x1xf32>
    %135 = vector.broadcast %134 : vector<16x1xf32> to vector<16x438xf32>
    %136 = vector.broadcast %133 : vector<1x438xf32> to vector<16x438xf32>
    %137 = arith.mulf %135, %136 : vector<16x438xf32>
    %138 = arith.addf %132, %137 : vector<16x438xf32>
    %139 = vector.extract_strided_slice %1 {offsets = [0, 37], sizes = [1, 438], strides = [1, 1]} : vector<1x528xf32> to vector<1x438xf32>
    %140 = vector.extract_strided_slice %2 {offsets = [0, 22], sizes = [16, 1], strides = [1, 1]} : vector<16x49xf32> to vector<16x1xf32>
    %141 = vector.broadcast %140 : vector<16x1xf32> to vector<16x438xf32>
    %142 = vector.broadcast %139 : vector<1x438xf32> to vector<16x438xf32>
    %143 = arith.mulf %141, %142 : vector<16x438xf32>
    %144 = arith.addf %138, %143 : vector<16x438xf32>
    %145 = vector.extract_strided_slice %1 {offsets = [0, 38], sizes = [1, 438], strides = [1, 1]} : vector<1x528xf32> to vector<1x438xf32>
    %146 = vector.extract_strided_slice %2 {offsets = [0, 23], sizes = [16, 1], strides = [1, 1]} : vector<16x49xf32> to vector<16x1xf32>
    %147 = vector.broadcast %146 : vector<16x1xf32> to vector<16x438xf32>
    %148 = vector.broadcast %145 : vector<1x438xf32> to vector<16x438xf32>
    %149 = arith.mulf %147, %148 : vector<16x438xf32>
    %150 = arith.addf %144, %149 : vector<16x438xf32>
    %151 = vector.extract_strided_slice %1 {offsets = [0, 39], sizes = [1, 438], strides = [1, 1]} : vector<1x528xf32> to vector<1x438xf32>
    %152 = vector.extract_strided_slice %2 {offsets = [0, 24], sizes = [16, 1], strides = [1, 1]} : vector<16x49xf32> to vector<16x1xf32>
    %153 = vector.broadcast %152 : vector<16x1xf32> to vector<16x438xf32>
    %154 = vector.broadcast %151 : vector<1x438xf32> to vector<16x438xf32>
    %155 = arith.mulf %153, %154 : vector<16x438xf32>
    %156 = arith.addf %150, %155 : vector<16x438xf32>
    %157 = vector.extract_strided_slice %1 {offsets = [0, 40], sizes = [1, 438], strides = [1, 1]} : vector<1x528xf32> to vector<1x438xf32>
    %158 = vector.extract_strided_slice %2 {offsets = [0, 25], sizes = [16, 1], strides = [1, 1]} : vector<16x49xf32> to vector<16x1xf32>
    %159 = vector.broadcast %158 : vector<16x1xf32> to vector<16x438xf32>
    %160 = vector.broadcast %157 : vector<1x438xf32> to vector<16x438xf32>
    %161 = arith.mulf %159, %160 : vector<16x438xf32>
    %162 = arith.addf %156, %161 : vector<16x438xf32>
    %163 = vector.extract_strided_slice %1 {offsets = [0, 41], sizes = [1, 438], strides = [1, 1]} : vector<1x528xf32> to vector<1x438xf32>
    %164 = vector.extract_strided_slice %2 {offsets = [0, 26], sizes = [16, 1], strides = [1, 1]} : vector<16x49xf32> to vector<16x1xf32>
    %165 = vector.broadcast %164 : vector<16x1xf32> to vector<16x438xf32>
    %166 = vector.broadcast %163 : vector<1x438xf32> to vector<16x438xf32>
    %167 = arith.mulf %165, %166 : vector<16x438xf32>
    %168 = arith.addf %162, %167 : vector<16x438xf32>
    %169 = vector.extract_strided_slice %1 {offsets = [0, 42], sizes = [1, 438], strides = [1, 1]} : vector<1x528xf32> to vector<1x438xf32>
    %170 = vector.extract_strided_slice %2 {offsets = [0, 27], sizes = [16, 1], strides = [1, 1]} : vector<16x49xf32> to vector<16x1xf32>
    %171 = vector.broadcast %170 : vector<16x1xf32> to vector<16x438xf32>
    %172 = vector.broadcast %169 : vector<1x438xf32> to vector<16x438xf32>
    %173 = arith.mulf %171, %172 : vector<16x438xf32>
    %174 = arith.addf %168, %173 : vector<16x438xf32>
    %175 = vector.extract_strided_slice %1 {offsets = [0, 48], sizes = [1, 438], strides = [1, 1]} : vector<1x528xf32> to vector<1x438xf32>
    %176 = vector.extract_strided_slice %2 {offsets = [0, 28], sizes = [16, 1], strides = [1, 1]} : vector<16x49xf32> to vector<16x1xf32>
    %177 = vector.broadcast %176 : vector<16x1xf32> to vector<16x438xf32>
    %178 = vector.broadcast %175 : vector<1x438xf32> to vector<16x438xf32>
    %179 = arith.mulf %177, %178 : vector<16x438xf32>
    %180 = arith.addf %174, %179 : vector<16x438xf32>
    %181 = vector.extract_strided_slice %1 {offsets = [0, 49], sizes = [1, 438], strides = [1, 1]} : vector<1x528xf32> to vector<1x438xf32>
    %182 = vector.extract_strided_slice %2 {offsets = [0, 29], sizes = [16, 1], strides = [1, 1]} : vector<16x49xf32> to vector<16x1xf32>
    %183 = vector.broadcast %182 : vector<16x1xf32> to vector<16x438xf32>
    %184 = vector.broadcast %181 : vector<1x438xf32> to vector<16x438xf32>
    %185 = arith.mulf %183, %184 : vector<16x438xf32>
    %186 = arith.addf %180, %185 : vector<16x438xf32>
    %187 = vector.extract_strided_slice %1 {offsets = [0, 50], sizes = [1, 438], strides = [1, 1]} : vector<1x528xf32> to vector<1x438xf32>
    %188 = vector.extract_strided_slice %2 {offsets = [0, 30], sizes = [16, 1], strides = [1, 1]} : vector<16x49xf32> to vector<16x1xf32>
    %189 = vector.broadcast %188 : vector<16x1xf32> to vector<16x438xf32>
    %190 = vector.broadcast %187 : vector<1x438xf32> to vector<16x438xf32>
    %191 = arith.mulf %189, %190 : vector<16x438xf32>
    %192 = arith.addf %186, %191 : vector<16x438xf32>
    %193 = vector.extract_strided_slice %1 {offsets = [0, 51], sizes = [1, 438], strides = [1, 1]} : vector<1x528xf32> to vector<1x438xf32>
    %194 = vector.extract_strided_slice %2 {offsets = [0, 31], sizes = [16, 1], strides = [1, 1]} : vector<16x49xf32> to vector<16x1xf32>
    %195 = vector.broadcast %194 : vector<16x1xf32> to vector<16x438xf32>
    %196 = vector.broadcast %193 : vector<1x438xf32> to vector<16x438xf32>
    %197 = arith.mulf %195, %196 : vector<16x438xf32>
    %198 = arith.addf %192, %197 : vector<16x438xf32>
    %199 = vector.extract_strided_slice %1 {offsets = [0, 52], sizes = [1, 438], strides = [1, 1]} : vector<1x528xf32> to vector<1x438xf32>
    %200 = vector.extract_strided_slice %2 {offsets = [0, 32], sizes = [16, 1], strides = [1, 1]} : vector<16x49xf32> to vector<16x1xf32>
    %201 = vector.broadcast %200 : vector<16x1xf32> to vector<16x438xf32>
    %202 = vector.broadcast %199 : vector<1x438xf32> to vector<16x438xf32>
    %203 = arith.mulf %201, %202 : vector<16x438xf32>
    %204 = arith.addf %198, %203 : vector<16x438xf32>
    %205 = vector.extract_strided_slice %1 {offsets = [0, 53], sizes = [1, 438], strides = [1, 1]} : vector<1x528xf32> to vector<1x438xf32>
    %206 = vector.extract_strided_slice %2 {offsets = [0, 33], sizes = [16, 1], strides = [1, 1]} : vector<16x49xf32> to vector<16x1xf32>
    %207 = vector.broadcast %206 : vector<16x1xf32> to vector<16x438xf32>
    %208 = vector.broadcast %205 : vector<1x438xf32> to vector<16x438xf32>
    %209 = arith.mulf %207, %208 : vector<16x438xf32>
    %210 = arith.addf %204, %209 : vector<16x438xf32>
    %211 = vector.extract_strided_slice %1 {offsets = [0, 54], sizes = [1, 438], strides = [1, 1]} : vector<1x528xf32> to vector<1x438xf32>
    %212 = vector.extract_strided_slice %2 {offsets = [0, 34], sizes = [16, 1], strides = [1, 1]} : vector<16x49xf32> to vector<16x1xf32>
    %213 = vector.broadcast %212 : vector<16x1xf32> to vector<16x438xf32>
    %214 = vector.broadcast %211 : vector<1x438xf32> to vector<16x438xf32>
    %215 = arith.mulf %213, %214 : vector<16x438xf32>
    %216 = arith.addf %210, %215 : vector<16x438xf32>
    %217 = vector.extract_strided_slice %1 {offsets = [0, 60], sizes = [1, 438], strides = [1, 1]} : vector<1x528xf32> to vector<1x438xf32>
    %218 = vector.extract_strided_slice %2 {offsets = [0, 35], sizes = [16, 1], strides = [1, 1]} : vector<16x49xf32> to vector<16x1xf32>
    %219 = vector.broadcast %218 : vector<16x1xf32> to vector<16x438xf32>
    %220 = vector.broadcast %217 : vector<1x438xf32> to vector<16x438xf32>
    %221 = arith.mulf %219, %220 : vector<16x438xf32>
    %222 = arith.addf %216, %221 : vector<16x438xf32>
    %223 = vector.extract_strided_slice %1 {offsets = [0, 61], sizes = [1, 438], strides = [1, 1]} : vector<1x528xf32> to vector<1x438xf32>
    %224 = vector.extract_strided_slice %2 {offsets = [0, 36], sizes = [16, 1], strides = [1, 1]} : vector<16x49xf32> to vector<16x1xf32>
    %225 = vector.broadcast %224 : vector<16x1xf32> to vector<16x438xf32>
    %226 = vector.broadcast %223 : vector<1x438xf32> to vector<16x438xf32>
    %227 = arith.mulf %225, %226 : vector<16x438xf32>
    %228 = arith.addf %222, %227 : vector<16x438xf32>
    %229 = vector.extract_strided_slice %1 {offsets = [0, 62], sizes = [1, 438], strides = [1, 1]} : vector<1x528xf32> to vector<1x438xf32>
    %230 = vector.extract_strided_slice %2 {offsets = [0, 37], sizes = [16, 1], strides = [1, 1]} : vector<16x49xf32> to vector<16x1xf32>
    %231 = vector.broadcast %230 : vector<16x1xf32> to vector<16x438xf32>
    %232 = vector.broadcast %229 : vector<1x438xf32> to vector<16x438xf32>
    %233 = arith.mulf %231, %232 : vector<16x438xf32>
    %234 = arith.addf %228, %233 : vector<16x438xf32>
    %235 = vector.extract_strided_slice %1 {offsets = [0, 63], sizes = [1, 438], strides = [1, 1]} : vector<1x528xf32> to vector<1x438xf32>
    %236 = vector.extract_strided_slice %2 {offsets = [0, 38], sizes = [16, 1], strides = [1, 1]} : vector<16x49xf32> to vector<16x1xf32>
    %237 = vector.broadcast %236 : vector<16x1xf32> to vector<16x438xf32>
    %238 = vector.broadcast %235 : vector<1x438xf32> to vector<16x438xf32>
    %239 = arith.mulf %237, %238 : vector<16x438xf32>
    %240 = arith.addf %234, %239 : vector<16x438xf32>
    %241 = vector.extract_strided_slice %1 {offsets = [0, 64], sizes = [1, 438], strides = [1, 1]} : vector<1x528xf32> to vector<1x438xf32>
    %242 = vector.extract_strided_slice %2 {offsets = [0, 39], sizes = [16, 1], strides = [1, 1]} : vector<16x49xf32> to vector<16x1xf32>
    %243 = vector.broadcast %242 : vector<16x1xf32> to vector<16x438xf32>
    %244 = vector.broadcast %241 : vector<1x438xf32> to vector<16x438xf32>
    %245 = arith.mulf %243, %244 : vector<16x438xf32>
    %246 = arith.addf %240, %245 : vector<16x438xf32>
    %247 = vector.extract_strided_slice %1 {offsets = [0, 65], sizes = [1, 438], strides = [1, 1]} : vector<1x528xf32> to vector<1x438xf32>
    %248 = vector.extract_strided_slice %2 {offsets = [0, 40], sizes = [16, 1], strides = [1, 1]} : vector<16x49xf32> to vector<16x1xf32>
    %249 = vector.broadcast %248 : vector<16x1xf32> to vector<16x438xf32>
    %250 = vector.broadcast %247 : vector<1x438xf32> to vector<16x438xf32>
    %251 = arith.mulf %249, %250 : vector<16x438xf32>
    %252 = arith.addf %246, %251 : vector<16x438xf32>
    %253 = vector.extract_strided_slice %1 {offsets = [0, 66], sizes = [1, 438], strides = [1, 1]} : vector<1x528xf32> to vector<1x438xf32>
    %254 = vector.extract_strided_slice %2 {offsets = [0, 41], sizes = [16, 1], strides = [1, 1]} : vector<16x49xf32> to vector<16x1xf32>
    %255 = vector.broadcast %254 : vector<16x1xf32> to vector<16x438xf32>
    %256 = vector.broadcast %253 : vector<1x438xf32> to vector<16x438xf32>
    %257 = arith.mulf %255, %256 : vector<16x438xf32>
    %258 = arith.addf %252, %257 : vector<16x438xf32>
    %259 = vector.extract_strided_slice %1 {offsets = [0, 72], sizes = [1, 438], strides = [1, 1]} : vector<1x528xf32> to vector<1x438xf32>
    %260 = vector.extract_strided_slice %2 {offsets = [0, 42], sizes = [16, 1], strides = [1, 1]} : vector<16x49xf32> to vector<16x1xf32>
    %261 = vector.broadcast %260 : vector<16x1xf32> to vector<16x438xf32>
    %262 = vector.broadcast %259 : vector<1x438xf32> to vector<16x438xf32>
    %263 = arith.mulf %261, %262 : vector<16x438xf32>
    %264 = arith.addf %258, %263 : vector<16x438xf32>
    %265 = vector.extract_strided_slice %1 {offsets = [0, 73], sizes = [1, 438], strides = [1, 1]} : vector<1x528xf32> to vector<1x438xf32>
    %266 = vector.extract_strided_slice %2 {offsets = [0, 43], sizes = [16, 1], strides = [1, 1]} : vector<16x49xf32> to vector<16x1xf32>
    %267 = vector.broadcast %266 : vector<16x1xf32> to vector<16x438xf32>
    %268 = vector.broadcast %265 : vector<1x438xf32> to vector<16x438xf32>
    %269 = arith.mulf %267, %268 : vector<16x438xf32>
    %270 = arith.addf %264, %269 : vector<16x438xf32>
    %271 = vector.extract_strided_slice %1 {offsets = [0, 74], sizes = [1, 438], strides = [1, 1]} : vector<1x528xf32> to vector<1x438xf32>
    %272 = vector.extract_strided_slice %2 {offsets = [0, 44], sizes = [16, 1], strides = [1, 1]} : vector<16x49xf32> to vector<16x1xf32>
    %273 = vector.broadcast %272 : vector<16x1xf32> to vector<16x438xf32>
    %274 = vector.broadcast %271 : vector<1x438xf32> to vector<16x438xf32>
    %275 = arith.mulf %273, %274 : vector<16x438xf32>
    %276 = arith.addf %270, %275 : vector<16x438xf32>
    %277 = vector.extract_strided_slice %1 {offsets = [0, 75], sizes = [1, 438], strides = [1, 1]} : vector<1x528xf32> to vector<1x438xf32>
    %278 = vector.extract_strided_slice %2 {offsets = [0, 45], sizes = [16, 1], strides = [1, 1]} : vector<16x49xf32> to vector<16x1xf32>
    %279 = vector.broadcast %278 : vector<16x1xf32> to vector<16x438xf32>
    %280 = vector.broadcast %277 : vector<1x438xf32> to vector<16x438xf32>
    %281 = arith.mulf %279, %280 : vector<16x438xf32>
    %282 = arith.addf %276, %281 : vector<16x438xf32>
    %283 = vector.extract_strided_slice %1 {offsets = [0, 76], sizes = [1, 438], strides = [1, 1]} : vector<1x528xf32> to vector<1x438xf32>
    %284 = vector.extract_strided_slice %2 {offsets = [0, 46], sizes = [16, 1], strides = [1, 1]} : vector<16x49xf32> to vector<16x1xf32>
    %285 = vector.broadcast %284 : vector<16x1xf32> to vector<16x438xf32>
    %286 = vector.broadcast %283 : vector<1x438xf32> to vector<16x438xf32>
    %287 = arith.mulf %285, %286 : vector<16x438xf32>
    %288 = arith.addf %282, %287 : vector<16x438xf32>
    %289 = vector.extract_strided_slice %1 {offsets = [0, 77], sizes = [1, 438], strides = [1, 1]} : vector<1x528xf32> to vector<1x438xf32>
    %290 = vector.extract_strided_slice %2 {offsets = [0, 47], sizes = [16, 1], strides = [1, 1]} : vector<16x49xf32> to vector<16x1xf32>
    %291 = vector.broadcast %290 : vector<16x1xf32> to vector<16x438xf32>
    %292 = vector.broadcast %289 : vector<1x438xf32> to vector<16x438xf32>
    %293 = arith.mulf %291, %292 : vector<16x438xf32>
    %294 = arith.addf %288, %293 : vector<16x438xf32>
    %295 = vector.extract_strided_slice %1 {offsets = [0, 78], sizes = [1, 438], strides = [1, 1]} : vector<1x528xf32> to vector<1x438xf32>
    %296 = vector.extract_strided_slice %2 {offsets = [0, 48], sizes = [16, 1], strides = [1, 1]} : vector<16x49xf32> to vector<16x1xf32>
    %297 = vector.broadcast %296 : vector<16x1xf32> to vector<16x438xf32>
    %298 = vector.broadcast %295 : vector<1x438xf32> to vector<16x438xf32>
    %299 = arith.mulf %297, %298 : vector<16x438xf32>
    %300 = arith.addf %294, %299 : vector<16x438xf32>
    %301 = vector.extract_strided_slice %300 {offsets = [0, 0], sizes = [16, 6], strides = [1, 1]} : vector<16x438xf32> to vector<16x6xf32>
    %302 = vector.extract_strided_slice %300 {offsets = [0, 24], sizes = [16, 6], strides = [1, 1]} : vector<16x438xf32> to vector<16x6xf32>
    %303 = vector.extract_strided_slice %300 {offsets = [0, 48], sizes = [16, 6], strides = [1, 1]} : vector<16x438xf32> to vector<16x6xf32>
    %304 = vector.extract_strided_slice %300 {offsets = [0, 72], sizes = [16, 6], strides = [1, 1]} : vector<16x438xf32> to vector<16x6xf32>
    %305 = vector.extract_strided_slice %300 {offsets = [0, 96], sizes = [16, 6], strides = [1, 1]} : vector<16x438xf32> to vector<16x6xf32>
    %306 = vector.extract_strided_slice %300 {offsets = [0, 120], sizes = [16, 6], strides = [1, 1]} : vector<16x438xf32> to vector<16x6xf32>
    %307 = vector.extract_strided_slice %300 {offsets = [0, 144], sizes = [16, 6], strides = [1, 1]} : vector<16x438xf32> to vector<16x6xf32>
    %308 = vector.extract_strided_slice %300 {offsets = [0, 168], sizes = [16, 6], strides = [1, 1]} : vector<16x438xf32> to vector<16x6xf32>
    %309 = vector.extract_strided_slice %300 {offsets = [0, 192], sizes = [16, 6], strides = [1, 1]} : vector<16x438xf32> to vector<16x6xf32>
    %310 = vector.extract_strided_slice %300 {offsets = [0, 216], sizes = [16, 6], strides = [1, 1]} : vector<16x438xf32> to vector<16x6xf32>
    %311 = vector.extract_strided_slice %300 {offsets = [0, 240], sizes = [16, 6], strides = [1, 1]} : vector<16x438xf32> to vector<16x6xf32>
    %312 = vector.extract_strided_slice %300 {offsets = [0, 264], sizes = [16, 6], strides = [1, 1]} : vector<16x438xf32> to vector<16x6xf32>
    %313 = vector.extract_strided_slice %300 {offsets = [0, 288], sizes = [16, 6], strides = [1, 1]} : vector<16x438xf32> to vector<16x6xf32>
    %314 = vector.extract_strided_slice %300 {offsets = [0, 312], sizes = [16, 6], strides = [1, 1]} : vector<16x438xf32> to vector<16x6xf32>
    %315 = vector.extract_strided_slice %300 {offsets = [0, 336], sizes = [16, 6], strides = [1, 1]} : vector<16x438xf32> to vector<16x6xf32>
    %316 = vector.extract_strided_slice %300 {offsets = [0, 360], sizes = [16, 6], strides = [1, 1]} : vector<16x438xf32> to vector<16x6xf32>
    %317 = vector.extract_strided_slice %300 {offsets = [0, 384], sizes = [16, 6], strides = [1, 1]} : vector<16x438xf32> to vector<16x6xf32>
    %318 = vector.extract_strided_slice %300 {offsets = [0, 408], sizes = [16, 6], strides = [1, 1]} : vector<16x438xf32> to vector<16x6xf32>
    %319 = vector.extract_strided_slice %300 {offsets = [0, 432], sizes = [16, 6], strides = [1, 1]} : vector<16x438xf32> to vector<16x6xf32>
    %320 = tpu.concatenate %301, %302, %303, %304, %305, %306, %307, %308, %309, %310, %311, %312, %313, %314, %315, %316 in 1 : vector<16x6xf32>, vector<16x6xf32>, vector<16x6xf32>, vector<16x6xf32>, vector<16x6xf32>, vector<16x6xf32>, vector<16x6xf32>, vector<16x6xf32>, vector<16x6xf32>, vector<16x6xf32>, vector<16x6xf32>, vector<16x6xf32>, vector<16x6xf32>, vector<16x6xf32>, vector<16x6xf32>, vector<16x6xf32> -> vector<16x96xf32>
    %321 = tpu.concatenate %317, %318, %319 in 1 : vector<16x6xf32>, vector<16x6xf32>, vector<16x6xf32> -> vector<16x18xf32>
    %322 = tpu.concatenate %320, %321 in 1 : vector<16x96xf32>, vector<16x18xf32> -> vector<16x114xf32>
    %cst_6 = arith.constant 0.000000e+00 : f32
    %323 = vector.broadcast %cst_6 : f32 to vector<16x114xf32>
    %324 = arith.maximumf %322, %323 : vector<16x114xf32>
    %c0_7 = arith.constant 0 : index
    %c0_8 = arith.constant 0 : index
    %325 = vector.load %arg5[%c0_7, %c0_8] : memref<8x13xf32, #tpu.memory_space<vmem>>, vector<8x13xf32>
    %c0_9 = arith.constant 0 : index
    %c0_10 = arith.constant 0 : index
    %326 = vector.load %arg6[%c0_9, %c0_10] : memref<8x8xf32, #tpu.memory_space<vmem>>, vector<8x8xf32>
    %c0_11 = arith.constant 0 : index
    %c0_12 = arith.constant 0 : index
    %327 = vector.load %arg4[%c0_11, %c0_12] : memref<8x16xf32, #tpu.memory_space<vmem>>, vector<8x16xf32>
    %cst_13 = arith.constant dense<0.000000e+00> : vector<8x114xf32>
    %328 = tpu.matmul %327, %324, %cst_13 {dimension_numbers = #tpu.dot_dimension_numbers<[1], [0], [0], [1], [0, 0, 1, 1], [], []>} : vector<8x16xf32>, vector<16x114xf32>, vector<8x114xf32> -> vector<8x114xf32>
    %329 = vector.extract_strided_slice %325 {offsets = [0, 12], sizes = [8, 1], strides = [1, 1]} : vector<8x13xf32> to vector<8x1xf32>
    %330 = vector.broadcast %329 : vector<8x1xf32> to vector<8x114xf32>
    %331 = arith.addf %328, %330 : vector<8x114xf32>
    %cst_14 = arith.constant 0.000000e+00 : f32
    %332 = vector.broadcast %cst_14 : f32 to vector<8x114xf32>
    %333 = arith.maximumf %331, %332 : vector<8x114xf32>
    %cst_15 = arith.constant 0.000000e+00 : f32
    %334 = vector.broadcast %cst_15 : f32 to vector<8x6xf32>
    %335 = vector.extract_strided_slice %333 {offsets = [0, 0], sizes = [8, 108], strides = [1, 1]} : vector<8x114xf32> to vector<8x108xf32>
    %336 = tpu.concatenate %334, %335 in 1 : vector<8x6xf32>, vector<8x108xf32> -> vector<8x114xf32>
    %337 = vector.extract_strided_slice %333 {offsets = [0, 6], sizes = [8, 108], strides = [1, 1]} : vector<8x114xf32> to vector<8x108xf32>
    %338 = tpu.concatenate %337, %334 in 1 : vector<8x108xf32>, vector<8x6xf32> -> vector<8x114xf32>
    %339 = vector.extract_strided_slice %325 {offsets = [0, 0], sizes = [8, 1], strides = [1, 1]} : vector<8x13xf32> to vector<8x1xf32>
    %340 = vector.broadcast %339 : vector<8x1xf32> to vector<8x114xf32>
    %341 = arith.mulf %340, %336 : vector<8x114xf32>
    %342 = vector.extract_strided_slice %325 {offsets = [0, 1], sizes = [8, 1], strides = [1, 1]} : vector<8x13xf32> to vector<8x1xf32>
    %343 = vector.broadcast %342 : vector<8x1xf32> to vector<8x114xf32>
    %344 = arith.mulf %343, %333 : vector<8x114xf32>
    %345 = arith.addf %341, %344 : vector<8x114xf32>
    %346 = vector.extract_strided_slice %325 {offsets = [0, 2], sizes = [8, 1], strides = [1, 1]} : vector<8x13xf32> to vector<8x1xf32>
    %347 = vector.broadcast %346 : vector<8x1xf32> to vector<8x114xf32>
    %348 = arith.mulf %347, %338 : vector<8x114xf32>
    %349 = arith.addf %345, %348 : vector<8x114xf32>
    %350 = vector.extract_strided_slice %325 {offsets = [0, 3], sizes = [8, 1], strides = [1, 1]} : vector<8x13xf32> to vector<8x1xf32>
    %351 = vector.broadcast %350 : vector<8x1xf32> to vector<8x114xf32>
    %352 = arith.addf %349, %351 : vector<8x114xf32>
    %353 = vector.extract_strided_slice %352 {offsets = [0, 0], sizes = [8, 6], strides = [1, 1]} : vector<8x114xf32> to vector<8x6xf32>
    %354 = vector.extract_strided_slice %352 {offsets = [0, 12], sizes = [8, 6], strides = [1, 1]} : vector<8x114xf32> to vector<8x6xf32>
    %355 = vector.extract_strided_slice %352 {offsets = [0, 24], sizes = [8, 6], strides = [1, 1]} : vector<8x114xf32> to vector<8x6xf32>
    %356 = vector.extract_strided_slice %352 {offsets = [0, 36], sizes = [8, 6], strides = [1, 1]} : vector<8x114xf32> to vector<8x6xf32>
    %357 = vector.extract_strided_slice %352 {offsets = [0, 48], sizes = [8, 6], strides = [1, 1]} : vector<8x114xf32> to vector<8x6xf32>
    %358 = vector.extract_strided_slice %352 {offsets = [0, 60], sizes = [8, 6], strides = [1, 1]} : vector<8x114xf32> to vector<8x6xf32>
    %359 = vector.extract_strided_slice %352 {offsets = [0, 72], sizes = [8, 6], strides = [1, 1]} : vector<8x114xf32> to vector<8x6xf32>
    %360 = vector.extract_strided_slice %352 {offsets = [0, 84], sizes = [8, 6], strides = [1, 1]} : vector<8x114xf32> to vector<8x6xf32>
    %361 = vector.extract_strided_slice %352 {offsets = [0, 96], sizes = [8, 6], strides = [1, 1]} : vector<8x114xf32> to vector<8x6xf32>
    %362 = vector.extract_strided_slice %352 {offsets = [0, 108], sizes = [8, 6], strides = [1, 1]} : vector<8x114xf32> to vector<8x6xf32>
    %363 = tpu.concatenate %353, %354, %355, %356, %357, %358, %359, %360, %361, %362 in 1 : vector<8x6xf32>, vector<8x6xf32>, vector<8x6xf32>, vector<8x6xf32>, vector<8x6xf32>, vector<8x6xf32>, vector<8x6xf32>, vector<8x6xf32>, vector<8x6xf32>, vector<8x6xf32> -> vector<8x60xf32>
    %cst_16 = arith.constant 0.000000e+00 : f32
    %364 = vector.broadcast %cst_16 : f32 to vector<8x60xf32>
    %365 = arith.subf %364, %363 : vector<8x60xf32>
    %366 = math.exp %365 : vector<8x60xf32>
    %cst_17 = arith.constant 1.000000e+00 : f32
    %367 = vector.broadcast %cst_17 : f32 to vector<8x60xf32>
    %368 = arith.addf %367, %366 : vector<8x60xf32>
    %cst_18 = arith.constant 1.000000e+00 : f32
    %369 = vector.broadcast %cst_18 : f32 to vector<8x60xf32>
    %370 = arith.divf %369, %368 : vector<8x60xf32>
    %371 = arith.mulf %363, %370 : vector<8x60xf32>
    %372 = vector.extract_strided_slice %325 {offsets = [0, 4], sizes = [8, 1], strides = [1, 1]} : vector<8x13xf32> to vector<8x1xf32>
    %373 = vector.broadcast %372 : vector<8x1xf32> to vector<8x60xf32>
    %374 = arith.mulf %371, %373 : vector<8x60xf32>
    %375 = vector.extract_strided_slice %325 {offsets = [0, 5], sizes = [8, 1], strides = [1, 1]} : vector<8x13xf32> to vector<8x1xf32>
    %376 = vector.broadcast %375 : vector<8x1xf32> to vector<8x60xf32>
    %377 = arith.addf %374, %376 : vector<8x60xf32>
    %378 = vector.extract_strided_slice %377 {offsets = [0, 0], sizes = [8, 6], strides = [1, 1]} : vector<8x60xf32> to vector<8x6xf32>
    %379 = vector.extract_strided_slice %377 {offsets = [0, 6], sizes = [8, 6], strides = [1, 1]} : vector<8x60xf32> to vector<8x6xf32>
    %380 = arith.addf %378, %379 : vector<8x6xf32>
    %381 = vector.extract_strided_slice %377 {offsets = [0, 12], sizes = [8, 6], strides = [1, 1]} : vector<8x60xf32> to vector<8x6xf32>
    %382 = arith.addf %380, %381 : vector<8x6xf32>
    %383 = vector.extract_strided_slice %377 {offsets = [0, 18], sizes = [8, 6], strides = [1, 1]} : vector<8x60xf32> to vector<8x6xf32>
    %384 = arith.addf %382, %383 : vector<8x6xf32>
    %385 = vector.extract_strided_slice %377 {offsets = [0, 24], sizes = [8, 6], strides = [1, 1]} : vector<8x60xf32> to vector<8x6xf32>
    %386 = arith.addf %384, %385 : vector<8x6xf32>
    %387 = vector.extract_strided_slice %377 {offsets = [0, 30], sizes = [8, 6], strides = [1, 1]} : vector<8x60xf32> to vector<8x6xf32>
    %388 = arith.addf %386, %387 : vector<8x6xf32>
    %389 = vector.extract_strided_slice %377 {offsets = [0, 36], sizes = [8, 6], strides = [1, 1]} : vector<8x60xf32> to vector<8x6xf32>
    %390 = arith.addf %388, %389 : vector<8x6xf32>
    %391 = vector.extract_strided_slice %377 {offsets = [0, 42], sizes = [8, 6], strides = [1, 1]} : vector<8x60xf32> to vector<8x6xf32>
    %392 = arith.addf %390, %391 : vector<8x6xf32>
    %393 = vector.extract_strided_slice %377 {offsets = [0, 48], sizes = [8, 6], strides = [1, 1]} : vector<8x60xf32> to vector<8x6xf32>
    %394 = arith.addf %392, %393 : vector<8x6xf32>
    %395 = vector.extract_strided_slice %377 {offsets = [0, 54], sizes = [8, 6], strides = [1, 1]} : vector<8x60xf32> to vector<8x6xf32>
    %396 = arith.addf %394, %395 : vector<8x6xf32>
    %cst_19 = arith.constant 1.000000e-01 : f32
    %397 = vector.broadcast %cst_19 : f32 to vector<8x6xf32>
    %398 = arith.mulf %396, %397 : vector<8x6xf32>
    %cst_20 = arith.constant 0.000000e+00 : f32
    %399 = vector.broadcast %cst_20 : f32 to vector<8x1xf32>
    %400 = vector.extract_strided_slice %398 {offsets = [0, 0], sizes = [8, 5], strides = [1, 1]} : vector<8x6xf32> to vector<8x5xf32>
    %401 = tpu.concatenate %399, %400 in 1 : vector<8x1xf32>, vector<8x5xf32> -> vector<8x6xf32>
    %402 = vector.extract_strided_slice %398 {offsets = [0, 1], sizes = [8, 5], strides = [1, 1]} : vector<8x6xf32> to vector<8x5xf32>
    %403 = tpu.concatenate %402, %399 in 1 : vector<8x5xf32>, vector<8x1xf32> -> vector<8x6xf32>
    %404 = vector.extract_strided_slice %325 {offsets = [0, 6], sizes = [8, 1], strides = [1, 1]} : vector<8x13xf32> to vector<8x1xf32>
    %405 = vector.broadcast %404 : vector<8x1xf32> to vector<8x6xf32>
    %406 = arith.mulf %405, %401 : vector<8x6xf32>
    %407 = vector.extract_strided_slice %325 {offsets = [0, 7], sizes = [8, 1], strides = [1, 1]} : vector<8x13xf32> to vector<8x1xf32>
    %408 = vector.broadcast %407 : vector<8x1xf32> to vector<8x6xf32>
    %409 = arith.mulf %408, %398 : vector<8x6xf32>
    %410 = arith.addf %406, %409 : vector<8x6xf32>
    %411 = vector.extract_strided_slice %325 {offsets = [0, 8], sizes = [8, 1], strides = [1, 1]} : vector<8x13xf32> to vector<8x1xf32>
    %412 = vector.broadcast %411 : vector<8x1xf32> to vector<8x6xf32>
    %413 = arith.mulf %412, %403 : vector<8x6xf32>
    %414 = arith.addf %410, %413 : vector<8x6xf32>
    %cst_21 = arith.constant 0.000000e+00 : f32
    %415 = vector.broadcast %cst_21 : f32 to vector<8x6xf32>
    %416 = arith.subf %415, %414 : vector<8x6xf32>
    %417 = math.exp %416 : vector<8x6xf32>
    %cst_22 = arith.constant 1.000000e+00 : f32
    %418 = vector.broadcast %cst_22 : f32 to vector<8x6xf32>
    %419 = arith.addf %418, %417 : vector<8x6xf32>
    %cst_23 = arith.constant 1.000000e+00 : f32
    %420 = vector.broadcast %cst_23 : f32 to vector<8x6xf32>
    %421 = arith.divf %420, %419 : vector<8x6xf32>
    %422 = arith.mulf %414, %421 : vector<8x6xf32>
    %423 = vector.extract_strided_slice %325 {offsets = [0, 9], sizes = [8, 1], strides = [1, 1]} : vector<8x13xf32> to vector<8x1xf32>
    %424 = vector.broadcast %423 : vector<8x1xf32> to vector<8x6xf32>
    %425 = arith.mulf %422, %424 : vector<8x6xf32>
    %426 = vector.extract_strided_slice %325 {offsets = [0, 10], sizes = [8, 1], strides = [1, 1]} : vector<8x13xf32> to vector<8x1xf32>
    %427 = vector.broadcast %426 : vector<8x1xf32> to vector<8x6xf32>
    %428 = arith.addf %425, %427 : vector<8x6xf32>
    %cst_24 = arith.constant dense<0.000000e+00> : vector<8x6xf32>
    %429 = tpu.matmul %326, %428, %cst_24 {dimension_numbers = #tpu.dot_dimension_numbers<[1], [0], [0], [1], [0, 0, 1, 1], [], []>} : vector<8x8xf32>, vector<8x6xf32>, vector<8x6xf32> -> vector<8x6xf32>
    %430 = vector.extract_strided_slice %325 {offsets = [0, 11], sizes = [8, 1], strides = [1, 1]} : vector<8x13xf32> to vector<8x1xf32>
    %431 = vector.broadcast %430 : vector<8x1xf32> to vector<8x6xf32>
    %432 = arith.addf %429, %431 : vector<8x6xf32>
    %433 = tpu.concatenate %432, %432, %432, %432, %432, %432, %432, %432, %432, %432 in 1 : vector<8x6xf32>, vector<8x6xf32>, vector<8x6xf32>, vector<8x6xf32>, vector<8x6xf32>, vector<8x6xf32>, vector<8x6xf32>, vector<8x6xf32>, vector<8x6xf32>, vector<8x6xf32> -> vector<8x60xf32>
    %434 = arith.addf %377, %433 : vector<8x60xf32>
    %cst_25 = arith.constant 0.000000e+00 : f32
    %435 = vector.broadcast %cst_25 : f32 to vector<8x60xf32>
    %436 = arith.maximumf %434, %435 : vector<8x60xf32>
    %c0_26 = arith.constant 0 : index
    %c0_27 = arith.constant 0 : index
    %437 = vector.load %arg8[%c0_26, %c0_27] : memref<12x13xf32, #tpu.memory_space<vmem>>, vector<12x13xf32>
    %c0_28 = arith.constant 0 : index
    %c0_29 = arith.constant 0 : index
    %438 = vector.load %arg9[%c0_28, %c0_29] : memref<12x12xf32, #tpu.memory_space<vmem>>, vector<12x12xf32>
    %c0_30 = arith.constant 0 : index
    %c0_31 = arith.constant 0 : index
    %439 = vector.load %arg7[%c0_30, %c0_31] : memref<12x8xf32, #tpu.memory_space<vmem>>, vector<12x8xf32>
    %cst_32 = arith.constant dense<0.000000e+00> : vector<12x60xf32>
    %440 = tpu.matmul %439, %436, %cst_32 {dimension_numbers = #tpu.dot_dimension_numbers<[1], [0], [0], [1], [0, 0, 1, 1], [], []>} : vector<12x8xf32>, vector<8x60xf32>, vector<12x60xf32> -> vector<12x60xf32>
    %441 = vector.extract_strided_slice %437 {offsets = [0, 12], sizes = [12, 1], strides = [1, 1]} : vector<12x13xf32> to vector<12x1xf32>
    %442 = vector.broadcast %441 : vector<12x1xf32> to vector<12x60xf32>
    %443 = arith.addf %440, %442 : vector<12x60xf32>
    %cst_33 = arith.constant 0.000000e+00 : f32
    %444 = vector.broadcast %cst_33 : f32 to vector<12x60xf32>
    %445 = arith.maximumf %443, %444 : vector<12x60xf32>
    %cst_34 = arith.constant 0.000000e+00 : f32
    %446 = vector.broadcast %cst_34 : f32 to vector<12x6xf32>
    %447 = vector.extract_strided_slice %445 {offsets = [0, 0], sizes = [12, 54], strides = [1, 1]} : vector<12x60xf32> to vector<12x54xf32>
    %448 = tpu.concatenate %446, %447 in 1 : vector<12x6xf32>, vector<12x54xf32> -> vector<12x60xf32>
    %449 = vector.extract_strided_slice %445 {offsets = [0, 6], sizes = [12, 54], strides = [1, 1]} : vector<12x60xf32> to vector<12x54xf32>
    %450 = tpu.concatenate %449, %446 in 1 : vector<12x54xf32>, vector<12x6xf32> -> vector<12x60xf32>
    %451 = vector.extract_strided_slice %437 {offsets = [0, 0], sizes = [12, 1], strides = [1, 1]} : vector<12x13xf32> to vector<12x1xf32>
    %452 = vector.broadcast %451 : vector<12x1xf32> to vector<12x60xf32>
    %453 = arith.mulf %452, %448 : vector<12x60xf32>
    %454 = vector.extract_strided_slice %437 {offsets = [0, 1], sizes = [12, 1], strides = [1, 1]} : vector<12x13xf32> to vector<12x1xf32>
    %455 = vector.broadcast %454 : vector<12x1xf32> to vector<12x60xf32>
    %456 = arith.mulf %455, %445 : vector<12x60xf32>
    %457 = arith.addf %453, %456 : vector<12x60xf32>
    %458 = vector.extract_strided_slice %437 {offsets = [0, 2], sizes = [12, 1], strides = [1, 1]} : vector<12x13xf32> to vector<12x1xf32>
    %459 = vector.broadcast %458 : vector<12x1xf32> to vector<12x60xf32>
    %460 = arith.mulf %459, %450 : vector<12x60xf32>
    %461 = arith.addf %457, %460 : vector<12x60xf32>
    %462 = vector.extract_strided_slice %437 {offsets = [0, 3], sizes = [12, 1], strides = [1, 1]} : vector<12x13xf32> to vector<12x1xf32>
    %463 = vector.broadcast %462 : vector<12x1xf32> to vector<12x60xf32>
    %464 = arith.addf %461, %463 : vector<12x60xf32>
    %cst_35 = arith.constant 0.000000e+00 : f32
    %465 = vector.broadcast %cst_35 : f32 to vector<12x60xf32>
    %466 = arith.subf %465, %464 : vector<12x60xf32>
    %467 = math.exp %466 : vector<12x60xf32>
    %cst_36 = arith.constant 1.000000e+00 : f32
    %468 = vector.broadcast %cst_36 : f32 to vector<12x60xf32>
    %469 = arith.addf %468, %467 : vector<12x60xf32>
    %cst_37 = arith.constant 1.000000e+00 : f32
    %470 = vector.broadcast %cst_37 : f32 to vector<12x60xf32>
    %471 = arith.divf %470, %469 : vector<12x60xf32>
    %472 = arith.mulf %464, %471 : vector<12x60xf32>
    %473 = vector.extract_strided_slice %437 {offsets = [0, 4], sizes = [12, 1], strides = [1, 1]} : vector<12x13xf32> to vector<12x1xf32>
    %474 = vector.broadcast %473 : vector<12x1xf32> to vector<12x60xf32>
    %475 = arith.mulf %472, %474 : vector<12x60xf32>
    %476 = vector.extract_strided_slice %437 {offsets = [0, 5], sizes = [12, 1], strides = [1, 1]} : vector<12x13xf32> to vector<12x1xf32>
    %477 = vector.broadcast %476 : vector<12x1xf32> to vector<12x60xf32>
    %478 = arith.addf %475, %477 : vector<12x60xf32>
    %479 = vector.extract_strided_slice %478 {offsets = [0, 0], sizes = [12, 6], strides = [1, 1]} : vector<12x60xf32> to vector<12x6xf32>
    %480 = vector.extract_strided_slice %478 {offsets = [0, 6], sizes = [12, 6], strides = [1, 1]} : vector<12x60xf32> to vector<12x6xf32>
    %481 = arith.addf %479, %480 : vector<12x6xf32>
    %482 = vector.extract_strided_slice %478 {offsets = [0, 12], sizes = [12, 6], strides = [1, 1]} : vector<12x60xf32> to vector<12x6xf32>
    %483 = arith.addf %481, %482 : vector<12x6xf32>
    %484 = vector.extract_strided_slice %478 {offsets = [0, 18], sizes = [12, 6], strides = [1, 1]} : vector<12x60xf32> to vector<12x6xf32>
    %485 = arith.addf %483, %484 : vector<12x6xf32>
    %486 = vector.extract_strided_slice %478 {offsets = [0, 24], sizes = [12, 6], strides = [1, 1]} : vector<12x60xf32> to vector<12x6xf32>
    %487 = arith.addf %485, %486 : vector<12x6xf32>
    %488 = vector.extract_strided_slice %478 {offsets = [0, 30], sizes = [12, 6], strides = [1, 1]} : vector<12x60xf32> to vector<12x6xf32>
    %489 = arith.addf %487, %488 : vector<12x6xf32>
    %490 = vector.extract_strided_slice %478 {offsets = [0, 36], sizes = [12, 6], strides = [1, 1]} : vector<12x60xf32> to vector<12x6xf32>
    %491 = arith.addf %489, %490 : vector<12x6xf32>
    %492 = vector.extract_strided_slice %478 {offsets = [0, 42], sizes = [12, 6], strides = [1, 1]} : vector<12x60xf32> to vector<12x6xf32>
    %493 = arith.addf %491, %492 : vector<12x6xf32>
    %494 = vector.extract_strided_slice %478 {offsets = [0, 48], sizes = [12, 6], strides = [1, 1]} : vector<12x60xf32> to vector<12x6xf32>
    %495 = arith.addf %493, %494 : vector<12x6xf32>
    %496 = vector.extract_strided_slice %478 {offsets = [0, 54], sizes = [12, 6], strides = [1, 1]} : vector<12x60xf32> to vector<12x6xf32>
    %497 = arith.addf %495, %496 : vector<12x6xf32>
    %cst_38 = arith.constant 1.000000e-01 : f32
    %498 = vector.broadcast %cst_38 : f32 to vector<12x6xf32>
    %499 = arith.mulf %497, %498 : vector<12x6xf32>
    %cst_39 = arith.constant 0.000000e+00 : f32
    %500 = vector.broadcast %cst_39 : f32 to vector<12x1xf32>
    %501 = vector.extract_strided_slice %499 {offsets = [0, 0], sizes = [12, 5], strides = [1, 1]} : vector<12x6xf32> to vector<12x5xf32>
    %502 = tpu.concatenate %500, %501 in 1 : vector<12x1xf32>, vector<12x5xf32> -> vector<12x6xf32>
    %503 = vector.extract_strided_slice %499 {offsets = [0, 1], sizes = [12, 5], strides = [1, 1]} : vector<12x6xf32> to vector<12x5xf32>
    %504 = tpu.concatenate %503, %500 in 1 : vector<12x5xf32>, vector<12x1xf32> -> vector<12x6xf32>
    %505 = vector.extract_strided_slice %437 {offsets = [0, 6], sizes = [12, 1], strides = [1, 1]} : vector<12x13xf32> to vector<12x1xf32>
    %506 = vector.broadcast %505 : vector<12x1xf32> to vector<12x6xf32>
    %507 = arith.mulf %506, %502 : vector<12x6xf32>
    %508 = vector.extract_strided_slice %437 {offsets = [0, 7], sizes = [12, 1], strides = [1, 1]} : vector<12x13xf32> to vector<12x1xf32>
    %509 = vector.broadcast %508 : vector<12x1xf32> to vector<12x6xf32>
    %510 = arith.mulf %509, %499 : vector<12x6xf32>
    %511 = arith.addf %507, %510 : vector<12x6xf32>
    %512 = vector.extract_strided_slice %437 {offsets = [0, 8], sizes = [12, 1], strides = [1, 1]} : vector<12x13xf32> to vector<12x1xf32>
    %513 = vector.broadcast %512 : vector<12x1xf32> to vector<12x6xf32>
    %514 = arith.mulf %513, %504 : vector<12x6xf32>
    %515 = arith.addf %511, %514 : vector<12x6xf32>
    %cst_40 = arith.constant 0.000000e+00 : f32
    %516 = vector.broadcast %cst_40 : f32 to vector<12x6xf32>
    %517 = arith.subf %516, %515 : vector<12x6xf32>
    %518 = math.exp %517 : vector<12x6xf32>
    %cst_41 = arith.constant 1.000000e+00 : f32
    %519 = vector.broadcast %cst_41 : f32 to vector<12x6xf32>
    %520 = arith.addf %519, %518 : vector<12x6xf32>
    %cst_42 = arith.constant 1.000000e+00 : f32
    %521 = vector.broadcast %cst_42 : f32 to vector<12x6xf32>
    %522 = arith.divf %521, %520 : vector<12x6xf32>
    %523 = arith.mulf %515, %522 : vector<12x6xf32>
    %524 = vector.extract_strided_slice %437 {offsets = [0, 9], sizes = [12, 1], strides = [1, 1]} : vector<12x13xf32> to vector<12x1xf32>
    %525 = vector.broadcast %524 : vector<12x1xf32> to vector<12x6xf32>
    %526 = arith.mulf %523, %525 : vector<12x6xf32>
    %527 = vector.extract_strided_slice %437 {offsets = [0, 10], sizes = [12, 1], strides = [1, 1]} : vector<12x13xf32> to vector<12x1xf32>
    %528 = vector.broadcast %527 : vector<12x1xf32> to vector<12x6xf32>
    %529 = arith.addf %526, %528 : vector<12x6xf32>
    %cst_43 = arith.constant dense<0.000000e+00> : vector<12x6xf32>
    %530 = tpu.matmul %438, %529, %cst_43 {dimension_numbers = #tpu.dot_dimension_numbers<[1], [0], [0], [1], [0, 0, 1, 1], [], []>} : vector<12x12xf32>, vector<12x6xf32>, vector<12x6xf32> -> vector<12x6xf32>
    %531 = vector.extract_strided_slice %437 {offsets = [0, 11], sizes = [12, 1], strides = [1, 1]} : vector<12x13xf32> to vector<12x1xf32>
    %532 = vector.broadcast %531 : vector<12x1xf32> to vector<12x6xf32>
    %533 = arith.addf %530, %532 : vector<12x6xf32>
    %534 = tpu.concatenate %533, %533, %533, %533, %533, %533, %533, %533, %533, %533 in 1 : vector<12x6xf32>, vector<12x6xf32>, vector<12x6xf32>, vector<12x6xf32>, vector<12x6xf32>, vector<12x6xf32>, vector<12x6xf32>, vector<12x6xf32>, vector<12x6xf32>, vector<12x6xf32> -> vector<12x60xf32>
    %535 = arith.addf %478, %534 : vector<12x60xf32>
    %cst_44 = arith.constant 0.000000e+00 : f32
    %536 = vector.broadcast %cst_44 : f32 to vector<12x60xf32>
    %537 = arith.maximumf %535, %536 : vector<12x60xf32>
    %c0_45 = arith.constant 0 : index
    %c0_46 = arith.constant 0 : index
    %538 = vector.load %arg10[%c0_45, %c0_46] : memref<12x13xf32, #tpu.memory_space<vmem>>, vector<12x13xf32>
    %c0_47 = arith.constant 0 : index
    %c0_48 = arith.constant 0 : index
    %539 = vector.load %arg11[%c0_47, %c0_48] : memref<12x12xf32, #tpu.memory_space<vmem>>, vector<12x12xf32>
    %cst_49 = arith.constant 0.000000e+00 : f32
    %540 = vector.broadcast %cst_49 : f32 to vector<12x6xf32>
    %541 = vector.extract_strided_slice %537 {offsets = [0, 0], sizes = [12, 54], strides = [1, 1]} : vector<12x60xf32> to vector<12x54xf32>
    %542 = tpu.concatenate %540, %541 in 1 : vector<12x6xf32>, vector<12x54xf32> -> vector<12x60xf32>
    %543 = vector.extract_strided_slice %537 {offsets = [0, 6], sizes = [12, 54], strides = [1, 1]} : vector<12x60xf32> to vector<12x54xf32>
    %544 = tpu.concatenate %543, %540 in 1 : vector<12x54xf32>, vector<12x6xf32> -> vector<12x60xf32>
    %545 = vector.extract_strided_slice %538 {offsets = [0, 0], sizes = [12, 1], strides = [1, 1]} : vector<12x13xf32> to vector<12x1xf32>
    %546 = vector.broadcast %545 : vector<12x1xf32> to vector<12x60xf32>
    %547 = arith.mulf %546, %542 : vector<12x60xf32>
    %548 = vector.extract_strided_slice %538 {offsets = [0, 1], sizes = [12, 1], strides = [1, 1]} : vector<12x13xf32> to vector<12x1xf32>
    %549 = vector.broadcast %548 : vector<12x1xf32> to vector<12x60xf32>
    %550 = arith.mulf %549, %537 : vector<12x60xf32>
    %551 = arith.addf %547, %550 : vector<12x60xf32>
    %552 = vector.extract_strided_slice %538 {offsets = [0, 2], sizes = [12, 1], strides = [1, 1]} : vector<12x13xf32> to vector<12x1xf32>
    %553 = vector.broadcast %552 : vector<12x1xf32> to vector<12x60xf32>
    %554 = arith.mulf %553, %544 : vector<12x60xf32>
    %555 = arith.addf %551, %554 : vector<12x60xf32>
    %556 = vector.extract_strided_slice %538 {offsets = [0, 3], sizes = [12, 1], strides = [1, 1]} : vector<12x13xf32> to vector<12x1xf32>
    %557 = vector.broadcast %556 : vector<12x1xf32> to vector<12x60xf32>
    %558 = arith.addf %555, %557 : vector<12x60xf32>
    %cst_50 = arith.constant 0.000000e+00 : f32
    %559 = vector.broadcast %cst_50 : f32 to vector<12x60xf32>
    %560 = arith.subf %559, %558 : vector<12x60xf32>
    %561 = math.exp %560 : vector<12x60xf32>
    %cst_51 = arith.constant 1.000000e+00 : f32
    %562 = vector.broadcast %cst_51 : f32 to vector<12x60xf32>
    %563 = arith.addf %562, %561 : vector<12x60xf32>
    %cst_52 = arith.constant 1.000000e+00 : f32
    %564 = vector.broadcast %cst_52 : f32 to vector<12x60xf32>
    %565 = arith.divf %564, %563 : vector<12x60xf32>
    %566 = arith.mulf %558, %565 : vector<12x60xf32>
    %567 = vector.extract_strided_slice %538 {offsets = [0, 4], sizes = [12, 1], strides = [1, 1]} : vector<12x13xf32> to vector<12x1xf32>
    %568 = vector.broadcast %567 : vector<12x1xf32> to vector<12x60xf32>
    %569 = arith.mulf %566, %568 : vector<12x60xf32>
    %570 = vector.extract_strided_slice %538 {offsets = [0, 5], sizes = [12, 1], strides = [1, 1]} : vector<12x13xf32> to vector<12x1xf32>
    %571 = vector.broadcast %570 : vector<12x1xf32> to vector<12x60xf32>
    %572 = arith.addf %569, %571 : vector<12x60xf32>
    %573 = vector.extract_strided_slice %572 {offsets = [0, 0], sizes = [12, 6], strides = [1, 1]} : vector<12x60xf32> to vector<12x6xf32>
    %574 = vector.extract_strided_slice %572 {offsets = [0, 6], sizes = [12, 6], strides = [1, 1]} : vector<12x60xf32> to vector<12x6xf32>
    %575 = arith.addf %573, %574 : vector<12x6xf32>
    %576 = vector.extract_strided_slice %572 {offsets = [0, 12], sizes = [12, 6], strides = [1, 1]} : vector<12x60xf32> to vector<12x6xf32>
    %577 = arith.addf %575, %576 : vector<12x6xf32>
    %578 = vector.extract_strided_slice %572 {offsets = [0, 18], sizes = [12, 6], strides = [1, 1]} : vector<12x60xf32> to vector<12x6xf32>
    %579 = arith.addf %577, %578 : vector<12x6xf32>
    %580 = vector.extract_strided_slice %572 {offsets = [0, 24], sizes = [12, 6], strides = [1, 1]} : vector<12x60xf32> to vector<12x6xf32>
    %581 = arith.addf %579, %580 : vector<12x6xf32>
    %582 = vector.extract_strided_slice %572 {offsets = [0, 30], sizes = [12, 6], strides = [1, 1]} : vector<12x60xf32> to vector<12x6xf32>
    %583 = arith.addf %581, %582 : vector<12x6xf32>
    %584 = vector.extract_strided_slice %572 {offsets = [0, 36], sizes = [12, 6], strides = [1, 1]} : vector<12x60xf32> to vector<12x6xf32>
    %585 = arith.addf %583, %584 : vector<12x6xf32>
    %586 = vector.extract_strided_slice %572 {offsets = [0, 42], sizes = [12, 6], strides = [1, 1]} : vector<12x60xf32> to vector<12x6xf32>
    %587 = arith.addf %585, %586 : vector<12x6xf32>
    %588 = vector.extract_strided_slice %572 {offsets = [0, 48], sizes = [12, 6], strides = [1, 1]} : vector<12x60xf32> to vector<12x6xf32>
    %589 = arith.addf %587, %588 : vector<12x6xf32>
    %590 = vector.extract_strided_slice %572 {offsets = [0, 54], sizes = [12, 6], strides = [1, 1]} : vector<12x60xf32> to vector<12x6xf32>
    %591 = arith.addf %589, %590 : vector<12x6xf32>
    %cst_53 = arith.constant 1.000000e-01 : f32
    %592 = vector.broadcast %cst_53 : f32 to vector<12x6xf32>
    %593 = arith.mulf %591, %592 : vector<12x6xf32>
    %cst_54 = arith.constant 0.000000e+00 : f32
    %594 = vector.broadcast %cst_54 : f32 to vector<12x1xf32>
    %595 = vector.extract_strided_slice %593 {offsets = [0, 0], sizes = [12, 5], strides = [1, 1]} : vector<12x6xf32> to vector<12x5xf32>
    %596 = tpu.concatenate %594, %595 in 1 : vector<12x1xf32>, vector<12x5xf32> -> vector<12x6xf32>
    %597 = vector.extract_strided_slice %593 {offsets = [0, 1], sizes = [12, 5], strides = [1, 1]} : vector<12x6xf32> to vector<12x5xf32>
    %598 = tpu.concatenate %597, %594 in 1 : vector<12x5xf32>, vector<12x1xf32> -> vector<12x6xf32>
    %599 = vector.extract_strided_slice %538 {offsets = [0, 6], sizes = [12, 1], strides = [1, 1]} : vector<12x13xf32> to vector<12x1xf32>
    %600 = vector.broadcast %599 : vector<12x1xf32> to vector<12x6xf32>
    %601 = arith.mulf %600, %596 : vector<12x6xf32>
    %602 = vector.extract_strided_slice %538 {offsets = [0, 7], sizes = [12, 1], strides = [1, 1]} : vector<12x13xf32> to vector<12x1xf32>
    %603 = vector.broadcast %602 : vector<12x1xf32> to vector<12x6xf32>
    %604 = arith.mulf %603, %593 : vector<12x6xf32>
    %605 = arith.addf %601, %604 : vector<12x6xf32>
    %606 = vector.extract_strided_slice %538 {offsets = [0, 8], sizes = [12, 1], strides = [1, 1]} : vector<12x13xf32> to vector<12x1xf32>
    %607 = vector.broadcast %606 : vector<12x1xf32> to vector<12x6xf32>
    %608 = arith.mulf %607, %598 : vector<12x6xf32>
    %609 = arith.addf %605, %608 : vector<12x6xf32>
    %cst_55 = arith.constant 0.000000e+00 : f32
    %610 = vector.broadcast %cst_55 : f32 to vector<12x6xf32>
    %611 = arith.subf %610, %609 : vector<12x6xf32>
    %612 = math.exp %611 : vector<12x6xf32>
    %cst_56 = arith.constant 1.000000e+00 : f32
    %613 = vector.broadcast %cst_56 : f32 to vector<12x6xf32>
    %614 = arith.addf %613, %612 : vector<12x6xf32>
    %cst_57 = arith.constant 1.000000e+00 : f32
    %615 = vector.broadcast %cst_57 : f32 to vector<12x6xf32>
    %616 = arith.divf %615, %614 : vector<12x6xf32>
    %617 = arith.mulf %609, %616 : vector<12x6xf32>
    %618 = vector.extract_strided_slice %538 {offsets = [0, 9], sizes = [12, 1], strides = [1, 1]} : vector<12x13xf32> to vector<12x1xf32>
    %619 = vector.broadcast %618 : vector<12x1xf32> to vector<12x6xf32>
    %620 = arith.mulf %617, %619 : vector<12x6xf32>
    %621 = vector.extract_strided_slice %538 {offsets = [0, 10], sizes = [12, 1], strides = [1, 1]} : vector<12x13xf32> to vector<12x1xf32>
    %622 = vector.broadcast %621 : vector<12x1xf32> to vector<12x6xf32>
    %623 = arith.addf %620, %622 : vector<12x6xf32>
    %cst_58 = arith.constant dense<0.000000e+00> : vector<12x6xf32>
    %624 = tpu.matmul %539, %623, %cst_58 {dimension_numbers = #tpu.dot_dimension_numbers<[1], [0], [0], [1], [0, 0, 1, 1], [], []>} : vector<12x12xf32>, vector<12x6xf32>, vector<12x6xf32> -> vector<12x6xf32>
    %625 = vector.extract_strided_slice %538 {offsets = [0, 11], sizes = [12, 1], strides = [1, 1]} : vector<12x13xf32> to vector<12x1xf32>
    %626 = vector.broadcast %625 : vector<12x1xf32> to vector<12x6xf32>
    %627 = arith.addf %624, %626 : vector<12x6xf32>
    %628 = tpu.concatenate %627, %627, %627, %627, %627, %627, %627, %627, %627, %627 in 1 : vector<12x6xf32>, vector<12x6xf32>, vector<12x6xf32>, vector<12x6xf32>, vector<12x6xf32>, vector<12x6xf32>, vector<12x6xf32>, vector<12x6xf32>, vector<12x6xf32>, vector<12x6xf32> -> vector<12x60xf32>
    %629 = arith.addf %572, %628 : vector<12x60xf32>
    %630 = arith.addf %629, %537 : vector<12x60xf32>
    %cst_59 = arith.constant 0.000000e+00 : f32
    %631 = vector.broadcast %cst_59 : f32 to vector<12x60xf32>
    %632 = arith.maximumf %630, %631 : vector<12x60xf32>
    %c0_60 = arith.constant 0 : index
    %c0_61 = arith.constant 0 : index
    %633 = vector.load %arg13[%c0_60, %c0_61] : memref<16x13xf32, #tpu.memory_space<vmem>>, vector<16x13xf32>
    %c0_62 = arith.constant 0 : index
    %c0_63 = arith.constant 0 : index
    %634 = vector.load %arg14[%c0_62, %c0_63] : memref<16x16xf32, #tpu.memory_space<vmem>>, vector<16x16xf32>
    %c0_64 = arith.constant 0 : index
    %c0_65 = arith.constant 0 : index
    %635 = vector.load %arg12[%c0_64, %c0_65] : memref<16x12xf32, #tpu.memory_space<vmem>>, vector<16x12xf32>
    %cst_66 = arith.constant dense<0.000000e+00> : vector<16x60xf32>
    %636 = tpu.matmul %635, %632, %cst_66 {dimension_numbers = #tpu.dot_dimension_numbers<[1], [0], [0], [1], [0, 0, 1, 1], [], []>} : vector<16x12xf32>, vector<12x60xf32>, vector<16x60xf32> -> vector<16x60xf32>
    %637 = vector.extract_strided_slice %633 {offsets = [0, 12], sizes = [16, 1], strides = [1, 1]} : vector<16x13xf32> to vector<16x1xf32>
    %638 = vector.broadcast %637 : vector<16x1xf32> to vector<16x60xf32>
    %639 = arith.addf %636, %638 : vector<16x60xf32>
    %cst_67 = arith.constant 0.000000e+00 : f32
    %640 = vector.broadcast %cst_67 : f32 to vector<16x60xf32>
    %641 = arith.maximumf %639, %640 : vector<16x60xf32>
    %cst_68 = arith.constant 0.000000e+00 : f32
    %642 = vector.broadcast %cst_68 : f32 to vector<16x6xf32>
    %643 = vector.extract_strided_slice %641 {offsets = [0, 0], sizes = [16, 54], strides = [1, 1]} : vector<16x60xf32> to vector<16x54xf32>
    %644 = tpu.concatenate %642, %643 in 1 : vector<16x6xf32>, vector<16x54xf32> -> vector<16x60xf32>
    %645 = vector.extract_strided_slice %641 {offsets = [0, 6], sizes = [16, 54], strides = [1, 1]} : vector<16x60xf32> to vector<16x54xf32>
    %646 = tpu.concatenate %645, %642 in 1 : vector<16x54xf32>, vector<16x6xf32> -> vector<16x60xf32>
    %647 = vector.extract_strided_slice %633 {offsets = [0, 0], sizes = [16, 1], strides = [1, 1]} : vector<16x13xf32> to vector<16x1xf32>
    %648 = vector.broadcast %647 : vector<16x1xf32> to vector<16x60xf32>
    %649 = arith.mulf %648, %644 : vector<16x60xf32>
    %650 = vector.extract_strided_slice %633 {offsets = [0, 1], sizes = [16, 1], strides = [1, 1]} : vector<16x13xf32> to vector<16x1xf32>
    %651 = vector.broadcast %650 : vector<16x1xf32> to vector<16x60xf32>
    %652 = arith.mulf %651, %641 : vector<16x60xf32>
    %653 = arith.addf %649, %652 : vector<16x60xf32>
    %654 = vector.extract_strided_slice %633 {offsets = [0, 2], sizes = [16, 1], strides = [1, 1]} : vector<16x13xf32> to vector<16x1xf32>
    %655 = vector.broadcast %654 : vector<16x1xf32> to vector<16x60xf32>
    %656 = arith.mulf %655, %646 : vector<16x60xf32>
    %657 = arith.addf %653, %656 : vector<16x60xf32>
    %658 = vector.extract_strided_slice %633 {offsets = [0, 3], sizes = [16, 1], strides = [1, 1]} : vector<16x13xf32> to vector<16x1xf32>
    %659 = vector.broadcast %658 : vector<16x1xf32> to vector<16x60xf32>
    %660 = arith.addf %657, %659 : vector<16x60xf32>
    %661 = vector.extract_strided_slice %660 {offsets = [0, 0], sizes = [16, 6], strides = [1, 1]} : vector<16x60xf32> to vector<16x6xf32>
    %662 = vector.extract_strided_slice %660 {offsets = [0, 12], sizes = [16, 6], strides = [1, 1]} : vector<16x60xf32> to vector<16x6xf32>
    %663 = vector.extract_strided_slice %660 {offsets = [0, 24], sizes = [16, 6], strides = [1, 1]} : vector<16x60xf32> to vector<16x6xf32>
    %664 = vector.extract_strided_slice %660 {offsets = [0, 36], sizes = [16, 6], strides = [1, 1]} : vector<16x60xf32> to vector<16x6xf32>
    %665 = vector.extract_strided_slice %660 {offsets = [0, 48], sizes = [16, 6], strides = [1, 1]} : vector<16x60xf32> to vector<16x6xf32>
    %666 = tpu.concatenate %661, %662, %663, %664, %665 in 1 : vector<16x6xf32>, vector<16x6xf32>, vector<16x6xf32>, vector<16x6xf32>, vector<16x6xf32> -> vector<16x30xf32>
    %cst_69 = arith.constant 0.000000e+00 : f32
    %667 = vector.broadcast %cst_69 : f32 to vector<16x30xf32>
    %668 = arith.subf %667, %666 : vector<16x30xf32>
    %669 = math.exp %668 : vector<16x30xf32>
    %cst_70 = arith.constant 1.000000e+00 : f32
    %670 = vector.broadcast %cst_70 : f32 to vector<16x30xf32>
    %671 = arith.addf %670, %669 : vector<16x30xf32>
    %cst_71 = arith.constant 1.000000e+00 : f32
    %672 = vector.broadcast %cst_71 : f32 to vector<16x30xf32>
    %673 = arith.divf %672, %671 : vector<16x30xf32>
    %674 = arith.mulf %666, %673 : vector<16x30xf32>
    %675 = vector.extract_strided_slice %633 {offsets = [0, 4], sizes = [16, 1], strides = [1, 1]} : vector<16x13xf32> to vector<16x1xf32>
    %676 = vector.broadcast %675 : vector<16x1xf32> to vector<16x30xf32>
    %677 = arith.mulf %674, %676 : vector<16x30xf32>
    %678 = vector.extract_strided_slice %633 {offsets = [0, 5], sizes = [16, 1], strides = [1, 1]} : vector<16x13xf32> to vector<16x1xf32>
    %679 = vector.broadcast %678 : vector<16x1xf32> to vector<16x30xf32>
    %680 = arith.addf %677, %679 : vector<16x30xf32>
    %681 = vector.extract_strided_slice %680 {offsets = [0, 0], sizes = [16, 6], strides = [1, 1]} : vector<16x30xf32> to vector<16x6xf32>
    %682 = vector.extract_strided_slice %680 {offsets = [0, 6], sizes = [16, 6], strides = [1, 1]} : vector<16x30xf32> to vector<16x6xf32>
    %683 = arith.addf %681, %682 : vector<16x6xf32>
    %684 = vector.extract_strided_slice %680 {offsets = [0, 12], sizes = [16, 6], strides = [1, 1]} : vector<16x30xf32> to vector<16x6xf32>
    %685 = arith.addf %683, %684 : vector<16x6xf32>
    %686 = vector.extract_strided_slice %680 {offsets = [0, 18], sizes = [16, 6], strides = [1, 1]} : vector<16x30xf32> to vector<16x6xf32>
    %687 = arith.addf %685, %686 : vector<16x6xf32>
    %688 = vector.extract_strided_slice %680 {offsets = [0, 24], sizes = [16, 6], strides = [1, 1]} : vector<16x30xf32> to vector<16x6xf32>
    %689 = arith.addf %687, %688 : vector<16x6xf32>
    %cst_72 = arith.constant 2.000000e-01 : f32
    %690 = vector.broadcast %cst_72 : f32 to vector<16x6xf32>
    %691 = arith.mulf %689, %690 : vector<16x6xf32>
    %cst_73 = arith.constant 0.000000e+00 : f32
    %692 = vector.broadcast %cst_73 : f32 to vector<16x1xf32>
    %693 = vector.extract_strided_slice %691 {offsets = [0, 0], sizes = [16, 5], strides = [1, 1]} : vector<16x6xf32> to vector<16x5xf32>
    %694 = tpu.concatenate %692, %693 in 1 : vector<16x1xf32>, vector<16x5xf32> -> vector<16x6xf32>
    %695 = vector.extract_strided_slice %691 {offsets = [0, 1], sizes = [16, 5], strides = [1, 1]} : vector<16x6xf32> to vector<16x5xf32>
    %696 = tpu.concatenate %695, %692 in 1 : vector<16x5xf32>, vector<16x1xf32> -> vector<16x6xf32>
    %697 = vector.extract_strided_slice %633 {offsets = [0, 6], sizes = [16, 1], strides = [1, 1]} : vector<16x13xf32> to vector<16x1xf32>
    %698 = vector.broadcast %697 : vector<16x1xf32> to vector<16x6xf32>
    %699 = arith.mulf %698, %694 : vector<16x6xf32>
    %700 = vector.extract_strided_slice %633 {offsets = [0, 7], sizes = [16, 1], strides = [1, 1]} : vector<16x13xf32> to vector<16x1xf32>
    %701 = vector.broadcast %700 : vector<16x1xf32> to vector<16x6xf32>
    %702 = arith.mulf %701, %691 : vector<16x6xf32>
    %703 = arith.addf %699, %702 : vector<16x6xf32>
    %704 = vector.extract_strided_slice %633 {offsets = [0, 8], sizes = [16, 1], strides = [1, 1]} : vector<16x13xf32> to vector<16x1xf32>
    %705 = vector.broadcast %704 : vector<16x1xf32> to vector<16x6xf32>
    %706 = arith.mulf %705, %696 : vector<16x6xf32>
    %707 = arith.addf %703, %706 : vector<16x6xf32>
    %cst_74 = arith.constant 0.000000e+00 : f32
    %708 = vector.broadcast %cst_74 : f32 to vector<16x6xf32>
    %709 = arith.subf %708, %707 : vector<16x6xf32>
    %710 = math.exp %709 : vector<16x6xf32>
    %cst_75 = arith.constant 1.000000e+00 : f32
    %711 = vector.broadcast %cst_75 : f32 to vector<16x6xf32>
    %712 = arith.addf %711, %710 : vector<16x6xf32>
    %cst_76 = arith.constant 1.000000e+00 : f32
    %713 = vector.broadcast %cst_76 : f32 to vector<16x6xf32>
    %714 = arith.divf %713, %712 : vector<16x6xf32>
    %715 = arith.mulf %707, %714 : vector<16x6xf32>
    %716 = vector.extract_strided_slice %633 {offsets = [0, 9], sizes = [16, 1], strides = [1, 1]} : vector<16x13xf32> to vector<16x1xf32>
    %717 = vector.broadcast %716 : vector<16x1xf32> to vector<16x6xf32>
    %718 = arith.mulf %715, %717 : vector<16x6xf32>
    %719 = vector.extract_strided_slice %633 {offsets = [0, 10], sizes = [16, 1], strides = [1, 1]} : vector<16x13xf32> to vector<16x1xf32>
    %720 = vector.broadcast %719 : vector<16x1xf32> to vector<16x6xf32>
    %721 = arith.addf %718, %720 : vector<16x6xf32>
    %cst_77 = arith.constant dense<0.000000e+00> : vector<16x6xf32>
    %722 = tpu.matmul %634, %721, %cst_77 {dimension_numbers = #tpu.dot_dimension_numbers<[1], [0], [0], [1], [0, 0, 1, 1], [], []>} : vector<16x16xf32>, vector<16x6xf32>, vector<16x6xf32> -> vector<16x6xf32>
    %723 = vector.extract_strided_slice %633 {offsets = [0, 11], sizes = [16, 1], strides = [1, 1]} : vector<16x13xf32> to vector<16x1xf32>
    %724 = vector.broadcast %723 : vector<16x1xf32> to vector<16x6xf32>
    %725 = arith.addf %722, %724 : vector<16x6xf32>
    %726 = tpu.concatenate %725, %725, %725, %725, %725 in 1 : vector<16x6xf32>, vector<16x6xf32>, vector<16x6xf32>, vector<16x6xf32>, vector<16x6xf32> -> vector<16x30xf32>
    %727 = arith.addf %680, %726 : vector<16x30xf32>
    %cst_78 = arith.constant 0.000000e+00 : f32
    %728 = vector.broadcast %cst_78 : f32 to vector<16x30xf32>
    %729 = arith.maximumf %727, %728 : vector<16x30xf32>
    %c0_79 = arith.constant 0 : index
    %c0_80 = arith.constant 0 : index
    %730 = vector.load %arg16[%c0_79, %c0_80] : memref<20x13xf32, #tpu.memory_space<vmem>>, vector<20x13xf32>
    %c0_81 = arith.constant 0 : index
    %c0_82 = arith.constant 0 : index
    %731 = vector.load %arg17[%c0_81, %c0_82] : memref<20x20xf32, #tpu.memory_space<vmem>>, vector<20x20xf32>
    %c0_83 = arith.constant 0 : index
    %c0_84 = arith.constant 0 : index
    %732 = vector.load %arg15[%c0_83, %c0_84] : memref<20x16xf32, #tpu.memory_space<vmem>>, vector<20x16xf32>
    %cst_85 = arith.constant dense<0.000000e+00> : vector<20x30xf32>
    %733 = tpu.matmul %732, %729, %cst_85 {dimension_numbers = #tpu.dot_dimension_numbers<[1], [0], [0], [1], [0, 0, 1, 1], [], []>} : vector<20x16xf32>, vector<16x30xf32>, vector<20x30xf32> -> vector<20x30xf32>
    %734 = vector.extract_strided_slice %730 {offsets = [0, 12], sizes = [20, 1], strides = [1, 1]} : vector<20x13xf32> to vector<20x1xf32>
    %735 = vector.broadcast %734 : vector<20x1xf32> to vector<20x30xf32>
    %736 = arith.addf %733, %735 : vector<20x30xf32>
    %cst_86 = arith.constant 0.000000e+00 : f32
    %737 = vector.broadcast %cst_86 : f32 to vector<20x30xf32>
    %738 = arith.maximumf %736, %737 : vector<20x30xf32>
    %cst_87 = arith.constant 0.000000e+00 : f32
    %739 = vector.broadcast %cst_87 : f32 to vector<20x6xf32>
    %740 = vector.extract_strided_slice %738 {offsets = [0, 0], sizes = [20, 24], strides = [1, 1]} : vector<20x30xf32> to vector<20x24xf32>
    %741 = tpu.concatenate %739, %740 in 1 : vector<20x6xf32>, vector<20x24xf32> -> vector<20x30xf32>
    %742 = vector.extract_strided_slice %738 {offsets = [0, 6], sizes = [20, 24], strides = [1, 1]} : vector<20x30xf32> to vector<20x24xf32>
    %743 = tpu.concatenate %742, %739 in 1 : vector<20x24xf32>, vector<20x6xf32> -> vector<20x30xf32>
    %744 = vector.extract_strided_slice %730 {offsets = [0, 0], sizes = [20, 1], strides = [1, 1]} : vector<20x13xf32> to vector<20x1xf32>
    %745 = vector.broadcast %744 : vector<20x1xf32> to vector<20x30xf32>
    %746 = arith.mulf %745, %741 : vector<20x30xf32>
    %747 = vector.extract_strided_slice %730 {offsets = [0, 1], sizes = [20, 1], strides = [1, 1]} : vector<20x13xf32> to vector<20x1xf32>
    %748 = vector.broadcast %747 : vector<20x1xf32> to vector<20x30xf32>
    %749 = arith.mulf %748, %738 : vector<20x30xf32>
    %750 = arith.addf %746, %749 : vector<20x30xf32>
    %751 = vector.extract_strided_slice %730 {offsets = [0, 2], sizes = [20, 1], strides = [1, 1]} : vector<20x13xf32> to vector<20x1xf32>
    %752 = vector.broadcast %751 : vector<20x1xf32> to vector<20x30xf32>
    %753 = arith.mulf %752, %743 : vector<20x30xf32>
    %754 = arith.addf %750, %753 : vector<20x30xf32>
    %755 = vector.extract_strided_slice %730 {offsets = [0, 3], sizes = [20, 1], strides = [1, 1]} : vector<20x13xf32> to vector<20x1xf32>
    %756 = vector.broadcast %755 : vector<20x1xf32> to vector<20x30xf32>
    %757 = arith.addf %754, %756 : vector<20x30xf32>
    %cst_88 = arith.constant 0.000000e+00 : f32
    %758 = vector.broadcast %cst_88 : f32 to vector<20x30xf32>
    %759 = arith.subf %758, %757 : vector<20x30xf32>
    %760 = math.exp %759 : vector<20x30xf32>
    %cst_89 = arith.constant 1.000000e+00 : f32
    %761 = vector.broadcast %cst_89 : f32 to vector<20x30xf32>
    %762 = arith.addf %761, %760 : vector<20x30xf32>
    %cst_90 = arith.constant 1.000000e+00 : f32
    %763 = vector.broadcast %cst_90 : f32 to vector<20x30xf32>
    %764 = arith.divf %763, %762 : vector<20x30xf32>
    %765 = arith.mulf %757, %764 : vector<20x30xf32>
    %766 = vector.extract_strided_slice %730 {offsets = [0, 4], sizes = [20, 1], strides = [1, 1]} : vector<20x13xf32> to vector<20x1xf32>
    %767 = vector.broadcast %766 : vector<20x1xf32> to vector<20x30xf32>
    %768 = arith.mulf %765, %767 : vector<20x30xf32>
    %769 = vector.extract_strided_slice %730 {offsets = [0, 5], sizes = [20, 1], strides = [1, 1]} : vector<20x13xf32> to vector<20x1xf32>
    %770 = vector.broadcast %769 : vector<20x1xf32> to vector<20x30xf32>
    %771 = arith.addf %768, %770 : vector<20x30xf32>
    %772 = vector.extract_strided_slice %771 {offsets = [0, 0], sizes = [20, 6], strides = [1, 1]} : vector<20x30xf32> to vector<20x6xf32>
    %773 = vector.extract_strided_slice %771 {offsets = [0, 6], sizes = [20, 6], strides = [1, 1]} : vector<20x30xf32> to vector<20x6xf32>
    %774 = arith.addf %772, %773 : vector<20x6xf32>
    %775 = vector.extract_strided_slice %771 {offsets = [0, 12], sizes = [20, 6], strides = [1, 1]} : vector<20x30xf32> to vector<20x6xf32>
    %776 = arith.addf %774, %775 : vector<20x6xf32>
    %777 = vector.extract_strided_slice %771 {offsets = [0, 18], sizes = [20, 6], strides = [1, 1]} : vector<20x30xf32> to vector<20x6xf32>
    %778 = arith.addf %776, %777 : vector<20x6xf32>
    %779 = vector.extract_strided_slice %771 {offsets = [0, 24], sizes = [20, 6], strides = [1, 1]} : vector<20x30xf32> to vector<20x6xf32>
    %780 = arith.addf %778, %779 : vector<20x6xf32>
    %cst_91 = arith.constant 2.000000e-01 : f32
    %781 = vector.broadcast %cst_91 : f32 to vector<20x6xf32>
    %782 = arith.mulf %780, %781 : vector<20x6xf32>
    %cst_92 = arith.constant 0.000000e+00 : f32
    %783 = vector.broadcast %cst_92 : f32 to vector<20x1xf32>
    %784 = vector.extract_strided_slice %782 {offsets = [0, 0], sizes = [20, 5], strides = [1, 1]} : vector<20x6xf32> to vector<20x5xf32>
    %785 = tpu.concatenate %783, %784 in 1 : vector<20x1xf32>, vector<20x5xf32> -> vector<20x6xf32>
    %786 = vector.extract_strided_slice %782 {offsets = [0, 1], sizes = [20, 5], strides = [1, 1]} : vector<20x6xf32> to vector<20x5xf32>
    %787 = tpu.concatenate %786, %783 in 1 : vector<20x5xf32>, vector<20x1xf32> -> vector<20x6xf32>
    %788 = vector.extract_strided_slice %730 {offsets = [0, 6], sizes = [20, 1], strides = [1, 1]} : vector<20x13xf32> to vector<20x1xf32>
    %789 = vector.broadcast %788 : vector<20x1xf32> to vector<20x6xf32>
    %790 = arith.mulf %789, %785 : vector<20x6xf32>
    %791 = vector.extract_strided_slice %730 {offsets = [0, 7], sizes = [20, 1], strides = [1, 1]} : vector<20x13xf32> to vector<20x1xf32>
    %792 = vector.broadcast %791 : vector<20x1xf32> to vector<20x6xf32>
    %793 = arith.mulf %792, %782 : vector<20x6xf32>
    %794 = arith.addf %790, %793 : vector<20x6xf32>
    %795 = vector.extract_strided_slice %730 {offsets = [0, 8], sizes = [20, 1], strides = [1, 1]} : vector<20x13xf32> to vector<20x1xf32>
    %796 = vector.broadcast %795 : vector<20x1xf32> to vector<20x6xf32>
    %797 = arith.mulf %796, %787 : vector<20x6xf32>
    %798 = arith.addf %794, %797 : vector<20x6xf32>
    %cst_93 = arith.constant 0.000000e+00 : f32
    %799 = vector.broadcast %cst_93 : f32 to vector<20x6xf32>
    %800 = arith.subf %799, %798 : vector<20x6xf32>
    %801 = math.exp %800 : vector<20x6xf32>
    %cst_94 = arith.constant 1.000000e+00 : f32
    %802 = vector.broadcast %cst_94 : f32 to vector<20x6xf32>
    %803 = arith.addf %802, %801 : vector<20x6xf32>
    %cst_95 = arith.constant 1.000000e+00 : f32
    %804 = vector.broadcast %cst_95 : f32 to vector<20x6xf32>
    %805 = arith.divf %804, %803 : vector<20x6xf32>
    %806 = arith.mulf %798, %805 : vector<20x6xf32>
    %807 = vector.extract_strided_slice %730 {offsets = [0, 9], sizes = [20, 1], strides = [1, 1]} : vector<20x13xf32> to vector<20x1xf32>
    %808 = vector.broadcast %807 : vector<20x1xf32> to vector<20x6xf32>
    %809 = arith.mulf %806, %808 : vector<20x6xf32>
    %810 = vector.extract_strided_slice %730 {offsets = [0, 10], sizes = [20, 1], strides = [1, 1]} : vector<20x13xf32> to vector<20x1xf32>
    %811 = vector.broadcast %810 : vector<20x1xf32> to vector<20x6xf32>
    %812 = arith.addf %809, %811 : vector<20x6xf32>
    %cst_96 = arith.constant dense<0.000000e+00> : vector<20x6xf32>
    %813 = tpu.matmul %731, %812, %cst_96 {dimension_numbers = #tpu.dot_dimension_numbers<[1], [0], [0], [1], [0, 0, 1, 1], [], []>} : vector<20x20xf32>, vector<20x6xf32>, vector<20x6xf32> -> vector<20x6xf32>
    %814 = vector.extract_strided_slice %730 {offsets = [0, 11], sizes = [20, 1], strides = [1, 1]} : vector<20x13xf32> to vector<20x1xf32>
    %815 = vector.broadcast %814 : vector<20x1xf32> to vector<20x6xf32>
    %816 = arith.addf %813, %815 : vector<20x6xf32>
    %817 = tpu.concatenate %816, %816, %816, %816, %816 in 1 : vector<20x6xf32>, vector<20x6xf32>, vector<20x6xf32>, vector<20x6xf32>, vector<20x6xf32> -> vector<20x30xf32>
    %818 = arith.addf %771, %817 : vector<20x30xf32>
    %cst_97 = arith.constant 0.000000e+00 : f32
    %819 = vector.broadcast %cst_97 : f32 to vector<20x30xf32>
    %820 = arith.maximumf %818, %819 : vector<20x30xf32>
    %c0_98 = arith.constant 0 : index
    %c0_99 = arith.constant 0 : index
    %821 = vector.load %arg18[%c0_98, %c0_99] : memref<20x25xf32, #tpu.memory_space<vmem>>, vector<20x25xf32>
    %c0_100 = arith.constant 0 : index
    %c0_101 = arith.constant 0 : index
    %822 = vector.load %arg19[%c0_100, %c0_101] : memref<32x20xf32, #tpu.memory_space<vmem>>, vector<32x20xf32>
    %c0_102 = arith.constant 0 : index
    %c0_103 = arith.constant 0 : index
    %823 = vector.load %arg20[%c0_102, %c0_103] : memref<2x32xf32, #tpu.memory_space<vmem>>, vector<2x32xf32>
    %cst_104 = arith.constant 0.000000e+00 : f32
    %824 = vector.broadcast %cst_104 : f32 to vector<20x2xf32>
    %cst_105 = arith.constant 0.000000e+00 : f32
    %825 = vector.broadcast %cst_105 : f32 to vector<20x6xf32>
    %826 = vector.extract_strided_slice %820 {offsets = [0, 0], sizes = [20, 6], strides = [1, 1]} : vector<20x30xf32> to vector<20x6xf32>
    %827 = tpu.concatenate %824, %826, %824 in 1 : vector<20x2xf32>, vector<20x6xf32>, vector<20x2xf32> -> vector<20x10xf32>
    %828 = vector.extract_strided_slice %821 {offsets = [0, 0], sizes = [20, 1], strides = [1, 1]} : vector<20x25xf32> to vector<20x1xf32>
    %829 = vector.extract_strided_slice %827 {offsets = [0, 0], sizes = [20, 6], strides = [1, 1]} : vector<20x10xf32> to vector<20x6xf32>
    %830 = vector.broadcast %828 : vector<20x1xf32> to vector<20x6xf32>
    %831 = arith.mulf %830, %829 : vector<20x6xf32>
    %832 = arith.addf %825, %831 : vector<20x6xf32>
    %833 = vector.extract_strided_slice %821 {offsets = [0, 1], sizes = [20, 1], strides = [1, 1]} : vector<20x25xf32> to vector<20x1xf32>
    %834 = vector.extract_strided_slice %827 {offsets = [0, 1], sizes = [20, 6], strides = [1, 1]} : vector<20x10xf32> to vector<20x6xf32>
    %835 = vector.broadcast %833 : vector<20x1xf32> to vector<20x6xf32>
    %836 = arith.mulf %835, %834 : vector<20x6xf32>
    %837 = arith.addf %832, %836 : vector<20x6xf32>
    %838 = vector.extract_strided_slice %821 {offsets = [0, 2], sizes = [20, 1], strides = [1, 1]} : vector<20x25xf32> to vector<20x1xf32>
    %839 = vector.extract_strided_slice %827 {offsets = [0, 2], sizes = [20, 6], strides = [1, 1]} : vector<20x10xf32> to vector<20x6xf32>
    %840 = vector.broadcast %838 : vector<20x1xf32> to vector<20x6xf32>
    %841 = arith.mulf %840, %839 : vector<20x6xf32>
    %842 = arith.addf %837, %841 : vector<20x6xf32>
    %843 = vector.extract_strided_slice %821 {offsets = [0, 3], sizes = [20, 1], strides = [1, 1]} : vector<20x25xf32> to vector<20x1xf32>
    %844 = vector.extract_strided_slice %827 {offsets = [0, 3], sizes = [20, 6], strides = [1, 1]} : vector<20x10xf32> to vector<20x6xf32>
    %845 = vector.broadcast %843 : vector<20x1xf32> to vector<20x6xf32>
    %846 = arith.mulf %845, %844 : vector<20x6xf32>
    %847 = arith.addf %842, %846 : vector<20x6xf32>
    %848 = vector.extract_strided_slice %821 {offsets = [0, 4], sizes = [20, 1], strides = [1, 1]} : vector<20x25xf32> to vector<20x1xf32>
    %849 = vector.extract_strided_slice %827 {offsets = [0, 4], sizes = [20, 6], strides = [1, 1]} : vector<20x10xf32> to vector<20x6xf32>
    %850 = vector.broadcast %848 : vector<20x1xf32> to vector<20x6xf32>
    %851 = arith.mulf %850, %849 : vector<20x6xf32>
    %852 = arith.addf %847, %851 : vector<20x6xf32>
    %853 = vector.extract_strided_slice %820 {offsets = [0, 6], sizes = [20, 6], strides = [1, 1]} : vector<20x30xf32> to vector<20x6xf32>
    %854 = tpu.concatenate %824, %853, %824 in 1 : vector<20x2xf32>, vector<20x6xf32>, vector<20x2xf32> -> vector<20x10xf32>
    %855 = vector.extract_strided_slice %821 {offsets = [0, 5], sizes = [20, 1], strides = [1, 1]} : vector<20x25xf32> to vector<20x1xf32>
    %856 = vector.extract_strided_slice %854 {offsets = [0, 0], sizes = [20, 6], strides = [1, 1]} : vector<20x10xf32> to vector<20x6xf32>
    %857 = vector.broadcast %855 : vector<20x1xf32> to vector<20x6xf32>
    %858 = arith.mulf %857, %856 : vector<20x6xf32>
    %859 = arith.addf %852, %858 : vector<20x6xf32>
    %860 = vector.extract_strided_slice %821 {offsets = [0, 6], sizes = [20, 1], strides = [1, 1]} : vector<20x25xf32> to vector<20x1xf32>
    %861 = vector.extract_strided_slice %854 {offsets = [0, 1], sizes = [20, 6], strides = [1, 1]} : vector<20x10xf32> to vector<20x6xf32>
    %862 = vector.broadcast %860 : vector<20x1xf32> to vector<20x6xf32>
    %863 = arith.mulf %862, %861 : vector<20x6xf32>
    %864 = arith.addf %859, %863 : vector<20x6xf32>
    %865 = vector.extract_strided_slice %821 {offsets = [0, 7], sizes = [20, 1], strides = [1, 1]} : vector<20x25xf32> to vector<20x1xf32>
    %866 = vector.extract_strided_slice %854 {offsets = [0, 2], sizes = [20, 6], strides = [1, 1]} : vector<20x10xf32> to vector<20x6xf32>
    %867 = vector.broadcast %865 : vector<20x1xf32> to vector<20x6xf32>
    %868 = arith.mulf %867, %866 : vector<20x6xf32>
    %869 = arith.addf %864, %868 : vector<20x6xf32>
    %870 = vector.extract_strided_slice %821 {offsets = [0, 8], sizes = [20, 1], strides = [1, 1]} : vector<20x25xf32> to vector<20x1xf32>
    %871 = vector.extract_strided_slice %854 {offsets = [0, 3], sizes = [20, 6], strides = [1, 1]} : vector<20x10xf32> to vector<20x6xf32>
    %872 = vector.broadcast %870 : vector<20x1xf32> to vector<20x6xf32>
    %873 = arith.mulf %872, %871 : vector<20x6xf32>
    %874 = arith.addf %869, %873 : vector<20x6xf32>
    %875 = vector.extract_strided_slice %821 {offsets = [0, 9], sizes = [20, 1], strides = [1, 1]} : vector<20x25xf32> to vector<20x1xf32>
    %876 = vector.extract_strided_slice %854 {offsets = [0, 4], sizes = [20, 6], strides = [1, 1]} : vector<20x10xf32> to vector<20x6xf32>
    %877 = vector.broadcast %875 : vector<20x1xf32> to vector<20x6xf32>
    %878 = arith.mulf %877, %876 : vector<20x6xf32>
    %879 = arith.addf %874, %878 : vector<20x6xf32>
    %880 = vector.extract_strided_slice %820 {offsets = [0, 12], sizes = [20, 6], strides = [1, 1]} : vector<20x30xf32> to vector<20x6xf32>
    %881 = tpu.concatenate %824, %880, %824 in 1 : vector<20x2xf32>, vector<20x6xf32>, vector<20x2xf32> -> vector<20x10xf32>
    %882 = vector.extract_strided_slice %821 {offsets = [0, 10], sizes = [20, 1], strides = [1, 1]} : vector<20x25xf32> to vector<20x1xf32>
    %883 = vector.extract_strided_slice %881 {offsets = [0, 0], sizes = [20, 6], strides = [1, 1]} : vector<20x10xf32> to vector<20x6xf32>
    %884 = vector.broadcast %882 : vector<20x1xf32> to vector<20x6xf32>
    %885 = arith.mulf %884, %883 : vector<20x6xf32>
    %886 = arith.addf %879, %885 : vector<20x6xf32>
    %887 = vector.extract_strided_slice %821 {offsets = [0, 11], sizes = [20, 1], strides = [1, 1]} : vector<20x25xf32> to vector<20x1xf32>
    %888 = vector.extract_strided_slice %881 {offsets = [0, 1], sizes = [20, 6], strides = [1, 1]} : vector<20x10xf32> to vector<20x6xf32>
    %889 = vector.broadcast %887 : vector<20x1xf32> to vector<20x6xf32>
    %890 = arith.mulf %889, %888 : vector<20x6xf32>
    %891 = arith.addf %886, %890 : vector<20x6xf32>
    %892 = vector.extract_strided_slice %821 {offsets = [0, 12], sizes = [20, 1], strides = [1, 1]} : vector<20x25xf32> to vector<20x1xf32>
    %893 = vector.extract_strided_slice %881 {offsets = [0, 2], sizes = [20, 6], strides = [1, 1]} : vector<20x10xf32> to vector<20x6xf32>
    %894 = vector.broadcast %892 : vector<20x1xf32> to vector<20x6xf32>
    %895 = arith.mulf %894, %893 : vector<20x6xf32>
    %896 = arith.addf %891, %895 : vector<20x6xf32>
    %897 = vector.extract_strided_slice %821 {offsets = [0, 13], sizes = [20, 1], strides = [1, 1]} : vector<20x25xf32> to vector<20x1xf32>
    %898 = vector.extract_strided_slice %881 {offsets = [0, 3], sizes = [20, 6], strides = [1, 1]} : vector<20x10xf32> to vector<20x6xf32>
    %899 = vector.broadcast %897 : vector<20x1xf32> to vector<20x6xf32>
    %900 = arith.mulf %899, %898 : vector<20x6xf32>
    %901 = arith.addf %896, %900 : vector<20x6xf32>
    %902 = vector.extract_strided_slice %821 {offsets = [0, 14], sizes = [20, 1], strides = [1, 1]} : vector<20x25xf32> to vector<20x1xf32>
    %903 = vector.extract_strided_slice %881 {offsets = [0, 4], sizes = [20, 6], strides = [1, 1]} : vector<20x10xf32> to vector<20x6xf32>
    %904 = vector.broadcast %902 : vector<20x1xf32> to vector<20x6xf32>
    %905 = arith.mulf %904, %903 : vector<20x6xf32>
    %906 = arith.addf %901, %905 : vector<20x6xf32>
    %907 = vector.extract_strided_slice %820 {offsets = [0, 18], sizes = [20, 6], strides = [1, 1]} : vector<20x30xf32> to vector<20x6xf32>
    %908 = tpu.concatenate %824, %907, %824 in 1 : vector<20x2xf32>, vector<20x6xf32>, vector<20x2xf32> -> vector<20x10xf32>
    %909 = vector.extract_strided_slice %821 {offsets = [0, 15], sizes = [20, 1], strides = [1, 1]} : vector<20x25xf32> to vector<20x1xf32>
    %910 = vector.extract_strided_slice %908 {offsets = [0, 0], sizes = [20, 6], strides = [1, 1]} : vector<20x10xf32> to vector<20x6xf32>
    %911 = vector.broadcast %909 : vector<20x1xf32> to vector<20x6xf32>
    %912 = arith.mulf %911, %910 : vector<20x6xf32>
    %913 = arith.addf %906, %912 : vector<20x6xf32>
    %914 = vector.extract_strided_slice %821 {offsets = [0, 16], sizes = [20, 1], strides = [1, 1]} : vector<20x25xf32> to vector<20x1xf32>
    %915 = vector.extract_strided_slice %908 {offsets = [0, 1], sizes = [20, 6], strides = [1, 1]} : vector<20x10xf32> to vector<20x6xf32>
    %916 = vector.broadcast %914 : vector<20x1xf32> to vector<20x6xf32>
    %917 = arith.mulf %916, %915 : vector<20x6xf32>
    %918 = arith.addf %913, %917 : vector<20x6xf32>
    %919 = vector.extract_strided_slice %821 {offsets = [0, 17], sizes = [20, 1], strides = [1, 1]} : vector<20x25xf32> to vector<20x1xf32>
    %920 = vector.extract_strided_slice %908 {offsets = [0, 2], sizes = [20, 6], strides = [1, 1]} : vector<20x10xf32> to vector<20x6xf32>
    %921 = vector.broadcast %919 : vector<20x1xf32> to vector<20x6xf32>
    %922 = arith.mulf %921, %920 : vector<20x6xf32>
    %923 = arith.addf %918, %922 : vector<20x6xf32>
    %924 = vector.extract_strided_slice %821 {offsets = [0, 18], sizes = [20, 1], strides = [1, 1]} : vector<20x25xf32> to vector<20x1xf32>
    %925 = vector.extract_strided_slice %908 {offsets = [0, 3], sizes = [20, 6], strides = [1, 1]} : vector<20x10xf32> to vector<20x6xf32>
    %926 = vector.broadcast %924 : vector<20x1xf32> to vector<20x6xf32>
    %927 = arith.mulf %926, %925 : vector<20x6xf32>
    %928 = arith.addf %923, %927 : vector<20x6xf32>
    %929 = vector.extract_strided_slice %821 {offsets = [0, 19], sizes = [20, 1], strides = [1, 1]} : vector<20x25xf32> to vector<20x1xf32>
    %930 = vector.extract_strided_slice %908 {offsets = [0, 4], sizes = [20, 6], strides = [1, 1]} : vector<20x10xf32> to vector<20x6xf32>
    %931 = vector.broadcast %929 : vector<20x1xf32> to vector<20x6xf32>
    %932 = arith.mulf %931, %930 : vector<20x6xf32>
    %933 = arith.addf %928, %932 : vector<20x6xf32>
    %934 = vector.extract_strided_slice %820 {offsets = [0, 24], sizes = [20, 6], strides = [1, 1]} : vector<20x30xf32> to vector<20x6xf32>
    %935 = tpu.concatenate %824, %934, %824 in 1 : vector<20x2xf32>, vector<20x6xf32>, vector<20x2xf32> -> vector<20x10xf32>
    %936 = vector.extract_strided_slice %821 {offsets = [0, 20], sizes = [20, 1], strides = [1, 1]} : vector<20x25xf32> to vector<20x1xf32>
    %937 = vector.extract_strided_slice %935 {offsets = [0, 0], sizes = [20, 6], strides = [1, 1]} : vector<20x10xf32> to vector<20x6xf32>
    %938 = vector.broadcast %936 : vector<20x1xf32> to vector<20x6xf32>
    %939 = arith.mulf %938, %937 : vector<20x6xf32>
    %940 = arith.addf %933, %939 : vector<20x6xf32>
    %941 = vector.extract_strided_slice %821 {offsets = [0, 21], sizes = [20, 1], strides = [1, 1]} : vector<20x25xf32> to vector<20x1xf32>
    %942 = vector.extract_strided_slice %935 {offsets = [0, 1], sizes = [20, 6], strides = [1, 1]} : vector<20x10xf32> to vector<20x6xf32>
    %943 = vector.broadcast %941 : vector<20x1xf32> to vector<20x6xf32>
    %944 = arith.mulf %943, %942 : vector<20x6xf32>
    %945 = arith.addf %940, %944 : vector<20x6xf32>
    %946 = vector.extract_strided_slice %821 {offsets = [0, 22], sizes = [20, 1], strides = [1, 1]} : vector<20x25xf32> to vector<20x1xf32>
    %947 = vector.extract_strided_slice %935 {offsets = [0, 2], sizes = [20, 6], strides = [1, 1]} : vector<20x10xf32> to vector<20x6xf32>
    %948 = vector.broadcast %946 : vector<20x1xf32> to vector<20x6xf32>
    %949 = arith.mulf %948, %947 : vector<20x6xf32>
    %950 = arith.addf %945, %949 : vector<20x6xf32>
    %951 = vector.extract_strided_slice %821 {offsets = [0, 23], sizes = [20, 1], strides = [1, 1]} : vector<20x25xf32> to vector<20x1xf32>
    %952 = vector.extract_strided_slice %935 {offsets = [0, 3], sizes = [20, 6], strides = [1, 1]} : vector<20x10xf32> to vector<20x6xf32>
    %953 = vector.broadcast %951 : vector<20x1xf32> to vector<20x6xf32>
    %954 = arith.mulf %953, %952 : vector<20x6xf32>
    %955 = arith.addf %950, %954 : vector<20x6xf32>
    %956 = vector.extract_strided_slice %821 {offsets = [0, 24], sizes = [20, 1], strides = [1, 1]} : vector<20x25xf32> to vector<20x1xf32>
    %957 = vector.extract_strided_slice %935 {offsets = [0, 4], sizes = [20, 6], strides = [1, 1]} : vector<20x10xf32> to vector<20x6xf32>
    %958 = vector.broadcast %956 : vector<20x1xf32> to vector<20x6xf32>
    %959 = arith.mulf %958, %957 : vector<20x6xf32>
    %960 = arith.addf %955, %959 : vector<20x6xf32>
    %cst_106 = arith.constant dense<0.000000e+00> : vector<32x6xf32>
    %961 = tpu.matmul %822, %960, %cst_106 {dimension_numbers = #tpu.dot_dimension_numbers<[1], [0], [0], [1], [0, 0, 1, 1], [], []>} : vector<32x20xf32>, vector<20x6xf32>, vector<32x6xf32> -> vector<32x6xf32>
    %cst_107 = arith.constant 0.000000e+00 : f32
    %962 = vector.broadcast %cst_107 : f32 to vector<32x6xf32>
    %963 = arith.maximumf %961, %962 : vector<32x6xf32>
    %cst_108 = arith.constant dense<0.000000e+00> : vector<32xf32>
    %964 = vector.multi_reduction <add>, %963, %cst_108 [1] : vector<32x6xf32> to vector<32xf32>
    %965 = vector.shape_cast %964 : vector<32xf32> to vector<32x1xf32>
    %cst_109 = arith.constant 6.000000e+00 : f32
    %966 = vector.broadcast %cst_109 : f32 to vector<32x1xf32>
    %967 = arith.divf %965, %966 : vector<32x1xf32>
    %cst_110 = arith.constant dense<0.000000e+00> : vector<2x1xf32>
    %968 = tpu.matmul %823, %967, %cst_110 {dimension_numbers = #tpu.dot_dimension_numbers<[1], [0], [0], [1], [0, 0, 1, 1], [], []>} : vector<2x32xf32>, vector<32x1xf32>, vector<2x1xf32> -> vector<2x1xf32>
    %c0_111 = arith.constant 0 : index
    %c0_112 = arith.constant 0 : index
    %c0_113 = arith.constant 0 : index
    %969 = vector.load %arg21[%c0_111, %c0_112, %c0_113] : memref<1x2x1xf32, #tpu.memory_space<vmem>>, vector<1x2x1xf32>
    %970 = vector.shape_cast %969 : vector<1x2x1xf32> to vector<2x1xf32>
    %971 = vector.shape_cast %968 : vector<2x1xf32> to vector<1x2x1xf32>
    tpu.vector_store %arg21[%c0_111, %c0_112, %c0_113], %971 {strides = array<i32>} : memref<1x2x1xf32, #tpu.memory_space<vmem>>, vector<1x2x1xf32>,
    return
  }
  func.func @transform_0(%arg0: i32) -> (i32, i32, i32) {
    %c0_i32 = arith.constant 0 : i32
    %c0_i32_0 = arith.constant 0 : i32
    %c0_i32_1 = arith.constant 0 : i32
    return %arg0, %c0_i32, %c0_i32_0 : i32, i32, i32
  }
  func.func @transform_1(%arg0: i32) -> (i32, i32) {
    %c0_i32 = arith.constant 0 : i32
    %c0_i32_0 = arith.constant 0 : i32
    %c0_i32_1 = arith.constant 0 : i32
    return %c0_i32, %c0_i32_0 : i32, i32
  }
  func.func @transform_2(%arg0: i32) -> (i32, i32) {
    %c0_i32 = arith.constant 0 : i32
    %c0_i32_0 = arith.constant 0 : i32
    %c0_i32_1 = arith.constant 0 : i32
    return %c0_i32, %c0_i32_0 : i32, i32
  }
  func.func @transform_3(%arg0: i32) -> (i32, i32) {
    %c0_i32 = arith.constant 0 : i32
    %c0_i32_0 = arith.constant 0 : i32
    %c0_i32_1 = arith.constant 0 : i32
    return %c0_i32, %c0_i32_0 : i32, i32
  }
  func.func @transform_4(%arg0: i32) -> (i32, i32) {
    %c0_i32 = arith.constant 0 : i32
    %c0_i32_0 = arith.constant 0 : i32
    %c0_i32_1 = arith.constant 0 : i32
    return %c0_i32, %c0_i32_0 : i32, i32
  }
  func.func @transform_5(%arg0: i32) -> (i32, i32) {
    %c0_i32 = arith.constant 0 : i32
    %c0_i32_0 = arith.constant 0 : i32
    %c0_i32_1 = arith.constant 0 : i32
    return %c0_i32, %c0_i32_0 : i32, i32
  }
  func.func @transform_6(%arg0: i32) -> (i32, i32) {
    %c0_i32 = arith.constant 0 : i32
    %c0_i32_0 = arith.constant 0 : i32
    %c0_i32_1 = arith.constant 0 : i32
    return %c0_i32, %c0_i32_0 : i32, i32
  }
  func.func @transform_7(%arg0: i32) -> (i32, i32) {
    %c0_i32 = arith.constant 0 : i32
    %c0_i32_0 = arith.constant 0 : i32
    %c0_i32_1 = arith.constant 0 : i32
    return %c0_i32, %c0_i32_0 : i32, i32
  }
  func.func @transform_8(%arg0: i32) -> (i32, i32) {
    %c0_i32 = arith.constant 0 : i32
    %c0_i32_0 = arith.constant 0 : i32
    %c0_i32_1 = arith.constant 0 : i32
    return %c0_i32, %c0_i32_0 : i32, i32
  }
  func.func @transform_9(%arg0: i32) -> (i32, i32) {
    %c0_i32 = arith.constant 0 : i32
    %c0_i32_0 = arith.constant 0 : i32
    %c0_i32_1 = arith.constant 0 : i32
    return %c0_i32, %c0_i32_0 : i32, i32
  }
  func.func @transform_10(%arg0: i32) -> (i32, i32) {
    %c0_i32 = arith.constant 0 : i32
    %c0_i32_0 = arith.constant 0 : i32
    %c0_i32_1 = arith.constant 0 : i32
    return %c0_i32, %c0_i32_0 : i32, i32
  }
  func.func @transform_11(%arg0: i32) -> (i32, i32) {
    %c0_i32 = arith.constant 0 : i32
    %c0_i32_0 = arith.constant 0 : i32
    %c0_i32_1 = arith.constant 0 : i32
    return %c0_i32, %c0_i32_0 : i32, i32
  }
  func.func @transform_12(%arg0: i32) -> (i32, i32) {
    %c0_i32 = arith.constant 0 : i32
    %c0_i32_0 = arith.constant 0 : i32
    %c0_i32_1 = arith.constant 0 : i32
    return %c0_i32, %c0_i32_0 : i32, i32
  }
  func.func @transform_13(%arg0: i32) -> (i32, i32) {
    %c0_i32 = arith.constant 0 : i32
    %c0_i32_0 = arith.constant 0 : i32
    %c0_i32_1 = arith.constant 0 : i32
    return %c0_i32, %c0_i32_0 : i32, i32
  }
  func.func @transform_14(%arg0: i32) -> (i32, i32) {
    %c0_i32 = arith.constant 0 : i32
    %c0_i32_0 = arith.constant 0 : i32
    %c0_i32_1 = arith.constant 0 : i32
    return %c0_i32, %c0_i32_0 : i32, i32
  }
  func.func @transform_15(%arg0: i32) -> (i32, i32) {
    %c0_i32 = arith.constant 0 : i32
    %c0_i32_0 = arith.constant 0 : i32
    %c0_i32_1 = arith.constant 0 : i32
    return %c0_i32, %c0_i32_0 : i32, i32
  }
  func.func @transform_16(%arg0: i32) -> (i32, i32) {
    %c0_i32 = arith.constant 0 : i32
    %c0_i32_0 = arith.constant 0 : i32
    %c0_i32_1 = arith.constant 0 : i32
    return %c0_i32, %c0_i32_0 : i32, i32
  }
  func.func @transform_17(%arg0: i32) -> (i32, i32) {
    %c0_i32 = arith.constant 0 : i32
    %c0_i32_0 = arith.constant 0 : i32
    %c0_i32_1 = arith.constant 0 : i32
    return %c0_i32, %c0_i32_0 : i32, i32
  }
  func.func @transform_18(%arg0: i32) -> (i32, i32) {
    %c0_i32 = arith.constant 0 : i32
    %c0_i32_0 = arith.constant 0 : i32
    %c0_i32_1 = arith.constant 0 : i32
    return %c0_i32, %c0_i32_0 : i32, i32
  }
  func.func @transform_19(%arg0: i32) -> (i32, i32) {
    %c0_i32 = arith.constant 0 : i32
    %c0_i32_0 = arith.constant 0 : i32
    %c0_i32_1 = arith.constant 0 : i32
    return %c0_i32, %c0_i32_0 : i32, i32
  }
  func.func @transform_20(%arg0: i32) -> (i32, i32, i32) {
    %c0_i32 = arith.constant 0 : i32
    %c0_i32_0 = arith.constant 0 : i32
    %c0_i32_1 = arith.constant 0 : i32
    return %arg0, %c0_i32, %c0_i32_0 : i32, i32, i32
  }
}

</mosaic_0001>

<llo_original>
// kernel: _lambda_.1
$region0: #{_lambda_.1}
  #allocation0 [shape = 'u32[]', space=smem, size = 0x4, offset = 0x4, fixed_abs, tag = 'smem constant byte address 0x4 - core index']
  #allocation1 [shape = 'u32[144,128]{1,0:T(1,128)}', space=vmem, size = 0x12000, scoped, tag = 'internal scratch']
  %s0 = inlined_call_operand.vmem [shape: f32[2,1,528], index: 0, kind: input, shape index: {}]
  %s1 = inlined_call_operand.vmem [shape: f32[16,49], index: 1, kind: input, shape index: {}]
  %s2 = inlined_call_operand.vmem [shape: f32[16,1], index: 2, kind: input, shape index: {}]
  %s3 = inlined_call_operand.vmem [shape: f32[8,16], index: 3, kind: input, shape index: {}]
  %s4 = inlined_call_operand.vmem [shape: f32[8,13], index: 4, kind: input, shape index: {}]
  %s5 = inlined_call_operand.vmem [shape: f32[8,8], index: 5, kind: input, shape index: {}]
  %s6 = inlined_call_operand.vmem [shape: f32[12,8], index: 6, kind: input, shape index: {}]
  %s7 = inlined_call_operand.vmem [shape: f32[12,13], index: 7, kind: input, shape index: {}]
  %s8 = inlined_call_operand.vmem [shape: f32[12,12], index: 8, kind: input, shape index: {}]
  %s9 = inlined_call_operand.vmem [shape: f32[12,13], index: 9, kind: input, shape index: {}]
  %s10 = inlined_call_operand.vmem [shape: f32[12,12], index: 10, kind: input, shape index: {}]
  %s11 = inlined_call_operand.vmem [shape: f32[16,12], index: 11, kind: input, shape index: {}]
  %s12 = inlined_call_operand.vmem [shape: f32[16,13], index: 12, kind: input, shape index: {}]
  %s13 = inlined_call_operand.vmem [shape: f32[16,16], index: 13, kind: input, shape index: {}]
  %s14 = inlined_call_operand.vmem [shape: f32[20,16], index: 14, kind: input, shape index: {}]
  %s15 = inlined_call_operand.vmem [shape: f32[20,13], index: 15, kind: input, shape index: {}]
  %s16 = inlined_call_operand.vmem [shape: f32[20,20], index: 16, kind: input, shape index: {}]
  %s17 = inlined_call_operand.vmem [shape: f32[20,25], index: 17, kind: input, shape index: {}]
  %s18 = inlined_call_operand.vmem [shape: f32[32,20], index: 18, kind: input, shape index: {}]
  %s19 = inlined_call_operand.vmem [shape: f32[2,32], index: 19, kind: input, shape index: {}]
  %s20 = inlined_call_operand.vmem [shape: f32[2,2,1], index: 20, kind: output, shape index: {}]
  %s21 = sld [smem:[#allocation0]]
  $region113: #{_lambda_.1} parent=0
    _
  %s23 = ssub.s32 1, %s21
  %s24 = scalar_select 0, %s23, %s21
  loop: start=0, step=1, limit=4
  $region2: #{_lambda_.1} parent=0 // loop_pre_header
    _
  $region3: #{_lambda_.1} parent=0 // loop_header
    %s26 = sphi 0, %s30
    %p27 = scmp.ge.s32.totalorder %s26, 4
    %s36 = sphi 0, %s38
    %s39 = sphi 0, %s36
    %s40 = sphi 0, %s39
    %s56 = sphi 0, %s40
    %s60 = sphi 0, %s60
    %s62 = sphi 0, %s60
    %s63 = sphi 0, %s62
    %s77 = sphi 0, %s63
    %s81 = sphi 0, %s81
    %s83 = sphi 0, %s81
    %s84 = sphi 0, %s83
    %s98 = sphi 0, %s84
    %s102 = sphi 0, %s102
    %s104 = sphi 0, %s102
    %s105 = sphi 0, %s104
    %s119 = sphi 0, %s105
    %s123 = sphi 0, %s123
    %s125 = sphi 0, %s123
    %s126 = sphi 0, %s125
    %s140 = sphi 0, %s126
    %s144 = sphi 0, %s144
    %s146 = sphi 0, %s144
    %s147 = sphi 0, %s146
    %s161 = sphi 0, %s147
    %s165 = sphi 0, %s165
    %s167 = sphi 0, %s165
    %s168 = sphi 0, %s167
    %s182 = sphi 0, %s168
    %s186 = sphi 0, %s186
    %s188 = sphi 0, %s186
    %s189 = sphi 0, %s188
    %s203 = sphi 0, %s189
    %s207 = sphi 0, %s207
    %s209 = sphi 0, %s207
    %s210 = sphi 0, %s209
    %s224 = sphi 0, %s210
    %s228 = sphi 0, %s228
    %s230 = sphi 0, %s228
    %s231 = sphi 0, %s230
    %s245 = sphi 0, %s231
    %s249 = sphi 0, %s249
    %s251 = sphi 0, %s249
    %s252 = sphi 0, %s251
    %s266 = sphi 0, %s252
    %s270 = sphi 0, %s270
    %s272 = sphi 0, %s270
    %s273 = sphi 0, %s272
    %s287 = sphi 0, %s273
    %s291 = sphi 0, %s291
    %s293 = sphi 0, %s291
    %s294 = sphi 0, %s293
    %s308 = sphi 0, %s294
    %s312 = sphi 0, %s312
    %s314 = sphi 0, %s312
    %s315 = sphi 0, %s314
    %s329 = sphi 0, %s315
    %s333 = sphi 0, %s333
    %s335 = sphi 0, %s333
    %s336 = sphi 0, %s335
    %s350 = sphi 0, %s336
    %s354 = sphi 0, %s354
    %s356 = sphi 0, %s354
    %s357 = sphi 0, %s356
    %s371 = sphi 0, %s357
    %s375 = sphi 0, %s375
    %s377 = sphi 0, %s375
    %s378 = sphi 0, %s377
    %s392 = sphi 0, %s378
    %s396 = sphi 0, %s396
    %s398 = sphi 0, %s396
    %s399 = sphi 0, %s398
    %s413 = sphi 0, %s399
    %s417 = sphi 0, %s417
    %s419 = sphi 0, %s417
    %s420 = sphi 0, %s419
    %s434 = sphi 0, %s420
    %s438 = sphi 0, %s438
    %s440 = sphi 0, %s438
    %s441 = sphi 0, %s440
    %s455 = sphi 0, %s441
    %s461 = sphi 0, %s463
    %s464 = sphi 0, %s461
    %s465 = sphi 0, %s464
    %s481 = sphi 0, %s465
  $region4: #{_lambda_.1} parent=0 // loop_header_branch
    %29 = sbr.rel (%p27) target = $region8
  $region5: #{_lambda_.1} parent=0 // loop_body
    %s31 = ssub.s32 %s26, 1
    %s32 = ssub.s32 %s26, 2
    %s33 = sadd.s32 %s26, 1
    %s34 = ssub.s32 %s26, %s33
    %p35 = scmp.eq.s32.totalorder %s34, 0
    %s37 = sadd.s32 %s36, 1
    %s38 = scalar_select %p35, %s36, %s37
    %p41 = pneg %p35
    %p42 = scmp.eq.s32.totalorder %s26, 1
    %p43 = por %p41, %p42
    %p44 = scmp.ne.s32.totalorder %s36, %s39
    %p45 = scmp.eq.s32.totalorder %s26, 0
    %p46 = por %p44, %p45
    %p47 = scmp.ne.s32.totalorder %s36, %s39
    %p48 = scmp.eq.s32.totalorder %s31, 1
    %p49 = por %p47, %p48
    %p50 = scmp.ne.s32.totalorder %s39, %s40
    %p51 = scmp.eq.s32.totalorder %s31, 0
    %p52 = por %p50, %p51
    %p53 = scmp.ne.s32.totalorder %s39, %s40
    %p54 = scmp.eq.s32.totalorder %s32, 1
    %p55 = por %p53, %p54
    %p57 = scmp.ne.s32.totalorder %s40, %s56
    %p58 = scmp.eq.s32.totalorder %s32, 0
    %p59 = por %p57, %p58
    %s61 = sadd.s32 %s60, 1
    %p64 = scmp.eq.s32.totalorder %s26, 1
    %p65 = scmp.ne.s32.totalorder %s60, %s62
    %p66 = scmp.eq.s32.totalorder %s26, 0
    %p67 = por %p65, %p66
    %p68 = scmp.ne.s32.totalorder %s60, %s62
    %p69 = scmp.eq.s32.totalorder %s31, 1
    %p70 = por %p68, %p69
    %p71 = scmp.ne.s32.totalorder %s62, %s63
    %p72 = scmp.eq.s32.totalorder %s31, 0
    %p73 = por %p71, %p72
    %p74 = scmp.ne.s32.totalorder %s62, %s63
    %p75 = scmp.eq.s32.totalorder %s32, 1
    %p76 = por %p74, %p75
    %p78 = scmp.ne.s32.totalorder %s63, %s77
    %p79 = scmp.eq.s32.totalorder %s32, 0
    %p80 = por %p78, %p79
    %s82 = sadd.s32 %s81, 1
    %p85 = scmp.eq.s32.totalorder %s26, 1
    %p86 = scmp.ne.s32.totalorder %s81, %s83
    %p87 = scmp.eq.s32.totalorder %s26, 0
    %p88 = por %p86, %p87
    %p89 = scmp.ne.s32.totalorder %s81, %s83
    %p90 = scmp.eq.s32.totalorder %s31, 1
    %p91 = por %p89, %p90
    %p92 = scmp.ne.s32.totalorder %s83, %s84
    %p93 = scmp.eq.s32.totalorder %s31, 0
    %p94 = por %p92, %p93
    %p95 = scmp.ne.s32.totalorder %s83, %s84
    %p96 = scmp.eq.s32.totalorder %s32, 1
    %p97 = por %p95, %p96
    %p99 = scmp.ne.s32.totalorder %s84, %s98
    %p100 = scmp.eq.s32.totalorder %s32, 0
    %p101 = por %p99, %p100
    %s103 = sadd.s32 %s102, 1
    %p106 = scmp.eq.s32.totalorder %s26, 1
    %p107 = scmp.ne.s32.totalorder %s102, %s104
    %p108 = scmp.eq.s32.totalorder %s26, 0
    %p109 = por %p107, %p108
    %p110 = scmp.ne.s32.totalorder %s102, %s104
    %p111 = scmp.eq.s32.totalorder %s31, 1
    %p112 = por %p110, %p111
    %p113 = scmp.ne.s32.totalorder %s104, %s105
    %p114 = scmp.eq.s32.totalorder %s31, 0
    %p115 = por %p113, %p114
    %p116 = scmp.ne.s32.totalorder %s104, %s105
    %p117 = scmp.eq.s32.totalorder %s32, 1
    %p118 = por %p116, %p117
    %p120 = scmp.ne.s32.totalorder %s105, %s119
    %p121 = scmp.eq.s32.totalorder %s32, 0
    %p122 = por %p120, %p121
    %s124 = sadd.s32 %s123, 1
    %p127 = scmp.eq.s32.totalorder %s26, 1
    %p128 = scmp.ne.s32.totalorder %s123, %s125
    %p129 = scmp.eq.s32.totalorder %s26, 0
    %p130 = por %p128, %p129
    %p131 = scmp.ne.s32.totalorder %s123, %s125
    %p132 = scmp.eq.s32.totalorder %s31, 1
    %p133 = por %p131, %p132
    %p134 = scmp.ne.s32.totalorder %s125, %s126
    %p135 = scmp.eq.s32.totalorder %s31, 0
    %p136 = por %p134, %p135
    %p137 = scmp.ne.s32.totalorder %s125, %s126
    %p138 = scmp.eq.s32.totalorder %s32, 1
    %p139 = por %p137, %p138
    %p141 = scmp.ne.s32.totalorder %s126, %s140
    %p142 = scmp.eq.s32.totalorder %s32, 0
    %p143 = por %p141, %p142
    %s145 = sadd.s32 %s144, 1
    %p148 = scmp.eq.s32.totalorder %s26, 1
    %p149 = scmp.ne.s32.totalorder %s144, %s146
    %p150 = scmp.eq.s32.totalorder %s26, 0
    %p151 = por %p149, %p150
    %p152 = scmp.ne.s32.totalorder %s144, %s146
    %p153 = scmp.eq.s32.totalorder %s31, 1
    %p154 = por %p152, %p153
    %p155 = scmp.ne.s32.totalorder %s146, %s147
    %p156 = scmp.eq.s32.totalorder %s31, 0
    %p157 = por %p155, %p156
    %p158 = scmp.ne.s32.totalorder %s146, %s147
    %p159 = scmp.eq.s32.totalorder %s32, 1
    %p160 = por %p158, %p159
    %p162 = scmp.ne.s32.totalorder %s147, %s161
    %p163 = scmp.eq.s32.totalorder %s32, 0
    %p164 = por %p162, %p163
    %s166 = sadd.s32 %s165, 1
    %p169 = scmp.eq.s32.totalorder %s26, 1
    %p170 = scmp.ne.s32.totalorder %s165, %s167
    %p171 = scmp.eq.s32.totalorder %s26, 0
    %p172 = por %p170, %p171
    %p173 = scmp.ne.s32.totalorder %s165, %s167
    %p174 = scmp.eq.s32.totalorder %s31, 1
    %p175 = por %p173, %p174
    %p176 = scmp.ne.s32.totalorder %s167, %s168
    %p177 = scmp.eq.s32.totalorder %s31, 0
    %p178 = por %p176, %p177
    %p179 = scmp.ne.s32.totalorder %s167, %s168
    %p180 = scmp.eq.s32.totalorder %s32, 1
    %p181 = por %p179, %p180
    %p183 = scmp.ne.s32.totalorder %s168, %s182
    %p184 = scmp.eq.s32.totalorder %s32, 0
    %p185 = por %p183, %p184
    %s187 = sadd.s32 %s186, 1
    %p190 = scmp.eq.s32.totalorder %s26, 1
    %p191 = scmp.ne.s32.totalorder %s186, %s188
    %p192 = scmp.eq.s32.totalorder %s26, 0
    %p193 = por %p191, %p192
    %p194 = scmp.ne.s32.totalorder %s186, %s188
    %p195 = scmp.eq.s32.totalorder %s31, 1
    %p196 = por %p194, %p195
    %p197 = scmp.ne.s32.totalorder %s188, %s189
    %p198 = scmp.eq.s32.totalorder %s31, 0
    %p199 = por %p197, %p198
    %p200 = scmp.ne.s32.totalorder %s188, %s189
    %p201 = scmp.eq.s32.totalorder %s32, 1
    %p202 = por %p200, %p201
    %p204 = scmp.ne.s32.totalorder %s189, %s203
    %p205 = scmp.eq.s32.totalorder %s32, 0
    %p206 = por %p204, %p205
    %s208 = sadd.s32 %s207, 1
    %p211 = scmp.eq.s32.totalorder %s26, 1
    %p212 = scmp.ne.s32.totalorder %s207, %s209
    %p213 = scmp.eq.s32.totalorder %s26, 0
    %p214 = por %p212, %p213
    %p215 = scmp.ne.s32.totalorder %s207, %s209
    %p216 = scmp.eq.s32.totalorder %s31, 1
    %p217 = por %p215, %p216
    %p218 = scmp.ne.s32.totalorder %s209, %s210
    %p219 = scmp.eq.s32.totalorder %s31, 0
    %p220 = por %p218, %p219
    %p221 = scmp.ne.s32.totalorder %s209, %s210
    %p222 = scmp.eq.s32.totalorder %s32, 1
    %p223 = por %p221, %p222
    %p225 = scmp.ne.s32.totalorder %s210, %s224
    %p226 = scmp.eq.s32.totalorder %s32, 0
    %p227 = por %p225, %p226
    %s229 = sadd.s32 %s228, 1
    %p232 = scmp.eq.s32.totalorder %s26, 1
    %p233 = scmp.ne.s32.totalorder %s228, %s230
    %p234 = scmp.eq.s32.totalorder %s26, 0
    %p235 = por %p233, %p234
    %p236 = scmp.ne.s32.totalorder %s228, %s230
    %p237 = scmp.eq.s32.totalorder %s31, 1
    %p238 = por %p236, %p237
    %p239 = scmp.ne.s32.totalorder %s230, %s231
    %p240 = scmp.eq.s32.totalorder %s31, 0
    %p241 = por %p239, %p240
    %p242 = scmp.ne.s32.totalorder %s230, %s231
    %p243 = scmp.eq.s32.totalorder %s32, 1
    %p244 = por %p242, %p243
    %p246 = scmp.ne.s32.totalorder %s231, %s245
    %p247 = scmp.eq.s32.totalorder %s32, 0
    %p248 = por %p246, %p247
    %s250 = sadd.s32 %s249, 1
    %p253 = scmp.eq.s32.totalorder %s26, 1
    %p254 = scmp.ne.s32.totalorder %s249, %s251
    %p255 = scmp.eq.s32.totalorder %s26, 0
    %p256 = por %p254, %p255
    %p257 = scmp.ne.s32.totalorder %s249, %s251
    %p258 = scmp.eq.s32.totalorder %s31, 1
    %p259 = por %p257, %p258
    %p260 = scmp.ne.s32.totalorder %s251, %s252
    %p261 = scmp.eq.s32.totalorder %s31, 0
    %p262 = por %p260, %p261
    %p263 = scmp.ne.s32.totalorder %s251, %s252
    %p264 = scmp.eq.s32.totalorder %s32, 1
    %p265 = por %p263, %p264
    %p267 = scmp.ne.s32.totalorder %s252, %s266
    %p268 = scmp.eq.s32.totalorder %s32, 0
    %p269 = por %p267, %p268
    %s271 = sadd.s32 %s270, 1
    %p274 = scmp.eq.s32.totalorder %s26, 1
    %p275 = scmp.ne.s32.totalorder %s270, %s272
    %p276 = scmp.eq.s32.totalorder %s26, 0
    %p277 = por %p275, %p276
    %p278 = scmp.ne.s32.totalorder %s270, %s272
    %p279 = scmp.eq.s32.totalorder %s31, 1
    %p280 = por %p278, %p279
    %p281 = scmp.ne.s32.totalorder %s272, %s273
    %p282 = scmp.eq.s32.totalorder %s31, 0
    %p283 = por %p281, %p282
    %p284 = scmp.ne.s32.totalorder %s272, %s273
    %p285 = scmp.eq.s32.totalorder %s32, 1
    %p286 = por %p284, %p285
    %p288 = scmp.ne.s32.totalorder %s273, %s287
    %p289 = scmp.eq.s32.totalorder %s32, 0
    %p290 = por %p288, %p289
    %s292 = sadd.s32 %s291, 1
    %p295 = scmp.eq.s32.totalorder %s26, 1
    %p296 = scmp.ne.s32.totalorder %s291, %s293
    %p297 = scmp.eq.s32.totalorder %s26, 0
    %p298 = por %p296, %p297
    %p299 = scmp.ne.s32.totalorder %s291, %s293
    %p300 = scmp.eq.s32.totalorder %s31, 1
    %p301 = por %p299, %p300
    %p302 = scmp.ne.s32.totalorder %s293, %s294
    %p303 = scmp.eq.s32.totalorder %s31, 0
    %p304 = por %p302, %p303
    %p305 = scmp.ne.s32.totalorder %s293, %s294
    %p306 = scmp.eq.s32.totalorder %s32, 1
    %p307 = por %p305, %p306
    %p309 = scmp.ne.s32.totalorder %s294, %s308
    %p310 = scmp.eq.s32.totalorder %s32, 0
    %p311 = por %p309, %p310
    %s313 = sadd.s32 %s312, 1
    %p316 = scmp.eq.s32.totalorder %s26, 1
    %p317 = scmp.ne.s32.totalorder %s312, %s314
    %p318 = scmp.eq.s32.totalorder %s26, 0
    %p319 = por %p317, %p318
    %p320 = scmp.ne.s32.totalorder %s312, %s314
    %p321 = scmp.eq.s32.totalorder %s31, 1
    %p322 = por %p320, %p321
    %p323 = scmp.ne.s32.totalorder %s314, %s315
    %p324 = scmp.eq.s32.totalorder %s31, 0
    %p325 = por %p323, %p324
    %p326 = scmp.ne.s32.totalorder %s314, %s315
    %p327 = scmp.eq.s32.totalorder %s32, 1
    %p328 = por %p326, %p327
    %p330 = scmp.ne.s32.totalorder %s315, %s329
    %p331 = scmp.eq.s32.totalorder %s32, 0
    %p332 = por %p330, %p331
    %s334 = sadd.s32 %s333, 1
    %p337 = scmp.eq.s32.totalorder %s26, 1
    %p338 = scmp.ne.s32.totalorder %s333, %s335
    %p339 = scmp.eq.s32.totalorder %s26, 0
    %p340 = por %p338, %p339
    %p341 = scmp.ne.s32.totalorder %s333, %s335
    %p342 = scmp.eq.s32.totalorder %s31, 1
    %p343 = por %p341, %p342
    %p344 = scmp.ne.s32.totalorder %s335, %s336
    %p345 = scmp.eq.s32.totalorder %s31, 0
    %p346 = por %p344, %p345
    %p347 = scmp.ne.s32.totalorder %s335, %s336
    %p348 = scmp.eq.s32.totalorder %s32, 1
    %p349 = por %p347, %p348
    %p351 = scmp.ne.s32.totalorder %s336, %s350
    %p352 = scmp.eq.s32.totalorder %s32, 0
    %p353 = por %p351, %p352
    %s355 = sadd.s32 %s354, 1
    %p358 = scmp.eq.s32.totalorder %s26, 1
    %p359 = scmp.ne.s32.totalorder %s354, %s356
    %p360 = scmp.eq.s32.totalorder %s26, 0
    %p361 = por %p359, %p360
    %p362 = scmp.ne.s32.totalorder %s354, %s356
    %p363 = scmp.eq.s32.totalorder %s31, 1
    %p364 = por %p362, %p363
    %p365 = scmp.ne.s32.totalorder %s356, %s357
    %p366 = scmp.eq.s32.totalorder %s31, 0
    %p367 = por %p365, %p366
    %p368 = scmp.ne.s32.totalorder %s356, %s357
    %p369 = scmp.eq.s32.totalorder %s32, 1
    %p370 = por %p368, %p369
    %p372 = scmp.ne.s32.totalorder %s357, %s371
    %p373 = scmp.eq.s32.totalorder %s32, 0
    %p374 = por %p372, %p373
    %s376 = sadd.s32 %s375, 1
    %p379 = scmp.eq.s32.totalorder %s26, 1
    %p380 = scmp.ne.s32.totalorder %s375, %s377
    %p381 = scmp.eq.s32.totalorder %s26, 0
    %p382 = por %p380, %p381
    %p383 = scmp.ne.s32.totalorder %s375, %s377
    %p384 = scmp.eq.s32.totalorder %s31, 1
    %p385 = por %p383, %p384
    %p386 = scmp.ne.s32.totalorder %s377, %s378
    %p387 = scmp.eq.s32.totalorder %s31, 0
    %p388 = por %p386, %p387
    %p389 = scmp.ne.s32.totalorder %s377, %s378
    %p390 = scmp.eq.s32.totalorder %s32, 1
    %p391 = por %p389, %p390
    %p393 = scmp.ne.s32.totalorder %s378, %s392
    %p394 = scmp.eq.s32.totalorder %s32, 0
    %p395 = por %p393, %p394
    %s397 = sadd.s32 %s396, 1
    %p400 = scmp.eq.s32.totalorder %s26, 1
    %p401 = scmp.ne.s32.totalorder %s396, %s398
    %p402 = scmp.eq.s32.totalorder %s26, 0
    %p403 = por %p401, %p402
    %p404 = scmp.ne.s32.totalorder %s396, %s398
    %p405 = scmp.eq.s32.totalorder %s31, 1
    %p406 = por %p404, %p405
    %p407 = scmp.ne.s32.totalorder %s398, %s399
    %p408 = scmp.eq.s32.totalorder %s31, 0
    %p409 = por %p407, %p408
    %p410 = scmp.ne.s32.totalorder %s398, %s399
    %p411 = scmp.eq.s32.totalorder %s32, 1
    %p412 = por %p410, %p411
    %p414 = scmp.ne.s32.totalorder %s399, %s413
    %p415 = scmp.eq.s32.totalorder %s32, 0
    %p416 = por %p414, %p415
    %s418 = sadd.s32 %s417, 1
    %p421 = scmp.eq.s32.totalorder %s26, 1
    %p422 = scmp.ne.s32.totalorder %s417, %s419
    %p423 = scmp.eq.s32.totalorder %s26, 0
    %p424 = por %p422, %p423
    %p425 = scmp.ne.s32.totalorder %s417, %s419
    %p426 = scmp.eq.s32.totalorder %s31, 1
    %p427 = por %p425, %p426
    %p428 = scmp.ne.s32.totalorder %s419, %s420
    %p429 = scmp.eq.s32.totalorder %s31, 0
    %p430 = por %p428, %p429
    %p431 = scmp.ne.s32.totalorder %s419, %s420
    %p432 = scmp.eq.s32.totalorder %s32, 1
    %p433 = por %p431, %p432
    %p435 = scmp.ne.s32.totalorder %s420, %s434
    %p436 = scmp.eq.s32.totalorder %s32, 0
    %p437 = por %p435, %p436
    %s439 = sadd.s32 %s438, 1
    %p442 = scmp.eq.s32.totalorder %s26, 1
    %p443 = scmp.ne.s32.totalorder %s438, %s440
    %p444 = scmp.eq.s32.totalorder %s26, 0
    %p445 = por %p443, %p444
    %p446 = scmp.ne.s32.totalorder %s438, %s440
    %p447 = scmp.eq.s32.totalorder %s31, 1
    %p448 = por %p446, %p447
    %p449 = scmp.ne.s32.totalorder %s440, %s441
    %p450 = scmp.eq.s32.totalorder %s31, 0
    %p451 = por %p449, %p450
    %p452 = scmp.ne.s32.totalorder %s440, %s441
    %p453 = scmp.eq.s32.totalorder %s32, 1
    %p454 = por %p452, %p453
    %p456 = scmp.ne.s32.totalorder %s441, %s455
    %p457 = scmp.eq.s32.totalorder %s32, 0
    %p458 = por %p456, %p457
    %s459 = ssub.s32 %s26, %s33
    %p460 = scmp.eq.s32.totalorder %s459, 0
    %s462 = sadd.s32 %s461, 1
    %s463 = scalar_select %p460, %s461, %s462
    %p466 = pneg %p460
    %p467 = scmp.eq.s32.totalorder %s26, 1
    %p468 = por %p466, %p467
    %p469 = scmp.ne.s32.totalorder %s461, %s464
    %p470 = scmp.eq.s32.totalorder %s26, 0
    %p471 = por %p469, %p470
    %p472 = scmp.ne.s32.totalorder %s461, %s464
    %p473 = scmp.eq.s32.totalorder %s31, 1
    %p474 = por %p472, %p473
    %p475 = scmp.ne.s32.totalorder %s464, %s465
    %p476 = scmp.eq.s32.totalorder %s31, 0
    %p477 = por %p475, %p476
    %p478 = scmp.ne.s32.totalorder %s464, %s465
    %p479 = scmp.eq.s32.totalorder %s32, 1
    %p480 = por %p478, %p479
    %p482 = scmp.ne.s32.totalorder %s465, %s481
    %p483 = scmp.eq.s32.totalorder %s32, 0
    %p484 = por %p482, %p483
    %p485 = scmp.le.s32.totalorder 1, %s26
    %p486 = scmp.lt.s32.totalorder %s26, 3
    %p487 = pnand %p485, %p486
    %p488 = pneg %p487
    // Predicated region
    $region9: #{_lambda_.1} parent=5 // pred_check
      _
    $region10: #{_lambda_.1} parent=5 // pred_check_branch
      %490 = sbr.rel (%p487) target = $region12
    $region11: #{_lambda_.1} parent=5 // pred_region
      %s491 = ssub.s32 %s26, 1
      // Predicated region
      $region13: #{_lambda_.1} parent=11 // pred_check
        %p492 = pneg %p73
      $region14: #{_lambda_.1} parent=11 // pred_check_branch
        %494 = sbr.rel (%p492) target = $region16
      $region15: #{_lambda_.1} parent=11 // pred_region
        _
      $region16: #{_lambda_.1} parent=11 // pred_fallthru
        _
      // Predicated region
      $region17: #{_lambda_.1} parent=11 // pred_check
        %p495 = pneg %p94
      $region18: #{_lambda_.1} parent=11 // pred_check_branch
        %497 = sbr.rel (%p495) target = $region20
      $region19: #{_lambda_.1} parent=11 // pred_region
        _
      $region20: #{_lambda_.1} parent=11 // pred_fallthru
        _
      // Predicated region
      $region21: #{_lambda_.1} parent=11 // pred_check
        %p498 = pneg %p115
      $region22: #{_lambda_.1} parent=11 // pred_check_branch
        %500 = sbr.rel (%p498) target = $region24
      $region23: #{_lambda_.1} parent=11 // pred_region
        _
      $region24: #{_lambda_.1} parent=11 // pred_fallthru
        _
      // Predicated region
      $region25: #{_lambda_.1} parent=11 // pred_check
        %p501 = pneg %p136
      $region26: #{_lambda_.1} parent=11 // pred_check_branch
        %503 = sbr.rel (%p501) target = $region28
      $region27: #{_lambda_.1} parent=11 // pred_region
        _
      $region28: #{_lambda_.1} parent=11 // pred_fallthru
        _
      // Predicated region
      $region29: #{_lambda_.1} parent=11 // pred_check
        %p504 = pneg %p157
      $region30: #{_lambda_.1} parent=11 // pred_check_branch
        %506 = sbr.rel (%p504) target = $region32
      $region31: #{_lambda_.1} parent=11 // pred_region
        _
      $region32: #{_lambda_.1} parent=11 // pred_fallthru
        _
      // Predicated region
      $region33: #{_lambda_.1} parent=11 // pred_check
        %p507 = pneg %p178
      $region34: #{_lambda_.1} parent=11 // pred_check_branch
        %509 = sbr.rel (%p507) target = $region36
      $region35: #{_lambda_.1} parent=11 // pred_region
        _
      $region36: #{_lambda_.1} parent=11 // pred_fallthru
        _
      // Predicated region
      $region37: #{_lambda_.1} parent=11 // pred_check
        %p510 = pneg %p199
      $region38: #{_lambda_.1} parent=11 // pred_check_branch
        %512 = sbr.rel (%p510) target = $region40
      $region39: #{_lambda_.1} parent=11 // pred_region
        _
      $region40: #{_lambda_.1} parent=11 // pred_fallthru
        _
      // Predicated region
      $region41: #{_lambda_.1} parent=11 // pred_check
        %p513 = pneg %p220
      $region42: #{_lambda_.1} parent=11 // pred_check_branch
        %515 = sbr.rel (%p513) target = $region44
      $region43: #{_lambda_.1} parent=11 // pred_region
        _
      $region44: #{_lambda_.1} parent=11 // pred_fallthru
        _
      // Predicated region
      $region45: #{_lambda_.1} parent=11 // pred_check
        %p516 = pneg %p241
      $region46: #{_lambda_.1} parent=11 // pred_check_branch
        %518 = sbr.rel (%p516) target = $region48
      $region47: #{_lambda_.1} parent=11 // pred_region
        _
      $region48: #{_lambda_.1} parent=11 // pred_fallthru
        _
      // Predicated region
      $region49: #{_lambda_.1} parent=11 // pred_check
        %p519 = pneg %p262
      $region50: #{_lambda_.1} parent=11 // pred_check_branch
        %521 = sbr.rel (%p519) target = $region52
      $region51: #{_lambda_.1} parent=11 // pred_region
        _
      $region52: #{_lambda_.1} parent=11 // pred_fallthru
        _
      // Predicated region
      $region53: #{_lambda_.1} parent=11 // pred_check
        %p522 = pneg %p283
      $region54: #{_lambda_.1} parent=11 // pred_check_branch
        %524 = sbr.rel (%p522) target = $region56
      $region55: #{_lambda_.1} parent=11 // pred_region
        _
      $region56: #{_lambda_.1} parent=11 // pred_fallthru
        _
      // Predicated region
      $region57: #{_lambda_.1} parent=11 // pred_check
        %p525 = pneg %p304
      $region58: #{_lambda_.1} parent=11 // pred_check_branch
        %527 = sbr.rel (%p525) target = $region60
      $region59: #{_lambda_.1} parent=11 // pred_region
        _
      $region60: #{_lambda_.1} parent=11 // pred_fallthru
        _
      // Predicated region
      $region61: #{_lambda_.1} parent=11 // pred_check
        %p528 = pneg %p325
      $region62: #{_lambda_.1} parent=11 // pred_check_branch
        %530 = sbr.rel (%p528) target = $region64
      $region63: #{_lambda_.1} parent=11 // pred_region
        _
      $region64: #{_lambda_.1} parent=11 // pred_fallthru
        _
      // Predicated region
      $region65: #{_lambda_.1} parent=11 // pred_check
        %p531 = pneg %p346
      $region66: #{_lambda_.1} parent=11 // pred_check_branch
        %533 = sbr.rel (%p531) target = $region68
      $region67: #{_lambda_.1} parent=11 // pred_region
        _
      $region68: #{_lambda_.1} parent=11 // pred_fallthru
        _
      // Predicated region
      $region69: #{_lambda_.1} parent=11 // pred_check
        %p534 = pneg %p367
      $region70: #{_lambda_.1} parent=11 // pred_check_branch
        %536 = sbr.rel (%p534) target = $region72
      $region71: #{_lambda_.1} parent=11 // pred_region
        _
      $region72: #{_lambda_.1} parent=11 // pred_fallthru
        _
      // Predicated region
      $region73: #{_lambda_.1} parent=11 // pred_check
        %p537 = pneg %p388
      $region74: #{_lambda_.1} parent=11 // pred_check_branch
        %539 = sbr.rel (%p537) target = $region76
      $region75: #{_lambda_.1} parent=11 // pred_region
        _
      $region76: #{_lambda_.1} parent=11 // pred_fallthru
        _
      // Predicated region
      $region77: #{_lambda_.1} parent=11 // pred_check
        %p540 = pneg %p409
      $region78: #{_lambda_.1} parent=11 // pred_check_branch
        %542 = sbr.rel (%p540) target = $region80
      $region79: #{_lambda_.1} parent=11 // pred_region
        _
      $region80: #{_lambda_.1} parent=11 // pred_fallthru
        _
      // Predicated region
      $region81: #{_lambda_.1} parent=11 // pred_check
        %p543 = pneg %p430
      $region82: #{_lambda_.1} parent=11 // pred_check_branch
        %545 = sbr.rel (%p543) target = $region84
      $region83: #{_lambda_.1} parent=11 // pred_region
        _
      $region84: #{_lambda_.1} parent=11 // pred_fallthru
        _
      // Predicated region
      $region85: #{_lambda_.1} parent=11 // pred_check
        %p546 = pneg %p451
      $region86: #{_lambda_.1} parent=11 // pred_check_branch
        %548 = sbr.rel (%p546) target = $region88
      $region87: #{_lambda_.1} parent=11 // pred_region
        _
      $region88: #{_lambda_.1} parent=11 // pred_fallthru
        _
    $region12: #{_lambda_.1} parent=5 // pred_fallthru
      _
    %p549 = scmp.lt.s32.totalorder %s26, 2
    // Predicated region
    $region89: #{_lambda_.1} parent=5 // pred_check
      %p550 = pneg %p549
    $region90: #{_lambda_.1} parent=5 // pred_check_branch
      %552 = sbr.rel (%p550) target = $region92
    $region91: #{_lambda_.1} parent=5 // pred_region
      // Predicated region
      $region93: #{_lambda_.1} parent=91 // pred_check
        %p553 = pneg %p46
      $region94: #{_lambda_.1} parent=91 // pred_check_branch
        %555 = sbr.rel (%p553) target = $region96
      $region95: #{_lambda_.1} parent=91 // pred_region
        %p556 = scmp.lt.s32.totalorder %s26, 1
        %s557 = scalar_select %p556, %s26, 1
        %s558 = smul.addr %s557, 5
        %s559 = scalar_lea.vmem %s0, %s558
      $region96: #{_lambda_.1} parent=91 // pred_fallthru
        _
    $region92: #{_lambda_.1} parent=5 // pred_fallthru
      _
    %p560 = scmp.le.s32.totalorder 1, %s26
    %p561 = scmp.lt.s32.totalorder %s26, 3
    %p562 = pnand %p560, %p561
    %p563 = pneg %p562
    // Predicated region
    $region97: #{_lambda_.1} parent=5 // pred_check
      _
    $region98: #{_lambda_.1} parent=5 // pred_check_branch
      %565 = sbr.rel (%p562) target = $region100
    $region99: #{_lambda_.1} parent=5 // pred_region
      %s566 = ssub.s32 %s26, 1
      %p567 = scmp.lt.s32.totalorder %s31, 1
      %s568 = scalar_select %p567, %s31, 1
      %s569 = smul.addr %s568, 5
      %s570 = scalar_lea.vmem %s0, %s569
      %p571 = pneg %p52
      %p572 = pneg %p49
      %p573 = pneg %p73
      %p574 = pneg %p70
      %p575 = pneg %p94
      %p576 = pneg %p91
      %p577 = pneg %p115
      %p578 = pneg %p112
      %p579 = pneg %p136
      %p580 = pneg %p133
      %p581 = pneg %p157
      %p582 = pneg %p154
      %p583 = pneg %p178
      %p584 = pneg %p175
      %p585 = pneg %p199
      %p586 = pneg %p196
      %p587 = pneg %p220
      %p588 = pneg %p217
      %p589 = pneg %p241
      %p590 = pneg %p238
      %p591 = pneg %p262
      %p592 = pneg %p259
      %p593 = pneg %p283
      %p594 = pneg %p280
      %p595 = pneg %p304
      %p596 = pneg %p301
      %p597 = pneg %p325
      %p598 = pneg %p322
      %p599 = pneg %p346
      %p600 = pneg %p343
      %p601 = pneg %p367
      %p602 = pneg %p364
      %p603 = pneg %p388
      %p604 = pneg %p385
      %p605 = pneg %p409
      %p606 = pneg %p406
      %p607 = pneg %p430
      %p608 = pneg %p427
      %p609 = pneg %p451
      %p610 = pneg %p448
      %p611 = pneg %p477
      %p612 = pneg %p474
      %p613 = scmp.lt.s32.totalorder %s31, 1
      %s614 = scalar_select %p613, %s31, 1
      %s615 = smul.addr %s614, 2
      %s616 = scalar_lea.vmem %s20, %s615
      %p617 = scmp.lt.s32.totalorder %s31, 1
      %s618 = scalar_select %p617, %s31, 1
      %s619 = smul.addr %s618, 5
      %s620 = scalar_lea.vmem %s0, %s619
      %p621 = scmp.lt.s32.totalorder %s31, 1
      %s622 = scalar_select %p621, %s31, 1
      %s623 = smul.addr %s622, 2
      %s624 = scalar_lea.vmem %s20, %s623
      %v625 = vld [vmem:[%s620] sm:$0x1f]
      %v626 = vld [vmem:[%s1] sm:$0xff]
      %v627 = vld [vmem:[%s1 + $0x8] sm:$0xff]
      %v628 = vld [vmem:[%s2] sm:$0xff]
      %v629 = vld [vmem:[%s2 + $0x8] sm:$0xff]
      %631 = vset.pattern.permute.xlu0 0
      %632 = vperm.xlu0 %631, %v628
      %v633 = vpop.permute.xlu0 %632
      %636 = vset.pattern.permute.xlu0 0
      %637 = vperm.xlu0 %636, %v629
      %v638 = vpop.permute.xlu0 %637
      %v640 = vadd.f32 %v633, 0.0
      %v641 = vadd.f32 %v638, 0.0
      %643 = vset.pattern.permute.xlu0 0
      %644 = vperm.xlu0 %643, %v626
      %v645 = vpop.permute.xlu0 %644
      %648 = vset.pattern.permute.xlu0 0
      %649 = vperm.xlu0 %648, %v627
      %v650 = vpop.permute.xlu0 %649
      %v653 = vlaneseq
      %v654 = vshrl.u32 %v653, 7
      %v655 = vsub.s32 0, %v654
      %v656 = vrot.slane %v625, %v655
      %v657 = vlaneseq
      %v658 = vshrl.u32 %v657, 7
      %v659 = vsub.s32 1, %v658
      %v660 = vrot.slane %v625, %v659
      %v661 = vlaneseq
      %v662 = vshrl.u32 %v661, 7
      %v663 = vsub.s32 2, %v662
      %v664 = vrot.slane %v625, %v663
      %v665 = vlaneseq
      %v666 = vshrl.u32 %v665, 7
      %v667 = vsub.s32 3, %v666
      %v668 = vrot.slane %v625, %v667
      %v673 = vmul.f32 %v645, %v656
      %v674 = vmul.f32 %v645, %v660
      %v675 = vmul.f32 %v645, %v664
      %v676 = vmul.f32 %v645, %v668
      %v677 = vmul.f32 %v650, %v656
      %v678 = vmul.f32 %v650, %v660
      %v679 = vmul.f32 %v650, %v664
      %v680 = vmul.f32 %v650, %v668
      %v681 = vadd.f32 %v640, %v673
      %v682 = vadd.f32 %v640, %v674
      %v683 = vadd.f32 %v640, %v675
      %v684 = vadd.f32 %v640, %v676
      %v685 = vadd.f32 %v641, %v677
      %v686 = vadd.f32 %v641, %v678
      %v687 = vadd.f32 %v641, %v679
      %v688 = vadd.f32 %v641, %v680
      %689 = vset.pattern.permute.xlu0 1
      %690 = vperm.xlu0 %689, %v626
      %v691 = vpop.permute.xlu0 %690
      %693 = vset.pattern.permute.xlu0 1
      %694 = vperm.xlu0 %693, %v627
      %v695 = vpop.permute.xlu0 %694
      %v697 = vmul.f32 %v691, %v656
      %v698 = vmul.f32 %v691, %v660
      %v699 = vmul.f32 %v691, %v664
      %v700 = vmul.f32 %v691, %v668
      %v701 = vmul.f32 %v695, %v656
      %v702 = vmul.f32 %v695, %v660
      %v703 = vmul.f32 %v695, %v664
      %v704 = vmul.f32 %v695, %v668
      %713 = vrot.lane.b32.xlu0 %v697, 127
      %v714 = vpop.permute.xlu0 %713
      %715 = vrot.lane.b32.xlu0 %v698, 127
      %v716 = vpop.permute.xlu0 %715
      %717 = vrot.lane.b32.xlu0 %v699, 127
      %v718 = vpop.permute.xlu0 %717
      %719 = vrot.lane.b32.xlu0 %v700, 127
      %v720 = vpop.permute.xlu0 %719
      %721 = vrot.lane.b32.xlu0 %v701, 127
      %v722 = vpop.permute.xlu0 %721
      %723 = vrot.lane.b32.xlu0 %v702, 127
      %v724 = vpop.permute.xlu0 %723
      %725 = vrot.lane.b32.xlu0 %v703, 127
      %v726 = vpop.permute.xlu0 %725
      %727 = vrot.lane.b32.xlu0 %v704, 127
      %v728 = vpop.permute.xlu0 %727
      %vm729 = vcmask 1039360
      %v730 = vsel %vm729, %v714, %v716
      %v731 = vsel %vm729, %v716, %v718
      %v732 = vsel %vm729, %v718, %v720
      %v733 = vsel %vm729, %v722, %v724
      %v734 = vsel %vm729, %v724, %v726
      %v735 = vsel %vm729, %v726, %v728
      %v744 = vadd.f32 %v681, %v730
      %v745 = vadd.f32 %v682, %v731
      %v746 = vadd.f32 %v683, %v732
      %v747 = vadd.f32 %v684, %v720
      %v748 = vadd.f32 %v685, %v733
      %v749 = vadd.f32 %v686, %v734
      %v750 = vadd.f32 %v687, %v735
      %v751 = vadd.f32 %v688, %v728
      %752 = vset.pattern.permute.xlu0 2
      %753 = vperm.xlu0 %752, %v626
      %v754 = vpop.permute.xlu0 %753
      %756 = vset.pattern.permute.xlu0 2
      %757 = vperm.xlu0 %756, %v627
      %v758 = vpop.permute.xlu0 %757
      %v760 = vmul.f32 %v754, %v656
      %v761 = vmul.f32 %v754, %v660
      %v762 = vmul.f32 %v754, %v664
      %v763 = vmul.f32 %v754, %v668
      %v764 = vmul.f32 %v758, %v656
      %v765 = vmul.f32 %v758, %v660
      %v766 = vmul.f32 %v758, %v664
      %v767 = vmul.f32 %v758, %v668
      %776 = vrot.lane.b32.xlu0 %v760, 126
      %v777 = vpop.permute.xlu0 %776
      %778 = vrot.lane.b32.xlu0 %v761, 126
      %v779 = vpop.permute.xlu0 %778
      %780 = vrot.lane.b32.xlu0 %v762, 126
      %v781 = vpop.permute.xlu0 %780
      %782 = vrot.lane.b32.xlu0 %v763, 126
      %v783 = vpop.permute.xlu0 %782
      %784 = vrot.lane.b32.xlu0 %v764, 126
      %v785 = vpop.permute.xlu0 %784
      %786 = vrot.lane.b32.xlu0 %v765, 126
      %v787 = vpop.permute.xlu0 %786
      %788 = vrot.lane.b32.xlu0 %v766, 126
      %v789 = vpop.permute.xlu0 %788
      %790 = vrot.lane.b32.xlu0 %v767, 126
      %v791 = vpop.permute.xlu0 %790
      %vm792 = vcmask 1031168
      %v793 = vsel %vm792, %v777, %v779
      %v794 = vsel %vm792, %v779, %v781
      %v795 = vsel %vm792, %v781, %v783
      %v796 = vsel %vm792, %v785, %v787
      %v797 = vsel %vm792, %v787, %v789
      %v798 = vsel %vm792, %v789, %v791
      %v807 = vadd.f32 %v744, %v793
      %v808 = vadd.f32 %v745, %v794
      %v809 = vadd.f32 %v746, %v795
      %v810 = vadd.f32 %v747, %v783
      %v811 = vadd.f32 %v748, %v796
      %v812 = vadd.f32 %v749, %v797
      %v813 = vadd.f32 %v750, %v798
      %v814 = vadd.f32 %v751, %v791
      %815 = vset.pattern.permute.xlu0 3
      %816 = vperm.xlu0 %815, %v626
      %v817 = vpop.permute.xlu0 %816
      %819 = vset.pattern.permute.xlu0 3
      %820 = vperm.xlu0 %819, %v627
      %v821 = vpop.permute.xlu0 %820
      %v823 = vmul.f32 %v817, %v656
      %v824 = vmul.f32 %v817, %v660
      %v825 = vmul.f32 %v817, %v664
      %v826 = vmul.f32 %v817, %v668
      %v827 = vmul.f32 %v821, %v656
      %v828 = vmul.f32 %v821, %v660
      %v829 = vmul.f32 %v821, %v664
      %v830 = vmul.f32 %v821, %v668
      %839 = vrot.lane.b32.xlu0 %v823, 125
      %v840 = vpop.permute.xlu0 %839
      %841 = vrot.lane.b32.xlu0 %v824, 125
      %v842 = vpop.permute.xlu0 %841
      %843 = vrot.lane.b32.xlu0 %v825, 125
      %v844 = vpop.permute.xlu0 %843
      %845 = vrot.lane.b32.xlu0 %v826, 125
      %v846 = vpop.permute.xlu0 %845
      %847 = vrot.lane.b32.xlu0 %v827, 125
      %v848 = vpop.permute.xlu0 %847
      %849 = vrot.lane.b32.xlu0 %v828, 125
      %v850 = vpop.permute.xlu0 %849
      %851 = vrot.lane.b32.xlu0 %v829, 125
      %v852 = vpop.permute.xlu0 %851
      %853 = vrot.lane.b32.xlu0 %v830, 125
      %v854 = vpop.permute.xlu0 %853
      %vm855 = vcmask 1022976
      %v856 = vsel %vm855, %v840, %v842
      %v857 = vsel %vm855, %v842, %v844
      %v858 = vsel %vm855, %v844, %v846
      %v859 = vsel %vm855, %v848, %v850
      %v860 = vsel %vm855, %v850, %v852
      %v861 = vsel %vm855, %v852, %v854
      %v870 = vadd.f32 %v807, %v856
      %v871 = vadd.f32 %v808, %v857
      %v872 = vadd.f32 %v809, %v858
      %v873 = vadd.f32 %v810, %v846
      %v874 = vadd.f32 %v811, %v859
      %v875 = vadd.f32 %v812, %v860
      %v876 = vadd.f32 %v813, %v861
      %v877 = vadd.f32 %v814, %v854
      %878 = vset.pattern.permute.xlu0 4
      %879 = vperm.xlu0 %878, %v626
      %v880 = vpop.permute.xlu0 %879
      %882 = vset.pattern.permute.xlu0 4
      %883 = vperm.xlu0 %882, %v627
      %v884 = vpop.permute.xlu0 %883
      %v886 = vmul.f32 %v880, %v656
      %v887 = vmul.f32 %v880, %v660
      %v888 = vmul.f32 %v880, %v664
      %v889 = vmul.f32 %v880, %v668
      %v890 = vmul.f32 %v884, %v656
      %v891 = vmul.f32 %v884, %v660
      %v892 = vmul.f32 %v884, %v664
      %v893 = vmul.f32 %v884, %v668
      %902 = vrot.lane.b32.xlu0 %v886, 124
      %v903 = vpop.permute.xlu0 %902
      %904 = vrot.lane.b32.xlu0 %v887, 124
      %v905 = vpop.permute.xlu0 %904
      %906 = vrot.lane.b32.xlu0 %v888, 124
      %v907 = vpop.permute.xlu0 %906
      %908 = vrot.lane.b32.xlu0 %v889, 124
      %v909 = vpop.permute.xlu0 %908
      %910 = vrot.lane.b32.xlu0 %v890, 124
      %v911 = vpop.permute.xlu0 %910
      %912 = vrot.lane.b32.xlu0 %v891, 124
      %v913 = vpop.permute.xlu0 %912
      %914 = vrot.lane.b32.xlu0 %v892, 124
      %v915 = vpop.permute.xlu0 %914
      %916 = vrot.lane.b32.xlu0 %v893, 124
      %v917 = vpop.permute.xlu0 %916
      %vm918 = vcmask 1014784
      %v919 = vsel %vm918, %v903, %v905
      %v920 = vsel %vm918, %v905, %v907
      %v921 = vsel %vm918, %v907, %v909
      %v922 = vsel %vm918, %v911, %v913
      %v923 = vsel %vm918, %v913, %v915
      %v924 = vsel %vm918, %v915, %v917
      %v933 = vadd.f32 %v870, %v919
      %v934 = vadd.f32 %v871, %v920
      %v935 = vadd.f32 %v872, %v921
      %v936 = vadd.f32 %v873, %v909
      %v937 = vadd.f32 %v874, %v922
      %v938 = vadd.f32 %v875, %v923
      %v939 = vadd.f32 %v876, %v924
      %v940 = vadd.f32 %v877, %v917
      %941 = vset.pattern.permute.xlu0 5
      %942 = vperm.xlu0 %941, %v626
      %v943 = vpop.permute.xlu0 %942
      %945 = vset.pattern.permute.xlu0 5
      %946 = vperm.xlu0 %945, %v627
      %v947 = vpop.permute.xlu0 %946
      %v949 = vmul.f32 %v943, %v656
      %v950 = vmul.f32 %v943, %v660
      %v951 = vmul.f32 %v943, %v664
      %v952 = vmul.f32 %v943, %v668
      %v953 = vmul.f32 %v947, %v656
      %v954 = vmul.f32 %v947, %v660
      %v955 = vmul.f32 %v947, %v664
      %v956 = vmul.f32 %v947, %v668
      %965 = vrot.lane.b32.xlu0 %v949, 123
      %v966 = vpop.permute.xlu0 %965
      %967 = vrot.lane.b32.xlu0 %v950, 123
      %v968 = vpop.permute.xlu0 %967
      %969 = vrot.lane.b32.xlu0 %v951, 123
      %v970 = vpop.permute.xlu0 %969
      %971 = vrot.lane.b32.xlu0 %v952, 123
      %v972 = vpop.permute.xlu0 %971
      %973 = vrot.lane.b32.xlu0 %v953, 123
      %v974 = vpop.permute.xlu0 %973
      %975 = vrot.lane.b32.xlu0 %v954, 123
      %v976 = vpop.permute.xlu0 %975
      %977 = vrot.lane.b32.xlu0 %v955, 123
      %v978 = vpop.permute.xlu0 %977
      %979 = vrot.lane.b32.xlu0 %v956, 123
      %v980 = vpop.permute.xlu0 %979
      %vm981 = vcmask 1006592
      %v982 = vsel %vm981, %v966, %v968
      %v983 = vsel %vm981, %v968, %v970
      %v984 = vsel %vm981, %v970, %v972
      %v985 = vsel %vm981, %v974, %v976
      %v986 = vsel %vm981, %v976, %v978
      %v987 = vsel %vm981, %v978, %v980
      %v996 = vadd.f32 %v933, %v982
      %v997 = vadd.f32 %v934, %v983
      %v998 = vadd.f32 %v935, %v984
      %v999 = vadd.f32 %v936, %v972
      %v1000 = vadd.f32 %v937, %v985
      %v1001 = vadd.f32 %v938, %v986
      %v1002 = vadd.f32 %v939, %v987
      %v1003 = vadd.f32 %v940, %v980
      %1004 = vset.pattern.permute.xlu0 6
      %1005 = vperm.xlu0 %1004, %v626
      %v1006 = vpop.permute.xlu0 %1005
      %1008 = vset.pattern.permute.xlu0 6
      %1009 = vperm.xlu0 %1008, %v627
      %v1010 = vpop.permute.xlu0 %1009
      %v1012 = vmul.f32 %v1006, %v656
      %v1013 = vmul.f32 %v1006, %v660
      %v1014 = vmul.f32 %v1006, %v664
      %v1015 = vmul.f32 %v1006, %v668
      %v1016 = vmul.f32 %v1010, %v656
      %v1017 = vmul.f32 %v1010, %v660
      %v1018 = vmul.f32 %v1010, %v664
      %v1019 = vmul.f32 %v1010, %v668
      %1028 = vrot.lane.b32.xlu0 %v1012, 122
      %v1029 = vpop.permute.xlu0 %1028
      %1030 = vrot.lane.b32.xlu0 %v1013, 122
      %v1031 = vpop.permute.xlu0 %1030
      %1032 = vrot.lane.b32.xlu0 %v1014, 122
      %v1033 = vpop.permute.xlu0 %1032
      %1034 = vrot.lane.b32.xlu0 %v1015, 122
      %v1035 = vpop.permute.xlu0 %1034
      %1036 = vrot.lane.b32.xlu0 %v1016, 122
      %v1037 = vpop.permute.xlu0 %1036
      %1038 = vrot.lane.b32.xlu0 %v1017, 122
      %v1039 = vpop.permute.xlu0 %1038
      %1040 = vrot.lane.b32.xlu0 %v1018, 122
      %v1041 = vpop.permute.xlu0 %1040
      %1042 = vrot.lane.b32.xlu0 %v1019, 122
      %v1043 = vpop.permute.xlu0 %1042
      %vm1044 = vcmask 998400
      %v1045 = vsel %vm1044, %v1029, %v1031
      %v1046 = vsel %vm1044, %v1031, %v1033
      %v1047 = vsel %vm1044, %v1033, %v1035
      %v1048 = vsel %vm1044, %v1037, %v1039
      %v1049 = vsel %vm1044, %v1039, %v1041
      %v1050 = vsel %vm1044, %v1041, %v1043
      %v1059 = vadd.f32 %v996, %v1045
      %v1060 = vadd.f32 %v997, %v1046
      %v1061 = vadd.f32 %v998, %v1047
      %v1062 = vadd.f32 %v999, %v1035
      %v1063 = vadd.f32 %v1000, %v1048
      %v1064 = vadd.f32 %v1001, %v1049
      %v1065 = vadd.f32 %v1002, %v1050
      %v1066 = vadd.f32 %v1003, %v1043
      %1067 = vset.pattern.permute.xlu0 7
      %1068 = vperm.xlu0 %1067, %v626
      %v1069 = vpop.permute.xlu0 %1068
      %1071 = vset.pattern.permute.xlu0 7
      %1072 = vperm.xlu0 %1071, %v627
      %v1073 = vpop.permute.xlu0 %1072
      %v1075 = vmul.f32 %v1069, %v656
      %v1076 = vmul.f32 %v1069, %v660
      %v1077 = vmul.f32 %v1069, %v664
      %v1078 = vmul.f32 %v1069, %v668
      %v1079 = vmul.f32 %v1073, %v656
      %v1080 = vmul.f32 %v1073, %v660
      %v1081 = vmul.f32 %v1073, %v664
      %v1082 = vmul.f32 %v1073, %v668
      %1091 = vrot.lane.b32.xlu0 %v1075, 116
      %v1092 = vpop.permute.xlu0 %1091
      %1093 = vrot.lane.b32.xlu0 %v1076, 116
      %v1094 = vpop.permute.xlu0 %1093
      %1095 = vrot.lane.b32.xlu0 %v1077, 116
      %v1096 = vpop.permute.xlu0 %1095
      %1097 = vrot.lane.b32.xlu0 %v1078, 116
      %v1098 = vpop.permute.xlu0 %1097
      %1099 = vrot.lane.b32.xlu0 %v1079, 116
      %v1100 = vpop.permute.xlu0 %1099
      %1101 = vrot.lane.b32.xlu0 %v1080, 116
      %v1102 = vpop.permute.xlu0 %1101
      %1103 = vrot.lane.b32.xlu0 %v1081, 116
      %v1104 = vpop.permute.xlu0 %1103
      %1105 = vrot.lane.b32.xlu0 %v1082, 116
      %v1106 = vpop.permute.xlu0 %1105
      %vm1107 = vcmask 949248
      %v1108 = vsel %vm1107, %v1092, %v1094
      %v1109 = vsel %vm1107, %v1094, %v1096
      %v1110 = vsel %vm1107, %v1096, %v1098
      %v1111 = vsel %vm1107, %v1100, %v1102
      %v1112 = vsel %vm1107, %v1102, %v1104
      %v1113 = vsel %vm1107, %v1104, %v1106
      %v1122 = vadd.f32 %v1059, %v1108
      %v1123 = vadd.f32 %v1060, %v1109
      %v1124 = vadd.f32 %v1061, %v1110
      %v1125 = vadd.f32 %v1062, %v1098
      %v1126 = vadd.f32 %v1063, %v1111
      %v1127 = vadd.f32 %v1064, %v1112
      %v1128 = vadd.f32 %v1065, %v1113
      %v1129 = vadd.f32 %v1066, %v1106
      %1130 = vset.pattern.permute.xlu0 8
      %1131 = vperm.xlu0 %1130, %v626
      %v1132 = vpop.permute.xlu0 %1131
      %1134 = vset.pattern.permute.xlu0 8
      %1135 = vperm.xlu0 %1134, %v627
      %v1136 = vpop.permute.xlu0 %1135
      %v1138 = vmul.f32 %v1132, %v656
      %v1139 = vmul.f32 %v1132, %v660
      %v1140 = vmul.f32 %v1132, %v664
      %v1141 = vmul.f32 %v1132, %v668
      %v1142 = vmul.f32 %v1136, %v656
      %v1143 = vmul.f32 %v1136, %v660
      %v1144 = vmul.f32 %v1136, %v664
      %v1145 = vmul.f32 %v1136, %v668
      %1154 = vrot.lane.b32.xlu0 %v1138, 115
      %v1155 = vpop.permute.xlu0 %1154
      %1156 = vrot.lane.b32.xlu0 %v1139, 115
      %v1157 = vpop.permute.xlu0 %1156
      %1158 = vrot.lane.b32.xlu0 %v1140, 115
      %v1159 = vpop.permute.xlu0 %1158
      %1160 = vrot.lane.b32.xlu0 %v1141, 115
      %v1161 = vpop.permute.xlu0 %1160
      %1162 = vrot.lane.b32.xlu0 %v1142, 115
      %v1163 = vpop.permute.xlu0 %1162
      %1164 = vrot.lane.b32.xlu0 %v1143, 115
      %v1165 = vpop.permute.xlu0 %1164
      %1166 = vrot.lane.b32.xlu0 %v1144, 115
      %v1167 = vpop.permute.xlu0 %1166
      %1168 = vrot.lane.b32.xlu0 %v1145, 115
      %v1169 = vpop.permute.xlu0 %1168
      %vm1170 = vcmask 941056
      %v1171 = vsel %vm1170, %v1155, %v1157
      %v1172 = vsel %vm1170, %v1157, %v1159
      %v1173 = vsel %vm1170, %v1159, %v1161
      %v1174 = vsel %vm1170, %v1163, %v1165
      %v1175 = vsel %vm1170, %v1165, %v1167
      %v1176 = vsel %vm1170, %v1167, %v1169
      %v1185 = vadd.f32 %v1122, %v1171
      %v1186 = vadd.f32 %v1123, %v1172
      %v1187 = vadd.f32 %v1124, %v1173
      %v1188 = vadd.f32 %v1125, %v1161
      %v1189 = vadd.f32 %v1126, %v1174
      %v1190 = vadd.f32 %v1127, %v1175
      %v1191 = vadd.f32 %v1128, %v1176
      %v1192 = vadd.f32 %v1129, %v1169
      %1193 = vset.pattern.permute.xlu0 9
      %1194 = vperm.xlu0 %1193, %v626
      %v1195 = vpop.permute.xlu0 %1194
      %1197 = vset.pattern.permute.xlu0 9
      %1198 = vperm.xlu0 %1197, %v627
      %v1199 = vpop.permute.xlu0 %1198
      %v1201 = vmul.f32 %v1195, %v656
      %v1202 = vmul.f32 %v1195, %v660
      %v1203 = vmul.f32 %v1195, %v664
      %v1204 = vmul.f32 %v1195, %v668
      %v1205 = vmul.f32 %v1199, %v656
      %v1206 = vmul.f32 %v1199, %v660
      %v1207 = vmul.f32 %v1199, %v664
      %v1208 = vmul.f32 %v1199, %v668
      %1217 = vrot.lane.b32.xlu0 %v1201, 114
      %v1218 = vpop.permute.xlu0 %1217
      %1219 = vrot.lane.b32.xlu0 %v1202, 114
      %v1220 = vpop.permute.xlu0 %1219
      %1221 = vrot.lane.b32.xlu0 %v1203, 114
      %v1222 = vpop.permute.xlu0 %1221
      %1223 = vrot.lane.b32.xlu0 %v1204, 114
      %v1224 = vpop.permute.xlu0 %1223
      %1225 = vrot.lane.b32.xlu0 %v1205, 114
      %v1226 = vpop.permute.xlu0 %1225
      %1227 = vrot.lane.b32.xlu0 %v1206, 114
      %v1228 = vpop.permute.xlu0 %1227
      %1229 = vrot.lane.b32.xlu0 %v1207, 114
      %v1230 = vpop.permute.xlu0 %1229
      %1231 = vrot.lane.b32.xlu0 %v1208, 114
      %v1232 = vpop.permute.xlu0 %1231
      %vm1233 = vcmask 932864
      %v1234 = vsel %vm1233, %v1218, %v1220
      %v1235 = vsel %vm1233, %v1220, %v1222
      %v1236 = vsel %vm1233, %v1222, %v1224
      %v1237 = vsel %vm1233, %v1226, %v1228
      %v1238 = vsel %vm1233, %v1228, %v1230
      %v1239 = vsel %vm1233, %v1230, %v1232
      %v1248 = vadd.f32 %v1185, %v1234
      %v1249 = vadd.f32 %v1186, %v1235
      %v1250 = vadd.f32 %v1187, %v1236
      %v1251 = vadd.f32 %v1188, %v1224
      %v1252 = vadd.f32 %v1189, %v1237
      %v1253 = vadd.f32 %v1190, %v1238
      %v1254 = vadd.f32 %v1191, %v1239
      %v1255 = vadd.f32 %v1192, %v1232
      %1256 = vset.pattern.permute.xlu0 10
      %1257 = vperm.xlu0 %1256, %v626
      %v1258 = vpop.permute.xlu0 %1257
      %1260 = vset.pattern.permute.xlu0 10
      %1261 = vperm.xlu0 %1260, %v627
      %v1262 = vpop.permute.xlu0 %1261
      %v1264 = vmul.f32 %v1258, %v656
      %v1265 = vmul.f32 %v1258, %v660
      %v1266 = vmul.f32 %v1258, %v664
      %v1267 = vmul.f32 %v1258, %v668
      %v1268 = vmul.f32 %v1262, %v656
      %v1269 = vmul.f32 %v1262, %v660
      %v1270 = vmul.f32 %v1262, %v664
      %v1271 = vmul.f32 %v1262, %v668
      %1280 = vrot.lane.b32.xlu0 %v1264, 113
      %v1281 = vpop.permute.xlu0 %1280
      %1282 = vrot.lane.b32.xlu0 %v1265, 113
      %v1283 = vpop.permute.xlu0 %1282
      %1284 = vrot.lane.b32.xlu0 %v1266, 113
      %v1285 = vpop.permute.xlu0 %1284
      %1286 = vrot.lane.b32.xlu0 %v1267, 113
      %v1287 = vpop.permute.xlu0 %1286
      %1288 = vrot.lane.b32.xlu0 %v1268, 113
      %v1289 = vpop.permute.xlu0 %1288
      %1290 = vrot.lane.b32.xlu0 %v1269, 113
      %v1291 = vpop.permute.xlu0 %1290
      %1292 = vrot.lane.b32.xlu0 %v1270, 113
      %v1293 = vpop.permute.xlu0 %1292
      %1294 = vrot.lane.b32.xlu0 %v1271, 113
      %v1295 = vpop.permute.xlu0 %1294
      %vm1296 = vcmask 924672
      %v1297 = vsel %vm1296, %v1281, %v1283
      %v1298 = vsel %vm1296, %v1283, %v1285
      %v1299 = vsel %vm1296, %v1285, %v1287
      %v1300 = vsel %vm1296, %v1289, %v1291
      %v1301 = vsel %vm1296, %v1291, %v1293
      %v1302 = vsel %vm1296, %v1293, %v1295
      %v1311 = vadd.f32 %v1248, %v1297
      %v1312 = vadd.f32 %v1249, %v1298
      %v1313 = vadd.f32 %v1250, %v1299
      %v1314 = vadd.f32 %v1251, %v1287
      %v1315 = vadd.f32 %v1252, %v1300
      %v1316 = vadd.f32 %v1253, %v1301
      %v1317 = vadd.f32 %v1254, %v1302
      %v1318 = vadd.f32 %v1255, %v1295
      %1319 = vset.pattern.permute.xlu0 11
      %1320 = vperm.xlu0 %1319, %v626
      %v1321 = vpop.permute.xlu0 %1320
      %1323 = vset.pattern.permute.xlu0 11
      %1324 = vperm.xlu0 %1323, %v627
      %v1325 = vpop.permute.xlu0 %1324
      %v1327 = vmul.f32 %v1321, %v656
      %v1328 = vmul.f32 %v1321, %v660
      %v1329 = vmul.f32 %v1321, %v664
      %v1330 = vmul.f32 %v1321, %v668
      %v1331 = vmul.f32 %v1325, %v656
      %v1332 = vmul.f32 %v1325, %v660
      %v1333 = vmul.f32 %v1325, %v664
      %v1334 = vmul.f32 %v1325, %v668
      %1343 = vrot.lane.b32.xlu0 %v1327, 112
      %v1344 = vpop.permute.xlu0 %1343
      %1345 = vrot.lane.b32.xlu0 %v1328, 112
      %v1346 = vpop.permute.xlu0 %1345
      %1347 = vrot.lane.b32.xlu0 %v1329, 112
      %v1348 = vpop.permute.xlu0 %1347
      %1349 = vrot.lane.b32.xlu0 %v1330, 112
      %v1350 = vpop.permute.xlu0 %1349
      %1351 = vrot.lane.b32.xlu0 %v1331, 112
      %v1352 = vpop.permute.xlu0 %1351
      %1353 = vrot.lane.b32.xlu0 %v1332, 112
      %v1354 = vpop.permute.xlu0 %1353
      %1355 = vrot.lane.b32.xlu0 %v1333, 112
      %v1356 = vpop.permute.xlu0 %1355
      %1357 = vrot.lane.b32.xlu0 %v1334, 112
      %v1358 = vpop.permute.xlu0 %1357
      %vm1359 = vcmask 916480
      %v1360 = vsel %vm1359, %v1344, %v1346
      %v1361 = vsel %vm1359, %v1346, %v1348
      %v1362 = vsel %vm1359, %v1348, %v1350
      %v1363 = vsel %vm1359, %v1352, %v1354
      %v1364 = vsel %vm1359, %v1354, %v1356
      %v1365 = vsel %vm1359, %v1356, %v1358
      %v1374 = vadd.f32 %v1311, %v1360
      %v1375 = vadd.f32 %v1312, %v1361
      %v1376 = vadd.f32 %v1313, %v1362
      %v1377 = vadd.f32 %v1314, %v1350
      %v1378 = vadd.f32 %v1315, %v1363
      %v1379 = vadd.f32 %v1316, %v1364
      %v1380 = vadd.f32 %v1317, %v1365
      %v1381 = vadd.f32 %v1318, %v1358
      %1382 = vset.pattern.permute.xlu0 12
      %1383 = vperm.xlu0 %1382, %v626
      %v1384 = vpop.permute.xlu0 %1383
      %1386 = vset.pattern.permute.xlu0 12
      %1387 = vperm.xlu0 %1386, %v627
      %v1388 = vpop.permute.xlu0 %1387
      %v1390 = vmul.f32 %v1384, %v656
      %v1391 = vmul.f32 %v1384, %v660
      %v1392 = vmul.f32 %v1384, %v664
      %v1393 = vmul.f32 %v1384, %v668
      %v1394 = vmul.f32 %v1388, %v656
      %v1395 = vmul.f32 %v1388, %v660
      %v1396 = vmul.f32 %v1388, %v664
      %v1397 = vmul.f32 %v1388, %v668
      %1406 = vrot.lane.b32.xlu0 %v1390, 111
      %v1407 = vpop.permute.xlu0 %1406
      %1408 = vrot.lane.b32.xlu0 %v1391, 111
      %v1409 = vpop.permute.xlu0 %1408
      %1410 = vrot.lane.b32.xlu0 %v1392, 111
      %v1411 = vpop.permute.xlu0 %1410
      %1412 = vrot.lane.b32.xlu0 %v1393, 111
      %v1413 = vpop.permute.xlu0 %1412
      %1414 = vrot.lane.b32.xlu0 %v1394, 111
      %v1415 = vpop.permute.xlu0 %1414
      %1416 = vrot.lane.b32.xlu0 %v1395, 111
      %v1417 = vpop.permute.xlu0 %1416
      %1418 = vrot.lane.b32.xlu0 %v1396, 111
      %v1419 = vpop.permute.xlu0 %1418
      %1420 = vrot.lane.b32.xlu0 %v1397, 111
      %v1421 = vpop.permute.xlu0 %1420
      %vm1422 = vcmask 908288
      %v1423 = vsel %vm1422, %v1407, %v1409
      %v1424 = vsel %vm1422, %v1409, %v1411
      %v1425 = vsel %vm1422, %v1411, %v1413
      %v1426 = vsel %vm1422, %v1415, %v1417
      %v1427 = vsel %vm1422, %v1417, %v1419
      %v1428 = vsel %vm1422, %v1419, %v1421
      %v1437 = vadd.f32 %v1374, %v1423
      %v1438 = vadd.f32 %v1375, %v1424
      %v1439 = vadd.f32 %v1376, %v1425
      %v1440 = vadd.f32 %v1377, %v1413
      %v1441 = vadd.f32 %v1378, %v1426
      %v1442 = vadd.f32 %v1379, %v1427
      %v1443 = vadd.f32 %v1380, %v1428
      %v1444 = vadd.f32 %v1381, %v1421
      %1445 = vset.pattern.permute.xlu0 13
      %1446 = vperm.xlu0 %1445, %v626
      %v1447 = vpop.permute.xlu0 %1446
      %1449 = vset.pattern.permute.xlu0 13
      %1450 = vperm.xlu0 %1449, %v627
      %v1451 = vpop.permute.xlu0 %1450
      %v1453 = vmul.f32 %v1447, %v656
      %v1454 = vmul.f32 %v1447, %v660
      %v1455 = vmul.f32 %v1447, %v664
      %v1456 = vmul.f32 %v1447, %v668
      %v1457 = vmul.f32 %v1451, %v656
      %v1458 = vmul.f32 %v1451, %v660
      %v1459 = vmul.f32 %v1451, %v664
      %v1460 = vmul.f32 %v1451, %v668
      %1469 = vrot.lane.b32.xlu0 %v1453, 110
      %v1470 = vpop.permute.xlu0 %1469
      %1471 = vrot.lane.b32.xlu0 %v1454, 110
      %v1472 = vpop.permute.xlu0 %1471
      %1473 = vrot.lane.b32.xlu0 %v1455, 110
      %v1474 = vpop.permute.xlu0 %1473
      %1475 = vrot.lane.b32.xlu0 %v1456, 110
      %v1476 = vpop.permute.xlu0 %1475
      %1477 = vrot.lane.b32.xlu0 %v1457, 110
      %v1478 = vpop.permute.xlu0 %1477
      %1479 = vrot.lane.b32.xlu0 %v1458, 110
      %v1480 = vpop.permute.xlu0 %1479
      %1481 = vrot.lane.b32.xlu0 %v1459, 110
      %v1482 = vpop.permute.xlu0 %1481
      %1483 = vrot.lane.b32.xlu0 %v1460, 110
      %v1484 = vpop.permute.xlu0 %1483
      %vm1485 = vcmask 900096
      %v1486 = vsel %vm1485, %v1470, %v1472
      %v1487 = vsel %vm1485, %v1472, %v1474
      %v1488 = vsel %vm1485, %v1474, %v1476
      %v1489 = vsel %vm1485, %v1478, %v1480
      %v1490 = vsel %vm1485, %v1480, %v1482
      %v1491 = vsel %vm1485, %v1482, %v1484
      %v1500 = vadd.f32 %v1437, %v1486
      %v1501 = vadd.f32 %v1438, %v1487
      %v1502 = vadd.f32 %v1439, %v1488
      %v1503 = vadd.f32 %v1440, %v1476
      %v1504 = vadd.f32 %v1441, %v1489
      %v1505 = vadd.f32 %v1442, %v1490
      %v1506 = vadd.f32 %v1443, %v1491
      %v1507 = vadd.f32 %v1444, %v1484
      %1508 = vset.pattern.permute.xlu0 14
      %1509 = vperm.xlu0 %1508, %v626
      %v1510 = vpop.permute.xlu0 %1509
      %1512 = vset.pattern.permute.xlu0 14
      %1513 = vperm.xlu0 %1512, %v627
      %v1514 = vpop.permute.xlu0 %1513
      %v1516 = vmul.f32 %v1510, %v656
      %v1517 = vmul.f32 %v1510, %v660
      %v1518 = vmul.f32 %v1510, %v664
      %v1519 = vmul.f32 %v1510, %v668
      %v1520 = vmul.f32 %v1514, %v656
      %v1521 = vmul.f32 %v1514, %v660
      %v1522 = vmul.f32 %v1514, %v664
      %v1523 = vmul.f32 %v1514, %v668
      %1532 = vrot.lane.b32.xlu0 %v1516, 104
      %v1533 = vpop.permute.xlu0 %1532
      %1534 = vrot.lane.b32.xlu0 %v1517, 104
      %v1535 = vpop.permute.xlu0 %1534
      %1536 = vrot.lane.b32.xlu0 %v1518, 104
      %v1537 = vpop.permute.xlu0 %1536
      %1538 = vrot.lane.b32.xlu0 %v1519, 104
      %v1539 = vpop.permute.xlu0 %1538
      %1540 = vrot.lane.b32.xlu0 %v1520, 104
      %v1541 = vpop.permute.xlu0 %1540
      %1542 = vrot.lane.b32.xlu0 %v1521, 104
      %v1543 = vpop.permute.xlu0 %1542
      %1544 = vrot.lane.b32.xlu0 %v1522, 104
      %v1545 = vpop.permute.xlu0 %1544
      %1546 = vrot.lane.b32.xlu0 %v1523, 104
      %v1547 = vpop.permute.xlu0 %1546
      %vm1548 = vcmask 850944
      %v1549 = vsel %vm1548, %v1533, %v1535
      %v1550 = vsel %vm1548, %v1535, %v1537
      %v1551 = vsel %vm1548, %v1537, %v1539
      %v1552 = vsel %vm1548, %v1541, %v1543
      %v1553 = vsel %vm1548, %v1543, %v1545
      %v1554 = vsel %vm1548, %v1545, %v1547
      %v1563 = vadd.f32 %v1500, %v1549
      %v1564 = vadd.f32 %v1501, %v1550
      %v1565 = vadd.f32 %v1502, %v1551
      %v1566 = vadd.f32 %v1503, %v1539
      %v1567 = vadd.f32 %v1504, %v1552
      %v1568 = vadd.f32 %v1505, %v1553
      %v1569 = vadd.f32 %v1506, %v1554
      %v1570 = vadd.f32 %v1507, %v1547
      %1571 = vset.pattern.permute.xlu0 15
      %1572 = vperm.xlu0 %1571, %v626
      %v1573 = vpop.permute.xlu0 %1572
      %1575 = vset.pattern.permute.xlu0 15
      %1576 = vperm.xlu0 %1575, %v627
      %v1577 = vpop.permute.xlu0 %1576
      %v1579 = vmul.f32 %v1573, %v656
      %v1580 = vmul.f32 %v1573, %v660
      %v1581 = vmul.f32 %v1573, %v664
      %v1582 = vmul.f32 %v1573, %v668
      %v1583 = vmul.f32 %v1577, %v656
      %v1584 = vmul.f32 %v1577, %v660
      %v1585 = vmul.f32 %v1577, %v664
      %v1586 = vmul.f32 %v1577, %v668
      %1595 = vrot.lane.b32.xlu0 %v1579, 103
      %v1596 = vpop.permute.xlu0 %1595
      %1597 = vrot.lane.b32.xlu0 %v1580, 103
      %v1598 = vpop.permute.xlu0 %1597
      %1599 = vrot.lane.b32.xlu0 %v1581, 103
      %v1600 = vpop.permute.xlu0 %1599
      %1601 = vrot.lane.b32.xlu0 %v1582, 103
      %v1602 = vpop.permute.xlu0 %1601
      %1603 = vrot.lane.b32.xlu0 %v1583, 103
      %v1604 = vpop.permute.xlu0 %1603
      %1605 = vrot.lane.b32.xlu0 %v1584, 103
      %v1606 = vpop.permute.xlu0 %1605
      %1607 = vrot.lane.b32.xlu0 %v1585, 103
      %v1608 = vpop.permute.xlu0 %1607
      %1609 = vrot.lane.b32.xlu0 %v1586, 103
      %v1610 = vpop.permute.xlu0 %1609
      %vm1611 = vcmask 842752
      %v1612 = vsel %vm1611, %v1596, %v1598
      %v1613 = vsel %vm1611, %v1598, %v1600
      %v1614 = vsel %vm1611, %v1600, %v1602
      %v1615 = vsel %vm1611, %v1604, %v1606
      %v1616 = vsel %vm1611, %v1606, %v1608
      %v1617 = vsel %vm1611, %v1608, %v1610
      %v1626 = vadd.f32 %v1563, %v1612
      %v1627 = vadd.f32 %v1564, %v1613
      %v1628 = vadd.f32 %v1565, %v1614
      %v1629 = vadd.f32 %v1566, %v1602
      %v1630 = vadd.f32 %v1567, %v1615
      %v1631 = vadd.f32 %v1568, %v1616
      %v1632 = vadd.f32 %v1569, %v1617
      %v1633 = vadd.f32 %v1570, %v1610
      %1634 = vset.pattern.permute.xlu0 16
      %1635 = vperm.xlu0 %1634, %v626
      %v1636 = vpop.permute.xlu0 %1635
      %1638 = vset.pattern.permute.xlu0 16
      %1639 = vperm.xlu0 %1638, %v627
      %v1640 = vpop.permute.xlu0 %1639
      %v1642 = vmul.f32 %v1636, %v656
      %v1643 = vmul.f32 %v1636, %v660
      %v1644 = vmul.f32 %v1636, %v664
      %v1645 = vmul.f32 %v1636, %v668
      %v1646 = vmul.f32 %v1640, %v656
      %v1647 = vmul.f32 %v1640, %v660
      %v1648 = vmul.f32 %v1640, %v664
      %v1649 = vmul.f32 %v1640, %v668
      %1658 = vrot.lane.b32.xlu0 %v1642, 102
      %v1659 = vpop.permute.xlu0 %1658
      %1660 = vrot.lane.b32.xlu0 %v1643, 102
      %v1661 = vpop.permute.xlu0 %1660
      %1662 = vrot.lane.b32.xlu0 %v1644, 102
      %v1663 = vpop.permute.xlu0 %1662
      %1664 = vrot.lane.b32.xlu0 %v1645, 102
      %v1665 = vpop.permute.xlu0 %1664
      %1666 = vrot.lane.b32.xlu0 %v1646, 102
      %v1667 = vpop.permute.xlu0 %1666
      %1668 = vrot.lane.b32.xlu0 %v1647, 102
      %v1669 = vpop.permute.xlu0 %1668
      %1670 = vrot.lane.b32.xlu0 %v1648, 102
      %v1671 = vpop.permute.xlu0 %1670
      %1672 = vrot.lane.b32.xlu0 %v1649, 102
      %v1673 = vpop.permute.xlu0 %1672
      %vm1674 = vcmask 834560
      %v1675 = vsel %vm1674, %v1659, %v1661
      %v1676 = vsel %vm1674, %v1661, %v1663
      %v1677 = vsel %vm1674, %v1663, %v1665
      %v1678 = vsel %vm1674, %v1667, %v1669
      %v1679 = vsel %vm1674, %v1669, %v1671
      %v1680 = vsel %vm1674, %v1671, %v1673
      %v1689 = vadd.f32 %v1626, %v1675
      %v1690 = vadd.f32 %v1627, %v1676
      %v1691 = vadd.f32 %v1628, %v1677
      %v1692 = vadd.f32 %v1629, %v1665
      %v1693 = vadd.f32 %v1630, %v1678
      %v1694 = vadd.f32 %v1631, %v1679
      %v1695 = vadd.f32 %v1632, %v1680
      %v1696 = vadd.f32 %v1633, %v1673
      %1697 = vset.pattern.permute.xlu0 17
      %1698 = vperm.xlu0 %1697, %v626
      %v1699 = vpop.permute.xlu0 %1698
      %1701 = vset.pattern.permute.xlu0 17
      %1702 = vperm.xlu0 %1701, %v627
      %v1703 = vpop.permute.xlu0 %1702
      %v1705 = vmul.f32 %v1699, %v656
      %v1706 = vmul.f32 %v1699, %v660
      %v1707 = vmul.f32 %v1699, %v664
      %v1708 = vmul.f32 %v1699, %v668
      %v1709 = vmul.f32 %v1703, %v656
      %v1710 = vmul.f32 %v1703, %v660
      %v1711 = vmul.f32 %v1703, %v664
      %v1712 = vmul.f32 %v1703, %v668
      %1721 = vrot.lane.b32.xlu0 %v1705, 101
      %v1722 = vpop.permute.xlu0 %1721
      %1723 = vrot.lane.b32.xlu0 %v1706, 101
      %v1724 = vpop.permute.xlu0 %1723
      %1725 = vrot.lane.b32.xlu0 %v1707, 101
      %v1726 = vpop.permute.xlu0 %1725
      %1727 = vrot.lane.b32.xlu0 %v1708, 101
      %v1728 = vpop.permute.xlu0 %1727
      %1729 = vrot.lane.b32.xlu0 %v1709, 101
      %v1730 = vpop.permute.xlu0 %1729
      %1731 = vrot.lane.b32.xlu0 %v1710, 101
      %v1732 = vpop.permute.xlu0 %1731
      %1733 = vrot.lane.b32.xlu0 %v1711, 101
      %v1734 = vpop.permute.xlu0 %1733
      %1735 = vrot.lane.b32.xlu0 %v1712, 101
      %v1736 = vpop.permute.xlu0 %1735
      %vm1737 = vcmask 826368
      %v1738 = vsel %vm1737, %v1722, %v1724
      %v1739 = vsel %vm1737, %v1724, %v1726
      %v1740 = vsel %vm1737, %v1726, %v1728
      %v1741 = vsel %vm1737, %v1730, %v1732
      %v1742 = vsel %vm1737, %v1732, %v1734
      %v1743 = vsel %vm1737, %v1734, %v1736
      %v1752 = vadd.f32 %v1689, %v1738
      %v1753 = vadd.f32 %v1690, %v1739
      %v1754 = vadd.f32 %v1691, %v1740
      %v1755 = vadd.f32 %v1692, %v1728
      %v1756 = vadd.f32 %v1693, %v1741
      %v1757 = vadd.f32 %v1694, %v1742
      %v1758 = vadd.f32 %v1695, %v1743
      %v1759 = vadd.f32 %v1696, %v1736
      %1760 = vset.pattern.permute.xlu0 18
      %1761 = vperm.xlu0 %1760, %v626
      %v1762 = vpop.permute.xlu0 %1761
      %1764 = vset.pattern.permute.xlu0 18
      %1765 = vperm.xlu0 %1764, %v627
      %v1766 = vpop.permute.xlu0 %1765
      %v1768 = vmul.f32 %v1762, %v656
      %v1769 = vmul.f32 %v1762, %v660
      %v1770 = vmul.f32 %v1762, %v664
      %v1771 = vmul.f32 %v1762, %v668
      %v1772 = vmul.f32 %v1766, %v656
      %v1773 = vmul.f32 %v1766, %v660
      %v1774 = vmul.f32 %v1766, %v664
      %v1775 = vmul.f32 %v1766, %v668
      %1784 = vrot.lane.b32.xlu0 %v1768, 100
      %v1785 = vpop.permute.xlu0 %1784
      %1786 = vrot.lane.b32.xlu0 %v1769, 100
      %v1787 = vpop.permute.xlu0 %1786
      %1788 = vrot.lane.b32.xlu0 %v1770, 100
      %v1789 = vpop.permute.xlu0 %1788
      %1790 = vrot.lane.b32.xlu0 %v1771, 100
      %v1791 = vpop.permute.xlu0 %1790
      %1792 = vrot.lane.b32.xlu0 %v1772, 100
      %v1793 = vpop.permute.xlu0 %1792
      %1794 = vrot.lane.b32.xlu0 %v1773, 100
      %v1795 = vpop.permute.xlu0 %1794
      %1796 = vrot.lane.b32.xlu0 %v1774, 100
      %v1797 = vpop.permute.xlu0 %1796
      %1798 = vrot.lane.b32.xlu0 %v1775, 100
      %v1799 = vpop.permute.xlu0 %1798
      %vm1800 = vcmask 818176
      %v1801 = vsel %vm1800, %v1785, %v1787
      %v1802 = vsel %vm1800, %v1787, %v1789
      %v1803 = vsel %vm1800, %v1789, %v1791
      %v1804 = vsel %vm1800, %v1793, %v1795
      %v1805 = vsel %vm1800, %v1795, %v1797
      %v1806 = vsel %vm1800, %v1797, %v1799
      %v1815 = vadd.f32 %v1752, %v1801
      %v1816 = vadd.f32 %v1753, %v1802
      %v1817 = vadd.f32 %v1754, %v1803
      %v1818 = vadd.f32 %v1755, %v1791
      %v1819 = vadd.f32 %v1756, %v1804
      %v1820 = vadd.f32 %v1757, %v1805
      %v1821 = vadd.f32 %v1758, %v1806
      %v1822 = vadd.f32 %v1759, %v1799
      %1823 = vset.pattern.permute.xlu0 19
      %1824 = vperm.xlu0 %1823, %v626
      %v1825 = vpop.permute.xlu0 %1824
      %1827 = vset.pattern.permute.xlu0 19
      %1828 = vperm.xlu0 %1827, %v627
      %v1829 = vpop.permute.xlu0 %1828
      %v1831 = vmul.f32 %v1825, %v656
      %v1832 = vmul.f32 %v1825, %v660
      %v1833 = vmul.f32 %v1825, %v664
      %v1834 = vmul.f32 %v1825, %v668
      %v1835 = vmul.f32 %v1829, %v656
      %v1836 = vmul.f32 %v1829, %v660
      %v1837 = vmul.f32 %v1829, %v664
      %v1838 = vmul.f32 %v1829, %v668
      %1847 = vrot.lane.b32.xlu0 %v1831, 99
      %v1848 = vpop.permute.xlu0 %1847
      %1849 = vrot.lane.b32.xlu0 %v1832, 99
      %v1850 = vpop.permute.xlu0 %1849
      %1851 = vrot.lane.b32.xlu0 %v1833, 99
      %v1852 = vpop.permute.xlu0 %1851
      %1853 = vrot.lane.b32.xlu0 %v1834, 99
      %v1854 = vpop.permute.xlu0 %1853
      %1855 = vrot.lane.b32.xlu0 %v1835, 99
      %v1856 = vpop.permute.xlu0 %1855
      %1857 = vrot.lane.b32.xlu0 %v1836, 99
      %v1858 = vpop.permute.xlu0 %1857
      %1859 = vrot.lane.b32.xlu0 %v1837, 99
      %v1860 = vpop.permute.xlu0 %1859
      %1861 = vrot.lane.b32.xlu0 %v1838, 99
      %v1862 = vpop.permute.xlu0 %1861
      %vm1863 = vcmask 809984
      %v1864 = vsel %vm1863, %v1848, %v1850
      %v1865 = vsel %vm1863, %v1850, %v1852
      %v1866 = vsel %vm1863, %v1852, %v1854
      %v1867 = vsel %vm1863, %v1856, %v1858
      %v1868 = vsel %vm1863, %v1858, %v1860
      %v1869 = vsel %vm1863, %v1860, %v1862
      %v1878 = vadd.f32 %v1815, %v1864
      %v1879 = vadd.f32 %v1816, %v1865
      %v1880 = vadd.f32 %v1817, %v1866
      %v1881 = vadd.f32 %v1818, %v1854
      %v1882 = vadd.f32 %v1819, %v1867
      %v1883 = vadd.f32 %v1820, %v1868
      %v1884 = vadd.f32 %v1821, %v1869
      %v1885 = vadd.f32 %v1822, %v1862
      %1886 = vset.pattern.permute.xlu0 20
      %1887 = vperm.xlu0 %1886, %v626
      %v1888 = vpop.permute.xlu0 %1887
      %1890 = vset.pattern.permute.xlu0 20
      %1891 = vperm.xlu0 %1890, %v627
      %v1892 = vpop.permute.xlu0 %1891
      %v1894 = vmul.f32 %v1888, %v656
      %v1895 = vmul.f32 %v1888, %v660
      %v1896 = vmul.f32 %v1888, %v664
      %v1897 = vmul.f32 %v1888, %v668
      %v1898 = vmul.f32 %v1892, %v656
      %v1899 = vmul.f32 %v1892, %v660
      %v1900 = vmul.f32 %v1892, %v664
      %v1901 = vmul.f32 %v1892, %v668
      %1910 = vrot.lane.b32.xlu0 %v1894, 98
      %v1911 = vpop.permute.xlu0 %1910
      %1912 = vrot.lane.b32.xlu0 %v1895, 98
      %v1913 = vpop.permute.xlu0 %1912
      %1914 = vrot.lane.b32.xlu0 %v1896, 98
      %v1915 = vpop.permute.xlu0 %1914
      %1916 = vrot.lane.b32.xlu0 %v1897, 98
      %v1917 = vpop.permute.xlu0 %1916
      %1918 = vrot.lane.b32.xlu0 %v1898, 98
      %v1919 = vpop.permute.xlu0 %1918
      %1920 = vrot.lane.b32.xlu0 %v1899, 98
      %v1921 = vpop.permute.xlu0 %1920
      %1922 = vrot.lane.b32.xlu0 %v1900, 98
      %v1923 = vpop.permute.xlu0 %1922
      %1924 = vrot.lane.b32.xlu0 %v1901, 98
      %v1925 = vpop.permute.xlu0 %1924
      %vm1926 = vcmask 801792
      %v1927 = vsel %vm1926, %v1911, %v1913
      %v1928 = vsel %vm1926, %v1913, %v1915
      %v1929 = vsel %vm1926, %v1915, %v1917
      %v1930 = vsel %vm1926, %v1919, %v1921
      %v1931 = vsel %vm1926, %v1921, %v1923
      %v1932 = vsel %vm1926, %v1923, %v1925
      %v1941 = vadd.f32 %v1878, %v1927
      %v1942 = vadd.f32 %v1879, %v1928
      %v1943 = vadd.f32 %v1880, %v1929
      %v1944 = vadd.f32 %v1881, %v1917
      %v1945 = vadd.f32 %v1882, %v1930
      %v1946 = vadd.f32 %v1883, %v1931
      %v1947 = vadd.f32 %v1884, %v1932
      %v1948 = vadd.f32 %v1885, %v1925
      %1949 = vset.pattern.permute.xlu0 21
      %1950 = vperm.xlu0 %1949, %v626
      %v1951 = vpop.permute.xlu0 %1950
      %1953 = vset.pattern.permute.xlu0 21
      %1954 = vperm.xlu0 %1953, %v627
      %v1955 = vpop.permute.xlu0 %1954
      %v1957 = vmul.f32 %v1951, %v656
      %v1958 = vmul.f32 %v1951, %v660
      %v1959 = vmul.f32 %v1951, %v664
      %v1960 = vmul.f32 %v1951, %v668
      %v1961 = vmul.f32 %v1955, %v656
      %v1962 = vmul.f32 %v1955, %v660
      %v1963 = vmul.f32 %v1955, %v664
      %v1964 = vmul.f32 %v1955, %v668
      %1973 = vrot.lane.b32.xlu0 %v1957, 92
      %v1974 = vpop.permute.xlu0 %1973
      %1975 = vrot.lane.b32.xlu0 %v1958, 92
      %v1976 = vpop.permute.xlu0 %1975
      %1977 = vrot.lane.b32.xlu0 %v1959, 92
      %v1978 = vpop.permute.xlu0 %1977
      %1979 = vrot.lane.b32.xlu0 %v1960, 92
      %v1980 = vpop.permute.xlu0 %1979
      %1981 = vrot.lane.b32.xlu0 %v1961, 92
      %v1982 = vpop.permute.xlu0 %1981
      %1983 = vrot.lane.b32.xlu0 %v1962, 92
      %v1984 = vpop.permute.xlu0 %1983
      %1985 = vrot.lane.b32.xlu0 %v1963, 92
      %v1986 = vpop.permute.xlu0 %1985
      %1987 = vrot.lane.b32.xlu0 %v1964, 92
      %v1988 = vpop.permute.xlu0 %1987
      %vm1989 = vcmask 752640
      %v1990 = vsel %vm1989, %v1974, %v1976
      %v1991 = vsel %vm1989, %v1976, %v1978
      %v1992 = vsel %vm1989, %v1978, %v1980
      %v1993 = vsel %vm1989, %v1982, %v1984
      %v1994 = vsel %vm1989, %v1984, %v1986
      %v1995 = vsel %vm1989, %v1986, %v1988
      %v2004 = vadd.f32 %v1941, %v1990
      %v2005 = vadd.f32 %v1942, %v1991
      %v2006 = vadd.f32 %v1943, %v1992
      %v2007 = vadd.f32 %v1944, %v1980
      %v2008 = vadd.f32 %v1945, %v1993
      %v2009 = vadd.f32 %v1946, %v1994
      %v2010 = vadd.f32 %v1947, %v1995
      %v2011 = vadd.f32 %v1948, %v1988
      %2012 = vset.pattern.permute.xlu0 22
      %2013 = vperm.xlu0 %2012, %v626
      %v2014 = vpop.permute.xlu0 %2013
      %2016 = vset.pattern.permute.xlu0 22
      %2017 = vperm.xlu0 %2016, %v627
      %v2018 = vpop.permute.xlu0 %2017
      %v2020 = vmul.f32 %v2014, %v656
      %v2021 = vmul.f32 %v2014, %v660
      %v2022 = vmul.f32 %v2014, %v664
      %v2023 = vmul.f32 %v2014, %v668
      %v2024 = vmul.f32 %v2018, %v656
      %v2025 = vmul.f32 %v2018, %v660
      %v2026 = vmul.f32 %v2018, %v664
      %v2027 = vmul.f32 %v2018, %v668
      %2036 = vrot.lane.b32.xlu0 %v2020, 91
      %v2037 = vpop.permute.xlu0 %2036
      %2038 = vrot.lane.b32.xlu0 %v2021, 91
      %v2039 = vpop.permute.xlu0 %2038
      %2040 = vrot.lane.b32.xlu0 %v2022, 91
      %v2041 = vpop.permute.xlu0 %2040
      %2042 = vrot.lane.b32.xlu0 %v2023, 91
      %v2043 = vpop.permute.xlu0 %2042
      %2044 = vrot.lane.b32.xlu0 %v2024, 91
      %v2045 = vpop.permute.xlu0 %2044
      %2046 = vrot.lane.b32.xlu0 %v2025, 91
      %v2047 = vpop.permute.xlu0 %2046
      %2048 = vrot.lane.b32.xlu0 %v2026, 91
      %v2049 = vpop.permute.xlu0 %2048
      %2050 = vrot.lane.b32.xlu0 %v2027, 91
      %v2051 = vpop.permute.xlu0 %2050
      %vm2052 = vcmask 744448
      %v2053 = vsel %vm2052, %v2037, %v2039
      %v2054 = vsel %vm2052, %v2039, %v2041
      %v2055 = vsel %vm2052, %v2041, %v2043
      %v2056 = vsel %vm2052, %v2045, %v2047
      %v2057 = vsel %vm2052, %v2047, %v2049
      %v2058 = vsel %vm2052, %v2049, %v2051
      %v2067 = vadd.f32 %v2004, %v2053
      %v2068 = vadd.f32 %v2005, %v2054
      %v2069 = vadd.f32 %v2006, %v2055
      %v2070 = vadd.f32 %v2007, %v2043
      %v2071 = vadd.f32 %v2008, %v2056
      %v2072 = vadd.f32 %v2009, %v2057
      %v2073 = vadd.f32 %v2010, %v2058
      %v2074 = vadd.f32 %v2011, %v2051
      %2075 = vset.pattern.permute.xlu0 23
      %2076 = vperm.xlu0 %2075, %v626
      %v2077 = vpop.permute.xlu0 %2076
      %2079 = vset.pattern.permute.xlu0 23
      %2080 = vperm.xlu0 %2079, %v627
      %v2081 = vpop.permute.xlu0 %2080
      %v2083 = vmul.f32 %v2077, %v656
      %v2084 = vmul.f32 %v2077, %v660
      %v2085 = vmul.f32 %v2077, %v664
      %v2086 = vmul.f32 %v2077, %v668
      %v2087 = vmul.f32 %v2081, %v656
      %v2088 = vmul.f32 %v2081, %v660
      %v2089 = vmul.f32 %v2081, %v664
      %v2090 = vmul.f32 %v2081, %v668
      %2099 = vrot.lane.b32.xlu0 %v2083, 90
      %v2100 = vpop.permute.xlu0 %2099
      %2101 = vrot.lane.b32.xlu0 %v2084, 90
      %v2102 = vpop.permute.xlu0 %2101
      %2103 = vrot.lane.b32.xlu0 %v2085, 90
      %v2104 = vpop.permute.xlu0 %2103
      %2105 = vrot.lane.b32.xlu0 %v2086, 90
      %v2106 = vpop.permute.xlu0 %2105
      %2107 = vrot.lane.b32.xlu0 %v2087, 90
      %v2108 = vpop.permute.xlu0 %2107
      %2109 = vrot.lane.b32.xlu0 %v2088, 90
      %v2110 = vpop.permute.xlu0 %2109
      %2111 = vrot.lane.b32.xlu0 %v2089, 90
      %v2112 = vpop.permute.xlu0 %2111
      %2113 = vrot.lane.b32.xlu0 %v2090, 90
      %v2114 = vpop.permute.xlu0 %2113
      %vm2115 = vcmask 736256
      %v2116 = vsel %vm2115, %v2100, %v2102
      %v2117 = vsel %vm2115, %v2102, %v2104
      %v2118 = vsel %vm2115, %v2104, %v2106
      %v2119 = vsel %vm2115, %v2108, %v2110
      %v2120 = vsel %vm2115, %v2110, %v2112
      %v2121 = vsel %vm2115, %v2112, %v2114
      %v2130 = vadd.f32 %v2067, %v2116
      %v2131 = vadd.f32 %v2068, %v2117
      %v2132 = vadd.f32 %v2069, %v2118
      %v2133 = vadd.f32 %v2070, %v2106
      %v2134 = vadd.f32 %v2071, %v2119
      %v2135 = vadd.f32 %v2072, %v2120
      %v2136 = vadd.f32 %v2073, %v2121
      %v2137 = vadd.f32 %v2074, %v2114
      %2138 = vset.pattern.permute.xlu0 24
      %2139 = vperm.xlu0 %2138, %v626
      %v2140 = vpop.permute.xlu0 %2139
      %2142 = vset.pattern.permute.xlu0 24
      %2143 = vperm.xlu0 %2142, %v627
      %v2144 = vpop.permute.xlu0 %2143
      %v2146 = vmul.f32 %v2140, %v656
      %v2147 = vmul.f32 %v2140, %v660
      %v2148 = vmul.f32 %v2140, %v664
      %v2149 = vmul.f32 %v2140, %v668
      %v2150 = vmul.f32 %v2144, %v656
      %v2151 = vmul.f32 %v2144, %v660
      %v2152 = vmul.f32 %v2144, %v664
      %v2153 = vmul.f32 %v2144, %v668
      %2162 = vrot.lane.b32.xlu0 %v2146, 89
      %v2163 = vpop.permute.xlu0 %2162
      %2164 = vrot.lane.b32.xlu0 %v2147, 89
      %v2165 = vpop.permute.xlu0 %2164
      %2166 = vrot.lane.b32.xlu0 %v2148, 89
      %v2167 = vpop.permute.xlu0 %2166
      %2168 = vrot.lane.b32.xlu0 %v2149, 89
      %v2169 = vpop.permute.xlu0 %2168
      %2170 = vrot.lane.b32.xlu0 %v2150, 89
      %v2171 = vpop.permute.xlu0 %2170
      %2172 = vrot.lane.b32.xlu0 %v2151, 89
      %v2173 = vpop.permute.xlu0 %2172
      %2174 = vrot.lane.b32.xlu0 %v2152, 89
      %v2175 = vpop.permute.xlu0 %2174
      %2176 = vrot.lane.b32.xlu0 %v2153, 89
      %v2177 = vpop.permute.xlu0 %2176
      %vm2178 = vcmask 728064
      %v2179 = vsel %vm2178, %v2163, %v2165
      %v2180 = vsel %vm2178, %v2165, %v2167
      %v2181 = vsel %vm2178, %v2167, %v2169
      %v2182 = vsel %vm2178, %v2171, %v2173
      %v2183 = vsel %vm2178, %v2173, %v2175
      %v2184 = vsel %vm2178, %v2175, %v2177
      %v2193 = vadd.f32 %v2130, %v2179
      %v2194 = vadd.f32 %v2131, %v2180
      %v2195 = vadd.f32 %v2132, %v2181
      %v2196 = vadd.f32 %v2133, %v2169
      %v2197 = vadd.f32 %v2134, %v2182
      %v2198 = vadd.f32 %v2135, %v2183
      %v2199 = vadd.f32 %v2136, %v2184
      %v2200 = vadd.f32 %v2137, %v2177
      %2201 = vset.pattern.permute.xlu0 25
      %2202 = vperm.xlu0 %2201, %v626
      %v2203 = vpop.permute.xlu0 %2202
      %2205 = vset.pattern.permute.xlu0 25
      %2206 = vperm.xlu0 %2205, %v627
      %v2207 = vpop.permute.xlu0 %2206
      %v2209 = vmul.f32 %v2203, %v656
      %v2210 = vmul.f32 %v2203, %v660
      %v2211 = vmul.f32 %v2203, %v664
      %v2212 = vmul.f32 %v2203, %v668
      %v2213 = vmul.f32 %v2207, %v656
      %v2214 = vmul.f32 %v2207, %v660
      %v2215 = vmul.f32 %v2207, %v664
      %v2216 = vmul.f32 %v2207, %v668
      %2225 = vrot.lane.b32.xlu0 %v2209, 88
      %v2226 = vpop.permute.xlu0 %2225
      %2227 = vrot.lane.b32.xlu0 %v2210, 88
      %v2228 = vpop.permute.xlu0 %2227
      %2229 = vrot.lane.b32.xlu0 %v2211, 88
      %v2230 = vpop.permute.xlu0 %2229
      %2231 = vrot.lane.b32.xlu0 %v2212, 88
      %v2232 = vpop.permute.xlu0 %2231
      %2233 = vrot.lane.b32.xlu0 %v2213, 88
      %v2234 = vpop.permute.xlu0 %2233
      %2235 = vrot.lane.b32.xlu0 %v2214, 88
      %v2236 = vpop.permute.xlu0 %2235
      %2237 = vrot.lane.b32.xlu0 %v2215, 88
      %v2238 = vpop.permute.xlu0 %2237
      %2239 = vrot.lane.b32.xlu0 %v2216, 88
      %v2240 = vpop.permute.xlu0 %2239
      %vm2241 = vcmask 719872
      %v2242 = vsel %vm2241, %v2226, %v2228
      %v2243 = vsel %vm2241, %v2228, %v2230
      %v2244 = vsel %vm2241, %v2230, %v2232
      %v2245 = vsel %vm2241, %v2234, %v2236
      %v2246 = vsel %vm2241, %v2236, %v2238
      %v2247 = vsel %vm2241, %v2238, %v2240
      %v2256 = vadd.f32 %v2193, %v2242
      %v2257 = vadd.f32 %v2194, %v2243
      %v2258 = vadd.f32 %v2195, %v2244
      %v2259 = vadd.f32 %v2196, %v2232
      %v2260 = vadd.f32 %v2197, %v2245
      %v2261 = vadd.f32 %v2198, %v2246
      %v2262 = vadd.f32 %v2199, %v2247
      %v2263 = vadd.f32 %v2200, %v2240
      %2264 = vset.pattern.permute.xlu0 26
      %2265 = vperm.xlu0 %2264, %v626
      %v2266 = vpop.permute.xlu0 %2265
      %2268 = vset.pattern.permute.xlu0 26
      %2269 = vperm.xlu0 %2268, %v627
      %v2270 = vpop.permute.xlu0 %2269
      %v2272 = vmul.f32 %v2266, %v656
      %v2273 = vmul.f32 %v2266, %v660
      %v2274 = vmul.f32 %v2266, %v664
      %v2275 = vmul.f32 %v2266, %v668
      %v2276 = vmul.f32 %v2270, %v656
      %v2277 = vmul.f32 %v2270, %v660
      %v2278 = vmul.f32 %v2270, %v664
      %v2279 = vmul.f32 %v2270, %v668
      %2288 = vrot.lane.b32.xlu0 %v2272, 87
      %v2289 = vpop.permute.xlu0 %2288
      %2290 = vrot.lane.b32.xlu0 %v2273, 87
      %v2291 = vpop.permute.xlu0 %2290
      %2292 = vrot.lane.b32.xlu0 %v2274, 87
      %v2293 = vpop.permute.xlu0 %2292
      %2294 = vrot.lane.b32.xlu0 %v2275, 87
      %v2295 = vpop.permute.xlu0 %2294
      %2296 = vrot.lane.b32.xlu0 %v2276, 87
      %v2297 = vpop.permute.xlu0 %2296
      %2298 = vrot.lane.b32.xlu0 %v2277, 87
      %v2299 = vpop.permute.xlu0 %2298
      %2300 = vrot.lane.b32.xlu0 %v2278, 87
      %v2301 = vpop.permute.xlu0 %2300
      %2302 = vrot.lane.b32.xlu0 %v2279, 87
      %v2303 = vpop.permute.xlu0 %2302
      %vm2304 = vcmask 711680
      %v2305 = vsel %vm2304, %v2289, %v2291
      %v2306 = vsel %vm2304, %v2291, %v2293
      %v2307 = vsel %vm2304, %v2293, %v2295
      %v2308 = vsel %vm2304, %v2297, %v2299
      %v2309 = vsel %vm2304, %v2299, %v2301
      %v2310 = vsel %vm2304, %v2301, %v2303
      %v2319 = vadd.f32 %v2256, %v2305
      %v2320 = vadd.f32 %v2257, %v2306
      %v2321 = vadd.f32 %v2258, %v2307
      %v2322 = vadd.f32 %v2259, %v2295
      %v2323 = vadd.f32 %v2260, %v2308
      %v2324 = vadd.f32 %v2261, %v2309
      %v2325 = vadd.f32 %v2262, %v2310
      %v2326 = vadd.f32 %v2263, %v2303
      %2327 = vset.pattern.permute.xlu0 27
      %2328 = vperm.xlu0 %2327, %v626
      %v2329 = vpop.permute.xlu0 %2328
      %2331 = vset.pattern.permute.xlu0 27
      %2332 = vperm.xlu0 %2331, %v627
      %v2333 = vpop.permute.xlu0 %2332
      %v2335 = vmul.f32 %v2329, %v656
      %v2336 = vmul.f32 %v2329, %v660
      %v2337 = vmul.f32 %v2329, %v664
      %v2338 = vmul.f32 %v2329, %v668
      %v2339 = vmul.f32 %v2333, %v656
      %v2340 = vmul.f32 %v2333, %v660
      %v2341 = vmul.f32 %v2333, %v664
      %v2342 = vmul.f32 %v2333, %v668
      %2351 = vrot.lane.b32.xlu0 %v2335, 86
      %v2352 = vpop.permute.xlu0 %2351
      %2353 = vrot.lane.b32.xlu0 %v2336, 86
      %v2354 = vpop.permute.xlu0 %2353
      %2355 = vrot.lane.b32.xlu0 %v2337, 86
      %v2356 = vpop.permute.xlu0 %2355
      %2357 = vrot.lane.b32.xlu0 %v2338, 86
      %v2358 = vpop.permute.xlu0 %2357
      %2359 = vrot.lane.b32.xlu0 %v2339, 86
      %v2360 = vpop.permute.xlu0 %2359
      %2361 = vrot.lane.b32.xlu0 %v2340, 86
      %v2362 = vpop.permute.xlu0 %2361
      %2363 = vrot.lane.b32.xlu0 %v2341, 86
      %v2364 = vpop.permute.xlu0 %2363
      %2365 = vrot.lane.b32.xlu0 %v2342, 86
      %v2366 = vpop.permute.xlu0 %2365
      %vm2367 = vcmask 703488
      %v2368 = vsel %vm2367, %v2352, %v2354
      %v2369 = vsel %vm2367, %v2354, %v2356
      %v2370 = vsel %vm2367, %v2356, %v2358
      %v2371 = vsel %vm2367, %v2360, %v2362
      %v2372 = vsel %vm2367, %v2362, %v2364
      %v2373 = vsel %vm2367, %v2364, %v2366
      %v2382 = vadd.f32 %v2319, %v2368
      %v2383 = vadd.f32 %v2320, %v2369
      %v2384 = vadd.f32 %v2321, %v2370
      %v2385 = vadd.f32 %v2322, %v2358
      %v2386 = vadd.f32 %v2323, %v2371
      %v2387 = vadd.f32 %v2324, %v2372
      %v2388 = vadd.f32 %v2325, %v2373
      %v2389 = vadd.f32 %v2326, %v2366
      %2390 = vset.pattern.permute.xlu0 28
      %2391 = vperm.xlu0 %2390, %v626
      %v2392 = vpop.permute.xlu0 %2391
      %2394 = vset.pattern.permute.xlu0 28
      %2395 = vperm.xlu0 %2394, %v627
      %v2396 = vpop.permute.xlu0 %2395
      %v2398 = vmul.f32 %v2392, %v656
      %v2399 = vmul.f32 %v2392, %v660
      %v2400 = vmul.f32 %v2392, %v664
      %v2401 = vmul.f32 %v2392, %v668
      %v2402 = vmul.f32 %v2396, %v656
      %v2403 = vmul.f32 %v2396, %v660
      %v2404 = vmul.f32 %v2396, %v664
      %v2405 = vmul.f32 %v2396, %v668
      %2414 = vrot.lane.b32.xlu0 %v2398, 80
      %v2415 = vpop.permute.xlu0 %2414
      %2416 = vrot.lane.b32.xlu0 %v2399, 80
      %v2417 = vpop.permute.xlu0 %2416
      %2418 = vrot.lane.b32.xlu0 %v2400, 80
      %v2419 = vpop.permute.xlu0 %2418
      %2420 = vrot.lane.b32.xlu0 %v2401, 80
      %v2421 = vpop.permute.xlu0 %2420
      %2422 = vrot.lane.b32.xlu0 %v2402, 80
      %v2423 = vpop.permute.xlu0 %2422
      %2424 = vrot.lane.b32.xlu0 %v2403, 80
      %v2425 = vpop.permute.xlu0 %2424
      %2426 = vrot.lane.b32.xlu0 %v2404, 80
      %v2427 = vpop.permute.xlu0 %2426
      %2428 = vrot.lane.b32.xlu0 %v2405, 80
      %v2429 = vpop.permute.xlu0 %2428
      %vm2430 = vcmask 654336
      %v2431 = vsel %vm2430, %v2415, %v2417
      %v2432 = vsel %vm2430, %v2417, %v2419
      %v2433 = vsel %vm2430, %v2419, %v2421
      %v2434 = vsel %vm2430, %v2423, %v2425
      %v2435 = vsel %vm2430, %v2425, %v2427
      %v2436 = vsel %vm2430, %v2427, %v2429
      %v2445 = vadd.f32 %v2382, %v2431
      %v2446 = vadd.f32 %v2383, %v2432
      %v2447 = vadd.f32 %v2384, %v2433
      %v2448 = vadd.f32 %v2385, %v2421
      %v2449 = vadd.f32 %v2386, %v2434
      %v2450 = vadd.f32 %v2387, %v2435
      %v2451 = vadd.f32 %v2388, %v2436
      %v2452 = vadd.f32 %v2389, %v2429
      %2453 = vset.pattern.permute.xlu0 29
      %2454 = vperm.xlu0 %2453, %v626
      %v2455 = vpop.permute.xlu0 %2454
      %2457 = vset.pattern.permute.xlu0 29
      %2458 = vperm.xlu0 %2457, %v627
      %v2459 = vpop.permute.xlu0 %2458
      %v2461 = vmul.f32 %v2455, %v656
      %v2462 = vmul.f32 %v2455, %v660
      %v2463 = vmul.f32 %v2455, %v664
      %v2464 = vmul.f32 %v2455, %v668
      %v2465 = vmul.f32 %v2459, %v656
      %v2466 = vmul.f32 %v2459, %v660
      %v2467 = vmul.f32 %v2459, %v664
      %v2468 = vmul.f32 %v2459, %v668
      %2477 = vrot.lane.b32.xlu0 %v2461, 79
      %v2478 = vpop.permute.xlu0 %2477
      %2479 = vrot.lane.b32.xlu0 %v2462, 79
      %v2480 = vpop.permute.xlu0 %2479
      %2481 = vrot.lane.b32.xlu0 %v2463, 79
      %v2482 = vpop.permute.xlu0 %2481
      %2483 = vrot.lane.b32.xlu0 %v2464, 79
      %v2484 = vpop.permute.xlu0 %2483
      %2485 = vrot.lane.b32.xlu0 %v2465, 79
      %v2486 = vpop.permute.xlu0 %2485
      %2487 = vrot.lane.b32.xlu0 %v2466, 79
      %v2488 = vpop.permute.xlu0 %2487
      %2489 = vrot.lane.b32.xlu0 %v2467, 79
      %v2490 = vpop.permute.xlu0 %2489
      %2491 = vrot.lane.b32.xlu0 %v2468, 79
      %v2492 = vpop.permute.xlu0 %2491
      %vm2493 = vcmask 646144
      %v2494 = vsel %vm2493, %v2478, %v2480
      %v2495 = vsel %vm2493, %v2480, %v2482
      %v2496 = vsel %vm2493, %v2482, %v2484
      %v2497 = vsel %vm2493, %v2486, %v2488
      %v2498 = vsel %vm2493, %v2488, %v2490
      %v2499 = vsel %vm2493, %v2490, %v2492
      %v2508 = vadd.f32 %v2445, %v2494
      %v2509 = vadd.f32 %v2446, %v2495
      %v2510 = vadd.f32 %v2447, %v2496
      %v2511 = vadd.f32 %v2448, %v2484
      %v2512 = vadd.f32 %v2449, %v2497
      %v2513 = vadd.f32 %v2450, %v2498
      %v2514 = vadd.f32 %v2451, %v2499
      %v2515 = vadd.f32 %v2452, %v2492
      %2516 = vset.pattern.permute.xlu0 30
      %2517 = vperm.xlu0 %2516, %v626
      %v2518 = vpop.permute.xlu0 %2517
      %2520 = vset.pattern.permute.xlu0 30
      %2521 = vperm.xlu0 %2520, %v627
      %v2522 = vpop.permute.xlu0 %2521
      %v2524 = vmul.f32 %v2518, %v656
      %v2525 = vmul.f32 %v2518, %v660
      %v2526 = vmul.f32 %v2518, %v664
      %v2527 = vmul.f32 %v2518, %v668
      %v2528 = vmul.f32 %v2522, %v656
      %v2529 = vmul.f32 %v2522, %v660
      %v2530 = vmul.f32 %v2522, %v664
      %v2531 = vmul.f32 %v2522, %v668
      %2540 = vrot.lane.b32.xlu0 %v2524, 78
      %v2541 = vpop.permute.xlu0 %2540
      %2542 = vrot.lane.b32.xlu0 %v2525, 78
      %v2543 = vpop.permute.xlu0 %2542
      %2544 = vrot.lane.b32.xlu0 %v2526, 78
      %v2545 = vpop.permute.xlu0 %2544
      %2546 = vrot.lane.b32.xlu0 %v2527, 78
      %v2547 = vpop.permute.xlu0 %2546
      %2548 = vrot.lane.b32.xlu0 %v2528, 78
      %v2549 = vpop.permute.xlu0 %2548
      %2550 = vrot.lane.b32.xlu0 %v2529, 78
      %v2551 = vpop.permute.xlu0 %2550
      %2552 = vrot.lane.b32.xlu0 %v2530, 78
      %v2553 = vpop.permute.xlu0 %2552
      %2554 = vrot.lane.b32.xlu0 %v2531, 78
      %v2555 = vpop.permute.xlu0 %2554
      %vm2556 = vcmask 637952
      %v2557 = vsel %vm2556, %v2541, %v2543
      %v2558 = vsel %vm2556, %v2543, %v2545
      %v2559 = vsel %vm2556, %v2545, %v2547
      %v2560 = vsel %vm2556, %v2549, %v2551
      %v2561 = vsel %vm2556, %v2551, %v2553
      %v2562 = vsel %vm2556, %v2553, %v2555
      %v2571 = vadd.f32 %v2508, %v2557
      %v2572 = vadd.f32 %v2509, %v2558
      %v2573 = vadd.f32 %v2510, %v2559
      %v2574 = vadd.f32 %v2511, %v2547
      %v2575 = vadd.f32 %v2512, %v2560
      %v2576 = vadd.f32 %v2513, %v2561
      %v2577 = vadd.f32 %v2514, %v2562
      %v2578 = vadd.f32 %v2515, %v2555
      %2579 = vset.pattern.permute.xlu0 31
      %2580 = vperm.xlu0 %2579, %v626
      %v2581 = vpop.permute.xlu0 %2580
      %2583 = vset.pattern.permute.xlu0 31
      %2584 = vperm.xlu0 %2583, %v627
      %v2585 = vpop.permute.xlu0 %2584
      %v2587 = vmul.f32 %v2581, %v656
      %v2588 = vmul.f32 %v2581, %v660
      %v2589 = vmul.f32 %v2581, %v664
      %v2590 = vmul.f32 %v2581, %v668
      %v2591 = vmul.f32 %v2585, %v656
      %v2592 = vmul.f32 %v2585, %v660
      %v2593 = vmul.f32 %v2585, %v664
      %v2594 = vmul.f32 %v2585, %v668
      %2603 = vrot.lane.b32.xlu0 %v2587, 77
      %v2604 = vpop.permute.xlu0 %2603
      %2605 = vrot.lane.b32.xlu0 %v2588, 77
      %v2606 = vpop.permute.xlu0 %2605
      %2607 = vrot.lane.b32.xlu0 %v2589, 77
      %v2608 = vpop.permute.xlu0 %2607
      %2609 = vrot.lane.b32.xlu0 %v2590, 77
      %v2610 = vpop.permute.xlu0 %2609
      %2611 = vrot.lane.b32.xlu0 %v2591, 77
      %v2612 = vpop.permute.xlu0 %2611
      %2613 = vrot.lane.b32.xlu0 %v2592, 77
      %v2614 = vpop.permute.xlu0 %2613
      %2615 = vrot.lane.b32.xlu0 %v2593, 77
      %v2616 = vpop.permute.xlu0 %2615
      %2617 = vrot.lane.b32.xlu0 %v2594, 77
      %v2618 = vpop.permute.xlu0 %2617
      %vm2619 = vcmask 629760
      %v2620 = vsel %vm2619, %v2604, %v2606
      %v2621 = vsel %vm2619, %v2606, %v2608
      %v2622 = vsel %vm2619, %v2608, %v2610
      %v2623 = vsel %vm2619, %v2612, %v2614
      %v2624 = vsel %vm2619, %v2614, %v2616
      %v2625 = vsel %vm2619, %v2616, %v2618
      %v2634 = vadd.f32 %v2571, %v2620
      %v2635 = vadd.f32 %v2572, %v2621
      %v2636 = vadd.f32 %v2573, %v2622
      %v2637 = vadd.f32 %v2574, %v2610
      %v2638 = vadd.f32 %v2575, %v2623
      %v2639 = vadd.f32 %v2576, %v2624
      %v2640 = vadd.f32 %v2577, %v2625
      %v2641 = vadd.f32 %v2578, %v2618
      %2642 = vset.pattern.permute.xlu0 32
      %2643 = vperm.xlu0 %2642, %v626
      %v2644 = vpop.permute.xlu0 %2643
      %2646 = vset.pattern.permute.xlu0 32
      %2647 = vperm.xlu0 %2646, %v627
      %v2648 = vpop.permute.xlu0 %2647
      %v2650 = vmul.f32 %v2644, %v656
      %v2651 = vmul.f32 %v2644, %v660
      %v2652 = vmul.f32 %v2644, %v664
      %v2653 = vmul.f32 %v2644, %v668
      %v2654 = vmul.f32 %v2648, %v656
      %v2655 = vmul.f32 %v2648, %v660
      %v2656 = vmul.f32 %v2648, %v664
      %v2657 = vmul.f32 %v2648, %v668
      %2666 = vrot.lane.b32.xlu0 %v2650, 76
      %v2667 = vpop.permute.xlu0 %2666
      %2668 = vrot.lane.b32.xlu0 %v2651, 76
      %v2669 = vpop.permute.xlu0 %2668
      %2670 = vrot.lane.b32.xlu0 %v2652, 76
      %v2671 = vpop.permute.xlu0 %2670
      %2672 = vrot.lane.b32.xlu0 %v2653, 76
      %v2673 = vpop.permute.xlu0 %2672
      %2674 = vrot.lane.b32.xlu0 %v2654, 76
      %v2675 = vpop.permute.xlu0 %2674
      %2676 = vrot.lane.b32.xlu0 %v2655, 76
      %v2677 = vpop.permute.xlu0 %2676
      %2678 = vrot.lane.b32.xlu0 %v2656, 76
      %v2679 = vpop.permute.xlu0 %2678
      %2680 = vrot.lane.b32.xlu0 %v2657, 76
      %v2681 = vpop.permute.xlu0 %2680
      %vm2682 = vcmask 621568
      %v2683 = vsel %vm2682, %v2667, %v2669
      %v2684 = vsel %vm2682, %v2669, %v2671
      %v2685 = vsel %vm2682, %v2671, %v2673
      %v2686 = vsel %vm2682, %v2675, %v2677
      %v2687 = vsel %vm2682, %v2677, %v2679
      %v2688 = vsel %vm2682, %v2679, %v2681
      %v2697 = vadd.f32 %v2634, %v2683
      %v2698 = vadd.f32 %v2635, %v2684
      %v2699 = vadd.f32 %v2636, %v2685
      %v2700 = vadd.f32 %v2637, %v2673
      %v2701 = vadd.f32 %v2638, %v2686
      %v2702 = vadd.f32 %v2639, %v2687
      %v2703 = vadd.f32 %v2640, %v2688
      %v2704 = vadd.f32 %v2641, %v2681
      %2705 = vset.pattern.permute.xlu0 33
      %2706 = vperm.xlu0 %2705, %v626
      %v2707 = vpop.permute.xlu0 %2706
      %2709 = vset.pattern.permute.xlu0 33
      %2710 = vperm.xlu0 %2709, %v627
      %v2711 = vpop.permute.xlu0 %2710
      %v2713 = vmul.f32 %v2707, %v656
      %v2714 = vmul.f32 %v2707, %v660
      %v2715 = vmul.f32 %v2707, %v664
      %v2716 = vmul.f32 %v2707, %v668
      %v2717 = vmul.f32 %v2711, %v656
      %v2718 = vmul.f32 %v2711, %v660
      %v2719 = vmul.f32 %v2711, %v664
      %v2720 = vmul.f32 %v2711, %v668
      %2729 = vrot.lane.b32.xlu0 %v2713, 75
      %v2730 = vpop.permute.xlu0 %2729
      %2731 = vrot.lane.b32.xlu0 %v2714, 75
      %v2732 = vpop.permute.xlu0 %2731
      %2733 = vrot.lane.b32.xlu0 %v2715, 75
      %v2734 = vpop.permute.xlu0 %2733
      %2735 = vrot.lane.b32.xlu0 %v2716, 75
      %v2736 = vpop.permute.xlu0 %2735
      %2737 = vrot.lane.b32.xlu0 %v2717, 75
      %v2738 = vpop.permute.xlu0 %2737
      %2739 = vrot.lane.b32.xlu0 %v2718, 75
      %v2740 = vpop.permute.xlu0 %2739
      %2741 = vrot.lane.b32.xlu0 %v2719, 75
      %v2742 = vpop.permute.xlu0 %2741
      %2743 = vrot.lane.b32.xlu0 %v2720, 75
      %v2744 = vpop.permute.xlu0 %2743
      %vm2745 = vcmask 613376
      %v2746 = vsel %vm2745, %v2730, %v2732
      %v2747 = vsel %vm2745, %v2732, %v2734
      %v2748 = vsel %vm2745, %v2734, %v2736
      %v2749 = vsel %vm2745, %v2738, %v2740
      %v2750 = vsel %vm2745, %v2740, %v2742
      %v2751 = vsel %vm2745, %v2742, %v2744
      %v2760 = vadd.f32 %v2697, %v2746
      %v2761 = vadd.f32 %v2698, %v2747
      %v2762 = vadd.f32 %v2699, %v2748
      %v2763 = vadd.f32 %v2700, %v2736
      %v2764 = vadd.f32 %v2701, %v2749
      %v2765 = vadd.f32 %v2702, %v2750
      %v2766 = vadd.f32 %v2703, %v2751
      %v2767 = vadd.f32 %v2704, %v2744
      %2768 = vset.pattern.permute.xlu0 34
      %2769 = vperm.xlu0 %2768, %v626
      %v2770 = vpop.permute.xlu0 %2769
      %2772 = vset.pattern.permute.xlu0 34
      %2773 = vperm.xlu0 %2772, %v627
      %v2774 = vpop.permute.xlu0 %2773
      %v2776 = vmul.f32 %v2770, %v656
      %v2777 = vmul.f32 %v2770, %v660
      %v2778 = vmul.f32 %v2770, %v664
      %v2779 = vmul.f32 %v2770, %v668
      %v2780 = vmul.f32 %v2774, %v656
      %v2781 = vmul.f32 %v2774, %v660
      %v2782 = vmul.f32 %v2774, %v664
      %v2783 = vmul.f32 %v2774, %v668
      %2792 = vrot.lane.b32.xlu0 %v2776, 74
      %v2793 = vpop.permute.xlu0 %2792
      %2794 = vrot.lane.b32.xlu0 %v2777, 74
      %v2795 = vpop.permute.xlu0 %2794
      %2796 = vrot.lane.b32.xlu0 %v2778, 74
      %v2797 = vpop.permute.xlu0 %2796
      %2798 = vrot.lane.b32.xlu0 %v2779, 74
      %v2799 = vpop.permute.xlu0 %2798
      %2800 = vrot.lane.b32.xlu0 %v2780, 74
      %v2801 = vpop.permute.xlu0 %2800
      %2802 = vrot.lane.b32.xlu0 %v2781, 74
      %v2803 = vpop.permute.xlu0 %2802
      %2804 = vrot.lane.b32.xlu0 %v2782, 74
      %v2805 = vpop.permute.xlu0 %2804
      %2806 = vrot.lane.b32.xlu0 %v2783, 74
      %v2807 = vpop.permute.xlu0 %2806
      %vm2808 = vcmask 605184
      %v2809 = vsel %vm2808, %v2793, %v2795
      %v2810 = vsel %vm2808, %v2795, %v2797
      %v2811 = vsel %vm2808, %v2797, %v2799
      %v2812 = vsel %vm2808, %v2801, %v2803
      %v2813 = vsel %vm2808, %v2803, %v2805
      %v2814 = vsel %vm2808, %v2805, %v2807
      %v2823 = vadd.f32 %v2760, %v2809
      %v2824 = vadd.f32 %v2761, %v2810
      %v2825 = vadd.f32 %v2762, %v2811
      %v2826 = vadd.f32 %v2763, %v2799
      %v2827 = vadd.f32 %v2764, %v2812
      %v2828 = vadd.f32 %v2765, %v2813
      %v2829 = vadd.f32 %v2766, %v2814
      %v2830 = vadd.f32 %v2767, %v2807
      %2831 = vset.pattern.permute.xlu0 35
      %2832 = vperm.xlu0 %2831, %v626
      %v2833 = vpop.permute.xlu0 %2832
      %2835 = vset.pattern.permute.xlu0 35
      %2836 = vperm.xlu0 %2835, %v627
      %v2837 = vpop.permute.xlu0 %2836
      %v2839 = vmul.f32 %v2833, %v656
      %v2840 = vmul.f32 %v2833, %v660
      %v2841 = vmul.f32 %v2833, %v664
      %v2842 = vmul.f32 %v2833, %v668
      %v2843 = vmul.f32 %v2837, %v656
      %v2844 = vmul.f32 %v2837, %v660
      %v2845 = vmul.f32 %v2837, %v664
      %v2846 = vmul.f32 %v2837, %v668
      %2855 = vrot.lane.b32.xlu0 %v2839, 68
      %v2856 = vpop.permute.xlu0 %2855
      %2857 = vrot.lane.b32.xlu0 %v2840, 68
      %v2858 = vpop.permute.xlu0 %2857
      %2859 = vrot.lane.b32.xlu0 %v2841, 68
      %v2860 = vpop.permute.xlu0 %2859
      %2861 = vrot.lane.b32.xlu0 %v2842, 68
      %v2862 = vpop.permute.xlu0 %2861
      %2863 = vrot.lane.b32.xlu0 %v2843, 68
      %v2864 = vpop.permute.xlu0 %2863
      %2865 = vrot.lane.b32.xlu0 %v2844, 68
      %v2866 = vpop.permute.xlu0 %2865
      %2867 = vrot.lane.b32.xlu0 %v2845, 68
      %v2868 = vpop.permute.xlu0 %2867
      %2869 = vrot.lane.b32.xlu0 %v2846, 68
      %v2870 = vpop.permute.xlu0 %2869
      %vm2871 = vcmask 556032
      %v2872 = vsel %vm2871, %v2856, %v2858
      %v2873 = vsel %vm2871, %v2858, %v2860
      %v2874 = vsel %vm2871, %v2860, %v2862
      %v2875 = vsel %vm2871, %v2864, %v2866
      %v2876 = vsel %vm2871, %v2866, %v2868
      %v2877 = vsel %vm2871, %v2868, %v2870
      %v2886 = vadd.f32 %v2823, %v2872
      %v2887 = vadd.f32 %v2824, %v2873
      %v2888 = vadd.f32 %v2825, %v2874
      %v2889 = vadd.f32 %v2826, %v2862
      %v2890 = vadd.f32 %v2827, %v2875
      %v2891 = vadd.f32 %v2828, %v2876
      %v2892 = vadd.f32 %v2829, %v2877
      %v2893 = vadd.f32 %v2830, %v2870
      %2894 = vset.pattern.permute.xlu0 36
      %2895 = vperm.xlu0 %2894, %v626
      %v2896 = vpop.permute.xlu0 %2895
      %2898 = vset.pattern.permute.xlu0 36
      %2899 = vperm.xlu0 %2898, %v627
      %v2900 = vpop.permute.xlu0 %2899
      %v2902 = vmul.f32 %v2896, %v656
      %v2903 = vmul.f32 %v2896, %v660
      %v2904 = vmul.f32 %v2896, %v664
      %v2905 = vmul.f32 %v2896, %v668
      %v2906 = vmul.f32 %v2900, %v656
      %v2907 = vmul.f32 %v2900, %v660
      %v2908 = vmul.f32 %v2900, %v664
      %v2909 = vmul.f32 %v2900, %v668
      %2918 = vrot.lane.b32.xlu0 %v2902, 67
      %v2919 = vpop.permute.xlu0 %2918
      %2920 = vrot.lane.b32.xlu0 %v2903, 67
      %v2921 = vpop.permute.xlu0 %2920
      %2922 = vrot.lane.b32.xlu0 %v2904, 67
      %v2923 = vpop.permute.xlu0 %2922
      %2924 = vrot.lane.b32.xlu0 %v2905, 67
      %v2925 = vpop.permute.xlu0 %2924
      %2926 = vrot.lane.b32.xlu0 %v2906, 67
      %v2927 = vpop.permute.xlu0 %2926
      %2928 = vrot.lane.b32.xlu0 %v2907, 67
      %v2929 = vpop.permute.xlu0 %2928
      %2930 = vrot.lane.b32.xlu0 %v2908, 67
      %v2931 = vpop.permute.xlu0 %2930
      %2932 = vrot.lane.b32.xlu0 %v2909, 67
      %v2933 = vpop.permute.xlu0 %2932
      %vm2934 = vcmask 547840
      %v2935 = vsel %vm2934, %v2919, %v2921
      %v2936 = vsel %vm2934, %v2921, %v2923
      %v2937 = vsel %vm2934, %v2923, %v2925
      %v2938 = vsel %vm2934, %v2927, %v2929
      %v2939 = vsel %vm2934, %v2929, %v2931
      %v2940 = vsel %vm2934, %v2931, %v2933
      %v2949 = vadd.f32 %v2886, %v2935
      %v2950 = vadd.f32 %v2887, %v2936
      %v2951 = vadd.f32 %v2888, %v2937
      %v2952 = vadd.f32 %v2889, %v2925
      %v2953 = vadd.f32 %v2890, %v2938
      %v2954 = vadd.f32 %v2891, %v2939
      %v2955 = vadd.f32 %v2892, %v2940
      %v2956 = vadd.f32 %v2893, %v2933
      %2957 = vset.pattern.permute.xlu0 37
      %2958 = vperm.xlu0 %2957, %v626
      %v2959 = vpop.permute.xlu0 %2958
      %2961 = vset.pattern.permute.xlu0 37
      %2962 = vperm.xlu0 %2961, %v627
      %v2963 = vpop.permute.xlu0 %2962
      %v2965 = vmul.f32 %v2959, %v656
      %v2966 = vmul.f32 %v2959, %v660
      %v2967 = vmul.f32 %v2959, %v664
      %v2968 = vmul.f32 %v2959, %v668
      %v2969 = vmul.f32 %v2963, %v656
      %v2970 = vmul.f32 %v2963, %v660
      %v2971 = vmul.f32 %v2963, %v664
      %v2972 = vmul.f32 %v2963, %v668
      %2981 = vrot.lane.b32.xlu0 %v2965, 66
      %v2982 = vpop.permute.xlu0 %2981
      %2983 = vrot.lane.b32.xlu0 %v2966, 66
      %v2984 = vpop.permute.xlu0 %2983
      %2985 = vrot.lane.b32.xlu0 %v2967, 66
      %v2986 = vpop.permute.xlu0 %2985
      %2987 = vrot.lane.b32.xlu0 %v2968, 66
      %v2988 = vpop.permute.xlu0 %2987
      %2989 = vrot.lane.b32.xlu0 %v2969, 66
      %v2990 = vpop.permute.xlu0 %2989
      %2991 = vrot.lane.b32.xlu0 %v2970, 66
      %v2992 = vpop.permute.xlu0 %2991
      %2993 = vrot.lane.b32.xlu0 %v2971, 66
      %v2994 = vpop.permute.xlu0 %2993
      %2995 = vrot.lane.b32.xlu0 %v2972, 66
      %v2996 = vpop.permute.xlu0 %2995
      %vm2997 = vcmask 539648
      %v2998 = vsel %vm2997, %v2982, %v2984
      %v2999 = vsel %vm2997, %v2984, %v2986
      %v3000 = vsel %vm2997, %v2986, %v2988
      %v3001 = vsel %vm2997, %v2990, %v2992
      %v3002 = vsel %vm2997, %v2992, %v2994
      %v3003 = vsel %vm2997, %v2994, %v2996
      %v3012 = vadd.f32 %v2949, %v2998
      %v3013 = vadd.f32 %v2950, %v2999
      %v3014 = vadd.f32 %v2951, %v3000
      %v3015 = vadd.f32 %v2952, %v2988
      %v3016 = vadd.f32 %v2953, %v3001
      %v3017 = vadd.f32 %v2954, %v3002
      %v3018 = vadd.f32 %v2955, %v3003
      %v3019 = vadd.f32 %v2956, %v2996
      %3020 = vset.pattern.permute.xlu0 38
      %3021 = vperm.xlu0 %3020, %v626
      %v3022 = vpop.permute.xlu0 %3021
      %3024 = vset.pattern.permute.xlu0 38
      %3025 = vperm.xlu0 %3024, %v627
      %v3026 = vpop.permute.xlu0 %3025
      %v3028 = vmul.f32 %v3022, %v656
      %v3029 = vmul.f32 %v3022, %v660
      %v3030 = vmul.f32 %v3022, %v664
      %v3031 = vmul.f32 %v3022, %v668
      %v3032 = vmul.f32 %v3026, %v656
      %v3033 = vmul.f32 %v3026, %v660
      %v3034 = vmul.f32 %v3026, %v664
      %v3035 = vmul.f32 %v3026, %v668
      %3044 = vrot.lane.b32.xlu0 %v3028, 65
      %v3045 = vpop.permute.xlu0 %3044
      %3046 = vrot.lane.b32.xlu0 %v3029, 65
      %v3047 = vpop.permute.xlu0 %3046
      %3048 = vrot.lane.b32.xlu0 %v3030, 65
      %v3049 = vpop.permute.xlu0 %3048
      %3050 = vrot.lane.b32.xlu0 %v3031, 65
      %v3051 = vpop.permute.xlu0 %3050
      %3052 = vrot.lane.b32.xlu0 %v3032, 65
      %v3053 = vpop.permute.xlu0 %3052
      %3054 = vrot.lane.b32.xlu0 %v3033, 65
      %v3055 = vpop.permute.xlu0 %3054
      %3056 = vrot.lane.b32.xlu0 %v3034, 65
      %v3057 = vpop.permute.xlu0 %3056
      %3058 = vrot.lane.b32.xlu0 %v3035, 65
      %v3059 = vpop.permute.xlu0 %3058
      %vm3060 = vcmask 531456
      %v3061 = vsel %vm3060, %v3045, %v3047
      %v3062 = vsel %vm3060, %v3047, %v3049
      %v3063 = vsel %vm3060, %v3049, %v3051
      %v3064 = vsel %vm3060, %v3053, %v3055
      %v3065 = vsel %vm3060, %v3055, %v3057
      %v3066 = vsel %vm3060, %v3057, %v3059
      %v3075 = vadd.f32 %v3012, %v3061
      %v3076 = vadd.f32 %v3013, %v3062
      %v3077 = vadd.f32 %v3014, %v3063
      %v3078 = vadd.f32 %v3015, %v3051
      %v3079 = vadd.f32 %v3016, %v3064
      %v3080 = vadd.f32 %v3017, %v3065
      %v3081 = vadd.f32 %v3018, %v3066
      %v3082 = vadd.f32 %v3019, %v3059
      %3083 = vset.pattern.permute.xlu0 39
      %3084 = vperm.xlu0 %3083, %v626
      %v3085 = vpop.permute.xlu0 %3084
      %3087 = vset.pattern.permute.xlu0 39
      %3088 = vperm.xlu0 %3087, %v627
      %v3089 = vpop.permute.xlu0 %3088
      %v3091 = vmul.f32 %v3085, %v656
      %v3092 = vmul.f32 %v3085, %v660
      %v3093 = vmul.f32 %v3085, %v664
      %v3094 = vmul.f32 %v3085, %v668
      %v3095 = vmul.f32 %v3089, %v656
      %v3096 = vmul.f32 %v3089, %v660
      %v3097 = vmul.f32 %v3089, %v664
      %v3098 = vmul.f32 %v3089, %v668
      %3107 = vrot.lane.b32.xlu0 %v3091, 64
      %v3108 = vpop.permute.xlu0 %3107
      %3109 = vrot.lane.b32.xlu0 %v3092, 64
      %v3110 = vpop.permute.xlu0 %3109
      %3111 = vrot.lane.b32.xlu0 %v3093, 64
      %v3112 = vpop.permute.xlu0 %3111
      %3113 = vrot.lane.b32.xlu0 %v3094, 64
      %v3114 = vpop.permute.xlu0 %3113
      %3115 = vrot.lane.b32.xlu0 %v3095, 64
      %v3116 = vpop.permute.xlu0 %3115
      %3117 = vrot.lane.b32.xlu0 %v3096, 64
      %v3118 = vpop.permute.xlu0 %3117
      %3119 = vrot.lane.b32.xlu0 %v3097, 64
      %v3120 = vpop.permute.xlu0 %3119
      %3121 = vrot.lane.b32.xlu0 %v3098, 64
      %v3122 = vpop.permute.xlu0 %3121
      %vm3123 = vcmask 523264
      %v3124 = vsel %vm3123, %v3108, %v3110
      %v3125 = vsel %vm3123, %v3110, %v3112
      %v3126 = vsel %vm3123, %v3112, %v3114
      %v3127 = vsel %vm3123, %v3116, %v3118
      %v3128 = vsel %vm3123, %v3118, %v3120
      %v3129 = vsel %vm3123, %v3120, %v3122
      %v3138 = vadd.f32 %v3075, %v3124
      %v3139 = vadd.f32 %v3076, %v3125
      %v3140 = vadd.f32 %v3077, %v3126
      %v3141 = vadd.f32 %v3078, %v3114
      %v3142 = vadd.f32 %v3079, %v3127
      %v3143 = vadd.f32 %v3080, %v3128
      %v3144 = vadd.f32 %v3081, %v3129
      %v3145 = vadd.f32 %v3082, %v3122
      %3146 = vset.pattern.permute.xlu0 40
      %3147 = vperm.xlu0 %3146, %v626
      %v3148 = vpop.permute.xlu0 %3147
      %3150 = vset.pattern.permute.xlu0 40
      %3151 = vperm.xlu0 %3150, %v627
      %v3152 = vpop.permute.xlu0 %3151
      %v3154 = vmul.f32 %v3148, %v656
      %v3155 = vmul.f32 %v3148, %v660
      %v3156 = vmul.f32 %v3148, %v664
      %v3157 = vmul.f32 %v3148, %v668
      %v3158 = vmul.f32 %v3152, %v656
      %v3159 = vmul.f32 %v3152, %v660
      %v3160 = vmul.f32 %v3152, %v664
      %v3161 = vmul.f32 %v3152, %v668
      %3170 = vrot.lane.b32.xlu0 %v3154, 63
      %v3171 = vpop.permute.xlu0 %3170
      %3172 = vrot.lane.b32.xlu0 %v3155, 63
      %v3173 = vpop.permute.xlu0 %3172
      %3174 = vrot.lane.b32.xlu0 %v3156, 63
      %v3175 = vpop.permute.xlu0 %3174
      %3176 = vrot.lane.b32.xlu0 %v3157, 63
      %v3177 = vpop.permute.xlu0 %3176
      %3178 = vrot.lane.b32.xlu0 %v3158, 63
      %v3179 = vpop.permute.xlu0 %3178
      %3180 = vrot.lane.b32.xlu0 %v3159, 63
      %v3181 = vpop.permute.xlu0 %3180
      %3182 = vrot.lane.b32.xlu0 %v3160, 63
      %v3183 = vpop.permute.xlu0 %3182
      %3184 = vrot.lane.b32.xlu0 %v3161, 63
      %v3185 = vpop.permute.xlu0 %3184
      %vm3186 = vcmask 515072
      %v3187 = vsel %vm3186, %v3171, %v3173
      %v3188 = vsel %vm3186, %v3173, %v3175
      %v3189 = vsel %vm3186, %v3175, %v3177
      %v3190 = vsel %vm3186, %v3179, %v3181
      %v3191 = vsel %vm3186, %v3181, %v3183
      %v3192 = vsel %vm3186, %v3183, %v3185
      %v3201 = vadd.f32 %v3138, %v3187
      %v3202 = vadd.f32 %v3139, %v3188
      %v3203 = vadd.f32 %v3140, %v3189
      %v3204 = vadd.f32 %v3141, %v3177
      %v3205 = vadd.f32 %v3142, %v3190
      %v3206 = vadd.f32 %v3143, %v3191
      %v3207 = vadd.f32 %v3144, %v3192
      %v3208 = vadd.f32 %v3145, %v3185
      %3209 = vset.pattern.permute.xlu0 41
      %3210 = vperm.xlu0 %3209, %v626
      %v3211 = vpop.permute.xlu0 %3210
      %3213 = vset.pattern.permute.xlu0 41
      %3214 = vperm.xlu0 %3213, %v627
      %v3215 = vpop.permute.xlu0 %3214
      %v3217 = vmul.f32 %v3211, %v656
      %v3218 = vmul.f32 %v3211, %v660
      %v3219 = vmul.f32 %v3211, %v664
      %v3220 = vmul.f32 %v3211, %v668
      %v3221 = vmul.f32 %v3215, %v656
      %v3222 = vmul.f32 %v3215, %v660
      %v3223 = vmul.f32 %v3215, %v664
      %v3224 = vmul.f32 %v3215, %v668
      %3233 = vrot.lane.b32.xlu0 %v3217, 62
      %v3234 = vpop.permute.xlu0 %3233
      %3235 = vrot.lane.b32.xlu0 %v3218, 62
      %v3236 = vpop.permute.xlu0 %3235
      %3237 = vrot.lane.b32.xlu0 %v3219, 62
      %v3238 = vpop.permute.xlu0 %3237
      %3239 = vrot.lane.b32.xlu0 %v3220, 62
      %v3240 = vpop.permute.xlu0 %3239
      %3241 = vrot.lane.b32.xlu0 %v3221, 62
      %v3242 = vpop.permute.xlu0 %3241
      %3243 = vrot.lane.b32.xlu0 %v3222, 62
      %v3244 = vpop.permute.xlu0 %3243
      %3245 = vrot.lane.b32.xlu0 %v3223, 62
      %v3246 = vpop.permute.xlu0 %3245
      %3247 = vrot.lane.b32.xlu0 %v3224, 62
      %v3248 = vpop.permute.xlu0 %3247
      %vm3249 = vcmask 506880
      %v3250 = vsel %vm3249, %v3234, %v3236
      %v3251 = vsel %vm3249, %v3236, %v3238
      %v3252 = vsel %vm3249, %v3238, %v3240
      %v3253 = vsel %vm3249, %v3242, %v3244
      %v3254 = vsel %vm3249, %v3244, %v3246
      %v3255 = vsel %vm3249, %v3246, %v3248
      %v3264 = vadd.f32 %v3201, %v3250
      %v3265 = vadd.f32 %v3202, %v3251
      %v3266 = vadd.f32 %v3203, %v3252
      %v3267 = vadd.f32 %v3204, %v3240
      %v3268 = vadd.f32 %v3205, %v3253
      %v3269 = vadd.f32 %v3206, %v3254
      %v3270 = vadd.f32 %v3207, %v3255
      %v3271 = vadd.f32 %v3208, %v3248
      %3272 = vset.pattern.permute.xlu0 42
      %3273 = vperm.xlu0 %3272, %v626
      %v3274 = vpop.permute.xlu0 %3273
      %3276 = vset.pattern.permute.xlu0 42
      %3277 = vperm.xlu0 %3276, %v627
      %v3278 = vpop.permute.xlu0 %3277
      %v3280 = vmul.f32 %v3274, %v656
      %v3281 = vmul.f32 %v3274, %v660
      %v3282 = vmul.f32 %v3274, %v664
      %v3283 = vmul.f32 %v3274, %v668
      %v3284 = vmul.f32 %v3278, %v656
      %v3285 = vmul.f32 %v3278, %v660
      %v3286 = vmul.f32 %v3278, %v664
      %v3287 = vmul.f32 %v3278, %v668
      %3296 = vrot.lane.b32.xlu0 %v3280, 56
      %v3297 = vpop.permute.xlu0 %3296
      %3298 = vrot.lane.b32.xlu0 %v3281, 56
      %v3299 = vpop.permute.xlu0 %3298
      %3300 = vrot.lane.b32.xlu0 %v3282, 56
      %v3301 = vpop.permute.xlu0 %3300
      %3302 = vrot.lane.b32.xlu0 %v3283, 56
      %v3303 = vpop.permute.xlu0 %3302
      %3304 = vrot.lane.b32.xlu0 %v3284, 56
      %v3305 = vpop.permute.xlu0 %3304
      %3306 = vrot.lane.b32.xlu0 %v3285, 56
      %v3307 = vpop.permute.xlu0 %3306
      %3308 = vrot.lane.b32.xlu0 %v3286, 56
      %v3309 = vpop.permute.xlu0 %3308
      %3310 = vrot.lane.b32.xlu0 %v3287, 56
      %v3311 = vpop.permute.xlu0 %3310
      %vm3312 = vcmask 457728
      %v3313 = vsel %vm3312, %v3297, %v3299
      %v3314 = vsel %vm3312, %v3299, %v3301
      %v3315 = vsel %vm3312, %v3301, %v3303
      %v3316 = vsel %vm3312, %v3305, %v3307
      %v3317 = vsel %vm3312, %v3307, %v3309
      %v3318 = vsel %vm3312, %v3309, %v3311
      %v3327 = vadd.f32 %v3264, %v3313
      %v3328 = vadd.f32 %v3265, %v3314
      %v3329 = vadd.f32 %v3266, %v3315
      %v3330 = vadd.f32 %v3267, %v3303
      %v3331 = vadd.f32 %v3268, %v3316
      %v3332 = vadd.f32 %v3269, %v3317
      %v3333 = vadd.f32 %v3270, %v3318
      %v3334 = vadd.f32 %v3271, %v3311
      %3335 = vset.pattern.permute.xlu0 43
      %3336 = vperm.xlu0 %3335, %v626
      %v3337 = vpop.permute.xlu0 %3336
      %3339 = vset.pattern.permute.xlu0 43
      %3340 = vperm.xlu0 %3339, %v627
      %v3341 = vpop.permute.xlu0 %3340
      %v3343 = vmul.f32 %v3337, %v656
      %v3344 = vmul.f32 %v3337, %v660
      %v3345 = vmul.f32 %v3337, %v664
      %v3346 = vmul.f32 %v3337, %v668
      %v3347 = vmul.f32 %v3341, %v656
      %v3348 = vmul.f32 %v3341, %v660
      %v3349 = vmul.f32 %v3341, %v664
      %v3350 = vmul.f32 %v3341, %v668
      %3359 = vrot.lane.b32.xlu0 %v3343, 55
      %v3360 = vpop.permute.xlu0 %3359
      %3361 = vrot.lane.b32.xlu0 %v3344, 55
      %v3362 = vpop.permute.xlu0 %3361
      %3363 = vrot.lane.b32.xlu0 %v3345, 55
      %v3364 = vpop.permute.xlu0 %3363
      %3365 = vrot.lane.b32.xlu0 %v3346, 55
      %v3366 = vpop.permute.xlu0 %3365
      %3367 = vrot.lane.b32.xlu0 %v3347, 55
      %v3368 = vpop.permute.xlu0 %3367
      %3369 = vrot.lane.b32.xlu0 %v3348, 55
      %v3370 = vpop.permute.xlu0 %3369
      %3371 = vrot.lane.b32.xlu0 %v3349, 55
      %v3372 = vpop.permute.xlu0 %3371
      %3373 = vrot.lane.b32.xlu0 %v3350, 55
      %v3374 = vpop.permute.xlu0 %3373
      %vm3375 = vcmask 449536
      %v3376 = vsel %vm3375, %v3360, %v3362
      %v3377 = vsel %vm3375, %v3362, %v3364
      %v3378 = vsel %vm3375, %v3364, %v3366
      %v3379 = vsel %vm3375, %v3368, %v3370
      %v3380 = vsel %vm3375, %v3370, %v3372
      %v3381 = vsel %vm3375, %v3372, %v3374
      %v3390 = vadd.f32 %v3327, %v3376
      %v3391 = vadd.f32 %v3328, %v3377
      %v3392 = vadd.f32 %v3329, %v3378
      %v3393 = vadd.f32 %v3330, %v3366
      %v3394 = vadd.f32 %v3331, %v3379
      %v3395 = vadd.f32 %v3332, %v3380
      %v3396 = vadd.f32 %v3333, %v3381
      %v3397 = vadd.f32 %v3334, %v3374
      %3398 = vset.pattern.permute.xlu0 44
      %3399 = vperm.xlu0 %3398, %v626
      %v3400 = vpop.permute.xlu0 %3399
      %3402 = vset.pattern.permute.xlu0 44
      %3403 = vperm.xlu0 %3402, %v627
      %v3404 = vpop.permute.xlu0 %3403
      %v3406 = vmul.f32 %v3400, %v656
      %v3407 = vmul.f32 %v3400, %v660
      %v3408 = vmul.f32 %v3400, %v664
      %v3409 = vmul.f32 %v3400, %v668
      %v3410 = vmul.f32 %v3404, %v656
      %v3411 = vmul.f32 %v3404, %v660
      %v3412 = vmul.f32 %v3404, %v664
      %v3413 = vmul.f32 %v3404, %v668
      %3422 = vrot.lane.b32.xlu0 %v3406, 54
      %v3423 = vpop.permute.xlu0 %3422
      %3424 = vrot.lane.b32.xlu0 %v3407, 54
      %v3425 = vpop.permute.xlu0 %3424
      %3426 = vrot.lane.b32.xlu0 %v3408, 54
      %v3427 = vpop.permute.xlu0 %3426
      %3428 = vrot.lane.b32.xlu0 %v3409, 54
      %v3429 = vpop.permute.xlu0 %3428
      %3430 = vrot.lane.b32.xlu0 %v3410, 54
      %v3431 = vpop.permute.xlu0 %3430
      %3432 = vrot.lane.b32.xlu0 %v3411, 54
      %v3433 = vpop.permute.xlu0 %3432
      %3434 = vrot.lane.b32.xlu0 %v3412, 54
      %v3435 = vpop.permute.xlu0 %3434
      %3436 = vrot.lane.b32.xlu0 %v3413, 54
      %v3437 = vpop.permute.xlu0 %3436
      %vm3438 = vcmask 441344
      %v3439 = vsel %vm3438, %v3423, %v3425
      %v3440 = vsel %vm3438, %v3425, %v3427
      %v3441 = vsel %vm3438, %v3427, %v3429
      %v3442 = vsel %vm3438, %v3431, %v3433
      %v3443 = vsel %vm3438, %v3433, %v3435
      %v3444 = vsel %vm3438, %v3435, %v3437
      %v3453 = vadd.f32 %v3390, %v3439
      %v3454 = vadd.f32 %v3391, %v3440
      %v3455 = vadd.f32 %v3392, %v3441
      %v3456 = vadd.f32 %v3393, %v3429
      %v3457 = vadd.f32 %v3394, %v3442
      %v3458 = vadd.f32 %v3395, %v3443
      %v3459 = vadd.f32 %v3396, %v3444
      %v3460 = vadd.f32 %v3397, %v3437
      %3461 = vset.pattern.permute.xlu0 45
      %3462 = vperm.xlu0 %3461, %v626
      %v3463 = vpop.permute.xlu0 %3462
      %3465 = vset.pattern.permute.xlu0 45
      %3466 = vperm.xlu0 %3465, %v627
      %v3467 = vpop.permute.xlu0 %3466
      %v3469 = vlaneseq
      %v3470 = vshrl.u32 %v3469, 7
      %v3471 = vsub.s32 4, %v3470
      %v3472 = vrot.slane %v625, %v3471
      %v3474 = vmul.f32 %v3463, %v656
      %v3475 = vmul.f32 %v3463, %v660
      %v3476 = vmul.f32 %v3463, %v664
      %v3477 = vmul.f32 %v3463, %v668
      %v3478 = vmul.f32 %v3463, %v3472
      %v3479 = vmul.f32 %v3467, %v656
      %v3480 = vmul.f32 %v3467, %v660
      %v3481 = vmul.f32 %v3467, %v664
      %v3482 = vmul.f32 %v3467, %v668
      %v3483 = vmul.f32 %v3467, %v3472
      %3494 = vrot.lane.b32.xlu0 %v3474, 53
      %v3495 = vpop.permute.xlu0 %3494
      %3496 = vrot.lane.b32.xlu0 %v3475, 53
      %v3497 = vpop.permute.xlu0 %3496
      %3498 = vrot.lane.b32.xlu0 %v3476, 53
      %v3499 = vpop.permute.xlu0 %3498
      %3500 = vrot.lane.b32.xlu0 %v3477, 53
      %v3501 = vpop.permute.xlu0 %3500
      %3502 = vrot.lane.b32.xlu0 %v3478, 53
      %v3503 = vpop.permute.xlu0 %3502
      %3504 = vrot.lane.b32.xlu0 %v3479, 53
      %v3505 = vpop.permute.xlu0 %3504
      %3506 = vrot.lane.b32.xlu0 %v3480, 53
      %v3507 = vpop.permute.xlu0 %3506
      %3508 = vrot.lane.b32.xlu0 %v3481, 53
      %v3509 = vpop.permute.xlu0 %3508
      %3510 = vrot.lane.b32.xlu0 %v3482, 53
      %v3511 = vpop.permute.xlu0 %3510
      %3512 = vrot.lane.b32.xlu0 %v3483, 53
      %v3513 = vpop.permute.xlu0 %3512
      %vm3514 = vcmask 433152
      %v3515 = vsel %vm3514, %v3495, %v3497
      %v3516 = vsel %vm3514, %v3497, %v3499
      %v3517 = vsel %vm3514, %v3499, %v3501
      %v3518 = vsel %vm3514, %v3501, %v3503
      %v3519 = vsel %vm3514, %v3505, %v3507
      %v3520 = vsel %vm3514, %v3507, %v3509
      %v3521 = vsel %vm3514, %v3509, %v3511
      %v3522 = vsel %vm3514, %v3511, %v3513
      %v3531 = vadd.f32 %v3453, %v3515
      %v3532 = vadd.f32 %v3454, %v3516
      %v3533 = vadd.f32 %v3455, %v3517
      %v3534 = vadd.f32 %v3456, %v3518
      %v3535 = vadd.f32 %v3457, %v3519
      %v3536 = vadd.f32 %v3458, %v3520
      %v3537 = vadd.f32 %v3459, %v3521
      %v3538 = vadd.f32 %v3460, %v3522
      %3539 = vset.pattern.permute.xlu0 46
      %3540 = vperm.xlu0 %3539, %v626
      %v3541 = vpop.permute.xlu0 %3540
      %3543 = vset.pattern.permute.xlu0 46
      %3544 = vperm.xlu0 %3543, %v627
      %v3545 = vpop.permute.xlu0 %3544
      %v3547 = vmul.f32 %v3541, %v656
      %v3548 = vmul.f32 %v3541, %v660
      %v3549 = vmul.f32 %v3541, %v664
      %v3550 = vmul.f32 %v3541, %v668
      %v3551 = vmul.f32 %v3541, %v3472
      %v3552 = vmul.f32 %v3545, %v656
      %v3553 = vmul.f32 %v3545, %v660
      %v3554 = vmul.f32 %v3545, %v664
      %v3555 = vmul.f32 %v3545, %v668
      %v3556 = vmul.f32 %v3545, %v3472
      %3567 = vrot.lane.b32.xlu0 %v3547, 52
      %v3568 = vpop.permute.xlu0 %3567
      %3569 = vrot.lane.b32.xlu0 %v3548, 52
      %v3570 = vpop.permute.xlu0 %3569
      %3571 = vrot.lane.b32.xlu0 %v3549, 52
      %v3572 = vpop.permute.xlu0 %3571
      %3573 = vrot.lane.b32.xlu0 %v3550, 52
      %v3574 = vpop.permute.xlu0 %3573
      %3575 = vrot.lane.b32.xlu0 %v3551, 52
      %v3576 = vpop.permute.xlu0 %3575
      %3577 = vrot.lane.b32.xlu0 %v3552, 52
      %v3578 = vpop.permute.xlu0 %3577
      %3579 = vrot.lane.b32.xlu0 %v3553, 52
      %v3580 = vpop.permute.xlu0 %3579
      %3581 = vrot.lane.b32.xlu0 %v3554, 52
      %v3582 = vpop.permute.xlu0 %3581
      %3583 = vrot.lane.b32.xlu0 %v3555, 52
      %v3584 = vpop.permute.xlu0 %3583
      %3585 = vrot.lane.b32.xlu0 %v3556, 52
      %v3586 = vpop.permute.xlu0 %3585
      %vm3587 = vcmask 424960
      %v3588 = vsel %vm3587, %v3568, %v3570
      %v3589 = vsel %vm3587, %v3570, %v3572
      %v3590 = vsel %vm3587, %v3572, %v3574
      %v3591 = vsel %vm3587, %v3574, %v3576
      %v3592 = vsel %vm3587, %v3578, %v3580
      %v3593 = vsel %vm3587, %v3580, %v3582
      %v3594 = vsel %vm3587, %v3582, %v3584
      %v3595 = vsel %vm3587, %v3584, %v3586
      %v3604 = vadd.f32 %v3531, %v3588
      %v3605 = vadd.f32 %v3532, %v3589
      %v3606 = vadd.f32 %v3533, %v3590
      %v3607 = vadd.f32 %v3534, %v3591
      %v3608 = vadd.f32 %v3535, %v3592
      %v3609 = vadd.f32 %v3536, %v3593
      %v3610 = vadd.f32 %v3537, %v3594
      %v3611 = vadd.f32 %v3538, %v3595
      %3612 = vset.pattern.permute.xlu0 47
      %3613 = vperm.xlu0 %3612, %v626
      %v3614 = vpop.permute.xlu0 %3613
      %3616 = vset.pattern.permute.xlu0 47
      %3617 = vperm.xlu0 %3616, %v627
      %v3618 = vpop.permute.xlu0 %3617
      %v3620 = vmul.f32 %v3614, %v656
      %v3621 = vmul.f32 %v3614, %v660
      %v3622 = vmul.f32 %v3614, %v664
      %v3623 = vmul.f32 %v3614, %v668
      %v3624 = vmul.f32 %v3614, %v3472
      %v3625 = vmul.f32 %v3618, %v656
      %v3626 = vmul.f32 %v3618, %v660
      %v3627 = vmul.f32 %v3618, %v664
      %v3628 = vmul.f32 %v3618, %v668
      %v3629 = vmul.f32 %v3618, %v3472
      %3640 = vrot.lane.b32.xlu0 %v3620, 51
      %v3641 = vpop.permute.xlu0 %3640
      %3642 = vrot.lane.b32.xlu0 %v3621, 51
      %v3643 = vpop.permute.xlu0 %3642
      %3644 = vrot.lane.b32.xlu0 %v3622, 51
      %v3645 = vpop.permute.xlu0 %3644
      %3646 = vrot.lane.b32.xlu0 %v3623, 51
      %v3647 = vpop.permute.xlu0 %3646
      %3648 = vrot.lane.b32.xlu0 %v3624, 51
      %v3649 = vpop.permute.xlu0 %3648
      %3650 = vrot.lane.b32.xlu0 %v3625, 51
      %v3651 = vpop.permute.xlu0 %3650
      %3652 = vrot.lane.b32.xlu0 %v3626, 51
      %v3653 = vpop.permute.xlu0 %3652
      %3654 = vrot.lane.b32.xlu0 %v3627, 51
      %v3655 = vpop.permute.xlu0 %3654
      %3656 = vrot.lane.b32.xlu0 %v3628, 51
      %v3657 = vpop.permute.xlu0 %3656
      %3658 = vrot.lane.b32.xlu0 %v3629, 51
      %v3659 = vpop.permute.xlu0 %3658
      %vm3660 = vcmask 416768
      %v3661 = vsel %vm3660, %v3641, %v3643
      %v3662 = vsel %vm3660, %v3643, %v3645
      %v3663 = vsel %vm3660, %v3645, %v3647
      %v3664 = vsel %vm3660, %v3647, %v3649
      %v3665 = vsel %vm3660, %v3651, %v3653
      %v3666 = vsel %vm3660, %v3653, %v3655
      %v3667 = vsel %vm3660, %v3655, %v3657
      %v3668 = vsel %vm3660, %v3657, %v3659
      %v3677 = vadd.f32 %v3604, %v3661
      %v3678 = vadd.f32 %v3605, %v3662
      %v3679 = vadd.f32 %v3606, %v3663
      %v3680 = vadd.f32 %v3607, %v3664
      %v3681 = vadd.f32 %v3608, %v3665
      %v3682 = vadd.f32 %v3609, %v3666
      %v3683 = vadd.f32 %v3610, %v3667
      %v3684 = vadd.f32 %v3611, %v3668
      %3685 = vset.pattern.permute.xlu0 48
      %3686 = vperm.xlu0 %3685, %v626
      %v3687 = vpop.permute.xlu0 %3686
      %3689 = vset.pattern.permute.xlu0 48
      %3690 = vperm.xlu0 %3689, %v627
      %v3691 = vpop.permute.xlu0 %3690
      %v3693 = vmul.f32 %v3687, %v656
      %v3694 = vmul.f32 %v3687, %v660
      %v3695 = vmul.f32 %v3687, %v664
      %v3696 = vmul.f32 %v3687, %v668
      %v3697 = vmul.f32 %v3687, %v3472
      %v3698 = vmul.f32 %v3691, %v656
      %v3699 = vmul.f32 %v3691, %v660
      %v3700 = vmul.f32 %v3691, %v664
      %v3701 = vmul.f32 %v3691, %v668
      %v3702 = vmul.f32 %v3691, %v3472
      %3713 = vrot.lane.b32.xlu0 %v3693, 50
      %v3714 = vpop.permute.xlu0 %3713
      %3715 = vrot.lane.b32.xlu0 %v3694, 50
      %v3716 = vpop.permute.xlu0 %3715
      %3717 = vrot.lane.b32.xlu0 %v3695, 50
      %v3718 = vpop.permute.xlu0 %3717
      %3719 = vrot.lane.b32.xlu0 %v3696, 50
      %v3720 = vpop.permute.xlu0 %3719
      %3721 = vrot.lane.b32.xlu0 %v3697, 50
      %v3722 = vpop.permute.xlu0 %3721
      %3723 = vrot.lane.b32.xlu0 %v3698, 50
      %v3724 = vpop.permute.xlu0 %3723
      %3725 = vrot.lane.b32.xlu0 %v3699, 50
      %v3726 = vpop.permute.xlu0 %3725
      %3727 = vrot.lane.b32.xlu0 %v3700, 50
      %v3728 = vpop.permute.xlu0 %3727
      %3729 = vrot.lane.b32.xlu0 %v3701, 50
      %v3730 = vpop.permute.xlu0 %3729
      %3731 = vrot.lane.b32.xlu0 %v3702, 50
      %v3732 = vpop.permute.xlu0 %3731
      %vm3733 = vcmask 408576
      %v3734 = vsel %vm3733, %v3714, %v3716
      %v3735 = vsel %vm3733, %v3716, %v3718
      %v3736 = vsel %vm3733, %v3718, %v3720
      %v3737 = vsel %vm3733, %v3720, %v3722
      %v3738 = vsel %vm3733, %v3724, %v3726
      %v3739 = vsel %vm3733, %v3726, %v3728
      %v3740 = vsel %vm3733, %v3728, %v3730
      %v3741 = vsel %vm3733, %v3730, %v3732
      %v3750 = vadd.f32 %v3677, %v3734
      %v3751 = vadd.f32 %v3678, %v3735
      %v3752 = vadd.f32 %v3679, %v3736
      %v3753 = vadd.f32 %v3680, %v3737
      %v3754 = vadd.f32 %v3681, %v3738
      %v3755 = vadd.f32 %v3682, %v3739
      %v3756 = vadd.f32 %v3683, %v3740
      %v3757 = vadd.f32 %v3684, %v3741
      %3760 = vrot.lane.b32.xlu0 %v3750, 110
      %v3761 = vpop.permute.xlu0 %3760
      %3762 = vrot.lane.b32.xlu0 %v3754, 110
      %v3763 = vpop.permute.xlu0 %3762
      %3766 = vrot.lane.b32.xlu0 %v3750, 92
      %v3767 = vpop.permute.xlu0 %3766
      %3768 = vrot.lane.b32.xlu0 %v3754, 92
      %v3769 = vpop.permute.xlu0 %3768
      %3772 = vrot.lane.b32.xlu0 %v3750, 74
      %v3773 = vpop.permute.xlu0 %3772
      %3774 = vrot.lane.b32.xlu0 %v3754, 74
      %v3775 = vpop.permute.xlu0 %3774
      %3778 = vrot.lane.b32.xlu0 %v3750, 56
      %v3779 = vpop.permute.xlu0 %3778
      %3780 = vrot.lane.b32.xlu0 %v3754, 56
      %v3781 = vpop.permute.xlu0 %3780
      %3784 = vrot.lane.b32.xlu0 %v3750, 38
      %v3785 = vpop.permute.xlu0 %3784
      %3786 = vrot.lane.b32.xlu0 %v3754, 38
      %v3787 = vpop.permute.xlu0 %3786
      %3792 = vrot.lane.b32.xlu0 %v3751, 20
      %v3793 = vpop.permute.xlu0 %3792
      %3794 = vrot.lane.b32.xlu0 %v3755, 20
      %v3795 = vpop.permute.xlu0 %3794
      %3798 = vrot.lane.b32.xlu0 %v3751, 2
      %v3799 = vpop.permute.xlu0 %3798
      %3800 = vrot.lane.b32.xlu0 %v3755, 2
      %v3801 = vpop.permute.xlu0 %3800
      %3804 = vrot.lane.b32.xlu0 %v3751, 112
      %v3805 = vpop.permute.xlu0 %3804
      %3806 = vrot.lane.b32.xlu0 %v3755, 112
      %v3807 = vpop.permute.xlu0 %3806
      %3810 = vrot.lane.b32.xlu0 %v3751, 94
      %v3811 = vpop.permute.xlu0 %3810
      %3812 = vrot.lane.b32.xlu0 %v3755, 94
      %v3813 = vpop.permute.xlu0 %3812
      %3816 = vrot.lane.b32.xlu0 %v3751, 76
      %v3817 = vpop.permute.xlu0 %3816
      %3818 = vrot.lane.b32.xlu0 %v3755, 76
      %v3819 = vpop.permute.xlu0 %3818
      %3824 = vrot.lane.b32.xlu0 %v3752, 58
      %v3825 = vpop.permute.xlu0 %3824
      %3826 = vrot.lane.b32.xlu0 %v3756, 58
      %v3827 = vpop.permute.xlu0 %3826
      %3830 = vrot.lane.b32.xlu0 %v3752, 40
      %v3831 = vpop.permute.xlu0 %3830
      %3832 = vrot.lane.b32.xlu0 %v3756, 40
      %v3833 = vpop.permute.xlu0 %3832
      %3836 = vrot.lane.b32.xlu0 %v3752, 22
      %v3837 = vpop.permute.xlu0 %3836
      %3838 = vrot.lane.b32.xlu0 %v3756, 22
      %v3839 = vpop.permute.xlu0 %3838
      %3842 = vrot.lane.b32.xlu0 %v3752, 4
      %v3843 = vpop.permute.xlu0 %3842
      %3844 = vrot.lane.b32.xlu0 %v3756, 4
      %v3845 = vpop.permute.xlu0 %3844
      %3848 = vrot.lane.b32.xlu0 %v3752, 114
      %v3849 = vpop.permute.xlu0 %3848
      %3850 = vrot.lane.b32.xlu0 %v3756, 114
      %v3851 = vpop.permute.xlu0 %3850
      %vm3854 = vcmask 48128
      %v3855 = vsel %vm3854, %v3750, %v3761
      %v3856 = vsel %vm3854, %v3754, %v3763
      %vm3857 = vcmask 97280
      %v3858 = vsel %vm3857, %v3855, %v3767
      %v3859 = vsel %vm3857, %v3856, %v3769
      %vm3860 = vcmask 146432
      %v3861 = vsel %vm3860, %v3858, %v3773
      %v3862 = vsel %vm3860, %v3859, %v3775
      %vm3863 = vcmask 195584
      %v3864 = vsel %vm3863, %v3861, %v3779
      %v3865 = vsel %vm3863, %v3862, %v3781
      %vm3866 = vcmask 244736
      %v3867 = vsel %vm3866, %v3864, %v3785
      %v3868 = vsel %vm3866, %v3865, %v3787
      %vm3869 = vcmask 293888
      %v3870 = vsel %vm3869, %v3867, %v3793
      %v3871 = vsel %vm3869, %v3868, %v3795
      %vm3872 = vcmask 343040
      %v3873 = vsel %vm3872, %v3870, %v3799
      %v3874 = vsel %vm3872, %v3871, %v3801
      %vm3875 = vcmask 392192
      %v3876 = vsel %vm3875, %v3873, %v3805
      %v3877 = vsel %vm3875, %v3874, %v3807
      %v3878 = vsel %vm3438, %v3876, %v3811
      %v3879 = vsel %vm3438, %v3877, %v3813
      %vm3880 = vcmask 490496
      %v3881 = vsel %vm3880, %v3878, %v3817
      %v3882 = vsel %vm3880, %v3879, %v3819
      %v3883 = vsel %vm2997, %v3881, %v3825
      %v3884 = vsel %vm2997, %v3882, %v3827
      %vm3885 = vcmask 588800
      %v3886 = vsel %vm3885, %v3883, %v3831
      %v3887 = vsel %vm3885, %v3884, %v3833
      %v3888 = vsel %vm2556, %v3886, %v3837
      %v3889 = vsel %vm2556, %v3887, %v3839
      %vm3890 = vcmask 687104
      %v3891 = vsel %vm3890, %v3888, %v3843
      %v3892 = vsel %vm3890, %v3889, %v3845
      %v3893 = vsel %vm2115, %v3891, %v3849
      %v3894 = vsel %vm2115, %v3892, %v3851
      %3897 = vrot.lane.b32.xlu0 %v3753, 110
      %v3898 = vpop.permute.xlu0 %3897
      %3899 = vrot.lane.b32.xlu0 %v3757, 110
      %v3900 = vpop.permute.xlu0 %3899
      %3903 = vrot.lane.b32.xlu0 %v3753, 92
      %v3904 = vpop.permute.xlu0 %3903
      %3905 = vrot.lane.b32.xlu0 %v3757, 92
      %v3906 = vpop.permute.xlu0 %3905
      %v3909 = vsel %vm3854, %v3753, %v3898
      %v3910 = vsel %vm3854, %v3757, %v3900
      %v3911 = vsel %vm3857, %v3909, %v3904
      %v3912 = vsel %vm3857, %v3910, %v3906
      %3915 = vrot.lane.b32.xlu0 %v3911, 96
      %v3916 = vpop.permute.xlu0 %3915
      %3917 = vrot.lane.b32.xlu0 %v3912, 96
      %v3918 = vpop.permute.xlu0 %3917
      %vm3921 = vcmask 785408
      %v3922 = vsel %vm3921, %v3893, %v3916
      %v3923 = vsel %vm3921, %v3894, %v3918
      %v3924 = vmax.f32 %v3922, 0.0
      %v3925 = vmax.f32 %v3923, 0.0
      %v3926 = vld [vmem:[%s4] sm:$0xff]
      %v3927 = vld [vmem:[%s5] sm:$0xff]
      %v3928 = vld [vmem:[%s3] sm:$0xff]
      %3930 = vset.pattern.permute.xlu0 12
      %3931 = vperm.xlu0 %3930, %v3926
      %v3932 = vpop.permute.xlu0 %3931
      %vm3934 = vcmask 130048
      %v3936 = vsel %vm3934, %v3928, 0
      %3938 = vmatprep.subr.mxu0 0.0
      %3939 = vmatpush1.msra.mxu0 0.0
      %3940 = vmatprep.subr.mxu0 0.0
      %3941 = vmatpush1.msra.mxu0 0.0
      %3942 = vmatprep.subr.mxu0 0.0
      %3943 = vmatpush1.msra.mxu0 0.0
      %3944 = vmatprep.subr.mxu0 0.0
      %3945 = vmatpush1.msra.mxu0 0.0
      %3946 = vmatprep.subr.mxu0 0.0
      %3947 = vmatpush1.msra.mxu0 0.0
      %3948 = vmatprep.subr.mxu0 0.0
      %3949 = vmatpush1.msra.mxu0 0.0
      %3950 = vmatprep.subr.mxu0 0.0
      %3951 = vmatpush1.msra.mxu0 0.0
      %3952 = vmatprep.subr.mxu0 0.0
      %3953 = vmatpush1.msra.mxu0 0.0
      %3954 = vmatprep.subr.mxu0 0.0
      %3955 = vmatpush1.msra.mxu0 0.0
      %3956 = vmatprep.subr.mxu0 0.0
      %3957 = vmatpush1.msra.mxu0 0.0
      %3958 = vmatprep.subr.mxu0 0.0
      %3959 = vmatpush1.msra.mxu0 0.0
      %3960 = vmatprep.subr.mxu0 0.0
      %3961 = vmatpush1.msra.mxu0 0.0
      %3962 = vmatprep.subr.mxu0 0.0
      %3963 = vmatpush1.msra.mxu0 0.0
      %3964 = vmatprep.subr.mxu0 0.0
      %3965 = vmatpush1.msra.mxu0 0.0
      %3966 = vmatprep.subr.mxu0 0.0
      %3967 = vmatpush1.msra.mxu0 %v3925
      %3968 = vmatprep.subr.mxu0 0.0
      %3969 = vmatpush1.msra.mxu0 %v3924
      %3970 = vmatprep.subr.mxu0 0.0
      %3971 = vmatpush2.msra.mxu0 0.0
      %3972 = vmatprep.subr.mxu0 0.0
      %3973 = vmatpush2.msra.mxu0 0.0
      %3974 = vmatprep.subr.mxu0 0.0
      %3975 = vmatpush2.msra.mxu0 0.0
      %3976 = vmatprep.subr.mxu0 0.0
      %3977 = vmatpush2.msra.mxu0 0.0
      %3978 = vmatprep.subr.mxu0 0.0
      %3979 = vmatpush2.msra.mxu0 0.0
      %3980 = vmatprep.subr.mxu0 0.0
      %3981 = vmatpush2.msra.mxu0 0.0
      %3982 = vmatprep.subr.mxu0 0.0
      %3983 = vmatpush2.msra.mxu0 0.0
      %3984 = vmatprep.subr.mxu0 0.0
      %3985 = vmatpush2.msra.mxu0 0.0
      %3986 = vmatprep.subr.mxu0 0.0
      %3987 = vmatpush2.msra.mxu0 0.0
      %3988 = vmatprep.subr.mxu0 0.0
      %3989 = vmatpush2.msra.mxu0 0.0
      %3990 = vmatprep.subr.mxu0 0.0
      %3991 = vmatpush2.msra.mxu0 0.0
      %3992 = vmatprep.subr.mxu0 0.0
      %3993 = vmatpush2.msra.mxu0 0.0
      %3994 = vmatprep.subr.mxu0 0.0
      %3995 = vmatpush2.msra.mxu0 0.0
      %3996 = vmatprep.subr.mxu0 0.0
      %3997 = vmatpush2.msra.mxu0 0.0
      %3998 = vmatprep.subr.mxu0 0.0
      %3999 = vmatpush2.msra.mxu0 0.0
      %4000 = vmatprep.subr.mxu0 0.0
      %4001 = vmatpush2.msra.mxu0 0.0
      %4002 = vmatprep.mubr.f32.mxu0 0.0
      %4003 = vmatmul.mubr.f32.gmra.mxu0 %v3936
      %v4004 = vpop.f32.mrf.mxu0
      %v4005 = vadd.f32 %v3932, %v4004
      %v4006 = vpop.f32.mrf.mxu0
      %4007 = vdwg.mxu0
      %v4008 = vmax.f32 %v4005, 0.0
      %4010 = vrot.lane.b32.xlu0 %v4008, 6
      %v4011 = vpop.permute.xlu0 %4010
      %v4013 = vsel %vm3854, 0.0, %v4011
      %4014 = vrot.lane.b32.xlu0 %v4008, 122
      %v4015 = vpop.permute.xlu0 %4014
      %vm4017 = vcmask 883712
      %v4018 = vsel %vm4017, %v4015, 0.0
      %4019 = vset.pattern.permute.xlu0 0
      %4020 = vperm.xlu0 %4019, %v3926
      %v4021 = vpop.permute.xlu0 %4020
      %v4023 = vmul.f32 %v4021, %v4013
      %4024 = vset.pattern.permute.xlu0 1
      %4025 = vperm.xlu0 %4024, %v3926
      %v4026 = vpop.permute.xlu0 %4025
      %v4028 = vmul.f32 %v4026, %v4008
      %v4029 = vadd.f32 %v4023, %v4028
      %4030 = vset.pattern.permute.xlu0 2
      %4031 = vperm.xlu0 %4030, %v3926
      %v4032 = vpop.permute.xlu0 %4031
      %v4034 = vmul.f32 %v4032, %v4018
      %v4035 = vadd.f32 %v4029, %v4034
      %4036 = vset.pattern.permute.xlu0 3
      %4037 = vperm.xlu0 %4036, %v3926
      %v4038 = vpop.permute.xlu0 %4037
      %v4040 = vadd.f32 %v4035, %v4038
      %4042 = vrot.lane.b32.xlu0 %v4040, 122
      %v4043 = vpop.permute.xlu0 %4042
      %4045 = vrot.lane.b32.xlu0 %v4040, 116
      %v4046 = vpop.permute.xlu0 %4045
      %4048 = vrot.lane.b32.xlu0 %v4040, 110
      %v4049 = vpop.permute.xlu0 %4048
      %4051 = vrot.lane.b32.xlu0 %v4040, 104
      %v4052 = vpop.permute.xlu0 %4051
      %4054 = vrot.lane.b32.xlu0 %v4040, 98
      %v4055 = vpop.permute.xlu0 %4054
      %4057 = vrot.lane.b32.xlu0 %v4040, 92
      %v4058 = vpop.permute.xlu0 %4057
      %4060 = vrot.lane.b32.xlu0 %v4040, 86
      %v4061 = vpop.permute.xlu0 %4060
      %4063 = vrot.lane.b32.xlu0 %v4040, 80
      %v4064 = vpop.permute.xlu0 %4063
      %4066 = vrot.lane.b32.xlu0 %v4040, 74
      %v4067 = vpop.permute.xlu0 %4066
      %v4069 = vsel %vm3854, %v4040, %v4043
      %v4070 = vsel %vm3857, %v4069, %v4046
      %v4071 = vsel %vm3860, %v4070, %v4049
      %v4072 = vsel %vm3863, %v4071, %v4052
      %v4073 = vsel %vm3866, %v4072, %v4055
      %v4074 = vsel %vm3869, %v4073, %v4058
      %v4075 = vsel %vm3872, %v4074, %v4061
      %v4076 = vsel %vm3875, %v4075, %v4064
      %v4077 = vsel %vm3438, %v4076, %v4067
      %v4078 = vsub.f32 0.0, %v4077
      %v4079 = vmul.f32 %v4078, 1.442695
      %v4080 = vpow.pop %v4079
      %v4081 = vadd.f32 %v4080, 1.0
      %v4082 = vrcp.pop %v4081
      %v4083 = vmul.f32 1.0, %v4082
      %v4084 = vmul.f32 %v4077, %v4083
      %4085 = vset.pattern.permute.xlu0 4
      %4086 = vperm.xlu0 %4085, %v3926
      %v4087 = vpop.permute.xlu0 %4086
      %v4089 = vmul.f32 %v4084, %v4087
      %4090 = vset.pattern.permute.xlu0 5
      %4091 = vperm.xlu0 %4090, %v3926
      %v4092 = vpop.permute.xlu0 %4091
      %v4094 = vadd.f32 %v4089, %v4092
      %4096 = vrot.lane.b32.xlu0 %v4094, 122
      %v4097 = vpop.permute.xlu0 %4096
      %v4099 = vadd.f32 %v4094, %v4097
      %4100 = vrot.lane.b32.xlu0 %v4094, 116
      %v4101 = vpop.permute.xlu0 %4100
      %v4103 = vadd.f32 %v4099, %v4101
      %4104 = vrot.lane.b32.xlu0 %v4094, 110
      %v4105 = vpop.permute.xlu0 %4104
      %v4107 = vadd.f32 %v4103, %v4105
      %4108 = vrot.lane.b32.xlu0 %v4094, 104
      %v4109 = vpop.permute.xlu0 %4108
      %v4111 = vadd.f32 %v4107, %v4109
      %4112 = vrot.lane.b32.xlu0 %v4094, 98
      %v4113 = vpop.permute.xlu0 %4112
      %v4115 = vadd.f32 %v4111, %v4113
      %4116 = vrot.lane.b32.xlu0 %v4094, 92
      %v4117 = vpop.permute.xlu0 %4116
      %v4119 = vadd.f32 %v4115, %v4117
      %4120 = vrot.lane.b32.xlu0 %v4094, 86
      %v4121 = vpop.permute.xlu0 %4120
      %v4123 = vadd.f32 %v4119, %v4121
      %4124 = vrot.lane.b32.xlu0 %v4094, 80
      %v4125 = vpop.permute.xlu0 %4124
      %v4127 = vadd.f32 %v4123, %v4125
      %4128 = vrot.lane.b32.xlu0 %v4094, 74
      %v4129 = vpop.permute.xlu0 %4128
      %v4131 = vadd.f32 %v4127, %v4129
      %v4132 = vmul.f32 %v4131, 0.1
      %4134 = vrot.lane.b32.xlu0 %v4132, 1
      %v4135 = vpop.permute.xlu0 %4134
      %vm4137 = vcmask 7168
      %v4138 = vsel %vm4137, 0.0, %v4135
      %4139 = vrot.lane.b32.xlu0 %v4132, 127
      %v4140 = vpop.permute.xlu0 %4139
      %vm4142 = vcmask 39936
      %v4143 = vsel %vm4142, %v4140, 0.0
      %4144 = vset.pattern.permute.xlu0 6
      %4145 = vperm.xlu0 %4144, %v3926
      %v4146 = vpop.permute.xlu0 %4145
      %v4148 = vmul.f32 %v4146, %v4138
      %4149 = vset.pattern.permute.xlu0 7
      %4150 = vperm.xlu0 %4149, %v3926
      %v4151 = vpop.permute.xlu0 %4150
      %v4153 = vmul.f32 %v4151, %v4132
      %v4154 = vadd.f32 %v4148, %v4153
      %4155 = vset.pattern.permute.xlu0 8
      %4156 = vperm.xlu0 %4155, %v3926
      %v4157 = vpop.permute.xlu0 %4156
      %v4159 = vmul.f32 %v4157, %v4143
      %v4160 = vadd.f32 %v4154, %v4159
      %v4161 = vsub.f32 0.0, %v4160
      %v4162 = vmul.f32 %v4161, 1.442695
      %v4163 = vpow.pop %v4162
      %v4164 = vadd.f32 %v4163, 1.0
      %v4165 = vrcp.pop %v4164
      %v4166 = vmul.f32 1.0, %v4165
      %v4167 = vmul.f32 %v4160, %v4166
      %4168 = vset.pattern.permute.xlu0 9
      %4169 = vperm.xlu0 %4168, %v3926
      %v4170 = vpop.permute.xlu0 %4169
      %v4172 = vmul.f32 %v4167, %v4170
      %4173 = vset.pattern.permute.xlu0 10
      %4174 = vperm.xlu0 %4173, %v3926
      %v4175 = vpop.permute.xlu0 %4174
      %v4177 = vadd.f32 %v4172, %v4175
      %4178 = vset.pattern.permute.xlu0 11
      %4179 = vperm.xlu0 %4178, %v3926
      %v4180 = vpop.permute.xlu0 %4179
      %vm4182 = vcmask 64512
      %v4184 = vsel %vm4182, %v3927, 0
      %4186 = vmatprep.subr.mxu0 0.0
      %4187 = vmatpush1.msra.mxu0 0.0
      %4188 = vmatprep.subr.mxu0 0.0
      %4189 = vmatpush1.msra.mxu0 0.0
      %4190 = vmatprep.subr.mxu0 0.0
      %4191 = vmatpush1.msra.mxu0 0.0
      %4192 = vmatprep.subr.mxu0 0.0
      %4193 = vmatpush1.msra.mxu0 0.0
      %4194 = vmatprep.subr.mxu0 0.0
      %4195 = vmatpush1.msra.mxu0 0.0
      %4196 = vmatprep.subr.mxu0 0.0
      %4197 = vmatpush1.msra.mxu0 0.0
      %4198 = vmatprep.subr.mxu0 0.0
      %4199 = vmatpush1.msra.mxu0 0.0
      %4200 = vmatprep.subr.mxu0 0.0
      %4201 = vmatpush1.msra.mxu0 0.0
      %4202 = vmatprep.subr.mxu0 0.0
      %4203 = vmatpush1.msra.mxu0 0.0
      %4204 = vmatprep.subr.mxu0 0.0
      %4205 = vmatpush1.msra.mxu0 0.0
      %4206 = vmatprep.subr.mxu0 0.0
      %4207 = vmatpush1.msra.mxu0 0.0
      %4208 = vmatprep.subr.mxu0 0.0
      %4209 = vmatpush1.msra.mxu0 0.0
      %4210 = vmatprep.subr.mxu0 0.0
      %4211 = vmatpush1.msra.mxu0 0.0
      %4212 = vmatprep.subr.mxu0 0.0
      %4213 = vmatpush1.msra.mxu0 0.0
      %4214 = vmatprep.subr.mxu0 0.0
      %4215 = vmatpush1.msra.mxu0 0.0
      %4216 = vmatprep.subr.mxu0 0.0
      %4217 = vmatpush1.msra.mxu0 %v4177
      %4218 = vmatprep.subr.mxu0 0.0
      %4219 = vmatpush2.msra.mxu0 0.0
      %4220 = vmatprep.subr.mxu0 0.0
      %4221 = vmatpush2.msra.mxu0 0.0
      %4222 = vmatprep.subr.mxu0 0.0
      %4223 = vmatpush2.msra.mxu0 0.0
      %4224 = vmatprep.subr.mxu0 0.0
      %4225 = vmatpush2.msra.mxu0 0.0
      %4226 = vmatprep.subr.mxu0 0.0
      %4227 = vmatpush2.msra.mxu0 0.0
      %4228 = vmatprep.subr.mxu0 0.0
      %4229 = vmatpush2.msra.mxu0 0.0
      %4230 = vmatprep.subr.mxu0 0.0
      %4231 = vmatpush2.msra.mxu0 0.0
      %4232 = vmatprep.subr.mxu0 0.0
      %4233 = vmatpush2.msra.mxu0 0.0
      %4234 = vmatprep.subr.mxu0 0.0
      %4235 = vmatpush2.msra.mxu0 0.0
      %4236 = vmatprep.subr.mxu0 0.0
      %4237 = vmatpush2.msra.mxu0 0.0
      %4238 = vmatprep.subr.mxu0 0.0
      %4239 = vmatpush2.msra.mxu0 0.0
      %4240 = vmatprep.subr.mxu0 0.0
      %4241 = vmatpush2.msra.mxu0 0.0
      %4242 = vmatprep.subr.mxu0 0.0
      %4243 = vmatpush2.msra.mxu0 0.0
      %4244 = vmatprep.subr.mxu0 0.0
      %4245 = vmatpush2.msra.mxu0 0.0
      %4246 = vmatprep.subr.mxu0 0.0
      %4247 = vmatpush2.msra.mxu0 0.0
      %4248 = vmatprep.subr.mxu0 0.0
      %4249 = vmatpush2.msra.mxu0 0.0
      %4250 = vmatprep.mubr.f32.mxu0 0.0
      %4251 = vmatmul.mubr.f32.gmra.mxu0 %v4184
      %v4252 = vpop.f32.mrf.mxu0
      %v4253 = vadd.f32 %v4180, %v4252
      %v4254 = vpop.f32.mrf.mxu0
      %4255 = vdwg.mxu0
      %4257 = vrot.lane.b32.xlu0 %v4253, 6
      %v4258 = vpop.permute.xlu0 %4257
      %4260 = vrot.lane.b32.xlu0 %v4253, 12
      %v4261 = vpop.permute.xlu0 %4260
      %4263 = vrot.lane.b32.xlu0 %v4253, 18
      %v4264 = vpop.permute.xlu0 %4263
      %4266 = vrot.lane.b32.xlu0 %v4253, 24
      %v4267 = vpop.permute.xlu0 %4266
      %4269 = vrot.lane.b32.xlu0 %v4253, 30
      %v4270 = vpop.permute.xlu0 %4269
      %4272 = vrot.lane.b32.xlu0 %v4253, 36
      %v4273 = vpop.permute.xlu0 %4272
      %4275 = vrot.lane.b32.xlu0 %v4253, 42
      %v4276 = vpop.permute.xlu0 %4275
      %4278 = vrot.lane.b32.xlu0 %v4253, 48
      %v4279 = vpop.permute.xlu0 %4278
      %4281 = vrot.lane.b32.xlu0 %v4253, 54
      %v4282 = vpop.permute.xlu0 %4281
      %v4284 = vsel %vm3854, %v4253, %v4258
      %v4285 = vsel %vm3857, %v4284, %v4261
      %v4286 = vsel %vm3860, %v4285, %v4264
      %v4287 = vsel %vm3863, %v4286, %v4267
      %v4288 = vsel %vm3866, %v4287, %v4270
      %v4289 = vsel %vm3869, %v4288, %v4273
      %v4290 = vsel %vm3872, %v4289, %v4276
      %v4291 = vsel %vm3875, %v4290, %v4279
      %v4292 = vsel %vm3438, %v4291, %v4282
      %v4293 = vadd.f32 %v4094, %v4292
      %v4294 = vmax.f32 %v4293, 0.0
      %v4295 = vld [vmem:[%s7] sm:$0xff]
      %v4296 = vld [vmem:[%s7 + $0x8] sm:$0xf]
      %v4297 = vld [vmem:[%s8] sm:$0xff]
      %v4298 = vld [vmem:[%s8 + $0x8] sm:$0xf]
      %v4299 = vld [vmem:[%s6] sm:$0xff]
      %v4300 = vld [vmem:[%s6 + $0x8] sm:$0xf]
      %4302 = vset.pattern.permute.xlu0 12
      %4303 = vperm.xlu0 %4302, %v4295
      %v4304 = vpop.permute.xlu0 %4303
      %4307 = vset.pattern.permute.xlu0 12
      %4308 = vperm.xlu0 %4307, %v4296
      %v4309 = vpop.permute.xlu0 %4308
      %v4312 = vsel %vm4182, %v4299, 0
      %v4315 = vsel %vm4182, %v4300, 0
      %4317 = vmatprep.subr.mxu0 0.0
      %4318 = vmatpush1.msra.mxu0 0.0
      %4319 = vmatprep.subr.mxu0 0.0
      %4320 = vmatpush1.msra.mxu0 0.0
      %4321 = vmatprep.subr.mxu0 0.0
      %4322 = vmatpush1.msra.mxu0 0.0
      %4323 = vmatprep.subr.mxu0 0.0
      %4324 = vmatpush1.msra.mxu0 0.0
      %4325 = vmatprep.subr.mxu0 0.0
      %4326 = vmatpush1.msra.mxu0 0.0
      %4327 = vmatprep.subr.mxu0 0.0
      %4328 = vmatpush1.msra.mxu0 0.0
      %4329 = vmatprep.subr.mxu0 0.0
      %4330 = vmatpush1.msra.mxu0 0.0
      %4331 = vmatprep.subr.mxu0 0.0
      %4332 = vmatpush1.msra.mxu0 0.0
      %4333 = vmatprep.subr.mxu0 0.0
      %4334 = vmatpush1.msra.mxu0 0.0
      %4335 = vmatprep.subr.mxu0 0.0
      %4336 = vmatpush1.msra.mxu0 0.0
      %4337 = vmatprep.subr.mxu0 0.0
      %4338 = vmatpush1.msra.mxu0 0.0
      %4339 = vmatprep.subr.mxu0 0.0
      %4340 = vmatpush1.msra.mxu0 0.0
      %4341 = vmatprep.subr.mxu0 0.0
      %4342 = vmatpush1.msra.mxu0 0.0
      %4343 = vmatprep.subr.mxu0 0.0
      %4344 = vmatpush1.msra.mxu0 0.0
      %4345 = vmatprep.subr.mxu0 0.0
      %4346 = vmatpush1.msra.mxu0 0.0
      %4347 = vmatprep.subr.mxu0 0.0
      %4348 = vmatpush1.msra.mxu0 %v4294
      %4349 = vmatprep.subr.mxu0 0.0
      %4350 = vmatpush2.msra.mxu0 0.0
      %4351 = vmatprep.subr.mxu0 0.0
      %4352 = vmatpush2.msra.mxu0 0.0
      %4353 = vmatprep.subr.mxu0 0.0
      %4354 = vmatpush2.msra.mxu0 0.0
      %4355 = vmatprep.subr.mxu0 0.0
      %4356 = vmatpush2.msra.mxu0 0.0
      %4357 = vmatprep.subr.mxu0 0.0
      %4358 = vmatpush2.msra.mxu0 0.0
      %4359 = vmatprep.subr.mxu0 0.0
      %4360 = vmatpush2.msra.mxu0 0.0
      %4361 = vmatprep.subr.mxu0 0.0
      %4362 = vmatpush2.msra.mxu0 0.0
      %4363 = vmatprep.subr.mxu0 0.0
      %4364 = vmatpush2.msra.mxu0 0.0
      %4365 = vmatprep.subr.mxu0 0.0
      %4366 = vmatpush2.msra.mxu0 0.0
      %4367 = vmatprep.subr.mxu0 0.0
      %4368 = vmatpush2.msra.mxu0 0.0
      %4369 = vmatprep.subr.mxu0 0.0
      %4370 = vmatpush2.msra.mxu0 0.0
      %4371 = vmatprep.subr.mxu0 0.0
      %4372 = vmatpush2.msra.mxu0 0.0
      %4373 = vmatprep.subr.mxu0 0.0
      %4374 = vmatpush2.msra.mxu0 0.0
      %4375 = vmatprep.subr.mxu0 0.0
      %4376 = vmatpush2.msra.mxu0 0.0
      %4377 = vmatprep.subr.mxu0 0.0
      %4378 = vmatpush2.msra.mxu0 0.0
      %4379 = vmatprep.subr.mxu0 0.0
      %4380 = vmatpush2.msra.mxu0 0.0
      %4381 = vmatprep.mubr.f32.mxu0 0.0
      %4382 = vmatmul.mubr.f32.gmra.mxu0 %v4312
      %v4383 = vpop.f32.mrf.mxu0
      %v4384 = vadd.f32 %v4304, %v4383
      %v4385 = vpop.f32.mrf.mxu0
      %4386 = vmatprep.mubr.f32.mxu0 0.0
      %4387 = vmatmul.mubr.f32.gmra.mxu0 %v4315
      %v4388 = vpop.f32.mrf.mxu0
      %v4389 = vadd.f32 %v4309, %v4388
      %v4390 = vpop.f32.mrf.mxu0
      %4391 = vdwg.mxu0
      %v4392 = vmax.f32 %v4384, 0.0
      %v4393 = vmax.f32 %v4389, 0.0
      %4396 = vrot.lane.b32.xlu0 %v4392, 6
      %v4397 = vpop.permute.xlu0 %4396
      %4398 = vrot.lane.b32.xlu0 %v4393, 6
      %v4399 = vpop.permute.xlu0 %4398
      %v4402 = vsel %vm3854, 0.0, %v4397
      %v4403 = vsel %vm3854, 0.0, %v4399
      %4404 = vrot.lane.b32.xlu0 %v4392, 122
      %v4405 = vpop.permute.xlu0 %4404
      %4406 = vrot.lane.b32.xlu0 %v4393, 122
      %v4407 = vpop.permute.xlu0 %4406
      %v4410 = vsel %vm3438, %v4405, 0.0
      %v4411 = vsel %vm3438, %v4407, 0.0
      %4412 = vset.pattern.permute.xlu0 0
      %4413 = vperm.xlu0 %4412, %v4295
      %v4414 = vpop.permute.xlu0 %4413
      %4416 = vset.pattern.permute.xlu0 0
      %4417 = vperm.xlu0 %4416, %v4296
      %v4418 = vpop.permute.xlu0 %4417
      %v4420 = vmul.f32 %v4414, %v4402
      %v4421 = vmul.f32 %v4418, %v4403
      %4422 = vset.pattern.permute.xlu0 1
      %4423 = vperm.xlu0 %4422, %v4295
      %v4424 = vpop.permute.xlu0 %4423
      %4426 = vset.pattern.permute.xlu0 1
      %4427 = vperm.xlu0 %4426, %v4296
      %v4428 = vpop.permute.xlu0 %4427
      %v4430 = vmul.f32 %v4424, %v4392
      %v4431 = vmul.f32 %v4428, %v4393
      %v4432 = vadd.f32 %v4420, %v4430
      %v4433 = vadd.f32 %v4421, %v4431
      %4434 = vset.pattern.permute.xlu0 2
      %4435 = vperm.xlu0 %4434, %v4295
      %v4436 = vpop.permute.xlu0 %4435
      %4438 = vset.pattern.permute.xlu0 2
      %4439 = vperm.xlu0 %4438, %v4296
      %v4440 = vpop.permute.xlu0 %4439
      %v4442 = vmul.f32 %v4436, %v4410
      %v4443 = vmul.f32 %v4440, %v4411
      %v4444 = vadd.f32 %v4432, %v4442
      %v4445 = vadd.f32 %v4433, %v4443
      %4446 = vset.pattern.permute.xlu0 3
      %4447 = vperm.xlu0 %4446, %v4295
      %v4448 = vpop.permute.xlu0 %4447
      %4450 = vset.pattern.permute.xlu0 3
      %4451 = vperm.xlu0 %4450, %v4296
      %v4452 = vpop.permute.xlu0 %4451
      %v4454 = vadd.f32 %v4444, %v4448
      %v4455 = vadd.f32 %v4445, %v4452
      %v4456 = vsub.f32 0.0, %v4454
      %v4457 = vsub.f32 0.0, %v4455
      %v4458 = vmul.f32 %v4456, 1.442695
      %v4459 = vpow.pop %v4458
      %v4460 = vmul.f32 %v4457, 1.442695
      %v4461 = vpow.pop %v4460
      %v4462 = vadd.f32 %v4459, 1.0
      %v4463 = vadd.f32 %v4461, 1.0
      %v4464 = vrcp.pop %v4462
      %v4465 = vmul.f32 1.0, %v4464
      %v4466 = vrcp.pop %v4463
      %v4467 = vmul.f32 1.0, %v4466
      %v4468 = vmul.f32 %v4454, %v4465
      %v4469 = vmul.f32 %v4455, %v4467
      %4470 = vset.pattern.permute.xlu0 4
      %4471 = vperm.xlu0 %4470, %v4295
      %v4472 = vpop.permute.xlu0 %4471
      %4474 = vset.pattern.permute.xlu0 4
      %4475 = vperm.xlu0 %4474, %v4296
      %v4476 = vpop.permute.xlu0 %4475
      %v4478 = vmul.f32 %v4468, %v4472
      %v4479 = vmul.f32 %v4469, %v4476
      %4480 = vset.pattern.permute.xlu0 5
      %4481 = vperm.xlu0 %4480, %v4295
      %v4482 = vpop.permute.xlu0 %4481
      %4484 = vset.pattern.permute.xlu0 5
      %4485 = vperm.xlu0 %4484, %v4296
      %v4486 = vpop.permute.xlu0 %4485
      %v4488 = vadd.f32 %v4478, %v4482
      %v4489 = vadd.f32 %v4479, %v4486
      %4492 = vrot.lane.b32.xlu0 %v4488, 122
      %v4493 = vpop.permute.xlu0 %4492
      %4494 = vrot.lane.b32.xlu0 %v4489, 122
      %v4495 = vpop.permute.xlu0 %4494
      %v4498 = vadd.f32 %v4488, %v4493
      %v4499 = vadd.f32 %v4489, %v4495
      %4500 = vrot.lane.b32.xlu0 %v4488, 116
      %v4501 = vpop.permute.xlu0 %4500
      %4502 = vrot.lane.b32.xlu0 %v4489, 116
      %v4503 = vpop.permute.xlu0 %4502
      %v4506 = vadd.f32 %v4498, %v4501
      %v4507 = vadd.f32 %v4499, %v4503
      %4508 = vrot.lane.b32.xlu0 %v4488, 110
      %v4509 = vpop.permute.xlu0 %4508
      %4510 = vrot.lane.b32.xlu0 %v4489, 110
      %v4511 = vpop.permute.xlu0 %4510
      %v4514 = vadd.f32 %v4506, %v4509
      %v4515 = vadd.f32 %v4507, %v4511
      %4516 = vrot.lane.b32.xlu0 %v4488, 104
      %v4517 = vpop.permute.xlu0 %4516
      %4518 = vrot.lane.b32.xlu0 %v4489, 104
      %v4519 = vpop.permute.xlu0 %4518
      %v4522 = vadd.f32 %v4514, %v4517
      %v4523 = vadd.f32 %v4515, %v4519
      %4524 = vrot.lane.b32.xlu0 %v4488, 98
      %v4525 = vpop.permute.xlu0 %4524
      %4526 = vrot.lane.b32.xlu0 %v4489, 98
      %v4527 = vpop.permute.xlu0 %4526
      %v4530 = vadd.f32 %v4522, %v4525
      %v4531 = vadd.f32 %v4523, %v4527
      %4532 = vrot.lane.b32.xlu0 %v4488, 92
      %v4533 = vpop.permute.xlu0 %4532
      %4534 = vrot.lane.b32.xlu0 %v4489, 92
      %v4535 = vpop.permute.xlu0 %4534
      %v4538 = vadd.f32 %v4530, %v4533
      %v4539 = vadd.f32 %v4531, %v4535
      %4540 = vrot.lane.b32.xlu0 %v4488, 86
      %v4541 = vpop.permute.xlu0 %4540
      %4542 = vrot.lane.b32.xlu0 %v4489, 86
      %v4543 = vpop.permute.xlu0 %4542
      %v4546 = vadd.f32 %v4538, %v4541
      %v4547 = vadd.f32 %v4539, %v4543
      %4548 = vrot.lane.b32.xlu0 %v4488, 80
      %v4549 = vpop.permute.xlu0 %4548
      %4550 = vrot.lane.b32.xlu0 %v4489, 80
      %v4551 = vpop.permute.xlu0 %4550
      %v4554 = vadd.f32 %v4546, %v4549
      %v4555 = vadd.f32 %v4547, %v4551
      %4556 = vrot.lane.b32.xlu0 %v4488, 74
      %v4557 = vpop.permute.xlu0 %4556
      %4558 = vrot.lane.b32.xlu0 %v4489, 74
      %v4559 = vpop.permute.xlu0 %4558
      %v4562 = vadd.f32 %v4554, %v4557
      %v4563 = vadd.f32 %v4555, %v4559
      %v4564 = vmul.f32 %v4562, 0.1
      %v4565 = vmul.f32 %v4563, 0.1
      %4568 = vrot.lane.b32.xlu0 %v4564, 1
      %v4569 = vpop.permute.xlu0 %4568
      %4570 = vrot.lane.b32.xlu0 %v4565, 1
      %v4571 = vpop.permute.xlu0 %4570
      %v4574 = vsel %vm4137, 0.0, %v4569
      %v4575 = vsel %vm4137, 0.0, %v4571
      %4576 = vrot.lane.b32.xlu0 %v4564, 127
      %v4577 = vpop.permute.xlu0 %4576
      %4578 = vrot.lane.b32.xlu0 %v4565, 127
      %v4579 = vpop.permute.xlu0 %4578
      %v4582 = vsel %vm4142, %v4577, 0.0
      %v4583 = vsel %vm4142, %v4579, 0.0
      %4584 = vset.pattern.permute.xlu0 6
      %4585 = vperm.xlu0 %4584, %v4295
      %v4586 = vpop.permute.xlu0 %4585
      %4588 = vset.pattern.permute.xlu0 6
      %4589 = vperm.xlu0 %4588, %v4296
      %v4590 = vpop.permute.xlu0 %4589
      %v4592 = vmul.f32 %v4586, %v4574
      %v4593 = vmul.f32 %v4590, %v4575
      %4594 = vset.pattern.permute.xlu0 7
      %4595 = vperm.xlu0 %4594, %v4295
      %v4596 = vpop.permute.xlu0 %4595
      %4598 = vset.pattern.permute.xlu0 7
      %4599 = vperm.xlu0 %4598, %v4296
      %v4600 = vpop.permute.xlu0 %4599
      %v4602 = vmul.f32 %v4596, %v4564
      %v4603 = vmul.f32 %v4600, %v4565
      %v4604 = vadd.f32 %v4592, %v4602
      %v4605 = vadd.f32 %v4593, %v4603
      %4606 = vset.pattern.permute.xlu0 8
      %4607 = vperm.xlu0 %4606, %v4295
      %v4608 = vpop.permute.xlu0 %4607
      %4610 = vset.pattern.permute.xlu0 8
      %4611 = vperm.xlu0 %4610, %v4296
      %v4612 = vpop.permute.xlu0 %4611
      %v4614 = vmul.f32 %v4608, %v4582
      %v4615 = vmul.f32 %v4612, %v4583
      %v4616 = vadd.f32 %v4604, %v4614
      %v4617 = vadd.f32 %v4605, %v4615
      %v4618 = vsub.f32 0.0, %v4616
      %v4619 = vsub.f32 0.0, %v4617
      %v4620 = vmul.f32 %v4618, 1.442695
      %v4621 = vpow.pop %v4620
      %v4622 = vmul.f32 %v4619, 1.442695
      %v4623 = vpow.pop %v4622
      %v4624 = vadd.f32 %v4621, 1.0
      %v4625 = vadd.f32 %v4623, 1.0
      %v4626 = vrcp.pop %v4624
      %v4627 = vmul.f32 1.0, %v4626
      %v4628 = vrcp.pop %v4625
      %v4629 = vmul.f32 1.0, %v4628
      %v4630 = vmul.f32 %v4616, %v4627
      %v4631 = vmul.f32 %v4617, %v4629
      %4632 = vset.pattern.permute.xlu0 9
      %4633 = vperm.xlu0 %4632, %v4295
      %v4634 = vpop.permute.xlu0 %4633
      %4636 = vset.pattern.permute.xlu0 9
      %4637 = vperm.xlu0 %4636, %v4296
      %v4638 = vpop.permute.xlu0 %4637
      %v4640 = vmul.f32 %v4630, %v4634
      %v4641 = vmul.f32 %v4631, %v4638
      %4642 = vset.pattern.permute.xlu0 10
      %4643 = vperm.xlu0 %4642, %v4295
      %v4644 = vpop.permute.xlu0 %4643
      %4646 = vset.pattern.permute.xlu0 10
      %4647 = vperm.xlu0 %4646, %v4296
      %v4648 = vpop.permute.xlu0 %4647
      %v4650 = vadd.f32 %v4640, %v4644
      %v4651 = vadd.f32 %v4641, %v4648
      %4652 = vset.pattern.permute.xlu0 11
      %4653 = vperm.xlu0 %4652, %v4295
      %v4654 = vpop.permute.xlu0 %4653
      %4656 = vset.pattern.permute.xlu0 11
      %4657 = vperm.xlu0 %4656, %v4296
      %v4658 = vpop.permute.xlu0 %4657
      %v4661 = vsel %vm3857, %v4297, 0
      %v4664 = vsel %vm3857, %v4298, 0
      %vm4666 = vcmask 1043456
      %v4668 = vsel %vm4666, %v4651, 0
      %4670 = vmatprep.subr.mxu0 0.0
      %4671 = vmatpush1.msra.mxu0 0.0
      %4672 = vmatprep.subr.mxu0 0.0
      %4673 = vmatpush1.msra.mxu0 0.0
      %4674 = vmatprep.subr.mxu0 0.0
      %4675 = vmatpush1.msra.mxu0 0.0
      %4676 = vmatprep.subr.mxu0 0.0
      %4677 = vmatpush1.msra.mxu0 0.0
      %4678 = vmatprep.subr.mxu0 0.0
      %4679 = vmatpush1.msra.mxu0 0.0
      %4680 = vmatprep.subr.mxu0 0.0
      %4681 = vmatpush1.msra.mxu0 0.0
      %4682 = vmatprep.subr.mxu0 0.0
      %4683 = vmatpush1.msra.mxu0 0.0
      %4684 = vmatprep.subr.mxu0 0.0
      %4685 = vmatpush1.msra.mxu0 0.0
      %4686 = vmatprep.subr.mxu0 0.0
      %4687 = vmatpush1.msra.mxu0 0.0
      %4688 = vmatprep.subr.mxu0 0.0
      %4689 = vmatpush1.msra.mxu0 0.0
      %4690 = vmatprep.subr.mxu0 0.0
      %4691 = vmatpush1.msra.mxu0 0.0
      %4692 = vmatprep.subr.mxu0 0.0
      %4693 = vmatpush1.msra.mxu0 0.0
      %4694 = vmatprep.subr.mxu0 0.0
      %4695 = vmatpush1.msra.mxu0 0.0
      %4696 = vmatprep.subr.mxu0 0.0
      %4697 = vmatpush1.msra.mxu0 0.0
      %4698 = vmatprep.subr.mxu0 0.0
      %4699 = vmatpush1.msra.mxu0 %v4668
      %4700 = vmatprep.subr.mxu0 0.0
      %4701 = vmatpush1.msra.mxu0 %v4650
      %4702 = vmatprep.subr.mxu0 0.0
      %4703 = vmatpush2.msra.mxu0 0.0
      %4704 = vmatprep.subr.mxu0 0.0
      %4705 = vmatpush2.msra.mxu0 0.0
      %4706 = vmatprep.subr.mxu0 0.0
      %4707 = vmatpush2.msra.mxu0 0.0
      %4708 = vmatprep.subr.mxu0 0.0
      %4709 = vmatpush2.msra.mxu0 0.0
      %4710 = vmatprep.subr.mxu0 0.0
      %4711 = vmatpush2.msra.mxu0 0.0
      %4712 = vmatprep.subr.mxu0 0.0
      %4713 = vmatpush2.msra.mxu0 0.0
      %4714 = vmatprep.subr.mxu0 0.0
      %4715 = vmatpush2.msra.mxu0 0.0
      %4716 = vmatprep.subr.mxu0 0.0
      %4717 = vmatpush2.msra.mxu0 0.0
      %4718 = vmatprep.subr.mxu0 0.0
      %4719 = vmatpush2.msra.mxu0 0.0
      %4720 = vmatprep.subr.mxu0 0.0
      %4721 = vmatpush2.msra.mxu0 0.0
      %4722 = vmatprep.subr.mxu0 0.0
      %4723 = vmatpush2.msra.mxu0 0.0
      %4724 = vmatprep.subr.mxu0 0.0
      %4725 = vmatpush2.msra.mxu0 0.0
      %4726 = vmatprep.subr.mxu0 0.0
      %4727 = vmatpush2.msra.mxu0 0.0
      %4728 = vmatprep.subr.mxu0 0.0
      %4729 = vmatpush2.msra.mxu0 0.0
      %4730 = vmatprep.subr.mxu0 0.0
      %4731 = vmatpush2.msra.mxu0 0.0
      %4732 = vmatprep.subr.mxu0 0.0
      %4733 = vmatpush2.msra.mxu0 0.0
      %4734 = vmatprep.mubr.f32.mxu0 0.0
      %4735 = vmatmul.mubr.f32.gmra.mxu0 %v4661
      %v4736 = vpop.f32.mrf.mxu0
      %v4737 = vadd.f32 %v4654, %v4736
      %v4738 = vpop.f32.mrf.mxu0
      %4739 = vmatprep.mubr.f32.mxu0 0.0
      %4740 = vmatmul.mubr.f32.gmra.mxu0 %v4664
      %v4741 = vpop.f32.mrf.mxu0
      %v4742 = vadd.f32 %v4658, %v4741
      %v4743 = vpop.f32.mrf.mxu0
      %4744 = vdwg.mxu0
      %4747 = vrot.lane.b32.xlu0 %v4737, 6
      %v4748 = vpop.permute.xlu0 %4747
      %4749 = vrot.lane.b32.xlu0 %v4742, 6
      %v4750 = vpop.permute.xlu0 %4749
      %4753 = vrot.lane.b32.xlu0 %v4737, 12
      %v4754 = vpop.permute.xlu0 %4753
      %4755 = vrot.lane.b32.xlu0 %v4742, 12
      %v4756 = vpop.permute.xlu0 %4755
      %4759 = vrot.lane.b32.xlu0 %v4737, 18
      %v4760 = vpop.permute.xlu0 %4759
      %4761 = vrot.lane.b32.xlu0 %v4742, 18
      %v4762 = vpop.permute.xlu0 %4761
      %4765 = vrot.lane.b32.xlu0 %v4737, 24
      %v4766 = vpop.permute.xlu0 %4765
      %4767 = vrot.lane.b32.xlu0 %v4742, 24
      %v4768 = vpop.permute.xlu0 %4767
      %4771 = vrot.lane.b32.xlu0 %v4737, 30
      %v4772 = vpop.permute.xlu0 %4771
      %4773 = vrot.lane.b32.xlu0 %v4742, 30
      %v4774 = vpop.permute.xlu0 %4773
      %4777 = vrot.lane.b32.xlu0 %v4737, 36
      %v4778 = vpop.permute.xlu0 %4777
      %4779 = vrot.lane.b32.xlu0 %v4742, 36
      %v4780 = vpop.permute.xlu0 %4779
      %4783 = vrot.lane.b32.xlu0 %v4737, 42
      %v4784 = vpop.permute.xlu0 %4783
      %4785 = vrot.lane.b32.xlu0 %v4742, 42
      %v4786 = vpop.permute.xlu0 %4785
      %4789 = vrot.lane.b32.xlu0 %v4737, 48
      %v4790 = vpop.permute.xlu0 %4789
      %4791 = vrot.lane.b32.xlu0 %v4742, 48
      %v4792 = vpop.permute.xlu0 %4791
      %4795 = vrot.lane.b32.xlu0 %v4737, 54
      %v4796 = vpop.permute.xlu0 %4795
      %4797 = vrot.lane.b32.xlu0 %v4742, 54
      %v4798 = vpop.permute.xlu0 %4797
      %v4801 = vsel %vm3854, %v4737, %v4748
      %v4802 = vsel %vm3854, %v4742, %v4750
      %v4803 = vsel %vm3857, %v4801, %v4754
      %v4804 = vsel %vm3857, %v4802, %v4756
      %v4805 = vsel %vm3860, %v4803, %v4760
      %v4806 = vsel %vm3860, %v4804, %v4762
      %v4807 = vsel %vm3863, %v4805, %v4766
      %v4808 = vsel %vm3863, %v4806, %v4768
      %v4809 = vsel %vm3866, %v4807, %v4772
      %v4810 = vsel %vm3866, %v4808, %v4774
      %v4811 = vsel %vm3869, %v4809, %v4778
      %v4812 = vsel %vm3869, %v4810, %v4780
      %v4813 = vsel %vm3872, %v4811, %v4784
      %v4814 = vsel %vm3872, %v4812, %v4786
      %v4815 = vsel %vm3875, %v4813, %v4790
      %v4816 = vsel %vm3875, %v4814, %v4792
      %v4817 = vsel %vm3438, %v4815, %v4796
      %v4818 = vsel %vm3438, %v4816, %v4798
      %v4819 = vadd.f32 %v4488, %v4817
      %v4820 = vadd.f32 %v4489, %v4818
      %v4821 = vmax.f32 %v4819, 0.0
      %v4822 = vmax.f32 %v4820, 0.0
      %v4823 = vld [vmem:[%s9] sm:$0xff]
      %v4824 = vld [vmem:[%s9 + $0x8] sm:$0xf]
      %v4825 = vld [vmem:[%s10] sm:$0xff]
      %v4826 = vld [vmem:[%s10 + $0x8] sm:$0xf]
      %4829 = vrot.lane.b32.xlu0 %v4821, 6
      %v4830 = vpop.permute.xlu0 %4829
      %4831 = vrot.lane.b32.xlu0 %v4822, 6
      %v4832 = vpop.permute.xlu0 %4831
      %v4835 = vsel %vm3854, 0.0, %v4830
      %v4836 = vsel %vm3854, 0.0, %v4832
      %4837 = vrot.lane.b32.xlu0 %v4821, 122
      %v4838 = vpop.permute.xlu0 %4837
      %4839 = vrot.lane.b32.xlu0 %v4822, 122
      %v4840 = vpop.permute.xlu0 %4839
      %v4843 = vsel %vm3438, %v4838, 0.0
      %v4844 = vsel %vm3438, %v4840, 0.0
      %4846 = vset.pattern.permute.xlu0 0
      %4847 = vperm.xlu0 %4846, %v4823
      %v4848 = vpop.permute.xlu0 %4847
      %4851 = vset.pattern.permute.xlu0 0
      %4852 = vperm.xlu0 %4851, %v4824
      %v4853 = vpop.permute.xlu0 %4852
      %v4855 = vmul.f32 %v4848, %v4835
      %v4856 = vmul.f32 %v4853, %v4836
      %4857 = vset.pattern.permute.xlu0 1
      %4858 = vperm.xlu0 %4857, %v4823
      %v4859 = vpop.permute.xlu0 %4858
      %4861 = vset.pattern.permute.xlu0 1
      %4862 = vperm.xlu0 %4861, %v4824
      %v4863 = vpop.permute.xlu0 %4862
      %v4865 = vmul.f32 %v4859, %v4821
      %v4866 = vmul.f32 %v4863, %v4822
      %v4867 = vadd.f32 %v4855, %v4865
      %v4868 = vadd.f32 %v4856, %v4866
      %4869 = vset.pattern.permute.xlu0 2
      %4870 = vperm.xlu0 %4869, %v4823
      %v4871 = vpop.permute.xlu0 %4870
      %4873 = vset.pattern.permute.xlu0 2
      %4874 = vperm.xlu0 %4873, %v4824
      %v4875 = vpop.permute.xlu0 %4874
      %v4877 = vmul.f32 %v4871, %v4843
      %v4878 = vmul.f32 %v4875, %v4844
      %v4879 = vadd.f32 %v4867, %v4877
      %v4880 = vadd.f32 %v4868, %v4878
      %4881 = vset.pattern.permute.xlu0 3
      %4882 = vperm.xlu0 %4881, %v4823
      %v4883 = vpop.permute.xlu0 %4882
      %4885 = vset.pattern.permute.xlu0 3
      %4886 = vperm.xlu0 %4885, %v4824
      %v4887 = vpop.permute.xlu0 %4886
      %v4889 = vadd.f32 %v4879, %v4883
      %v4890 = vadd.f32 %v4880, %v4887
      %v4891 = vsub.f32 0.0, %v4889
      %v4892 = vsub.f32 0.0, %v4890
      %v4893 = vmul.f32 %v4891, 1.442695
      %v4894 = vpow.pop %v4893
      %v4895 = vmul.f32 %v4892, 1.442695
      %v4896 = vpow.pop %v4895
      %v4897 = vadd.f32 %v4894, 1.0
      %v4898 = vadd.f32 %v4896, 1.0
      %v4899 = vrcp.pop %v4897
      %v4900 = vmul.f32 1.0, %v4899
      %v4901 = vrcp.pop %v4898
      %v4902 = vmul.f32 1.0, %v4901
      %v4903 = vmul.f32 %v4889, %v4900
      %v4904 = vmul.f32 %v4890, %v4902
      %4905 = vset.pattern.permute.xlu0 4
      %4906 = vperm.xlu0 %4905, %v4823
      %v4907 = vpop.permute.xlu0 %4906
      %4909 = vset.pattern.permute.xlu0 4
      %4910 = vperm.xlu0 %4909, %v4824
      %v4911 = vpop.permute.xlu0 %4910
      %v4913 = vmul.f32 %v4903, %v4907
      %v4914 = vmul.f32 %v4904, %v4911
      %4915 = vset.pattern.permute.xlu0 5
      %4916 = vperm.xlu0 %4915, %v4823
      %v4917 = vpop.permute.xlu0 %4916
      %4919 = vset.pattern.permute.xlu0 5
      %4920 = vperm.xlu0 %4919, %v4824
      %v4921 = vpop.permute.xlu0 %4920
      %v4923 = vadd.f32 %v4913, %v4917
      %v4924 = vadd.f32 %v4914, %v4921
      %4927 = vrot.lane.b32.xlu0 %v4923, 122
      %v4928 = vpop.permute.xlu0 %4927
      %4929 = vrot.lane.b32.xlu0 %v4924, 122
      %v4930 = vpop.permute.xlu0 %4929
      %v4933 = vadd.f32 %v4923, %v4928
      %v4934 = vadd.f32 %v4924, %v4930
      %4935 = vrot.lane.b32.xlu0 %v4923, 116
      %v4936 = vpop.permute.xlu0 %4935
      %4937 = vrot.lane.b32.xlu0 %v4924, 116
      %v4938 = vpop.permute.xlu0 %4937
      %v4941 = vadd.f32 %v4933, %v4936
      %v4942 = vadd.f32 %v4934, %v4938
      %4943 = vrot.lane.b32.xlu0 %v4923, 110
      %v4944 = vpop.permute.xlu0 %4943
      %4945 = vrot.lane.b32.xlu0 %v4924, 110
      %v4946 = vpop.permute.xlu0 %4945
      %v4949 = vadd.f32 %v4941, %v4944
      %v4950 = vadd.f32 %v4942, %v4946
      %4951 = vrot.lane.b32.xlu0 %v4923, 104
      %v4952 = vpop.permute.xlu0 %4951
      %4953 = vrot.lane.b32.xlu0 %v4924, 104
      %v4954 = vpop.permute.xlu0 %4953
      %v4957 = vadd.f32 %v4949, %v4952
      %v4958 = vadd.f32 %v4950, %v4954
      %4959 = vrot.lane.b32.xlu0 %v4923, 98
      %v4960 = vpop.permute.xlu0 %4959
      %4961 = vrot.lane.b32.xlu0 %v4924, 98
      %v4962 = vpop.permute.xlu0 %4961
      %v4965 = vadd.f32 %v4957, %v4960
      %v4966 = vadd.f32 %v4958, %v4962
      %4967 = vrot.lane.b32.xlu0 %v4923, 92
      %v4968 = vpop.permute.xlu0 %4967
      %4969 = vrot.lane.b32.xlu0 %v4924, 92
      %v4970 = vpop.permute.xlu0 %4969
      %v4973 = vadd.f32 %v4965, %v4968
      %v4974 = vadd.f32 %v4966, %v4970
      %4975 = vrot.lane.b32.xlu0 %v4923, 86
      %v4976 = vpop.permute.xlu0 %4975
      %4977 = vrot.lane.b32.xlu0 %v4924, 86
      %v4978 = vpop.permute.xlu0 %4977
      %v4981 = vadd.f32 %v4973, %v4976
      %v4982 = vadd.f32 %v4974, %v4978
      %4983 = vrot.lane.b32.xlu0 %v4923, 80
      %v4984 = vpop.permute.xlu0 %4983
      %4985 = vrot.lane.b32.xlu0 %v4924, 80
      %v4986 = vpop.permute.xlu0 %4985
      %v4989 = vadd.f32 %v4981, %v4984
      %v4990 = vadd.f32 %v4982, %v4986
      %4991 = vrot.lane.b32.xlu0 %v4923, 74
      %v4992 = vpop.permute.xlu0 %4991
      %4993 = vrot.lane.b32.xlu0 %v4924, 74
      %v4994 = vpop.permute.xlu0 %4993
      %v4997 = vadd.f32 %v4989, %v4992
      %v4998 = vadd.f32 %v4990, %v4994
      %v4999 = vmul.f32 %v4997, 0.1
      %v5000 = vmul.f32 %v4998, 0.1
      %5003 = vrot.lane.b32.xlu0 %v4999, 1
      %v5004 = vpop.permute.xlu0 %5003
      %5005 = vrot.lane.b32.xlu0 %v5000, 1
      %v5006 = vpop.permute.xlu0 %5005
      %v5009 = vsel %vm4137, 0.0, %v5004
      %v5010 = vsel %vm4137, 0.0, %v5006
      %5011 = vrot.lane.b32.xlu0 %v4999, 127
      %v5012 = vpop.permute.xlu0 %5011
      %5013 = vrot.lane.b32.xlu0 %v5000, 127
      %v5014 = vpop.permute.xlu0 %5013
      %v5017 = vsel %vm4142, %v5012, 0.0
      %v5018 = vsel %vm4142, %v5014, 0.0
      %5019 = vset.pattern.permute.xlu0 6
      %5020 = vperm.xlu0 %5019, %v4823
      %v5021 = vpop.permute.xlu0 %5020
      %5023 = vset.pattern.permute.xlu0 6
      %5024 = vperm.xlu0 %5023, %v4824
      %v5025 = vpop.permute.xlu0 %5024
      %v5027 = vmul.f32 %v5021, %v5009
      %v5028 = vmul.f32 %v5025, %v5010
      %5029 = vset.pattern.permute.xlu0 7
      %5030 = vperm.xlu0 %5029, %v4823
      %v5031 = vpop.permute.xlu0 %5030
      %5033 = vset.pattern.permute.xlu0 7
      %5034 = vperm.xlu0 %5033, %v4824
      %v5035 = vpop.permute.xlu0 %5034
      %v5037 = vmul.f32 %v5031, %v4999
      %v5038 = vmul.f32 %v5035, %v5000
      %v5039 = vadd.f32 %v5027, %v5037
      %v5040 = vadd.f32 %v5028, %v5038
      %5041 = vset.pattern.permute.xlu0 8
      %5042 = vperm.xlu0 %5041, %v4823
      %v5043 = vpop.permute.xlu0 %5042
      %5045 = vset.pattern.permute.xlu0 8
      %5046 = vperm.xlu0 %5045, %v4824
      %v5047 = vpop.permute.xlu0 %5046
      %v5049 = vmul.f32 %v5043, %v5017
      %v5050 = vmul.f32 %v5047, %v5018
      %v5051 = vadd.f32 %v5039, %v5049
      %v5052 = vadd.f32 %v5040, %v5050
      %v5053 = vsub.f32 0.0, %v5051
      %v5054 = vsub.f32 0.0, %v5052
      %v5055 = vmul.f32 %v5053, 1.442695
      %v5056 = vpow.pop %v5055
      %v5057 = vmul.f32 %v5054, 1.442695
      %v5058 = vpow.pop %v5057
      %v5059 = vadd.f32 %v5056, 1.0
      %v5060 = vadd.f32 %v5058, 1.0
      %v5061 = vrcp.pop %v5059
      %v5062 = vmul.f32 1.0, %v5061
      %v5063 = vrcp.pop %v5060
      %v5064 = vmul.f32 1.0, %v5063
      %v5065 = vmul.f32 %v5051, %v5062
      %v5066 = vmul.f32 %v5052, %v5064
      %5067 = vset.pattern.permute.xlu0 9
      %5068 = vperm.xlu0 %5067, %v4823
      %v5069 = vpop.permute.xlu0 %5068
      %5071 = vset.pattern.permute.xlu0 9
      %5072 = vperm.xlu0 %5071, %v4824
      %v5073 = vpop.permute.xlu0 %5072
      %v5075 = vmul.f32 %v5065, %v5069
      %v5076 = vmul.f32 %v5066, %v5073
      %5077 = vset.pattern.permute.xlu0 10
      %5078 = vperm.xlu0 %5077, %v4823
      %v5079 = vpop.permute.xlu0 %5078
      %5081 = vset.pattern.permute.xlu0 10
      %5082 = vperm.xlu0 %5081, %v4824
      %v5083 = vpop.permute.xlu0 %5082
      %v5085 = vadd.f32 %v5075, %v5079
      %v5086 = vadd.f32 %v5076, %v5083
      %5087 = vset.pattern.permute.xlu0 11
      %5088 = vperm.xlu0 %5087, %v4823
      %v5089 = vpop.permute.xlu0 %5088
      %5091 = vset.pattern.permute.xlu0 11
      %5092 = vperm.xlu0 %5091, %v4824
      %v5093 = vpop.permute.xlu0 %5092
      %v5096 = vsel %vm3857, %v4825, 0
      %v5099 = vsel %vm3857, %v4826, 0
      %v5102 = vsel %vm4666, %v5086, 0
      %5104 = vmatprep.subr.mxu0 0.0
      %5105 = vmatpush1.msra.mxu0 0.0
      %5106 = vmatprep.subr.mxu0 0.0
      %5107 = vmatpush1.msra.mxu0 0.0
      %5108 = vmatprep.subr.mxu0 0.0
      %5109 = vmatpush1.msra.mxu0 0.0
      %5110 = vmatprep.subr.mxu0 0.0
      %5111 = vmatpush1.msra.mxu0 0.0
      %5112 = vmatprep.subr.mxu0 0.0
      %5113 = vmatpush1.msra.mxu0 0.0
      %5114 = vmatprep.subr.mxu0 0.0
      %5115 = vmatpush1.msra.mxu0 0.0
      %5116 = vmatprep.subr.mxu0 0.0
      %5117 = vmatpush1.msra.mxu0 0.0
      %5118 = vmatprep.subr.mxu0 0.0
      %5119 = vmatpush1.msra.mxu0 0.0
      %5120 = vmatprep.subr.mxu0 0.0
      %5121 = vmatpush1.msra.mxu0 0.0
      %5122 = vmatprep.subr.mxu0 0.0
      %5123 = vmatpush1.msra.mxu0 0.0
      %5124 = vmatprep.subr.mxu0 0.0
      %5125 = vmatpush1.msra.mxu0 0.0
      %5126 = vmatprep.subr.mxu0 0.0
      %5127 = vmatpush1.msra.mxu0 0.0
      %5128 = vmatprep.subr.mxu0 0.0
      %5129 = vmatpush1.msra.mxu0 0.0
      %5130 = vmatprep.subr.mxu0 0.0
      %5131 = vmatpush1.msra.mxu0 0.0
      %5132 = vmatprep.subr.mxu0 0.0
      %5133 = vmatpush1.msra.mxu0 %v5102
      %5134 = vmatprep.subr.mxu0 0.0
      %5135 = vmatpush1.msra.mxu0 %v5085
      %5136 = vmatprep.subr.mxu0 0.0
      %5137 = vmatpush2.msra.mxu0 0.0
      %5138 = vmatprep.subr.mxu0 0.0
      %5139 = vmatpush2.msra.mxu0 0.0
      %5140 = vmatprep.subr.mxu0 0.0
      %5141 = vmatpush2.msra.mxu0 0.0
      %5142 = vmatprep.subr.mxu0 0.0
      %5143 = vmatpush2.msra.mxu0 0.0
      %5144 = vmatprep.subr.mxu0 0.0
      %5145 = vmatpush2.msra.mxu0 0.0
      %5146 = vmatprep.subr.mxu0 0.0
      %5147 = vmatpush2.msra.mxu0 0.0
      %5148 = vmatprep.subr.mxu0 0.0
      %5149 = vmatpush2.msra.mxu0 0.0
      %5150 = vmatprep.subr.mxu0 0.0
      %5151 = vmatpush2.msra.mxu0 0.0
      %5152 = vmatprep.subr.mxu0 0.0
      %5153 = vmatpush2.msra.mxu0 0.0
      %5154 = vmatprep.subr.mxu0 0.0
      %5155 = vmatpush2.msra.mxu0 0.0
      %5156 = vmatprep.subr.mxu0 0.0
      %5157 = vmatpush2.msra.mxu0 0.0
      %5158 = vmatprep.subr.mxu0 0.0
      %5159 = vmatpush2.msra.mxu0 0.0
      %5160 = vmatprep.subr.mxu0 0.0
      %5161 = vmatpush2.msra.mxu0 0.0
      %5162 = vmatprep.subr.mxu0 0.0
      %5163 = vmatpush2.msra.mxu0 0.0
      %5164 = vmatprep.subr.mxu0 0.0
      %5165 = vmatpush2.msra.mxu0 0.0
      %5166 = vmatprep.subr.mxu0 0.0
      %5167 = vmatpush2.msra.mxu0 0.0
      %5168 = vmatprep.mubr.f32.mxu0 0.0
      %5169 = vmatmul.mubr.f32.gmra.mxu0 %v5096
      %v5170 = vpop.f32.mrf.mxu0
      %v5171 = vadd.f32 %v5089, %v5170
      %v5172 = vpop.f32.mrf.mxu0
      %5173 = vmatprep.mubr.f32.mxu0 0.0
      %5174 = vmatmul.mubr.f32.gmra.mxu0 %v5099
      %v5175 = vpop.f32.mrf.mxu0
      %v5176 = vadd.f32 %v5093, %v5175
      %v5177 = vpop.f32.mrf.mxu0
      %5178 = vdwg.mxu0
      %5181 = vrot.lane.b32.xlu0 %v5171, 6
      %v5182 = vpop.permute.xlu0 %5181
      %5183 = vrot.lane.b32.xlu0 %v5176, 6
      %v5184 = vpop.permute.xlu0 %5183
      %5187 = vrot.lane.b32.xlu0 %v5171, 12
      %v5188 = vpop.permute.xlu0 %5187
      %5189 = vrot.lane.b32.xlu0 %v5176, 12
      %v5190 = vpop.permute.xlu0 %5189
      %5193 = vrot.lane.b32.xlu0 %v5171, 18
      %v5194 = vpop.permute.xlu0 %5193
      %5195 = vrot.lane.b32.xlu0 %v5176, 18
      %v5196 = vpop.permute.xlu0 %5195
      %5199 = vrot.lane.b32.xlu0 %v5171, 24
      %v5200 = vpop.permute.xlu0 %5199
      %5201 = vrot.lane.b32.xlu0 %v5176, 24
      %v5202 = vpop.permute.xlu0 %5201
      %5205 = vrot.lane.b32.xlu0 %v5171, 30
      %v5206 = vpop.permute.xlu0 %5205
      %5207 = vrot.lane.b32.xlu0 %v5176, 30
      %v5208 = vpop.permute.xlu0 %5207
      %5211 = vrot.lane.b32.xlu0 %v5171, 36
      %v5212 = vpop.permute.xlu0 %5211
      %5213 = vrot.lane.b32.xlu0 %v5176, 36
      %v5214 = vpop.permute.xlu0 %5213
      %5217 = vrot.lane.b32.xlu0 %v5171, 42
      %v5218 = vpop.permute.xlu0 %5217
      %5219 = vrot.lane.b32.xlu0 %v5176, 42
      %v5220 = vpop.permute.xlu0 %5219
      %5223 = vrot.lane.b32.xlu0 %v5171, 48
      %v5224 = vpop.permute.xlu0 %5223
      %5225 = vrot.lane.b32.xlu0 %v5176, 48
      %v5226 = vpop.permute.xlu0 %5225
      %5229 = vrot.lane.b32.xlu0 %v5171, 54
      %v5230 = vpop.permute.xlu0 %5229
      %5231 = vrot.lane.b32.xlu0 %v5176, 54
      %v5232 = vpop.permute.xlu0 %5231
      %v5235 = vsel %vm3854, %v5171, %v5182
      %v5236 = vsel %vm3854, %v5176, %v5184
      %v5237 = vsel %vm3857, %v5235, %v5188
      %v5238 = vsel %vm3857, %v5236, %v5190
      %v5239 = vsel %vm3860, %v5237, %v5194
      %v5240 = vsel %vm3860, %v5238, %v5196
      %v5241 = vsel %vm3863, %v5239, %v5200
      %v5242 = vsel %vm3863, %v5240, %v5202
      %v5243 = vsel %vm3866, %v5241, %v5206
      %v5244 = vsel %vm3866, %v5242, %v5208
      %v5245 = vsel %vm3869, %v5243, %v5212
      %v5246 = vsel %vm3869, %v5244, %v5214
      %v5247 = vsel %vm3872, %v5245, %v5218
      %v5248 = vsel %vm3872, %v5246, %v5220
      %v5249 = vsel %vm3875, %v5247, %v5224
      %v5250 = vsel %vm3875, %v5248, %v5226
      %v5251 = vsel %vm3438, %v5249, %v5230
      %v5252 = vsel %vm3438, %v5250, %v5232
      %v5253 = vadd.f32 %v4923, %v5251
      %v5254 = vadd.f32 %v4924, %v5252
      %v5255 = vadd.f32 %v5253, %v4821
      %v5256 = vadd.f32 %v5254, %v4822
      %v5257 = vmax.f32 %v5255, 0.0
      %v5258 = vmax.f32 %v5256, 0.0
      %v5259 = vld [vmem:[%s12] sm:$0xff]
      %v5260 = vld [vmem:[%s12 + $0x8] sm:$0xff]
      %v5261 = vld [vmem:[%s13] sm:$0xff]
      %v5262 = vld [vmem:[%s13 + $0x8] sm:$0xff]
      %v5263 = vld [vmem:[%s11] sm:$0xff]
      %v5264 = vld [vmem:[%s11 + $0x8] sm:$0xff]
      %5266 = vset.pattern.permute.xlu0 12
      %5267 = vperm.xlu0 %5266, %v5259
      %v5268 = vpop.permute.xlu0 %5267
      %5271 = vset.pattern.permute.xlu0 12
      %5272 = vperm.xlu0 %5271, %v5260
      %v5273 = vpop.permute.xlu0 %5272
      %v5276 = vsel %vm3857, %v5263, 0
      %v5279 = vsel %vm3857, %v5264, 0
      %v5282 = vsel %vm4666, %v5258, 0
      %5284 = vmatprep.subr.mxu0 0.0
      %5285 = vmatpush1.msra.mxu0 0.0
      %5286 = vmatprep.subr.mxu0 0.0
      %5287 = vmatpush1.msra.mxu0 0.0
      %5288 = vmatprep.subr.mxu0 0.0
      %5289 = vmatpush1.msra.mxu0 0.0
      %5290 = vmatprep.subr.mxu0 0.0
      %5291 = vmatpush1.msra.mxu0 0.0
      %5292 = vmatprep.subr.mxu0 0.0
      %5293 = vmatpush1.msra.mxu0 0.0
      %5294 = vmatprep.subr.mxu0 0.0
      %5295 = vmatpush1.msra.mxu0 0.0
      %5296 = vmatprep.subr.mxu0 0.0
      %5297 = vmatpush1.msra.mxu0 0.0
      %5298 = vmatprep.subr.mxu0 0.0
      %5299 = vmatpush1.msra.mxu0 0.0
      %5300 = vmatprep.subr.mxu0 0.0
      %5301 = vmatpush1.msra.mxu0 0.0
      %5302 = vmatprep.subr.mxu0 0.0
      %5303 = vmatpush1.msra.mxu0 0.0
      %5304 = vmatprep.subr.mxu0 0.0
      %5305 = vmatpush1.msra.mxu0 0.0
      %5306 = vmatprep.subr.mxu0 0.0
      %5307 = vmatpush1.msra.mxu0 0.0
      %5308 = vmatprep.subr.mxu0 0.0
      %5309 = vmatpush1.msra.mxu0 0.0
      %5310 = vmatprep.subr.mxu0 0.0
      %5311 = vmatpush1.msra.mxu0 0.0
      %5312 = vmatprep.subr.mxu0 0.0
      %5313 = vmatpush1.msra.mxu0 %v5282
      %5314 = vmatprep.subr.mxu0 0.0
      %5315 = vmatpush1.msra.mxu0 %v5257
      %5316 = vmatprep.subr.mxu0 0.0
      %5317 = vmatpush2.msra.mxu0 0.0
      %5318 = vmatprep.subr.mxu0 0.0
      %5319 = vmatpush2.msra.mxu0 0.0
      %5320 = vmatprep.subr.mxu0 0.0
      %5321 = vmatpush2.msra.mxu0 0.0
      %5322 = vmatprep.subr.mxu0 0.0
      %5323 = vmatpush2.msra.mxu0 0.0
      %5324 = vmatprep.subr.mxu0 0.0
      %5325 = vmatpush2.msra.mxu0 0.0
      %5326 = vmatprep.subr.mxu0 0.0
      %5327 = vmatpush2.msra.mxu0 0.0
      %5328 = vmatprep.subr.mxu0 0.0
      %5329 = vmatpush2.msra.mxu0 0.0
      %5330 = vmatprep.subr.mxu0 0.0
      %5331 = vmatpush2.msra.mxu0 0.0
      %5332 = vmatprep.subr.mxu0 0.0
      %5333 = vmatpush2.msra.mxu0 0.0
      %5334 = vmatprep.subr.mxu0 0.0
      %5335 = vmatpush2.msra.mxu0 0.0
      %5336 = vmatprep.subr.mxu0 0.0
      %5337 = vmatpush2.msra.mxu0 0.0
      %5338 = vmatprep.subr.mxu0 0.0
      %5339 = vmatpush2.msra.mxu0 0.0
      %5340 = vmatprep.subr.mxu0 0.0
      %5341 = vmatpush2.msra.mxu0 0.0
      %5342 = vmatprep.subr.mxu0 0.0
      %5343 = vmatpush2.msra.mxu0 0.0
      %5344 = vmatprep.subr.mxu0 0.0
      %5345 = vmatpush2.msra.mxu0 0.0
      %5346 = vmatprep.subr.mxu0 0.0
      %5347 = vmatpush2.msra.mxu0 0.0
      %5348 = vmatprep.mubr.f32.mxu0 0.0
      %5349 = vmatmul.mubr.f32.gmra.mxu0 %v5276
      %v5350 = vpop.f32.mrf.mxu0
      %v5351 = vadd.f32 %v5268, %v5350
      %v5352 = vpop.f32.mrf.mxu0
      %5353 = vmatprep.mubr.f32.mxu0 0.0
      %5354 = vmatmul.mubr.f32.gmra.mxu0 %v5279
      %v5355 = vpop.f32.mrf.mxu0
      %v5356 = vadd.f32 %v5273, %v5355
      %v5357 = vpop.f32.mrf.mxu0
      %5358 = vdwg.mxu0
      %v5359 = vmax.f32 %v5351, 0.0
      %v5360 = vmax.f32 %v5356, 0.0
      %5363 = vrot.lane.b32.xlu0 %v5359, 6
      %v5364 = vpop.permute.xlu0 %5363
      %5365 = vrot.lane.b32.xlu0 %v5360, 6
      %v5366 = vpop.permute.xlu0 %5365
      %v5369 = vsel %vm3854, 0.0, %v5364
      %v5370 = vsel %vm3854, 0.0, %v5366
      %5371 = vrot.lane.b32.xlu0 %v5359, 122
      %v5372 = vpop.permute.xlu0 %5371
      %5373 = vrot.lane.b32.xlu0 %v5360, 122
      %v5374 = vpop.permute.xlu0 %5373
      %v5377 = vsel %vm3438, %v5372, 0.0
      %v5378 = vsel %vm3438, %v5374, 0.0
      %5379 = vset.pattern.permute.xlu0 0
      %5380 = vperm.xlu0 %5379, %v5259
      %v5381 = vpop.permute.xlu0 %5380
      %5383 = vset.pattern.permute.xlu0 0
      %5384 = vperm.xlu0 %5383, %v5260
      %v5385 = vpop.permute.xlu0 %5384
      %v5387 = vmul.f32 %v5381, %v5369
      %v5388 = vmul.f32 %v5385, %v5370
      %5389 = vset.pattern.permute.xlu0 1
      %5390 = vperm.xlu0 %5389, %v5259
      %v5391 = vpop.permute.xlu0 %5390
      %5393 = vset.pattern.permute.xlu0 1
      %5394 = vperm.xlu0 %5393, %v5260
      %v5395 = vpop.permute.xlu0 %5394
      %v5397 = vmul.f32 %v5391, %v5359
      %v5398 = vmul.f32 %v5395, %v5360
      %v5399 = vadd.f32 %v5387, %v5397
      %v5400 = vadd.f32 %v5388, %v5398
      %5401 = vset.pattern.permute.xlu0 2
      %5402 = vperm.xlu0 %5401, %v5259
      %v5403 = vpop.permute.xlu0 %5402
      %5405 = vset.pattern.permute.xlu0 2
      %5406 = vperm.xlu0 %5405, %v5260
      %v5407 = vpop.permute.xlu0 %5406
      %v5409 = vmul.f32 %v5403, %v5377
      %v5410 = vmul.f32 %v5407, %v5378
      %v5411 = vadd.f32 %v5399, %v5409
      %v5412 = vadd.f32 %v5400, %v5410
      %5413 = vset.pattern.permute.xlu0 3
      %5414 = vperm.xlu0 %5413, %v5259
      %v5415 = vpop.permute.xlu0 %5414
      %5417 = vset.pattern.permute.xlu0 3
      %5418 = vperm.xlu0 %5417, %v5260
      %v5419 = vpop.permute.xlu0 %5418
      %v5421 = vadd.f32 %v5411, %v5415
      %v5422 = vadd.f32 %v5412, %v5419
      %5425 = vrot.lane.b32.xlu0 %v5421, 122
      %v5426 = vpop.permute.xlu0 %5425
      %5427 = vrot.lane.b32.xlu0 %v5422, 122
      %v5428 = vpop.permute.xlu0 %5427
      %5431 = vrot.lane.b32.xlu0 %v5421, 116
      %v5432 = vpop.permute.xlu0 %5431
      %5433 = vrot.lane.b32.xlu0 %v5422, 116
      %v5434 = vpop.permute.xlu0 %5433
      %5437 = vrot.lane.b32.xlu0 %v5421, 110
      %v5438 = vpop.permute.xlu0 %5437
      %5439 = vrot.lane.b32.xlu0 %v5422, 110
      %v5440 = vpop.permute.xlu0 %5439
      %5443 = vrot.lane.b32.xlu0 %v5421, 104
      %v5444 = vpop.permute.xlu0 %5443
      %5445 = vrot.lane.b32.xlu0 %v5422, 104
      %v5446 = vpop.permute.xlu0 %5445
      %v5449 = vsel %vm3854, %v5421, %v5426
      %v5450 = vsel %vm3854, %v5422, %v5428
      %v5451 = vsel %vm3857, %v5449, %v5432
      %v5452 = vsel %vm3857, %v5450, %v5434
      %v5453 = vsel %vm3860, %v5451, %v5438
      %v5454 = vsel %vm3860, %v5452, %v5440
      %v5455 = vsel %vm3863, %v5453, %v5444
      %v5456 = vsel %vm3863, %v5454, %v5446
      %v5457 = vsub.f32 0.0, %v5455
      %v5458 = vsub.f32 0.0, %v5456
      %v5459 = vmul.f32 %v5457, 1.442695
      %v5460 = vpow.pop %v5459
      %v5461 = vmul.f32 %v5458, 1.442695
      %v5462 = vpow.pop %v5461
      %v5463 = vadd.f32 %v5460, 1.0
      %v5464 = vadd.f32 %v5462, 1.0
      %v5465 = vrcp.pop %v5463
      %v5466 = vmul.f32 1.0, %v5465
      %v5467 = vrcp.pop %v5464
      %v5468 = vmul.f32 1.0, %v5467
      %v5469 = vmul.f32 %v5455, %v5466
      %v5470 = vmul.f32 %v5456, %v5468
      %5471 = vset.pattern.permute.xlu0 4
      %5472 = vperm.xlu0 %5471, %v5259
      %v5473 = vpop.permute.xlu0 %5472
      %5475 = vset.pattern.permute.xlu0 4
      %5476 = vperm.xlu0 %5475, %v5260
      %v5477 = vpop.permute.xlu0 %5476
      %v5479 = vmul.f32 %v5469, %v5473
      %v5480 = vmul.f32 %v5470, %v5477
      %5481 = vset.pattern.permute.xlu0 5
      %5482 = vperm.xlu0 %5481, %v5259
      %v5483 = vpop.permute.xlu0 %5482
      %5485 = vset.pattern.permute.xlu0 5
      %5486 = vperm.xlu0 %5485, %v5260
      %v5487 = vpop.permute.xlu0 %5486
      %v5489 = vadd.f32 %v5479, %v5483
      %v5490 = vadd.f32 %v5480, %v5487
      %5493 = vrot.lane.b32.xlu0 %v5489, 122
      %v5494 = vpop.permute.xlu0 %5493
      %5495 = vrot.lane.b32.xlu0 %v5490, 122
      %v5496 = vpop.permute.xlu0 %5495
      %v5499 = vadd.f32 %v5489, %v5494
      %v5500 = vadd.f32 %v5490, %v5496
      %5501 = vrot.lane.b32.xlu0 %v5489, 116
      %v5502 = vpop.permute.xlu0 %5501
      %5503 = vrot.lane.b32.xlu0 %v5490, 116
      %v5504 = vpop.permute.xlu0 %5503
      %v5507 = vadd.f32 %v5499, %v5502
      %v5508 = vadd.f32 %v5500, %v5504
      %5509 = vrot.lane.b32.xlu0 %v5489, 110
      %v5510 = vpop.permute.xlu0 %5509
      %5511 = vrot.lane.b32.xlu0 %v5490, 110
      %v5512 = vpop.permute.xlu0 %5511
      %v5515 = vadd.f32 %v5507, %v5510
      %v5516 = vadd.f32 %v5508, %v5512
      %5517 = vrot.lane.b32.xlu0 %v5489, 104
      %v5518 = vpop.permute.xlu0 %5517
      %5519 = vrot.lane.b32.xlu0 %v5490, 104
      %v5520 = vpop.permute.xlu0 %5519
      %v5523 = vadd.f32 %v5515, %v5518
      %v5524 = vadd.f32 %v5516, %v5520
      %v5525 = vmul.f32 %v5523, 0.2
      %v5526 = vmul.f32 %v5524, 0.2
      %5529 = vrot.lane.b32.xlu0 %v5525, 1
      %v5530 = vpop.permute.xlu0 %5529
      %5531 = vrot.lane.b32.xlu0 %v5526, 1
      %v5532 = vpop.permute.xlu0 %5531
      %v5535 = vsel %vm4137, 0.0, %v5530
      %v5536 = vsel %vm4137, 0.0, %v5532
      %5537 = vrot.lane.b32.xlu0 %v5525, 127
      %v5538 = vpop.permute.xlu0 %5537
      %5539 = vrot.lane.b32.xlu0 %v5526, 127
      %v5540 = vpop.permute.xlu0 %5539
      %v5543 = vsel %vm4142, %v5538, 0.0
      %v5544 = vsel %vm4142, %v5540, 0.0
      %5545 = vset.pattern.permute.xlu0 6
      %5546 = vperm.xlu0 %5545, %v5259
      %v5547 = vpop.permute.xlu0 %5546
      %5549 = vset.pattern.permute.xlu0 6
      %5550 = vperm.xlu0 %5549, %v5260
      %v5551 = vpop.permute.xlu0 %5550
      %v5553 = vmul.f32 %v5547, %v5535
      %v5554 = vmul.f32 %v5551, %v5536
      %5555 = vset.pattern.permute.xlu0 7
      %5556 = vperm.xlu0 %5555, %v5259
      %v5557 = vpop.permute.xlu0 %5556
      %5559 = vset.pattern.permute.xlu0 7
      %5560 = vperm.xlu0 %5559, %v5260
      %v5561 = vpop.permute.xlu0 %5560
      %v5563 = vmul.f32 %v5557, %v5525
      %v5564 = vmul.f32 %v5561, %v5526
      %v5565 = vadd.f32 %v5553, %v5563
      %v5566 = vadd.f32 %v5554, %v5564
      %5567 = vset.pattern.permute.xlu0 8
      %5568 = vperm.xlu0 %5567, %v5259
      %v5569 = vpop.permute.xlu0 %5568
      %5571 = vset.pattern.permute.xlu0 8
      %5572 = vperm.xlu0 %5571, %v5260
      %v5573 = vpop.permute.xlu0 %5572
      %v5575 = vmul.f32 %v5569, %v5543
      %v5576 = vmul.f32 %v5573, %v5544
      %v5577 = vadd.f32 %v5565, %v5575
      %v5578 = vadd.f32 %v5566, %v5576
      %v5579 = vsub.f32 0.0, %v5577
      %v5580 = vsub.f32 0.0, %v5578
      %v5581 = vmul.f32 %v5579, 1.442695
      %v5582 = vpow.pop %v5581
      %v5583 = vmul.f32 %v5580, 1.442695
      %v5584 = vpow.pop %v5583
      %v5585 = vadd.f32 %v5582, 1.0
      %v5586 = vadd.f32 %v5584, 1.0
      %v5587 = vrcp.pop %v5585
      %v5588 = vmul.f32 1.0, %v5587
      %v5589 = vrcp.pop %v5586
      %v5590 = vmul.f32 1.0, %v5589
      %v5591 = vmul.f32 %v5577, %v5588
      %v5592 = vmul.f32 %v5578, %v5590
      %5593 = vset.pattern.permute.xlu0 9
      %5594 = vperm.xlu0 %5593, %v5259
      %v5595 = vpop.permute.xlu0 %5594
      %5597 = vset.pattern.permute.xlu0 9
      %5598 = vperm.xlu0 %5597, %v5260
      %v5599 = vpop.permute.xlu0 %5598
      %v5601 = vmul.f32 %v5591, %v5595
      %v5602 = vmul.f32 %v5592, %v5599
      %5603 = vset.pattern.permute.xlu0 10
      %5604 = vperm.xlu0 %5603, %v5259
      %v5605 = vpop.permute.xlu0 %5604
      %5607 = vset.pattern.permute.xlu0 10
      %5608 = vperm.xlu0 %5607, %v5260
      %v5609 = vpop.permute.xlu0 %5608
      %v5611 = vadd.f32 %v5601, %v5605
      %v5612 = vadd.f32 %v5602, %v5609
      %5613 = vset.pattern.permute.xlu0 11
      %5614 = vperm.xlu0 %5613, %v5259
      %v5615 = vpop.permute.xlu0 %5614
      %5617 = vset.pattern.permute.xlu0 11
      %5618 = vperm.xlu0 %5617, %v5260
      %v5619 = vpop.permute.xlu0 %5618
      %v5622 = vsel %vm3934, %v5261, 0
      %v5625 = vsel %vm3934, %v5262, 0
      %5627 = vmatprep.subr.mxu0 0.0
      %5628 = vmatpush1.msra.mxu0 0.0
      %5629 = vmatprep.subr.mxu0 0.0
      %5630 = vmatpush1.msra.mxu0 0.0
      %5631 = vmatprep.subr.mxu0 0.0
      %5632 = vmatpush1.msra.mxu0 0.0
      %5633 = vmatprep.subr.mxu0 0.0
      %5634 = vmatpush1.msra.mxu0 0.0
      %5635 = vmatprep.subr.mxu0 0.0
      %5636 = vmatpush1.msra.mxu0 0.0
      %5637 = vmatprep.subr.mxu0 0.0
      %5638 = vmatpush1.msra.mxu0 0.0
      %5639 = vmatprep.subr.mxu0 0.0
      %5640 = vmatpush1.msra.mxu0 0.0
      %5641 = vmatprep.subr.mxu0 0.0
      %5642 = vmatpush1.msra.mxu0 0.0
      %5643 = vmatprep.subr.mxu0 0.0
      %5644 = vmatpush1.msra.mxu0 0.0
      %5645 = vmatprep.subr.mxu0 0.0
      %5646 = vmatpush1.msra.mxu0 0.0
      %5647 = vmatprep.subr.mxu0 0.0
      %5648 = vmatpush1.msra.mxu0 0.0
      %5649 = vmatprep.subr.mxu0 0.0
      %5650 = vmatpush1.msra.mxu0 0.0
      %5651 = vmatprep.subr.mxu0 0.0
      %5652 = vmatpush1.msra.mxu0 0.0
      %5653 = vmatprep.subr.mxu0 0.0
      %5654 = vmatpush1.msra.mxu0 0.0
      %5655 = vmatprep.subr.mxu0 0.0
      %5656 = vmatpush1.msra.mxu0 %v5612
      %5657 = vmatprep.subr.mxu0 0.0
      %5658 = vmatpush1.msra.mxu0 %v5611
      %5659 = vmatprep.subr.mxu0 0.0
      %5660 = vmatpush2.msra.mxu0 0.0
      %5661 = vmatprep.subr.mxu0 0.0
      %5662 = vmatpush2.msra.mxu0 0.0
      %5663 = vmatprep.subr.mxu0 0.0
      %5664 = vmatpush2.msra.mxu0 0.0
      %5665 = vmatprep.subr.mxu0 0.0
      %5666 = vmatpush2.msra.mxu0 0.0
      %5667 = vmatprep.subr.mxu0 0.0
      %5668 = vmatpush2.msra.mxu0 0.0
      %5669 = vmatprep.subr.mxu0 0.0
      %5670 = vmatpush2.msra.mxu0 0.0
      %5671 = vmatprep.subr.mxu0 0.0
      %5672 = vmatpush2.msra.mxu0 0.0
      %5673 = vmatprep.subr.mxu0 0.0
      %5674 = vmatpush2.msra.mxu0 0.0
      %5675 = vmatprep.subr.mxu0 0.0
      %5676 = vmatpush2.msra.mxu0 0.0
      %5677 = vmatprep.subr.mxu0 0.0
      %5678 = vmatpush2.msra.mxu0 0.0
      %5679 = vmatprep.subr.mxu0 0.0
      %5680 = vmatpush2.msra.mxu0 0.0
      %5681 = vmatprep.subr.mxu0 0.0
      %5682 = vmatpush2.msra.mxu0 0.0
      %5683 = vmatprep.subr.mxu0 0.0
      %5684 = vmatpush2.msra.mxu0 0.0
      %5685 = vmatprep.subr.mxu0 0.0
      %5686 = vmatpush2.msra.mxu0 0.0
      %5687 = vmatprep.subr.mxu0 0.0
      %5688 = vmatpush2.msra.mxu0 0.0
      %5689 = vmatprep.subr.mxu0 0.0
      %5690 = vmatpush2.msra.mxu0 0.0
      %5691 = vmatprep.mubr.f32.mxu0 0.0
      %5692 = vmatmul.mubr.f32.gmra.mxu0 %v5622
      %v5693 = vpop.f32.mrf.mxu0
      %v5694 = vadd.f32 %v5615, %v5693
      %v5695 = vpop.f32.mrf.mxu0
      %5696 = vmatprep.mubr.f32.mxu0 0.0
      %5697 = vmatmul.mubr.f32.gmra.mxu0 %v5625
      %v5698 = vpop.f32.mrf.mxu0
      %v5699 = vadd.f32 %v5619, %v5698
      %v5700 = vpop.f32.mrf.mxu0
      %5701 = vdwg.mxu0
      %5704 = vrot.lane.b32.xlu0 %v5694, 6
      %v5705 = vpop.permute.xlu0 %5704
      %5706 = vrot.lane.b32.xlu0 %v5699, 6
      %v5707 = vpop.permute.xlu0 %5706
      %5710 = vrot.lane.b32.xlu0 %v5694, 12
      %v5711 = vpop.permute.xlu0 %5710
      %5712 = vrot.lane.b32.xlu0 %v5699, 12
      %v5713 = vpop.permute.xlu0 %5712
      %5716 = vrot.lane.b32.xlu0 %v5694, 18
      %v5717 = vpop.permute.xlu0 %5716
      %5718 = vrot.lane.b32.xlu0 %v5699, 18
      %v5719 = vpop.permute.xlu0 %5718
      %5722 = vrot.lane.b32.xlu0 %v5694, 24
      %v5723 = vpop.permute.xlu0 %5722
      %5724 = vrot.lane.b32.xlu0 %v5699, 24
      %v5725 = vpop.permute.xlu0 %5724
      %v5728 = vsel %vm3854, %v5694, %v5705
      %v5729 = vsel %vm3854, %v5699, %v5707
      %v5730 = vsel %vm3857, %v5728, %v5711
      %v5731 = vsel %vm3857, %v5729, %v5713
      %v5732 = vsel %vm3860, %v5730, %v5717
      %v5733 = vsel %vm3860, %v5731, %v5719
      %v5734 = vsel %vm3863, %v5732, %v5723
      %v5735 = vsel %vm3863, %v5733, %v5725
      %v5736 = vadd.f32 %v5489, %v5734
      %v5737 = vadd.f32 %v5490, %v5735
      %v5738 = vmax.f32 %v5736, 0.0
      %v5739 = vmax.f32 %v5737, 0.0
      %v5740 = vld [vmem:[%s15] sm:$0xff]
      %v5741 = vld [vmem:[%s15 + $0x8] sm:$0xff]
      %v5742 = vld [vmem:[%s15 + $0x10] sm:$0xf]
      %v5743 = vld [vmem:[%s16] sm:$0xff]
      %v5744 = vld [vmem:[%s16 + $0x8] sm:$0xff]
      %v5745 = vld [vmem:[%s16 + $0x10] sm:$0xf]
      %v5746 = vld [vmem:[%s14] sm:$0xff]
      %v5747 = vld [vmem:[%s14 + $0x8] sm:$0xff]
      %v5748 = vld [vmem:[%s14 + $0x10] sm:$0xf]
      %5750 = vset.pattern.permute.xlu0 12
      %5751 = vperm.xlu0 %5750, %v5740
      %v5752 = vpop.permute.xlu0 %5751
      %5755 = vset.pattern.permute.xlu0 12
      %5756 = vperm.xlu0 %5755, %v5741
      %v5757 = vpop.permute.xlu0 %5756
      %5760 = vset.pattern.permute.xlu0 12
      %5761 = vperm.xlu0 %5760, %v5742
      %v5762 = vpop.permute.xlu0 %5761
      %v5765 = vsel %vm3934, %v5746, 0
      %v5768 = vsel %vm3934, %v5747, 0
      %v5771 = vsel %vm3934, %v5748, 0
      %5773 = vmatprep.subr.mxu0 0.0
      %5774 = vmatpush1.msra.mxu0 0.0
      %5775 = vmatprep.subr.mxu0 0.0
      %5776 = vmatpush1.msra.mxu0 0.0
      %5777 = vmatprep.subr.mxu0 0.0
      %5778 = vmatpush1.msra.mxu0 0.0
      %5779 = vmatprep.subr.mxu0 0.0
      %5780 = vmatpush1.msra.mxu0 0.0
      %5781 = vmatprep.subr.mxu0 0.0
      %5782 = vmatpush1.msra.mxu0 0.0
      %5783 = vmatprep.subr.mxu0 0.0
      %5784 = vmatpush1.msra.mxu0 0.0
      %5785 = vmatprep.subr.mxu0 0.0
      %5786 = vmatpush1.msra.mxu0 0.0
      %5787 = vmatprep.subr.mxu0 0.0
      %5788 = vmatpush1.msra.mxu0 0.0
      %5789 = vmatprep.subr.mxu0 0.0
      %5790 = vmatpush1.msra.mxu0 0.0
      %5791 = vmatprep.subr.mxu0 0.0
      %5792 = vmatpush1.msra.mxu0 0.0
      %5793 = vmatprep.subr.mxu0 0.0
      %5794 = vmatpush1.msra.mxu0 0.0
      %5795 = vmatprep.subr.mxu0 0.0
      %5796 = vmatpush1.msra.mxu0 0.0
      %5797 = vmatprep.subr.mxu0 0.0
      %5798 = vmatpush1.msra.mxu0 0.0
      %5799 = vmatprep.subr.mxu0 0.0
      %5800 = vmatpush1.msra.mxu0 0.0
      %5801 = vmatprep.subr.mxu0 0.0
      %5802 = vmatpush1.msra.mxu0 %v5739
      %5803 = vmatprep.subr.mxu0 0.0
      %5804 = vmatpush1.msra.mxu0 %v5738
      %5805 = vmatprep.subr.mxu0 0.0
      %5806 = vmatpush2.msra.mxu0 0.0
      %5807 = vmatprep.subr.mxu0 0.0
      %5808 = vmatpush2.msra.mxu0 0.0
      %5809 = vmatprep.subr.mxu0 0.0
      %5810 = vmatpush2.msra.mxu0 0.0
      %5811 = vmatprep.subr.mxu0 0.0
      %5812 = vmatpush2.msra.mxu0 0.0
      %5813 = vmatprep.subr.mxu0 0.0
      %5814 = vmatpush2.msra.mxu0 0.0
      %5815 = vmatprep.subr.mxu0 0.0
      %5816 = vmatpush2.msra.mxu0 0.0
      %5817 = vmatprep.subr.mxu0 0.0
      %5818 = vmatpush2.msra.mxu0 0.0
      %5819 = vmatprep.subr.mxu0 0.0
      %5820 = vmatpush2.msra.mxu0 0.0
      %5821 = vmatprep.subr.mxu0 0.0
      %5822 = vmatpush2.msra.mxu0 0.0
      %5823 = vmatprep.subr.mxu0 0.0
      %5824 = vmatpush2.msra.mxu0 0.0
      %5825 = vmatprep.subr.mxu0 0.0
      %5826 = vmatpush2.msra.mxu0 0.0
      %5827 = vmatprep.subr.mxu0 0.0
      %5828 = vmatpush2.msra.mxu0 0.0
      %5829 = vmatprep.subr.mxu0 0.0
      %5830 = vmatpush2.msra.mxu0 0.0
      %5831 = vmatprep.subr.mxu0 0.0
      %5832 = vmatpush2.msra.mxu0 0.0
      %5833 = vmatprep.subr.mxu0 0.0
      %5834 = vmatpush2.msra.mxu0 0.0
      %5835 = vmatprep.subr.mxu0 0.0
      %5836 = vmatpush2.msra.mxu0 0.0
      %5837 = vmatprep.mubr.f32.mxu0 0.0
      %5838 = vmatmul.mubr.f32.gmra.mxu0 %v5765
      %v5839 = vpop.f32.mrf.mxu0
      %v5840 = vadd.f32 %v5752, %v5839
      %v5841 = vpop.f32.mrf.mxu0
      %5842 = vmatprep.mubr.f32.mxu0 0.0
      %5843 = vmatmul.mubr.f32.gmra.mxu0 %v5768
      %v5844 = vpop.f32.mrf.mxu0
      %v5845 = vadd.f32 %v5757, %v5844
      %v5846 = vpop.f32.mrf.mxu0
      %5847 = vmatprep.mubr.f32.mxu0 0.0
      %5848 = vmatmul.mubr.f32.gmra.mxu0 %v5771
      %v5849 = vpop.f32.mrf.mxu0
      %v5850 = vadd.f32 %v5762, %v5849
      %v5851 = vpop.f32.mrf.mxu0
      %5852 = vdwg.mxu0
      %v5853 = vmax.f32 %v5840, 0.0
      %v5854 = vmax.f32 %v5845, 0.0
      %v5855 = vmax.f32 %v5850, 0.0
      %5859 = vrot.lane.b32.xlu0 %v5853, 6
      %v5860 = vpop.permute.xlu0 %5859
      %5861 = vrot.lane.b32.xlu0 %v5854, 6
      %v5862 = vpop.permute.xlu0 %5861
      %5863 = vrot.lane.b32.xlu0 %v5855, 6
      %v5864 = vpop.permute.xlu0 %5863
      %v5868 = vsel %vm3854, 0.0, %v5860
      %v5869 = vsel %vm3854, 0.0, %v5862
      %v5870 = vsel %vm3854, 0.0, %v5864
      %5871 = vrot.lane.b32.xlu0 %v5853, 122
      %v5872 = vpop.permute.xlu0 %5871
      %5873 = vrot.lane.b32.xlu0 %v5854, 122
      %v5874 = vpop.permute.xlu0 %5873
      %5875 = vrot.lane.b32.xlu0 %v5855, 122
      %v5876 = vpop.permute.xlu0 %5875
      %v5880 = vsel %vm3863, %v5872, 0.0
      %v5881 = vsel %vm3863, %v5874, 0.0
      %v5882 = vsel %vm3863, %v5876, 0.0
      %5883 = vset.pattern.permute.xlu0 0
      %5884 = vperm.xlu0 %5883, %v5740
      %v5885 = vpop.permute.xlu0 %5884
      %5887 = vset.pattern.permute.xlu0 0
      %5888 = vperm.xlu0 %5887, %v5741
      %v5889 = vpop.permute.xlu0 %5888
      %5891 = vset.pattern.permute.xlu0 0
      %5892 = vperm.xlu0 %5891, %v5742
      %v5893 = vpop.permute.xlu0 %5892
      %v5895 = vmul.f32 %v5885, %v5868
      %v5896 = vmul.f32 %v5889, %v5869
      %v5897 = vmul.f32 %v5893, %v5870
      %5898 = vset.pattern.permute.xlu0 1
      %5899 = vperm.xlu0 %5898, %v5740
      %v5900 = vpop.permute.xlu0 %5899
      %5902 = vset.pattern.permute.xlu0 1
      %5903 = vperm.xlu0 %5902, %v5741
      %v5904 = vpop.permute.xlu0 %5903
      %5906 = vset.pattern.permute.xlu0 1
      %5907 = vperm.xlu0 %5906, %v5742
      %v5908 = vpop.permute.xlu0 %5907
      %v5910 = vmul.f32 %v5900, %v5853
      %v5911 = vmul.f32 %v5904, %v5854
      %v5912 = vmul.f32 %v5908, %v5855
      %v5913 = vadd.f32 %v5895, %v5910
      %v5914 = vadd.f32 %v5896, %v5911
      %v5915 = vadd.f32 %v5897, %v5912
      %5916 = vset.pattern.permute.xlu0 2
      %5917 = vperm.xlu0 %5916, %v5740
      %v5918 = vpop.permute.xlu0 %5917
      %5920 = vset.pattern.permute.xlu0 2
      %5921 = vperm.xlu0 %5920, %v5741
      %v5922 = vpop.permute.xlu0 %5921
      %5924 = vset.pattern.permute.xlu0 2
      %5925 = vperm.xlu0 %5924, %v5742
      %v5926 = vpop.permute.xlu0 %5925
      %v5928 = vmul.f32 %v5918, %v5880
      %v5929 = vmul.f32 %v5922, %v5881
      %v5930 = vmul.f32 %v5926, %v5882
      %v5931 = vadd.f32 %v5913, %v5928
      %v5932 = vadd.f32 %v5914, %v5929
      %v5933 = vadd.f32 %v5915, %v5930
      %5934 = vset.pattern.permute.xlu0 3
      %5935 = vperm.xlu0 %5934, %v5740
      %v5936 = vpop.permute.xlu0 %5935
      %5938 = vset.pattern.permute.xlu0 3
      %5939 = vperm.xlu0 %5938, %v5741
      %v5940 = vpop.permute.xlu0 %5939
      %5942 = vset.pattern.permute.xlu0 3
      %5943 = vperm.xlu0 %5942, %v5742
      %v5944 = vpop.permute.xlu0 %5943
      %v5946 = vadd.f32 %v5931, %v5936
      %v5947 = vadd.f32 %v5932, %v5940
      %v5948 = vadd.f32 %v5933, %v5944
      %v5949 = vsub.f32 0.0, %v5946
      %v5950 = vsub.f32 0.0, %v5947
      %v5951 = vsub.f32 0.0, %v5948
      %v5952 = vmul.f32 %v5949, 1.442695
      %v5953 = vpow.pop %v5952
      %v5954 = vmul.f32 %v5950, 1.442695
      %v5955 = vpow.pop %v5954
      %v5956 = vmul.f32 %v5951, 1.442695
      %v5957 = vpow.pop %v5956
      %v5958 = vadd.f32 %v5953, 1.0
      %v5959 = vadd.f32 %v5955, 1.0
      %v5960 = vadd.f32 %v5957, 1.0
      %v5961 = vrcp.pop %v5958
      %v5962 = vmul.f32 1.0, %v5961
      %v5963 = vrcp.pop %v5959
      %v5964 = vmul.f32 1.0, %v5963
      %v5965 = vrcp.pop %v5960
      %v5966 = vmul.f32 1.0, %v5965
      %v5967 = vmul.f32 %v5946, %v5962
      %v5968 = vmul.f32 %v5947, %v5964
      %v5969 = vmul.f32 %v5948, %v5966
      %5970 = vset.pattern.permute.xlu0 4
      %5971 = vperm.xlu0 %5970, %v5740
      %v5972 = vpop.permute.xlu0 %5971
      %5974 = vset.pattern.permute.xlu0 4
      %5975 = vperm.xlu0 %5974, %v5741
      %v5976 = vpop.permute.xlu0 %5975
      %5978 = vset.pattern.permute.xlu0 4
      %5979 = vperm.xlu0 %5978, %v5742
      %v5980 = vpop.permute.xlu0 %5979
      %v5982 = vmul.f32 %v5967, %v5972
      %v5983 = vmul.f32 %v5968, %v5976
      %v5984 = vmul.f32 %v5969, %v5980
      %5985 = vset.pattern.permute.xlu0 5
      %5986 = vperm.xlu0 %5985, %v5740
      %v5987 = vpop.permute.xlu0 %5986
      %5989 = vset.pattern.permute.xlu0 5
      %5990 = vperm.xlu0 %5989, %v5741
      %v5991 = vpop.permute.xlu0 %5990
      %5993 = vset.pattern.permute.xlu0 5
      %5994 = vperm.xlu0 %5993, %v5742
      %v5995 = vpop.permute.xlu0 %5994
      %v5997 = vadd.f32 %v5982, %v5987
      %v5998 = vadd.f32 %v5983, %v5991
      %v5999 = vadd.f32 %v5984, %v5995
      %6003 = vrot.lane.b32.xlu0 %v5997, 122
      %v6004 = vpop.permute.xlu0 %6003
      %6005 = vrot.lane.b32.xlu0 %v5998, 122
      %v6006 = vpop.permute.xlu0 %6005
      %6007 = vrot.lane.b32.xlu0 %v5999, 122
      %v6008 = vpop.permute.xlu0 %6007
      %v6012 = vadd.f32 %v5997, %v6004
      %v6013 = vadd.f32 %v5998, %v6006
      %v6014 = vadd.f32 %v5999, %v6008
      %6015 = vrot.lane.b32.xlu0 %v5997, 116
      %v6016 = vpop.permute.xlu0 %6015
      %6017 = vrot.lane.b32.xlu0 %v5998, 116
      %v6018 = vpop.permute.xlu0 %6017
      %6019 = vrot.lane.b32.xlu0 %v5999, 116
      %v6020 = vpop.permute.xlu0 %6019
      %v6024 = vadd.f32 %v6012, %v6016
      %v6025 = vadd.f32 %v6013, %v6018
      %v6026 = vadd.f32 %v6014, %v6020
      %6027 = vrot.lane.b32.xlu0 %v5997, 110
      %v6028 = vpop.permute.xlu0 %6027
      %6029 = vrot.lane.b32.xlu0 %v5998, 110
      %v6030 = vpop.permute.xlu0 %6029
      %6031 = vrot.lane.b32.xlu0 %v5999, 110
      %v6032 = vpop.permute.xlu0 %6031
      %v6036 = vadd.f32 %v6024, %v6028
      %v6037 = vadd.f32 %v6025, %v6030
      %v6038 = vadd.f32 %v6026, %v6032
      %6039 = vrot.lane.b32.xlu0 %v5997, 104
      %v6040 = vpop.permute.xlu0 %6039
      %6041 = vrot.lane.b32.xlu0 %v5998, 104
      %v6042 = vpop.permute.xlu0 %6041
      %6043 = vrot.lane.b32.xlu0 %v5999, 104
      %v6044 = vpop.permute.xlu0 %6043
      %v6048 = vadd.f32 %v6036, %v6040
      %v6049 = vadd.f32 %v6037, %v6042
      %v6050 = vadd.f32 %v6038, %v6044
      %v6051 = vmul.f32 %v6048, 0.2
      %v6052 = vmul.f32 %v6049, 0.2
      %v6053 = vmul.f32 %v6050, 0.2
      %6057 = vrot.lane.b32.xlu0 %v6051, 1
      %v6058 = vpop.permute.xlu0 %6057
      %6059 = vrot.lane.b32.xlu0 %v6052, 1
      %v6060 = vpop.permute.xlu0 %6059
      %6061 = vrot.lane.b32.xlu0 %v6053, 1
      %v6062 = vpop.permute.xlu0 %6061
      %v6066 = vsel %vm4137, 0.0, %v6058
      %v6067 = vsel %vm4137, 0.0, %v6060
      %v6068 = vsel %vm4137, 0.0, %v6062
      %6069 = vrot.lane.b32.xlu0 %v6051, 127
      %v6070 = vpop.permute.xlu0 %6069
      %6071 = vrot.lane.b32.xlu0 %v6052, 127
      %v6072 = vpop.permute.xlu0 %6071
      %6073 = vrot.lane.b32.xlu0 %v6053, 127
      %v6074 = vpop.permute.xlu0 %6073
      %v6078 = vsel %vm4142, %v6070, 0.0
      %v6079 = vsel %vm4142, %v6072, 0.0
      %v6080 = vsel %vm4142, %v6074, 0.0
      %6081 = vset.pattern.permute.xlu0 6
      %6082 = vperm.xlu0 %6081, %v5740
      %v6083 = vpop.permute.xlu0 %6082
      %6085 = vset.pattern.permute.xlu0 6
      %6086 = vperm.xlu0 %6085, %v5741
      %v6087 = vpop.permute.xlu0 %6086
      %6089 = vset.pattern.permute.xlu0 6
      %6090 = vperm.xlu0 %6089, %v5742
      %v6091 = vpop.permute.xlu0 %6090
      %v6093 = vmul.f32 %v6083, %v6066
      %v6094 = vmul.f32 %v6087, %v6067
      %v6095 = vmul.f32 %v6091, %v6068
      %6096 = vset.pattern.permute.xlu0 7
      %6097 = vperm.xlu0 %6096, %v5740
      %v6098 = vpop.permute.xlu0 %6097
      %6100 = vset.pattern.permute.xlu0 7
      %6101 = vperm.xlu0 %6100, %v5741
      %v6102 = vpop.permute.xlu0 %6101
      %6104 = vset.pattern.permute.xlu0 7
      %6105 = vperm.xlu0 %6104, %v5742
      %v6106 = vpop.permute.xlu0 %6105
      %v6108 = vmul.f32 %v6098, %v6051
      %v6109 = vmul.f32 %v6102, %v6052
      %v6110 = vmul.f32 %v6106, %v6053
      %v6111 = vadd.f32 %v6093, %v6108
      %v6112 = vadd.f32 %v6094, %v6109
      %v6113 = vadd.f32 %v6095, %v6110
      %6114 = vset.pattern.permute.xlu0 8
      %6115 = vperm.xlu0 %6114, %v5740
      %v6116 = vpop.permute.xlu0 %6115
      %6118 = vset.pattern.permute.xlu0 8
      %6119 = vperm.xlu0 %6118, %v5741
      %v6120 = vpop.permute.xlu0 %6119
      %6122 = vset.pattern.permute.xlu0 8
      %6123 = vperm.xlu0 %6122, %v5742
      %v6124 = vpop.permute.xlu0 %6123
      %v6126 = vmul.f32 %v6116, %v6078
      %v6127 = vmul.f32 %v6120, %v6079
      %v6128 = vmul.f32 %v6124, %v6080
      %v6129 = vadd.f32 %v6111, %v6126
      %v6130 = vadd.f32 %v6112, %v6127
      %v6131 = vadd.f32 %v6113, %v6128
      %v6132 = vsub.f32 0.0, %v6129
      %v6133 = vsub.f32 0.0, %v6130
      %v6134 = vsub.f32 0.0, %v6131
      %v6135 = vmul.f32 %v6132, 1.442695
      %v6136 = vpow.pop %v6135
      %v6137 = vmul.f32 %v6133, 1.442695
      %v6138 = vpow.pop %v6137
      %v6139 = vmul.f32 %v6134, 1.442695
      %v6140 = vpow.pop %v6139
      %v6141 = vadd.f32 %v6136, 1.0
      %v6142 = vadd.f32 %v6138, 1.0
      %v6143 = vadd.f32 %v6140, 1.0
      %v6144 = vrcp.pop %v6141
      %v6145 = vmul.f32 1.0, %v6144
      %v6146 = vrcp.pop %v6142
      %v6147 = vmul.f32 1.0, %v6146
      %v6148 = vrcp.pop %v6143
      %v6149 = vmul.f32 1.0, %v6148
      %v6150 = vmul.f32 %v6129, %v6145
      %v6151 = vmul.f32 %v6130, %v6147
      %v6152 = vmul.f32 %v6131, %v6149
      %6153 = vset.pattern.permute.xlu0 9
      %6154 = vperm.xlu0 %6153, %v5740
      %v6155 = vpop.permute.xlu0 %6154
      %6157 = vset.pattern.permute.xlu0 9
      %6158 = vperm.xlu0 %6157, %v5741
      %v6159 = vpop.permute.xlu0 %6158
      %6161 = vset.pattern.permute.xlu0 9
      %6162 = vperm.xlu0 %6161, %v5742
      %v6163 = vpop.permute.xlu0 %6162
      %v6165 = vmul.f32 %v6150, %v6155
      %v6166 = vmul.f32 %v6151, %v6159
      %v6167 = vmul.f32 %v6152, %v6163
      %6168 = vset.pattern.permute.xlu0 10
      %6169 = vperm.xlu0 %6168, %v5740
      %v6170 = vpop.permute.xlu0 %6169
      %6172 = vset.pattern.permute.xlu0 10
      %6173 = vperm.xlu0 %6172, %v5741
      %v6174 = vpop.permute.xlu0 %6173
      %6176 = vset.pattern.permute.xlu0 10
      %6177 = vperm.xlu0 %6176, %v5742
      %v6178 = vpop.permute.xlu0 %6177
      %v6180 = vadd.f32 %v6165, %v6170
      %v6181 = vadd.f32 %v6166, %v6174
      %v6182 = vadd.f32 %v6167, %v6178
      %6183 = vset.pattern.permute.xlu0 11
      %6184 = vperm.xlu0 %6183, %v5740
      %v6185 = vpop.permute.xlu0 %6184
      %6187 = vset.pattern.permute.xlu0 11
      %6188 = vperm.xlu0 %6187, %v5741
      %v6189 = vpop.permute.xlu0 %6188
      %6191 = vset.pattern.permute.xlu0 11
      %6192 = vperm.xlu0 %6191, %v5742
      %v6193 = vpop.permute.xlu0 %6192
      %vm6195 = vcmask 162816
      %v6197 = vsel %vm6195, %v5743, 0
      %v6200 = vsel %vm6195, %v5744, 0
      %v6203 = vsel %vm6195, %v5745, 0
      %v6206 = vsel %vm4666, %v6182, 0
      %6208 = vmatprep.subr.mxu0 0.0
      %6209 = vmatpush1.msra.mxu0 0.0
      %6210 = vmatprep.subr.mxu0 0.0
      %6211 = vmatpush1.msra.mxu0 0.0
      %6212 = vmatprep.subr.mxu0 0.0
      %6213 = vmatpush1.msra.mxu0 0.0
      %6214 = vmatprep.subr.mxu0 0.0
      %6215 = vmatpush1.msra.mxu0 0.0
      %6216 = vmatprep.subr.mxu0 0.0
      %6217 = vmatpush1.msra.mxu0 0.0
      %6218 = vmatprep.subr.mxu0 0.0
      %6219 = vmatpush1.msra.mxu0 0.0
      %6220 = vmatprep.subr.mxu0 0.0
      %6221 = vmatpush1.msra.mxu0 0.0
      %6222 = vmatprep.subr.mxu0 0.0
      %6223 = vmatpush1.msra.mxu0 0.0
      %6224 = vmatprep.subr.mxu0 0.0
      %6225 = vmatpush1.msra.mxu0 0.0
      %6226 = vmatprep.subr.mxu0 0.0
      %6227 = vmatpush1.msra.mxu0 0.0
      %6228 = vmatprep.subr.mxu0 0.0
      %6229 = vmatpush1.msra.mxu0 0.0
      %6230 = vmatprep.subr.mxu0 0.0
      %6231 = vmatpush1.msra.mxu0 0.0
      %6232 = vmatprep.subr.mxu0 0.0
      %6233 = vmatpush1.msra.mxu0 0.0
      %6234 = vmatprep.subr.mxu0 0.0
      %6235 = vmatpush1.msra.mxu0 %v6206
      %6236 = vmatprep.subr.mxu0 0.0
      %6237 = vmatpush1.msra.mxu0 %v6181
      %6238 = vmatprep.subr.mxu0 0.0
      %6239 = vmatpush1.msra.mxu0 %v6180
      %6240 = vmatprep.subr.mxu0 0.0
      %6241 = vmatpush2.msra.mxu0 0.0
      %6242 = vmatprep.subr.mxu0 0.0
      %6243 = vmatpush2.msra.mxu0 0.0
      %6244 = vmatprep.subr.mxu0 0.0
      %6245 = vmatpush2.msra.mxu0 0.0
      %6246 = vmatprep.subr.mxu0 0.0
      %6247 = vmatpush2.msra.mxu0 0.0
      %6248 = vmatprep.subr.mxu0 0.0
      %6249 = vmatpush2.msra.mxu0 0.0
      %6250 = vmatprep.subr.mxu0 0.0
      %6251 = vmatpush2.msra.mxu0 0.0
      %6252 = vmatprep.subr.mxu0 0.0
      %6253 = vmatpush2.msra.mxu0 0.0
      %6254 = vmatprep.subr.mxu0 0.0
      %6255 = vmatpush2.msra.mxu0 0.0
      %6256 = vmatprep.subr.mxu0 0.0
      %6257 = vmatpush2.msra.mxu0 0.0
      %6258 = vmatprep.subr.mxu0 0.0
      %6259 = vmatpush2.msra.mxu0 0.0
      %6260 = vmatprep.subr.mxu0 0.0
      %6261 = vmatpush2.msra.mxu0 0.0
      %6262 = vmatprep.subr.mxu0 0.0
      %6263 = vmatpush2.msra.mxu0 0.0
      %6264 = vmatprep.subr.mxu0 0.0
      %6265 = vmatpush2.msra.mxu0 0.0
      %6266 = vmatprep.subr.mxu0 0.0
      %6267 = vmatpush2.msra.mxu0 0.0
      %6268 = vmatprep.subr.mxu0 0.0
      %6269 = vmatpush2.msra.mxu0 0.0
      %6270 = vmatprep.subr.mxu0 0.0
      %6271 = vmatpush2.msra.mxu0 0.0
      %6272 = vmatprep.mubr.f32.mxu0 0.0
      %6273 = vmatmul.mubr.f32.gmra.mxu0 %v6197
      %v6274 = vpop.f32.mrf.mxu0
      %v6275 = vadd.f32 %v6185, %v6274
      %v6276 = vpop.f32.mrf.mxu0
      %6277 = vmatprep.mubr.f32.mxu0 0.0
      %6278 = vmatmul.mubr.f32.gmra.mxu0 %v6200
      %v6279 = vpop.f32.mrf.mxu0
      %v6280 = vadd.f32 %v6189, %v6279
      %v6281 = vpop.f32.mrf.mxu0
      %6282 = vmatprep.mubr.f32.mxu0 0.0
      %6283 = vmatmul.mubr.f32.gmra.mxu0 %v6203
      %v6284 = vpop.f32.mrf.mxu0
      %v6285 = vadd.f32 %v6193, %v6284
      %v6286 = vpop.f32.mrf.mxu0
      %6287 = vdwg.mxu0
      %6291 = vrot.lane.b32.xlu0 %v6275, 6
      %v6292 = vpop.permute.xlu0 %6291
      %6293 = vrot.lane.b32.xlu0 %v6280, 6
      %v6294 = vpop.permute.xlu0 %6293
      %6295 = vrot.lane.b32.xlu0 %v6285, 6
      %v6296 = vpop.permute.xlu0 %6295
      %6300 = vrot.lane.b32.xlu0 %v6275, 12
      %v6301 = vpop.permute.xlu0 %6300
      %6302 = vrot.lane.b32.xlu0 %v6280, 12
      %v6303 = vpop.permute.xlu0 %6302
      %6304 = vrot.lane.b32.xlu0 %v6285, 12
      %v6305 = vpop.permute.xlu0 %6304
      %6309 = vrot.lane.b32.xlu0 %v6275, 18
      %v6310 = vpop.permute.xlu0 %6309
      %6311 = vrot.lane.b32.xlu0 %v6280, 18
      %v6312 = vpop.permute.xlu0 %6311
      %6313 = vrot.lane.b32.xlu0 %v6285, 18
      %v6314 = vpop.permute.xlu0 %6313
      %6318 = vrot.lane.b32.xlu0 %v6275, 24
      %v6319 = vpop.permute.xlu0 %6318
      %6320 = vrot.lane.b32.xlu0 %v6280, 24
      %v6321 = vpop.permute.xlu0 %6320
      %6322 = vrot.lane.b32.xlu0 %v6285, 24
      %v6323 = vpop.permute.xlu0 %6322
      %v6327 = vsel %vm3854, %v6275, %v6292
      %v6328 = vsel %vm3854, %v6280, %v6294
      %v6329 = vsel %vm3854, %v6285, %v6296
      %v6330 = vsel %vm3857, %v6327, %v6301
      %v6331 = vsel %vm3857, %v6328, %v6303
      %v6332 = vsel %vm3857, %v6329, %v6305
      %v6333 = vsel %vm3860, %v6330, %v6310
      %v6334 = vsel %vm3860, %v6331, %v6312
      %v6335 = vsel %vm3860, %v6332, %v6314
      %v6336 = vsel %vm3863, %v6333, %v6319
      %v6337 = vsel %vm3863, %v6334, %v6321
      %v6338 = vsel %vm3863, %v6335, %v6323
      %v6339 = vadd.f32 %v5997, %v6336
      %v6340 = vadd.f32 %v5998, %v6337
      %v6341 = vadd.f32 %v5999, %v6338
      %v6342 = vmax.f32 %v6339, 0.0
      %v6343 = vmax.f32 %v6340, 0.0
      %v6344 = vmax.f32 %v6341, 0.0
      %v6345 = vld [vmem:[%s17] sm:$0xff]
      %v6346 = vld [vmem:[%s17 + $0x8] sm:$0xff]
      %v6347 = vld [vmem:[%s17 + $0x10] sm:$0xf]
      %v6348 = vld [vmem:[%s18] sm:$0xff]
      %v6349 = vld [vmem:[%s18 + $0x8] sm:$0xff]
      %v6350 = vld [vmem:[%s18 + $0x10] sm:$0xff]
      %v6351 = vld [vmem:[%s18 + $0x18] sm:$0xff]
      %v6352 = vld [vmem:[%s19] sm:$0x3]
      %6356 = vrot.lane.b32.xlu0 %v6342, 2
      %v6357 = vpop.permute.xlu0 %6356
      %6358 = vrot.lane.b32.xlu0 %v6343, 2
      %v6359 = vpop.permute.xlu0 %6358
      %6360 = vrot.lane.b32.xlu0 %v6344, 2
      %v6361 = vpop.permute.xlu0 %6360
      %vm6365 = vcmask 15360
      %v6366 = vsel %vm6365, 0.0, %v6357
      %v6367 = vsel %vm6365, 0.0, %v6359
      %v6368 = vsel %vm6365, 0.0, %v6361
      %v6369 = vsel %vm4182, %v6366, 0.0
      %v6370 = vsel %vm4182, %v6367, 0.0
      %v6371 = vsel %vm4182, %v6368, 0.0
      %6373 = vset.pattern.permute.xlu0 0
      %6374 = vperm.xlu0 %6373, %v6345
      %v6375 = vpop.permute.xlu0 %6374
      %6378 = vset.pattern.permute.xlu0 0
      %6379 = vperm.xlu0 %6378, %v6346
      %v6380 = vpop.permute.xlu0 %6379
      %6383 = vset.pattern.permute.xlu0 0
      %6384 = vperm.xlu0 %6383, %v6347
      %v6385 = vpop.permute.xlu0 %6384
      %v6387 = vmul.f32 %v6375, %v6369
      %v6388 = vmul.f32 %v6380, %v6370
      %v6389 = vmul.f32 %v6385, %v6371
      %v6390 = vadd.f32 %v6387, 0.0
      %v6391 = vadd.f32 %v6388, 0.0
      %v6392 = vadd.f32 %v6389, 0.0
      %6393 = vset.pattern.permute.xlu0 1
      %6394 = vperm.xlu0 %6393, %v6345
      %v6395 = vpop.permute.xlu0 %6394
      %6397 = vset.pattern.permute.xlu0 1
      %6398 = vperm.xlu0 %6397, %v6346
      %v6399 = vpop.permute.xlu0 %6398
      %6401 = vset.pattern.permute.xlu0 1
      %6402 = vperm.xlu0 %6401, %v6347
      %v6403 = vpop.permute.xlu0 %6402
      %v6405 = vmul.f32 %v6395, %v6369
      %v6406 = vmul.f32 %v6399, %v6370
      %v6407 = vmul.f32 %v6403, %v6371
      %6411 = vrot.lane.b32.xlu0 %v6405, 127
      %v6412 = vpop.permute.xlu0 %6411
      %6413 = vrot.lane.b32.xlu0 %v6406, 127
      %v6414 = vpop.permute.xlu0 %6413
      %6415 = vrot.lane.b32.xlu0 %v6407, 127
      %v6416 = vpop.permute.xlu0 %6415
      %v6420 = vadd.f32 %v6390, %v6412
      %v6421 = vadd.f32 %v6391, %v6414
      %v6422 = vadd.f32 %v6392, %v6416
      %6423 = vset.pattern.permute.xlu0 2
      %6424 = vperm.xlu0 %6423, %v6345
      %v6425 = vpop.permute.xlu0 %6424
      %6427 = vset.pattern.permute.xlu0 2
      %6428 = vperm.xlu0 %6427, %v6346
      %v6429 = vpop.permute.xlu0 %6428
      %6431 = vset.pattern.permute.xlu0 2
      %6432 = vperm.xlu0 %6431, %v6347
      %v6433 = vpop.permute.xlu0 %6432
      %v6435 = vmul.f32 %v6425, %v6369
      %v6436 = vmul.f32 %v6429, %v6370
      %v6437 = vmul.f32 %v6433, %v6371
      %6441 = vrot.lane.b32.xlu0 %v6435, 126
      %v6442 = vpop.permute.xlu0 %6441
      %6443 = vrot.lane.b32.xlu0 %v6436, 126
      %v6444 = vpop.permute.xlu0 %6443
      %6445 = vrot.lane.b32.xlu0 %v6437, 126
      %v6446 = vpop.permute.xlu0 %6445
      %v6450 = vadd.f32 %v6420, %v6442
      %v6451 = vadd.f32 %v6421, %v6444
      %v6452 = vadd.f32 %v6422, %v6446
      %6453 = vset.pattern.permute.xlu0 3
      %6454 = vperm.xlu0 %6453, %v6345
      %v6455 = vpop.permute.xlu0 %6454
      %6457 = vset.pattern.permute.xlu0 3
      %6458 = vperm.xlu0 %6457, %v6346
      %v6459 = vpop.permute.xlu0 %6458
      %6461 = vset.pattern.permute.xlu0 3
      %6462 = vperm.xlu0 %6461, %v6347
      %v6463 = vpop.permute.xlu0 %6462
      %v6465 = vmul.f32 %v6455, %v6369
      %v6466 = vmul.f32 %v6459, %v6370
      %v6467 = vmul.f32 %v6463, %v6371
      %6471 = vrot.lane.b32.xlu0 %v6465, 125
      %v6472 = vpop.permute.xlu0 %6471
      %6473 = vrot.lane.b32.xlu0 %v6466, 125
      %v6474 = vpop.permute.xlu0 %6473
      %6475 = vrot.lane.b32.xlu0 %v6467, 125
      %v6476 = vpop.permute.xlu0 %6475
      %v6480 = vadd.f32 %v6450, %v6472
      %v6481 = vadd.f32 %v6451, %v6474
      %v6482 = vadd.f32 %v6452, %v6476
      %6483 = vset.pattern.permute.xlu0 4
      %6484 = vperm.xlu0 %6483, %v6345
      %v6485 = vpop.permute.xlu0 %6484
      %6487 = vset.pattern.permute.xlu0 4
      %6488 = vperm.xlu0 %6487, %v6346
      %v6489 = vpop.permute.xlu0 %6488
      %6491 = vset.pattern.permute.xlu0 4
      %6492 = vperm.xlu0 %6491, %v6347
      %v6493 = vpop.permute.xlu0 %6492
      %v6495 = vmul.f32 %v6485, %v6369
      %v6496 = vmul.f32 %v6489, %v6370
      %v6497 = vmul.f32 %v6493, %v6371
      %6501 = vrot.lane.b32.xlu0 %v6495, 124
      %v6502 = vpop.permute.xlu0 %6501
      %6503 = vrot.lane.b32.xlu0 %v6496, 124
      %v6504 = vpop.permute.xlu0 %6503
      %6505 = vrot.lane.b32.xlu0 %v6497, 124
      %v6506 = vpop.permute.xlu0 %6505
      %v6510 = vadd.f32 %v6480, %v6502
      %v6511 = vadd.f32 %v6481, %v6504
      %v6512 = vadd.f32 %v6482, %v6506
      %6513 = vrot.lane.b32.xlu0 %v6342, 124
      %v6514 = vpop.permute.xlu0 %6513
      %6515 = vrot.lane.b32.xlu0 %v6343, 124
      %v6516 = vpop.permute.xlu0 %6515
      %6517 = vrot.lane.b32.xlu0 %v6344, 124
      %v6518 = vpop.permute.xlu0 %6517
      %v6522 = vsel %vm6365, 0.0, %v6514
      %v6523 = vsel %vm6365, 0.0, %v6516
      %v6524 = vsel %vm6365, 0.0, %v6518
      %v6525 = vsel %vm4182, %v6522, 0.0
      %v6526 = vsel %vm4182, %v6523, 0.0
      %v6527 = vsel %vm4182, %v6524, 0.0
      %6528 = vset.pattern.permute.xlu0 5
      %6529 = vperm.xlu0 %6528, %v6345
      %v6530 = vpop.permute.xlu0 %6529
      %6532 = vset.pattern.permute.xlu0 5
      %6533 = vperm.xlu0 %6532, %v6346
      %v6534 = vpop.permute.xlu0 %6533
      %6536 = vset.pattern.permute.xlu0 5
      %6537 = vperm.xlu0 %6536, %v6347
      %v6538 = vpop.permute.xlu0 %6537
      %v6540 = vmul.f32 %v6530, %v6525
      %v6541 = vmul.f32 %v6534, %v6526
      %v6542 = vmul.f32 %v6538, %v6527
      %v6543 = vadd.f32 %v6510, %v6540
      %v6544 = vadd.f32 %v6511, %v6541
      %v6545 = vadd.f32 %v6512, %v6542
      %6546 = vset.pattern.permute.xlu0 6
      %6547 = vperm.xlu0 %6546, %v6345
      %v6548 = vpop.permute.xlu0 %6547
      %6550 = vset.pattern.permute.xlu0 6
      %6551 = vperm.xlu0 %6550, %v6346
      %v6552 = vpop.permute.xlu0 %6551
      %6554 = vset.pattern.permute.xlu0 6
      %6555 = vperm.xlu0 %6554, %v6347
      %v6556 = vpop.permute.xlu0 %6555
      %v6558 = vmul.f32 %v6548, %v6525
      %v6559 = vmul.f32 %v6552, %v6526
      %v6560 = vmul.f32 %v6556, %v6527
      %6564 = vrot.lane.b32.xlu0 %v6558, 127
      %v6565 = vpop.permute.xlu0 %6564
      %6566 = vrot.lane.b32.xlu0 %v6559, 127
      %v6567 = vpop.permute.xlu0 %6566
      %6568 = vrot.lane.b32.xlu0 %v6560, 127
      %v6569 = vpop.permute.xlu0 %6568
      %v6573 = vadd.f32 %v6543, %v6565
      %v6574 = vadd.f32 %v6544, %v6567
      %v6575 = vadd.f32 %v6545, %v6569
      %6576 = vset.pattern.permute.xlu0 7
      %6577 = vperm.xlu0 %6576, %v6345
      %v6578 = vpop.permute.xlu0 %6577
      %6580 = vset.pattern.permute.xlu0 7
      %6581 = vperm.xlu0 %6580, %v6346
      %v6582 = vpop.permute.xlu0 %6581
      %6584 = vset.pattern.permute.xlu0 7
      %6585 = vperm.xlu0 %6584, %v6347
      %v6586 = vpop.permute.xlu0 %6585
      %v6588 = vmul.f32 %v6578, %v6525
      %v6589 = vmul.f32 %v6582, %v6526
      %v6590 = vmul.f32 %v6586, %v6527
      %6594 = vrot.lane.b32.xlu0 %v6588, 126
      %v6595 = vpop.permute.xlu0 %6594
      %6596 = vrot.lane.b32.xlu0 %v6589, 126
      %v6597 = vpop.permute.xlu0 %6596
      %6598 = vrot.lane.b32.xlu0 %v6590, 126
      %v6599 = vpop.permute.xlu0 %6598
      %v6603 = vadd.f32 %v6573, %v6595
      %v6604 = vadd.f32 %v6574, %v6597
      %v6605 = vadd.f32 %v6575, %v6599
      %6606 = vset.pattern.permute.xlu0 8
      %6607 = vperm.xlu0 %6606, %v6345
      %v6608 = vpop.permute.xlu0 %6607
      %6610 = vset.pattern.permute.xlu0 8
      %6611 = vperm.xlu0 %6610, %v6346
      %v6612 = vpop.permute.xlu0 %6611
      %6614 = vset.pattern.permute.xlu0 8
      %6615 = vperm.xlu0 %6614, %v6347
      %v6616 = vpop.permute.xlu0 %6615
      %v6618 = vmul.f32 %v6608, %v6525
      %v6619 = vmul.f32 %v6612, %v6526
      %v6620 = vmul.f32 %v6616, %v6527
      %6624 = vrot.lane.b32.xlu0 %v6618, 125
      %v6625 = vpop.permute.xlu0 %6624
      %6626 = vrot.lane.b32.xlu0 %v6619, 125
      %v6627 = vpop.permute.xlu0 %6626
      %6628 = vrot.lane.b32.xlu0 %v6620, 125
      %v6629 = vpop.permute.xlu0 %6628
      %v6633 = vadd.f32 %v6603, %v6625
      %v6634 = vadd.f32 %v6604, %v6627
      %v6635 = vadd.f32 %v6605, %v6629
      %6636 = vset.pattern.permute.xlu0 9
      %6637 = vperm.xlu0 %6636, %v6345
      %v6638 = vpop.permute.xlu0 %6637
      %6640 = vset.pattern.permute.xlu0 9
      %6641 = vperm.xlu0 %6640, %v6346
      %v6642 = vpop.permute.xlu0 %6641
      %6644 = vset.pattern.permute.xlu0 9
      %6645 = vperm.xlu0 %6644, %v6347
      %v6646 = vpop.permute.xlu0 %6645
      %v6648 = vmul.f32 %v6638, %v6525
      %v6649 = vmul.f32 %v6642, %v6526
      %v6650 = vmul.f32 %v6646, %v6527
      %6654 = vrot.lane.b32.xlu0 %v6648, 124
      %v6655 = vpop.permute.xlu0 %6654
      %6656 = vrot.lane.b32.xlu0 %v6649, 124
      %v6657 = vpop.permute.xlu0 %6656
      %6658 = vrot.lane.b32.xlu0 %v6650, 124
      %v6659 = vpop.permute.xlu0 %6658
      %v6663 = vadd.f32 %v6633, %v6655
      %v6664 = vadd.f32 %v6634, %v6657
      %v6665 = vadd.f32 %v6635, %v6659
      %6666 = vrot.lane.b32.xlu0 %v6342, 118
      %v6667 = vpop.permute.xlu0 %6666
      %6668 = vrot.lane.b32.xlu0 %v6343, 118
      %v6669 = vpop.permute.xlu0 %6668
      %6670 = vrot.lane.b32.xlu0 %v6344, 118
      %v6671 = vpop.permute.xlu0 %6670
      %v6675 = vsel %vm6365, 0.0, %v6667
      %v6676 = vsel %vm6365, 0.0, %v6669
      %v6677 = vsel %vm6365, 0.0, %v6671
      %v6678 = vsel %vm4182, %v6675, 0.0
      %v6679 = vsel %vm4182, %v6676, 0.0
      %v6680 = vsel %vm4182, %v6677, 0.0
      %6681 = vset.pattern.permute.xlu0 10
      %6682 = vperm.xlu0 %6681, %v6345
      %v6683 = vpop.permute.xlu0 %6682
      %6685 = vset.pattern.permute.xlu0 10
      %6686 = vperm.xlu0 %6685, %v6346
      %v6687 = vpop.permute.xlu0 %6686
      %6689 = vset.pattern.permute.xlu0 10
      %6690 = vperm.xlu0 %6689, %v6347
      %v6691 = vpop.permute.xlu0 %6690
      %v6693 = vmul.f32 %v6683, %v6678
      %v6694 = vmul.f32 %v6687, %v6679
      %v6695 = vmul.f32 %v6691, %v6680
      %v6696 = vadd.f32 %v6663, %v6693
      %v6697 = vadd.f32 %v6664, %v6694
      %v6698 = vadd.f32 %v6665, %v6695
      %6699 = vset.pattern.permute.xlu0 11
      %6700 = vperm.xlu0 %6699, %v6345
      %v6701 = vpop.permute.xlu0 %6700
      %6703 = vset.pattern.permute.xlu0 11
      %6704 = vperm.xlu0 %6703, %v6346
      %v6705 = vpop.permute.xlu0 %6704
      %6707 = vset.pattern.permute.xlu0 11
      %6708 = vperm.xlu0 %6707, %v6347
      %v6709 = vpop.permute.xlu0 %6708
      %v6711 = vmul.f32 %v6701, %v6678
      %v6712 = vmul.f32 %v6705, %v6679
      %v6713 = vmul.f32 %v6709, %v6680
      %6717 = vrot.lane.b32.xlu0 %v6711, 127
      %v6718 = vpop.permute.xlu0 %6717
      %6719 = vrot.lane.b32.xlu0 %v6712, 127
      %v6720 = vpop.permute.xlu0 %6719
      %6721 = vrot.lane.b32.xlu0 %v6713, 127
      %v6722 = vpop.permute.xlu0 %6721
      %v6726 = vadd.f32 %v6696, %v6718
      %v6727 = vadd.f32 %v6697, %v6720
      %v6728 = vadd.f32 %v6698, %v6722
      %6729 = vset.pattern.permute.xlu0 12
      %6730 = vperm.xlu0 %6729, %v6345
      %v6731 = vpop.permute.xlu0 %6730
      %6733 = vset.pattern.permute.xlu0 12
      %6734 = vperm.xlu0 %6733, %v6346
      %v6735 = vpop.permute.xlu0 %6734
      %6737 = vset.pattern.permute.xlu0 12
      %6738 = vperm.xlu0 %6737, %v6347
      %v6739 = vpop.permute.xlu0 %6738
      %v6741 = vmul.f32 %v6731, %v6678
      %v6742 = vmul.f32 %v6735, %v6679
      %v6743 = vmul.f32 %v6739, %v6680
      %6747 = vrot.lane.b32.xlu0 %v6741, 126
      %v6748 = vpop.permute.xlu0 %6747
      %6749 = vrot.lane.b32.xlu0 %v6742, 126
      %v6750 = vpop.permute.xlu0 %6749
      %6751 = vrot.lane.b32.xlu0 %v6743, 126
      %v6752 = vpop.permute.xlu0 %6751
      %v6756 = vadd.f32 %v6726, %v6748
      %v6757 = vadd.f32 %v6727, %v6750
      %v6758 = vadd.f32 %v6728, %v6752
      %6759 = vset.pattern.permute.xlu0 13
      %6760 = vperm.xlu0 %6759, %v6345
      %v6761 = vpop.permute.xlu0 %6760
      %6763 = vset.pattern.permute.xlu0 13
      %6764 = vperm.xlu0 %6763, %v6346
      %v6765 = vpop.permute.xlu0 %6764
      %6767 = vset.pattern.permute.xlu0 13
      %6768 = vperm.xlu0 %6767, %v6347
      %v6769 = vpop.permute.xlu0 %6768
      %v6771 = vmul.f32 %v6761, %v6678
      %v6772 = vmul.f32 %v6765, %v6679
      %v6773 = vmul.f32 %v6769, %v6680
      %6777 = vrot.lane.b32.xlu0 %v6771, 125
      %v6778 = vpop.permute.xlu0 %6777
      %6779 = vrot.lane.b32.xlu0 %v6772, 125
      %v6780 = vpop.permute.xlu0 %6779
      %6781 = vrot.lane.b32.xlu0 %v6773, 125
      %v6782 = vpop.permute.xlu0 %6781
      %v6786 = vadd.f32 %v6756, %v6778
      %v6787 = vadd.f32 %v6757, %v6780
      %v6788 = vadd.f32 %v6758, %v6782
      %6789 = vset.pattern.permute.xlu0 14
      %6790 = vperm.xlu0 %6789, %v6345
      %v6791 = vpop.permute.xlu0 %6790
      %6793 = vset.pattern.permute.xlu0 14
      %6794 = vperm.xlu0 %6793, %v6346
      %v6795 = vpop.permute.xlu0 %6794
      %6797 = vset.pattern.permute.xlu0 14
      %6798 = vperm.xlu0 %6797, %v6347
      %v6799 = vpop.permute.xlu0 %6798
      %v6801 = vmul.f32 %v6791, %v6678
      %v6802 = vmul.f32 %v6795, %v6679
      %v6803 = vmul.f32 %v6799, %v6680
      %6807 = vrot.lane.b32.xlu0 %v6801, 124
      %v6808 = vpop.permute.xlu0 %6807
      %6809 = vrot.lane.b32.xlu0 %v6802, 124
      %v6810 = vpop.permute.xlu0 %6809
      %6811 = vrot.lane.b32.xlu0 %v6803, 124
      %v6812 = vpop.permute.xlu0 %6811
      %v6816 = vadd.f32 %v6786, %v6808
      %v6817 = vadd.f32 %v6787, %v6810
      %v6818 = vadd.f32 %v6788, %v6812
      %6819 = vrot.lane.b32.xlu0 %v6342, 112
      %v6820 = vpop.permute.xlu0 %6819
      %6821 = vrot.lane.b32.xlu0 %v6343, 112
      %v6822 = vpop.permute.xlu0 %6821
      %6823 = vrot.lane.b32.xlu0 %v6344, 112
      %v6824 = vpop.permute.xlu0 %6823
      %v6828 = vsel %vm6365, 0.0, %v6820
      %v6829 = vsel %vm6365, 0.0, %v6822
      %v6830 = vsel %vm6365, 0.0, %v6824
      %v6831 = vsel %vm4182, %v6828, 0.0
      %v6832 = vsel %vm4182, %v6829, 0.0
      %v6833 = vsel %vm4182, %v6830, 0.0
      %6834 = vset.pattern.permute.xlu0 15
      %6835 = vperm.xlu0 %6834, %v6345
      %v6836 = vpop.permute.xlu0 %6835
      %6838 = vset.pattern.permute.xlu0 15
      %6839 = vperm.xlu0 %6838, %v6346
      %v6840 = vpop.permute.xlu0 %6839
      %6842 = vset.pattern.permute.xlu0 15
      %6843 = vperm.xlu0 %6842, %v6347
      %v6844 = vpop.permute.xlu0 %6843
      %v6846 = vmul.f32 %v6836, %v6831
      %v6847 = vmul.f32 %v6840, %v6832
      %v6848 = vmul.f32 %v6844, %v6833
      %v6849 = vadd.f32 %v6816, %v6846
      %v6850 = vadd.f32 %v6817, %v6847
      %v6851 = vadd.f32 %v6818, %v6848
      %6852 = vset.pattern.permute.xlu0 16
      %6853 = vperm.xlu0 %6852, %v6345
      %v6854 = vpop.permute.xlu0 %6853
      %6856 = vset.pattern.permute.xlu0 16
      %6857 = vperm.xlu0 %6856, %v6346
      %v6858 = vpop.permute.xlu0 %6857
      %6860 = vset.pattern.permute.xlu0 16
      %6861 = vperm.xlu0 %6860, %v6347
      %v6862 = vpop.permute.xlu0 %6861
      %v6864 = vmul.f32 %v6854, %v6831
      %v6865 = vmul.f32 %v6858, %v6832
      %v6866 = vmul.f32 %v6862, %v6833
      %6870 = vrot.lane.b32.xlu0 %v6864, 127
      %v6871 = vpop.permute.xlu0 %6870
      %6872 = vrot.lane.b32.xlu0 %v6865, 127
      %v6873 = vpop.permute.xlu0 %6872
      %6874 = vrot.lane.b32.xlu0 %v6866, 127
      %v6875 = vpop.permute.xlu0 %6874
      %v6879 = vadd.f32 %v6849, %v6871
      %v6880 = vadd.f32 %v6850, %v6873
      %v6881 = vadd.f32 %v6851, %v6875
      %6882 = vset.pattern.permute.xlu0 17
      %6883 = vperm.xlu0 %6882, %v6345
      %v6884 = vpop.permute.xlu0 %6883
      %6886 = vset.pattern.permute.xlu0 17
      %6887 = vperm.xlu0 %6886, %v6346
      %v6888 = vpop.permute.xlu0 %6887
      %6890 = vset.pattern.permute.xlu0 17
      %6891 = vperm.xlu0 %6890, %v6347
      %v6892 = vpop.permute.xlu0 %6891
      %v6894 = vmul.f32 %v6884, %v6831
      %v6895 = vmul.f32 %v6888, %v6832
      %v6896 = vmul.f32 %v6892, %v6833
      %6900 = vrot.lane.b32.xlu0 %v6894, 126
      %v6901 = vpop.permute.xlu0 %6900
      %6902 = vrot.lane.b32.xlu0 %v6895, 126
      %v6903 = vpop.permute.xlu0 %6902
      %6904 = vrot.lane.b32.xlu0 %v6896, 126
      %v6905 = vpop.permute.xlu0 %6904
      %v6909 = vadd.f32 %v6879, %v6901
      %v6910 = vadd.f32 %v6880, %v6903
      %v6911 = vadd.f32 %v6881, %v6905
      %6912 = vset.pattern.permute.xlu0 18
      %6913 = vperm.xlu0 %6912, %v6345
      %v6914 = vpop.permute.xlu0 %6913
      %6916 = vset.pattern.permute.xlu0 18
      %6917 = vperm.xlu0 %6916, %v6346
      %v6918 = vpop.permute.xlu0 %6917
      %6920 = vset.pattern.permute.xlu0 18
      %6921 = vperm.xlu0 %6920, %v6347
      %v6922 = vpop.permute.xlu0 %6921
      %v6924 = vmul.f32 %v6914, %v6831
      %v6925 = vmul.f32 %v6918, %v6832
      %v6926 = vmul.f32 %v6922, %v6833
      %6930 = vrot.lane.b32.xlu0 %v6924, 125
      %v6931 = vpop.permute.xlu0 %6930
      %6932 = vrot.lane.b32.xlu0 %v6925, 125
      %v6933 = vpop.permute.xlu0 %6932
      %6934 = vrot.lane.b32.xlu0 %v6926, 125
      %v6935 = vpop.permute.xlu0 %6934
      %v6939 = vadd.f32 %v6909, %v6931
      %v6940 = vadd.f32 %v6910, %v6933
      %v6941 = vadd.f32 %v6911, %v6935
      %6942 = vset.pattern.permute.xlu0 19
      %6943 = vperm.xlu0 %6942, %v6345
      %v6944 = vpop.permute.xlu0 %6943
      %6946 = vset.pattern.permute.xlu0 19
      %6947 = vperm.xlu0 %6946, %v6346
      %v6948 = vpop.permute.xlu0 %6947
      %6950 = vset.pattern.permute.xlu0 19
      %6951 = vperm.xlu0 %6950, %v6347
      %v6952 = vpop.permute.xlu0 %6951
      %v6954 = vmul.f32 %v6944, %v6831
      %v6955 = vmul.f32 %v6948, %v6832
      %v6956 = vmul.f32 %v6952, %v6833
      %6960 = vrot.lane.b32.xlu0 %v6954, 124
      %v6961 = vpop.permute.xlu0 %6960
      %6962 = vrot.lane.b32.xlu0 %v6955, 124
      %v6963 = vpop.permute.xlu0 %6962
      %6964 = vrot.lane.b32.xlu0 %v6956, 124
      %v6965 = vpop.permute.xlu0 %6964
      %v6969 = vadd.f32 %v6939, %v6961
      %v6970 = vadd.f32 %v6940, %v6963
      %v6971 = vadd.f32 %v6941, %v6965
      %6972 = vrot.lane.b32.xlu0 %v6342, 106
      %v6973 = vpop.permute.xlu0 %6972
      %6974 = vrot.lane.b32.xlu0 %v6343, 106
      %v6975 = vpop.permute.xlu0 %6974
      %6976 = vrot.lane.b32.xlu0 %v6344, 106
      %v6977 = vpop.permute.xlu0 %6976
      %v6981 = vsel %vm6365, 0.0, %v6973
      %v6982 = vsel %vm6365, 0.0, %v6975
      %v6983 = vsel %vm6365, 0.0, %v6977
      %v6984 = vsel %vm4182, %v6981, 0.0
      %v6985 = vsel %vm4182, %v6982, 0.0
      %v6986 = vsel %vm4182, %v6983, 0.0
      %6987 = vset.pattern.permute.xlu0 20
      %6988 = vperm.xlu0 %6987, %v6345
      %v6989 = vpop.permute.xlu0 %6988
      %6991 = vset.pattern.permute.xlu0 20
      %6992 = vperm.xlu0 %6991, %v6346
      %v6993 = vpop.permute.xlu0 %6992
      %6995 = vset.pattern.permute.xlu0 20
      %6996 = vperm.xlu0 %6995, %v6347
      %v6997 = vpop.permute.xlu0 %6996
      %v6999 = vmul.f32 %v6989, %v6984
      %v7000 = vmul.f32 %v6993, %v6985
      %v7001 = vmul.f32 %v6997, %v6986
      %v7002 = vadd.f32 %v6969, %v6999
      %v7003 = vadd.f32 %v6970, %v7000
      %v7004 = vadd.f32 %v6971, %v7001
      %7005 = vset.pattern.permute.xlu0 21
      %7006 = vperm.xlu0 %7005, %v6345
      %v7007 = vpop.permute.xlu0 %7006
      %7009 = vset.pattern.permute.xlu0 21
      %7010 = vperm.xlu0 %7009, %v6346
      %v7011 = vpop.permute.xlu0 %7010
      %7013 = vset.pattern.permute.xlu0 21
      %7014 = vperm.xlu0 %7013, %v6347
      %v7015 = vpop.permute.xlu0 %7014
      %v7017 = vmul.f32 %v7007, %v6984
      %v7018 = vmul.f32 %v7011, %v6985
      %v7019 = vmul.f32 %v7015, %v6986
      %7023 = vrot.lane.b32.xlu0 %v7017, 127
      %v7024 = vpop.permute.xlu0 %7023
      %7025 = vrot.lane.b32.xlu0 %v7018, 127
      %v7026 = vpop.permute.xlu0 %7025
      %7027 = vrot.lane.b32.xlu0 %v7019, 127
      %v7028 = vpop.permute.xlu0 %7027
      %v7032 = vadd.f32 %v7002, %v7024
      %v7033 = vadd.f32 %v7003, %v7026
      %v7034 = vadd.f32 %v7004, %v7028
      %7035 = vset.pattern.permute.xlu0 22
      %7036 = vperm.xlu0 %7035, %v6345
      %v7037 = vpop.permute.xlu0 %7036
      %7039 = vset.pattern.permute.xlu0 22
      %7040 = vperm.xlu0 %7039, %v6346
      %v7041 = vpop.permute.xlu0 %7040
      %7043 = vset.pattern.permute.xlu0 22
      %7044 = vperm.xlu0 %7043, %v6347
      %v7045 = vpop.permute.xlu0 %7044
      %v7047 = vmul.f32 %v7037, %v6984
      %v7048 = vmul.f32 %v7041, %v6985
      %v7049 = vmul.f32 %v7045, %v6986
      %7053 = vrot.lane.b32.xlu0 %v7047, 126
      %v7054 = vpop.permute.xlu0 %7053
      %7055 = vrot.lane.b32.xlu0 %v7048, 126
      %v7056 = vpop.permute.xlu0 %7055
      %7057 = vrot.lane.b32.xlu0 %v7049, 126
      %v7058 = vpop.permute.xlu0 %7057
      %v7062 = vadd.f32 %v7032, %v7054
      %v7063 = vadd.f32 %v7033, %v7056
      %v7064 = vadd.f32 %v7034, %v7058
      %7065 = vset.pattern.permute.xlu0 23
      %7066 = vperm.xlu0 %7065, %v6345
      %v7067 = vpop.permute.xlu0 %7066
      %7069 = vset.pattern.permute.xlu0 23
      %7070 = vperm.xlu0 %7069, %v6346
      %v7071 = vpop.permute.xlu0 %7070
      %7073 = vset.pattern.permute.xlu0 23
      %7074 = vperm.xlu0 %7073, %v6347
      %v7075 = vpop.permute.xlu0 %7074
      %v7077 = vmul.f32 %v7067, %v6984
      %v7078 = vmul.f32 %v7071, %v6985
      %v7079 = vmul.f32 %v7075, %v6986
      %7083 = vrot.lane.b32.xlu0 %v7077, 125
      %v7084 = vpop.permute.xlu0 %7083
      %7085 = vrot.lane.b32.xlu0 %v7078, 125
      %v7086 = vpop.permute.xlu0 %7085
      %7087 = vrot.lane.b32.xlu0 %v7079, 125
      %v7088 = vpop.permute.xlu0 %7087
      %v7092 = vadd.f32 %v7062, %v7084
      %v7093 = vadd.f32 %v7063, %v7086
      %v7094 = vadd.f32 %v7064, %v7088
      %7095 = vset.pattern.permute.xlu0 24
      %7096 = vperm.xlu0 %7095, %v6345
      %v7097 = vpop.permute.xlu0 %7096
      %7099 = vset.pattern.permute.xlu0 24
      %7100 = vperm.xlu0 %7099, %v6346
      %v7101 = vpop.permute.xlu0 %7100
      %7103 = vset.pattern.permute.xlu0 24
      %7104 = vperm.xlu0 %7103, %v6347
      %v7105 = vpop.permute.xlu0 %7104
      %v7107 = vmul.f32 %v7097, %v6984
      %v7108 = vmul.f32 %v7101, %v6985
      %v7109 = vmul.f32 %v7105, %v6986
      %7113 = vrot.lane.b32.xlu0 %v7107, 124
      %v7114 = vpop.permute.xlu0 %7113
      %7115 = vrot.lane.b32.xlu0 %v7108, 124
      %v7116 = vpop.permute.xlu0 %7115
      %7117 = vrot.lane.b32.xlu0 %v7109, 124
      %v7118 = vpop.permute.xlu0 %7117
      %v7122 = vadd.f32 %v7092, %v7114
      %v7123 = vadd.f32 %v7093, %v7116
      %v7124 = vadd.f32 %v7094, %v7118
      %v7126 = vsel %vm6195, %v6348, 0
      %v7129 = vsel %vm6195, %v6349, 0
      %v7132 = vsel %vm6195, %v6350, 0
      %v7135 = vsel %vm6195, %v6351, 0
      %v7138 = vsel %vm4666, %v7124, 0
      %7140 = vmatprep.subr.mxu0 0.0
      %7141 = vmatpush1.msra.mxu0 0.0
      %7142 = vmatprep.subr.mxu0 0.0
      %7143 = vmatpush1.msra.mxu0 0.0
      %7144 = vmatprep.subr.mxu0 0.0
      %7145 = vmatpush1.msra.mxu0 0.0
      %7146 = vmatprep.subr.mxu0 0.0
      %7147 = vmatpush1.msra.mxu0 0.0
      %7148 = vmatprep.subr.mxu0 0.0
      %7149 = vmatpush1.msra.mxu0 0.0
      %7150 = vmatprep.subr.mxu0 0.0
      %7151 = vmatpush1.msra.mxu0 0.0
      %7152 = vmatprep.subr.mxu0 0.0
      %7153 = vmatpush1.msra.mxu0 0.0
      %7154 = vmatprep.subr.mxu0 0.0
      %7155 = vmatpush1.msra.mxu0 0.0
      %7156 = vmatprep.subr.mxu0 0.0
      %7157 = vmatpush1.msra.mxu0 0.0
      %7158 = vmatprep.subr.mxu0 0.0
      %7159 = vmatpush1.msra.mxu0 0.0
      %7160 = vmatprep.subr.mxu0 0.0
      %7161 = vmatpush1.msra.mxu0 0.0
      %7162 = vmatprep.subr.mxu0 0.0
      %7163 = vmatpush1.msra.mxu0 0.0
      %7164 = vmatprep.subr.mxu0 0.0
      %7165 = vmatpush1.msra.mxu0 0.0
      %7166 = vmatprep.subr.mxu0 0.0
      %7167 = vmatpush1.msra.mxu0 %v7138
      %7168 = vmatprep.subr.mxu0 0.0
      %7169 = vmatpush1.msra.mxu0 %v7123
      %7170 = vmatprep.subr.mxu0 0.0
      %7171 = vmatpush1.msra.mxu0 %v7122
      %7172 = vmatprep.subr.mxu0 0.0
      %7173 = vmatpush2.msra.mxu0 0.0
      %7174 = vmatprep.subr.mxu0 0.0
      %7175 = vmatpush2.msra.mxu0 0.0
      %7176 = vmatprep.subr.mxu0 0.0
      %7177 = vmatpush2.msra.mxu0 0.0
      %7178 = vmatprep.subr.mxu0 0.0
      %7179 = vmatpush2.msra.mxu0 0.0
      %7180 = vmatprep.subr.mxu0 0.0
      %7181 = vmatpush2.msra.mxu0 0.0
      %7182 = vmatprep.subr.mxu0 0.0
      %7183 = vmatpush2.msra.mxu0 0.0
      %7184 = vmatprep.subr.mxu0 0.0
      %7185 = vmatpush2.msra.mxu0 0.0
      %7186 = vmatprep.subr.mxu0 0.0
      %7187 = vmatpush2.msra.mxu0 0.0
      %7188 = vmatprep.subr.mxu0 0.0
      %7189 = vmatpush2.msra.mxu0 0.0
      %7190 = vmatprep.subr.mxu0 0.0
      %7191 = vmatpush2.msra.mxu0 0.0
      %7192 = vmatprep.subr.mxu0 0.0
      %7193 = vmatpush2.msra.mxu0 0.0
      %7194 = vmatprep.subr.mxu0 0.0
      %7195 = vmatpush2.msra.mxu0 0.0
      %7196 = vmatprep.subr.mxu0 0.0
      %7197 = vmatpush2.msra.mxu0 0.0
      %7198 = vmatprep.subr.mxu0 0.0
      %7199 = vmatpush2.msra.mxu0 0.0
      %7200 = vmatprep.subr.mxu0 0.0
      %7201 = vmatpush2.msra.mxu0 0.0
      %7202 = vmatprep.subr.mxu0 0.0
      %7203 = vmatpush2.msra.mxu0 0.0
      %7204 = vmatprep.mubr.f32.mxu0 0.0
      %7205 = vmatmul.mubr.f32.gmra.mxu0 %v7126
      %v7206 = vpop.f32.mrf.mxu0
      %v7207 = vadd.f32 0.0, %v7206
      %v7208 = vpop.f32.mrf.mxu0
      %7209 = vmatprep.mubr.f32.mxu0 0.0
      %7210 = vmatmul.mubr.f32.gmra.mxu0 %v7129
      %v7211 = vpop.f32.mrf.mxu0
      %v7212 = vadd.f32 0.0, %v7211
      %v7213 = vpop.f32.mrf.mxu0
      %7214 = vmatprep.mubr.f32.mxu0 0.0
      %7215 = vmatmul.mubr.f32.gmra.mxu0 %v7132
      %v7216 = vpop.f32.mrf.mxu0
      %v7217 = vadd.f32 0.0, %v7216
      %v7218 = vpop.f32.mrf.mxu0
      %7219 = vmatprep.mubr.f32.mxu0 0.0
      %7220 = vmatmul.mubr.f32.gmra.mxu0 %v7135
      %v7221 = vpop.f32.mrf.mxu0
      %v7222 = vadd.f32 0.0, %v7221
      %v7223 = vpop.f32.mrf.mxu0
      %7224 = vdwg.mxu0
      %v7225 = vmax.f32 %v7207, 0.0
      %v7226 = vmax.f32 %v7212, 0.0
      %v7227 = vmax.f32 %v7217, 0.0
      %v7228 = vmax.f32 %v7222, 0.0
      %v7229 = vsel %vm3854, %v7225, 0.0
      %7230 = vadd.xlane.f32.xlu0 %v7229
      %v7231 = vpop.xlane.xlu0 %7230
      %v7232 = vsel %vm3854, %v7226, 0.0
      %7233 = vadd.xlane.f32.xlu0 %v7232
      %v7234 = vpop.xlane.xlu0 %7233
      %v7235 = vsel %vm3854, %v7227, 0.0
      %7236 = vadd.xlane.f32.xlu0 %v7235
      %v7237 = vpop.xlane.xlu0 %7236
      %v7238 = vsel %vm3854, %v7228, 0.0
      %7239 = vadd.xlane.f32.xlu0 %v7238
      %v7240 = vpop.xlane.xlu0 %7239
      %v7241 = vrcp.pop 6.0
      %v7242 = vmul.f32 %v7231, %v7241
      %v7243 = vmul.f32 %v7234, %v7241
      %v7244 = vmul.f32 %v7237, %v7241
      %v7245 = vmul.f32 %v7240, %v7241
      %vm7246 = vcmask 261120
      %v7248 = vsel %vm7246, %v6352, 0
      %7250 = vmatprep.subr.mxu0 0.0
      %7251 = vmatpush1.msra.mxu0 0.0
      %7252 = vmatprep.subr.mxu0 0.0
      %7253 = vmatpush1.msra.mxu0 0.0
      %7254 = vmatprep.subr.mxu0 0.0
      %7255 = vmatpush1.msra.mxu0 0.0
      %7256 = vmatprep.subr.mxu0 0.0
      %7257 = vmatpush1.msra.mxu0 0.0
      %7258 = vmatprep.subr.mxu0 0.0
      %7259 = vmatpush1.msra.mxu0 0.0
      %7260 = vmatprep.subr.mxu0 0.0
      %7261 = vmatpush1.msra.mxu0 0.0
      %7262 = vmatprep.subr.mxu0 0.0
      %7263 = vmatpush1.msra.mxu0 0.0
      %7264 = vmatprep.subr.mxu0 0.0
      %7265 = vmatpush1.msra.mxu0 0.0
      %7266 = vmatprep.subr.mxu0 0.0
      %7267 = vmatpush1.msra.mxu0 0.0
      %7268 = vmatprep.subr.mxu0 0.0
      %7269 = vmatpush1.msra.mxu0 0.0
      %7270 = vmatprep.subr.mxu0 0.0
      %7271 = vmatpush1.msra.mxu0 0.0
      %7272 = vmatprep.subr.mxu0 0.0
      %7273 = vmatpush1.msra.mxu0 0.0
      %7274 = vmatprep.subr.mxu0 0.0
      %7275 = vmatpush1.msra.mxu0 %v7245
      %7276 = vmatprep.subr.mxu0 0.0
      %7277 = vmatpush1.msra.mxu0 %v7244
      %7278 = vmatprep.subr.mxu0 0.0
      %7279 = vmatpush1.msra.mxu0 %v7243
      %7280 = vmatprep.subr.mxu0 0.0
      %7281 = vmatpush1.msra.mxu0 %v7242
      %7282 = vmatprep.subr.mxu0 0.0
      %7283 = vmatpush2.msra.mxu0 0.0
      %7284 = vmatprep.subr.mxu0 0.0
      %7285 = vmatpush2.msra.mxu0 0.0
      %7286 = vmatprep.subr.mxu0 0.0
      %7287 = vmatpush2.msra.mxu0 0.0
      %7288 = vmatprep.subr.mxu0 0.0
      %7289 = vmatpush2.msra.mxu0 0.0
      %7290 = vmatprep.subr.mxu0 0.0
      %7291 = vmatpush2.msra.mxu0 0.0
      %7292 = vmatprep.subr.mxu0 0.0
      %7293 = vmatpush2.msra.mxu0 0.0
      %7294 = vmatprep.subr.mxu0 0.0
      %7295 = vmatpush2.msra.mxu0 0.0
      %7296 = vmatprep.subr.mxu0 0.0
      %7297 = vmatpush2.msra.mxu0 0.0
      %7298 = vmatprep.subr.mxu0 0.0
      %7299 = vmatpush2.msra.mxu0 0.0
      %7300 = vmatprep.subr.mxu0 0.0
      %7301 = vmatpush2.msra.mxu0 0.0
      %7302 = vmatprep.subr.mxu0 0.0
      %7303 = vmatpush2.msra.mxu0 0.0
      %7304 = vmatprep.subr.mxu0 0.0
      %7305 = vmatpush2.msra.mxu0 0.0
      %7306 = vmatprep.subr.mxu0 0.0
      %7307 = vmatpush2.msra.mxu0 0.0
      %7308 = vmatprep.subr.mxu0 0.0
      %7309 = vmatpush2.msra.mxu0 0.0
      %7310 = vmatprep.subr.mxu0 0.0
      %7311 = vmatpush2.msra.mxu0 0.0
      %7312 = vmatprep.subr.mxu0 0.0
      %7313 = vmatpush2.msra.mxu0 0.0
      %7314 = vmatprep.mubr.f32.mxu0 0.0
      %7315 = vmatmul.mubr.f32.gmra.mxu0 %v7248
      %v7316 = vpop.f32.mrf.mxu0
      %v7317 = vadd.f32 0.0, %v7316
      %v7318 = vpop.f32.mrf.mxu0
      %7319 = vdwg.mxu0
      %vm7320 = vcmask 1024
      %7321 = vst.msk [vmem:[%s624] sm:$0x3] %vm7320, %v7317
      %p7322 = scmp.lt.s32.totalorder %s31, 1
      %s7323 = scalar_select %p7322, %s31, 1
      %s7324 = smul.addr %s7323, 2
      %s7325 = scalar_lea.vmem %s20, %s7324
      // Predicated region
      $region101: #{_lambda_.1} parent=99 // pred_check
        %p7326 = pneg %p474
      $region102: #{_lambda_.1} parent=99 // pred_check_branch
        %7328 = sbr.rel (%p7326) target = $region104
      $region103: #{_lambda_.1} parent=99 // pred_region
        _
      $region104: #{_lambda_.1} parent=99 // pred_fallthru
        _
    $region100: #{_lambda_.1} parent=5 // pred_fallthru
      _
    %p7329 = scmp.le.s32.totalorder 2, %s26
    // Predicated region
    $region105: #{_lambda_.1} parent=5 // pred_check
      %p7330 = pneg %p7329
    $region106: #{_lambda_.1} parent=5 // pred_check_branch
      %7332 = sbr.rel (%p7330) target = $region108
    $region107: #{_lambda_.1} parent=5 // pred_region
      %s7333 = ssub.s32 %s26, 2
      // Predicated region
      $region109: #{_lambda_.1} parent=107 // pred_check
        %p7334 = pneg %p480
      $region110: #{_lambda_.1} parent=107 // pred_check_branch
        %7336 = sbr.rel (%p7334) target = $region112
      $region111: #{_lambda_.1} parent=107 // pred_region
        %p7337 = scmp.lt.s32.totalorder %s32, 1
        %s7338 = scalar_select %p7337, %s32, 1
        %s7339 = smul.addr %s7338, 2
        %s7340 = scalar_lea.vmem %s20, %s7339
      $region112: #{_lambda_.1} parent=107 // pred_fallthru
        _
    $region108: #{_lambda_.1} parent=5 // pred_fallthru
      _
  $region6: #{_lambda_.1} parent=0 // loop_footer
    %s30 = sadd.s32 1, %s26
  $region7: #{_lambda_.1} parent=0 // loop_footer_branch
    %25 = sbr.rel target = $region3
  $region8: #{_lambda_.1} parent=0 // loop_exit
    _

</llo_original>
